<compile_context>
chip_gen: v5e
topology: v5e:2x2
jax: 0.10.0
libtpu: 0.0.40
codegen_flags: <defaults>
</compile_context>

<pallas_src>
import functools

import jax
import jax.numpy as jnp
from jax.experimental import pallas as pl
from jax.experimental.pallas import tpu as pltpu


# ---------------------------------------------------------------------------
# Fused whole-network kernel (one grid step == one image)
# ---------------------------------------------------------------------------
def _fused_resnet_kernel(*refs, plan, H, W):
    """stem conv + all ResBlocks + avgpool + FC for one image, VMEM-resident."""
    refs = list(refs)
    o_ref = refs.pop(-1)            # (1, 8, nf_pad) f32 output block
    x_ref = refs.pop(0)             # (1, H+2, W+2, cin_pad) bf16, pre-haloed
    it = iter(refs)                 # weights / BN / FC refs in consumption order

    def halo(a):
        # Zero-pad H and W by one pixel on each side, entirely in VMEM.
        h, w, c = a.shape
        zrow = jnp.zeros((1, w, c), a.dtype)
        a = jnp.concatenate([zrow, a, zrow], axis=0)           # (h+2, w,   c)
        zcol = jnp.zeros((h + 2, 1, c), a.dtype)
        return jnp.concatenate([zcol, a, zcol], axis=1)        # (h+2, w+2, c)

    def conv3x3_bn(a_halo, w_ref, s_ref, b_ref, relu):
        # Taps folded into the contraction dim: a single
        # (H*W, 9C) @ (9C, Cout) MXU matmul; BN (+ReLU) fused in f32 epilogue.
        c = a_halo.shape[-1]
        slabs = [a_halo[dy:dy + H, dx:dx + W, :]
                 for dy in range(3) for dx in range(3)]
        patch = jnp.concatenate(slabs, axis=-1).reshape(H * W, 9 * c)
        acc = jnp.dot(patch, w_ref[...], preferred_element_type=jnp.float32)
        out = acc * s_ref[...] + b_ref[...]
        return jnp.maximum(out, 0.0) if relu else out          # (H*W, Cout) f32

    def conv1x1_bn(a2d, w_ref, s_ref, b_ref):
        acc = jnp.dot(a2d, w_ref[...], preferred_element_type=jnp.float32)
        return acc * s_ref[...] + b_ref[...]                   # (H*W, Cout) f32

    # --- stem: conv3x3 -> BN -> ReLU (input block arrives already haloed) ---
    w, s, b = next(it), next(it), next(it)
    a = conv3x3_bn(x_ref[0], w, s, b, relu=True)
    a = a.astype(jnp.bfloat16).reshape(H, W, a.shape[-1])

    # --- residual blocks: conv-bn-relu, conv-bn, koef*main + shortcut, relu ---
    for step in plan:
        w1, s1, b1 = next(it), next(it), next(it)
        w2, s2, b2 = next(it), next(it), next(it)
        h1 = conv3x3_bn(halo(a), w1, s1, b1, relu=True)
        h1 = h1.astype(jnp.bfloat16).reshape(H, W, h1.shape[-1])
        main = conv3x3_bn(halo(h1), w2, s2, b2, relu=False)
        a2d = a.reshape(H * W, a.shape[-1])
        if step["has_sc"]:
            ws, ss, bs = next(it), next(it), next(it)
            sc = conv1x1_bn(a2d, ws, ss, bs)
        else:
            sc = a2d.astype(jnp.float32)
        out = jnp.maximum(step["koef"] * main + sc, 0.0)
        a = out.astype(jnp.bfloat16).reshape(H, W, out.shape[-1])

    # --- head: AdaptiveAvgPool2d((1,1)) + Flatten + Linear (f32) ---
    fcw, fcb = next(it), next(it)
    pooled = jnp.mean(a.reshape(H * W, a.shape[-1]).astype(jnp.float32),
                      axis=0, keepdims=True)                   # (1, C)
    logits = (jnp.dot(pooled, fcw[...],
                      preferred_element_type=jnp.float32) + fcb[...])
    o_ref[0] = jnp.broadcast_to(logits, (8, logits.shape[-1]))


# ---------------------------------------------------------------------------
# pallas_call wrapper
# ---------------------------------------------------------------------------
def resnet_forward(params, x_nchw):
    """Full forward pass in a single pallas_call (grid over batch)."""
    B, cin, H, W = x_nchw.shape
    cin_pad = params["cin_pad"]
    flat = params["flat"]
    plan = params["plan"]
    num_classes = params["num_classes"]
    nf_pad = flat[-1].shape[-1]

    # NCHW -> NHWC, channel-pack to the stem width, 1-pixel halo added once.
    x = jnp.transpose(x_nchw, (0, 2, 3, 1))
    x = jnp.pad(x, ((0, 0), (1, 1), (1, 1), (0, cin_pad - cin)))
    x = x.astype(jnp.bfloat16)

    weight_map = lambda b: (0, 0)
    in_specs = [pl.BlockSpec((1, H + 2, W + 2, cin_pad),
                             lambda b: (b, 0, 0, 0))]
    in_specs += [pl.BlockSpec(arr.shape, weight_map) for arr in flat]

    # Advisory cost estimate.
    flops = 0
    for arr in flat[:-2]:
        if arr.ndim == 2 and arr.shape[0] > 1:                 # conv weight (K, N)
            flops += 2 * H * W * int(arr.shape[0]) * int(arr.shape[1])
    flops += 2 * int(flat[-2].shape[0]) * int(flat[-2].shape[1])   # FC
    flops *= B
    bytes_accessed = (int(x.size) * 2
                      + sum(int(a.size) * a.dtype.itemsize for a in flat)
                      + B * 8 * nf_pad * 4)

    out = pl.pallas_call(
        functools.partial(_fused_resnet_kernel, plan=plan, H=H, W=W),
        out_shape=jax.ShapeDtypeStruct((B, 8, nf_pad), jnp.float32),
        grid=(B,),
        in_specs=in_specs,
        out_specs=pl.BlockSpec((1, 8, nf_pad), lambda b: (b, 0, 0)),
        compiler_params=pltpu.CompilerParams(
            dimension_semantics=("parallel",),
            vmem_limit_bytes=32 * 1024 * 1024),
        cost_estimate=pl.CostEstimate(flops=int(flops), transcendentals=0,
                                      bytes_accessed=int(bytes_accessed)),
    )(x, *flat)
    return out[:, 0, :num_classes]


# ---------------------------------------------------------------------------
# Deterministic parameter construction (tap-folded, bf16-packed)
# ---------------------------------------------------------------------------
def _init_conv(key, kh, kw, cin, cout):
    fan_in = kh * kw * cin
    return (jax.random.normal(key, (kh, kw, cin, cout), jnp.float32)
            / jnp.sqrt(float(fan_in)))


def _init_bn(key, c):
    k1, k2 = jax.random.split(key)
    gamma = 1.0 + 0.1 * jax.random.normal(k1, (c,), jnp.float32)
    beta = 0.1 * jax.random.normal(k2, (c,), jnp.float32)
    mean = jnp.zeros((c,), jnp.float32)        # inference-mode running stats
    var = jnp.ones((c,), jnp.float32)
    return gamma, beta, mean, var


def _fold_bn(gamma, beta, mean, var, eps=1e-5):
    # General inference fold: y = scale * conv(x) + shift.
    scale = gamma / jnp.sqrt(var + eps)
    shift = beta - scale * mean
    return [scale.reshape(1, -1).astype(jnp.float32),
            shift.reshape(1, -1).astype(jnp.float32)]


def _pack_conv3x3(w_hwio, cin_pack):
    # (3, 3, cin, cout) -> (9*cin_pack, cout) bf16 with the 9 taps folded into
    # the contraction dim; row index = (dy*3 + dx)*cin_pack + c, matching the
    # kernel's patch-concat order.
    kh, kw, ci, co = w_hwio.shape
    wp = jnp.zeros((kh, kw, cin_pack, co), jnp.float32)
    wp = wp.at[:, :, :ci, :].set(w_hwio)
    return wp.reshape(kh * kw * cin_pack, co).astype(jnp.bfloat16)


def build_params(key, channels, num_blocks, strides, koef, num_classes, cin=3):
    if strides is None:
        strides = [1] * len(num_blocks)
    if koef is None:
        koef = [1.0] * len(num_blocks)
    if any(s != 1 for s in strides):
        # TODO(synk): stride != 1 needs in-kernel output-row subsampling.
        raise NotImplementedError("stride != 1 not supported by fused kernel")

    cin_pad = 8          # stem input lane packing (3 real channels + zero pad)
    flat, plan = [], []

    # stem: conv3x3(cin -> channels[0]) + BN
    key, k = jax.random.split(key)
    flat.append(_pack_conv3x3(_init_conv(k, 3, 3, cin, channels[0]), cin_pad))
    key, k = jax.random.split(key)
    flat.extend(_fold_bn(*_init_bn(k, channels[0])))

    # residual stages (mirrors ResTruck._make_layers block wiring)
    for i in range(len(num_blocks)):
        for j in range(num_blocks[i]):
            if j != num_blocks[i] - 1:
                c_in, c_out = channels[i], channels[i]
                stride = strides[i] if j == 0 else 1
            elif i != len(num_blocks) - 1:
                c_in, c_out = channels[i], channels[i + 1]
                stride = 1
            else:
                c_in, c_out = channels[i], channels[i]
                stride = 1
            has_sc = (stride != 1) or (c_in != c_out)

            key, k = jax.random.split(key)
            flat.append(_pack_conv3x3(_init_conv(k, 3, 3, c_in, c_out), c_in))
            key, k = jax.random.split(key)
            flat.extend(_fold_bn(*_init_bn(k, c_out)))
            key, k = jax.random.split(key)
            flat.append(_pack_conv3x3(_init_conv(k, 3, 3, c_out, c_out), c_out))
            key, k = jax.random.split(key)
            flat.extend(_fold_bn(*_init_bn(k, c_out)))
            if has_sc:
                key, k = jax.random.split(key)
                w1x1 = _init_conv(k, 1, 1, c_in, c_out).reshape(c_in, c_out)
                flat.append(w1x1.astype(jnp.bfloat16))
                key, k = jax.random.split(key)
                flat.extend(_fold_bn(*_init_bn(k, c_out)))
            plan.append({"has_sc": has_sc, "koef": float(koef[i])})

    # head: Linear(channels[-1] -> num_classes), classes padded to 128 lanes
    nf_pad = max(128, ((num_classes + 127) // 128) * 128)
    key, k = jax.random.split(key)
    fc_w = (jax.random.normal(k, (channels[-1], num_classes), jnp.float32)
            / jnp.sqrt(float(channels[-1])))
    key, k = jax.random.split(key)
    fc_b = 0.1 * jax.random.normal(k, (num_classes,), jnp.float32)
    flat.append(jnp.zeros((channels[-1], nf_pad), jnp.float32)
                .at[:, :num_classes].set(fc_w))
    flat.append(jnp.zeros((1, nf_pad), jnp.float32)
                .at[0, :num_classes].set(fc_b))

    return {"flat": flat, "plan": plan, "cin_pad": cin_pad,
            "num_classes": num_classes}


# ---------------------------------------------------------------------------
# Pure-JAX reference (lax.conv) mirroring the kernel's numerics
# ---------------------------------------------------------------------------
def reference_forward(params, x_nchw):
    flat = params["flat"]
    plan = params["plan"]
    num_classes = params["num_classes"]
    it = iter(flat)

    def conv_bn(a, w_packed, s, b, relu, ksize):
        cin, cout = a.shape[-1], w_packed.shape[-1]
        w = w_packed.reshape(ksize, ksize,
                             w_packed.shape[0] // (ksize * ksize), cout)
        w = w[:, :, :cin, :]
        out = jax.lax.conv_general_dilated(
            a.astype(jnp.bfloat16), w.astype(jnp.bfloat16),
            window_strides=(1, 1),
            padding="SAME" if ksize == 3 else "VALID",
            dimension_numbers=("NHWC", "HWIO", "NHWC"),
            preferred_element_type=jnp.float32)
        out = out * s.reshape(1, 1, 1, -1) + b.reshape(1, 1, 1, -1)
        return jnp.maximum(out, 0.0) if relu else out

    x = jnp.transpose(x_nchw, (0, 2, 3, 1)).astype(jnp.bfloat16)
    w, s, b = next(it), next(it), next(it)
    a = conv_bn(x, w, s, b, True, 3).astype(jnp.bfloat16)
    for step in plan:
        w1, s1, b1 = next(it), next(it), next(it)
        w2, s2, b2 = next(it), next(it), next(it)
        h = conv_bn(a, w1, s1, b1, True, 3).astype(jnp.bfloat16)
        main = conv_bn(h, w2, s2, b2, False, 3)
        if step["has_sc"]:
            ws, ss, bs = next(it), next(it), next(it)
            sc = conv_bn(a, ws, ss, bs, False, 1)
        else:
            sc = a.astype(jnp.float32)
        a = jnp.maximum(step["koef"] * main + sc, 0.0).astype(jnp.bfloat16)
    fcw, fcb = next(it), next(it)
    pooled = jnp.mean(a.astype(jnp.float32), axis=(1, 2))          # (B, C)
    logits = jnp.dot(pooled, fcw,
                     precision=jax.lax.Precision.HIGHEST) + fcb
    return logits[:, :num_classes]


if __name__ == "__main__":
    # Small synthetic config: Resnet_construct(block=ResBlockV1,
    #   strides=[1,1], num_blocks=[2,2], channels=[8,16], koef=[1,1],
    #   num_classes=10)
    channels = [8, 16]
    num_blocks = [2, 2]
    strides = [1, 1]
    koef = [1.0, 1.0]
    num_classes = 10

    key = jax.random.PRNGKey(0)
    key, pkey, xkey = jax.random.split(key, 3)
    params = build_params(pkey, channels, num_blocks, strides, koef,
                          num_classes)

    x = jax.random.normal(xkey, (2, 3, 16, 16), jnp.float32)   # NCHW like torch

    fwd = jax.jit(lambda inp: resnet_forward(params, inp))
    out = jax.block_until_ready(fwd(x))
    assert out.shape == (2, num_classes), out.shape

    ref = jax.block_until_ready(
        jax.jit(lambda inp: reference_forward(params, inp))(x))
    err = float(jnp.max(jnp.abs(out - ref)))
    assert err < 3e-2, f"mismatch vs pure-JAX reference: max abs err = {err}"

    print("KERNEL_OK")
</pallas_src>

<mosaic_0001>
module attributes {stable_mosaic.version = 11 : i64} {
  func.func @_fused_resnet_kernel(%arg0: i32, %arg1: memref<1x18x18x8xbf16, #tpu.memory_space<vmem>>, %arg2: memref<72x8xbf16, #tpu.memory_space<vmem>>, %arg3: memref<1x8xf32, #tpu.memory_space<vmem>>, %arg4: memref<1x8xf32, #tpu.memory_space<vmem>>, %arg5: memref<72x8xbf16, #tpu.memory_space<vmem>>, %arg6: memref<1x8xf32, #tpu.memory_space<vmem>>, %arg7: memref<1x8xf32, #tpu.memory_space<vmem>>, %arg8: memref<72x8xbf16, #tpu.memory_space<vmem>>, %arg9: memref<1x8xf32, #tpu.memory_space<vmem>>, %arg10: memref<1x8xf32, #tpu.memory_space<vmem>>, %arg11: memref<72x16xbf16, #tpu.memory_space<vmem>>, %arg12: memref<1x16xf32, #tpu.memory_space<vmem>>, %arg13: memref<1x16xf32, #tpu.memory_space<vmem>>, %arg14: memref<144x16xbf16, #tpu.memory_space<vmem>>, %arg15: memref<1x16xf32, #tpu.memory_space<vmem>>, %arg16: memref<1x16xf32, #tpu.memory_space<vmem>>, %arg17: memref<8x16xbf16, #tpu.memory_space<vmem>>, %arg18: memref<1x16xf32, #tpu.memory_space<vmem>>, %arg19: memref<1x16xf32, #tpu.memory_space<vmem>>, %arg20: memref<144x16xbf16, #tpu.memory_space<vmem>>, %arg21: memref<1x16xf32, #tpu.memory_space<vmem>>, %arg22: memref<1x16xf32, #tpu.memory_space<vmem>>, %arg23: memref<144x16xbf16, #tpu.memory_space<vmem>>, %arg24: memref<1x16xf32, #tpu.memory_space<vmem>>, %arg25: memref<1x16xf32, #tpu.memory_space<vmem>>, %arg26: memref<144x16xbf16, #tpu.memory_space<vmem>>, %arg27: memref<1x16xf32, #tpu.memory_space<vmem>>, %arg28: memref<1x16xf32, #tpu.memory_space<vmem>>, %arg29: memref<144x16xbf16, #tpu.memory_space<vmem>>, %arg30: memref<1x16xf32, #tpu.memory_space<vmem>>, %arg31: memref<1x16xf32, #tpu.memory_space<vmem>>, %arg32: memref<16x128xf32, #tpu.memory_space<vmem>>, %arg33: memref<1x128xf32, #tpu.memory_space<vmem>>, %arg34: memref<1x8x128xf32, #tpu.memory_space<vmem>>) attributes {dimension_semantics = [#tpu.dimension_semantics<parallel>], iteration_bounds = array<i64: 2>, scalar_prefetch = 0 : i64, scratch_operands = 0 : i64, tpu.core_type = #tpu.core_type<tc>, window_params = [{transform_indices = @transform_0, window_bounds = array<i64: 1, 18, 18, 8>}, {pipeline_mode = #tpu.pipeline_mode<synchronous>, transform_indices = @transform_1, window_bounds = array<i64: 72, 8>}, {pipeline_mode = #tpu.pipeline_mode<synchronous>, transform_indices = @transform_2, window_bounds = array<i64: 1, 8>}, {pipeline_mode = #tpu.pipeline_mode<synchronous>, transform_indices = @transform_3, window_bounds = array<i64: 1, 8>}, {pipeline_mode = #tpu.pipeline_mode<synchronous>, transform_indices = @transform_4, window_bounds = array<i64: 72, 8>}, {pipeline_mode = #tpu.pipeline_mode<synchronous>, transform_indices = @transform_5, window_bounds = array<i64: 1, 8>}, {pipeline_mode = #tpu.pipeline_mode<synchronous>, transform_indices = @transform_6, window_bounds = array<i64: 1, 8>}, {pipeline_mode = #tpu.pipeline_mode<synchronous>, transform_indices = @transform_7, window_bounds = array<i64: 72, 8>}, {pipeline_mode = #tpu.pipeline_mode<synchronous>, transform_indices = @transform_8, window_bounds = array<i64: 1, 8>}, {pipeline_mode = #tpu.pipeline_mode<synchronous>, transform_indices = @transform_9, window_bounds = array<i64: 1, 8>}, {pipeline_mode = #tpu.pipeline_mode<synchronous>, transform_indices = @transform_10, window_bounds = array<i64: 72, 16>}, {pipeline_mode = #tpu.pipeline_mode<synchronous>, transform_indices = @transform_11, window_bounds = array<i64: 1, 16>}, {pipeline_mode = #tpu.pipeline_mode<synchronous>, transform_indices = @transform_12, window_bounds = array<i64: 1, 16>}, {pipeline_mode = #tpu.pipeline_mode<synchronous>, transform_indices = @transform_13, window_bounds = array<i64: 144, 16>}, {pipeline_mode = #tpu.pipeline_mode<synchronous>, transform_indices = @transform_14, window_bounds = array<i64: 1, 16>}, {pipeline_mode = #tpu.pipeline_mode<synchronous>, transform_indices = @transform_15, window_bounds = array<i64: 1, 16>}, {pipeline_mode = #tpu.pipeline_mode<synchronous>, transform_indices = @transform_16, window_bounds = array<i64: 8, 16>}, {pipeline_mode = #tpu.pipeline_mode<synchronous>, transform_indices = @transform_17, window_bounds = array<i64: 1, 16>}, {pipeline_mode = #tpu.pipeline_mode<synchronous>, transform_indices = @transform_18, window_bounds = array<i64: 1, 16>}, {pipeline_mode = #tpu.pipeline_mode<synchronous>, transform_indices = @transform_19, window_bounds = array<i64: 144, 16>}, {pipeline_mode = #tpu.pipeline_mode<synchronous>, transform_indices = @transform_20, window_bounds = array<i64: 1, 16>}, {pipeline_mode = #tpu.pipeline_mode<synchronous>, transform_indices = @transform_21, window_bounds = array<i64: 1, 16>}, {pipeline_mode = #tpu.pipeline_mode<synchronous>, transform_indices = @transform_22, window_bounds = array<i64: 144, 16>}, {pipeline_mode = #tpu.pipeline_mode<synchronous>, transform_indices = @transform_23, window_bounds = array<i64: 1, 16>}, {pipeline_mode = #tpu.pipeline_mode<synchronous>, transform_indices = @transform_24, window_bounds = array<i64: 1, 16>}, {pipeline_mode = #tpu.pipeline_mode<synchronous>, transform_indices = @transform_25, window_bounds = array<i64: 144, 16>}, {pipeline_mode = #tpu.pipeline_mode<synchronous>, transform_indices = @transform_26, window_bounds = array<i64: 1, 16>}, {pipeline_mode = #tpu.pipeline_mode<synchronous>, transform_indices = @transform_27, window_bounds = array<i64: 1, 16>}, {pipeline_mode = #tpu.pipeline_mode<synchronous>, transform_indices = @transform_28, window_bounds = array<i64: 144, 16>}, {pipeline_mode = #tpu.pipeline_mode<synchronous>, transform_indices = @transform_29, window_bounds = array<i64: 1, 16>}, {pipeline_mode = #tpu.pipeline_mode<synchronous>, transform_indices = @transform_30, window_bounds = array<i64: 1, 16>}, {pipeline_mode = #tpu.pipeline_mode<synchronous>, transform_indices = @transform_31, window_bounds = array<i64: 16, 128>}, {pipeline_mode = #tpu.pipeline_mode<synchronous>, transform_indices = @transform_32, window_bounds = array<i64: 1, 128>}, {transform_indices = @transform_33, window_bounds = array<i64: 1, 8, 128>}]} {
    %c0 = arith.constant 0 : index
    %c0_0 = arith.constant 0 : index
    %c0_1 = arith.constant 0 : index
    %c0_2 = arith.constant 0 : index
    %0 = vector.load %arg1[%c0, %c0_0, %c0_1, %c0_2] : memref<1x18x18x8xbf16, #tpu.memory_space<vmem>>, vector<1x18x18x8xbf16>
    %1 = vector.shape_cast %0 : vector<1x18x18x8xbf16> to vector<18x18x8xbf16>
    %2 = vector.extract_strided_slice %1 {offsets = [0, 0, 0], sizes = [16, 16, 8], strides = [1, 1, 1]} : vector<18x18x8xbf16> to vector<16x16x8xbf16>
    %3 = vector.extract_strided_slice %1 {offsets = [0, 1, 0], sizes = [16, 16, 8], strides = [1, 1, 1]} : vector<18x18x8xbf16> to vector<16x16x8xbf16>
    %4 = vector.extract_strided_slice %1 {offsets = [0, 2, 0], sizes = [16, 16, 8], strides = [1, 1, 1]} : vector<18x18x8xbf16> to vector<16x16x8xbf16>
    %5 = vector.extract_strided_slice %1 {offsets = [1, 0, 0], sizes = [16, 16, 8], strides = [1, 1, 1]} : vector<18x18x8xbf16> to vector<16x16x8xbf16>
    %6 = vector.extract_strided_slice %1 {offsets = [1, 1, 0], sizes = [16, 16, 8], strides = [1, 1, 1]} : vector<18x18x8xbf16> to vector<16x16x8xbf16>
    %7 = vector.extract_strided_slice %1 {offsets = [1, 2, 0], sizes = [16, 16, 8], strides = [1, 1, 1]} : vector<18x18x8xbf16> to vector<16x16x8xbf16>
    %8 = vector.extract_strided_slice %1 {offsets = [2, 0, 0], sizes = [16, 16, 8], strides = [1, 1, 1]} : vector<18x18x8xbf16> to vector<16x16x8xbf16>
    %9 = vector.extract_strided_slice %1 {offsets = [2, 1, 0], sizes = [16, 16, 8], strides = [1, 1, 1]} : vector<18x18x8xbf16> to vector<16x16x8xbf16>
    %10 = vector.extract_strided_slice %1 {offsets = [2, 2, 0], sizes = [16, 16, 8], strides = [1, 1, 1]} : vector<18x18x8xbf16> to vector<16x16x8xbf16>
    %11 = tpu.concatenate %2, %3, %4, %5, %6, %7, %8, %9, %10 in 2 : vector<16x16x8xbf16>, vector<16x16x8xbf16>, vector<16x16x8xbf16>, vector<16x16x8xbf16>, vector<16x16x8xbf16>, vector<16x16x8xbf16>, vector<16x16x8xbf16>, vector<16x16x8xbf16>, vector<16x16x8xbf16> -> vector<16x16x72xbf16>
    %12 = vector.shape_cast %11 : vector<16x16x72xbf16> to vector<256x72xbf16>
    %c0_3 = arith.constant 0 : index
    %c0_4 = arith.constant 0 : index
    %13 = vector.load %arg2[%c0_3, %c0_4] : memref<72x8xbf16, #tpu.memory_space<vmem>>, vector<72x8xbf16>
    %cst = arith.constant dense<0.000000e+00> : vector<256x8xf32>
    %14 = tpu.matmul %12, %13, %cst {dimension_numbers = #tpu.dot_dimension_numbers<[1], [0], [0], [1], [0, 0, 1, 1], [], []>} : vector<256x72xbf16>, vector<72x8xbf16>, vector<256x8xf32> -> vector<256x8xf32>
    %c0_5 = arith.constant 0 : index
    %c0_6 = arith.constant 0 : index
    %15 = vector.load %arg3[%c0_5, %c0_6] : memref<1x8xf32, #tpu.memory_space<vmem>>, vector<1x8xf32>
    %16 = vector.broadcast %15 : vector<1x8xf32> to vector<256x8xf32>
    %17 = arith.mulf %14, %16 : vector<256x8xf32>
    %c0_7 = arith.constant 0 : index
    %c0_8 = arith.constant 0 : index
    %18 = vector.load %arg4[%c0_7, %c0_8] : memref<1x8xf32, #tpu.memory_space<vmem>>, vector<1x8xf32>
    %19 = vector.broadcast %18 : vector<1x8xf32> to vector<256x8xf32>
    %20 = arith.addf %17, %19 : vector<256x8xf32>
    %cst_9 = arith.constant 0.000000e+00 : f32
    %21 = vector.broadcast %cst_9 : f32 to vector<256x8xf32>
    %22 = arith.maximumf %20, %21 : vector<256x8xf32>
    %23 = arith.truncf %22 : vector<256x8xf32> to vector<256x8xbf16>
    %24 = vector.shape_cast %23 : vector<256x8xbf16> to vector<16x16x8xbf16>
    %cst_10 = arith.constant 0.000000e+00 : bf16
    %25 = vector.broadcast %cst_10 : bf16 to vector<1x16x8xbf16>
    %26 = tpu.concatenate %25, %24, %25 in 0 : vector<1x16x8xbf16>, vector<16x16x8xbf16>, vector<1x16x8xbf16> -> vector<18x16x8xbf16>
    %cst_11 = arith.constant 0.000000e+00 : bf16
    %27 = vector.broadcast %cst_11 : bf16 to vector<18x1x8xbf16>
    %28 = tpu.concatenate %27, %26, %27 in 1 : vector<18x1x8xbf16>, vector<18x16x8xbf16>, vector<18x1x8xbf16> -> vector<18x18x8xbf16>
    %29 = vector.extract_strided_slice %28 {offsets = [0, 0, 0], sizes = [16, 16, 8], strides = [1, 1, 1]} : vector<18x18x8xbf16> to vector<16x16x8xbf16>
    %30 = vector.extract_strided_slice %28 {offsets = [0, 1, 0], sizes = [16, 16, 8], strides = [1, 1, 1]} : vector<18x18x8xbf16> to vector<16x16x8xbf16>
    %31 = vector.extract_strided_slice %28 {offsets = [0, 2, 0], sizes = [16, 16, 8], strides = [1, 1, 1]} : vector<18x18x8xbf16> to vector<16x16x8xbf16>
    %32 = vector.extract_strided_slice %28 {offsets = [1, 0, 0], sizes = [16, 16, 8], strides = [1, 1, 1]} : vector<18x18x8xbf16> to vector<16x16x8xbf16>
    %33 = vector.extract_strided_slice %28 {offsets = [1, 1, 0], sizes = [16, 16, 8], strides = [1, 1, 1]} : vector<18x18x8xbf16> to vector<16x16x8xbf16>
    %34 = vector.extract_strided_slice %28 {offsets = [1, 2, 0], sizes = [16, 16, 8], strides = [1, 1, 1]} : vector<18x18x8xbf16> to vector<16x16x8xbf16>
    %35 = vector.extract_strided_slice %28 {offsets = [2, 0, 0], sizes = [16, 16, 8], strides = [1, 1, 1]} : vector<18x18x8xbf16> to vector<16x16x8xbf16>
    %36 = vector.extract_strided_slice %28 {offsets = [2, 1, 0], sizes = [16, 16, 8], strides = [1, 1, 1]} : vector<18x18x8xbf16> to vector<16x16x8xbf16>
    %37 = vector.extract_strided_slice %28 {offsets = [2, 2, 0], sizes = [16, 16, 8], strides = [1, 1, 1]} : vector<18x18x8xbf16> to vector<16x16x8xbf16>
    %38 = tpu.concatenate %29, %30, %31, %32, %33, %34, %35, %36, %37 in 2 : vector<16x16x8xbf16>, vector<16x16x8xbf16>, vector<16x16x8xbf16>, vector<16x16x8xbf16>, vector<16x16x8xbf16>, vector<16x16x8xbf16>, vector<16x16x8xbf16>, vector<16x16x8xbf16>, vector<16x16x8xbf16> -> vector<16x16x72xbf16>
    %39 = vector.shape_cast %38 : vector<16x16x72xbf16> to vector<256x72xbf16>
    %c0_12 = arith.constant 0 : index
    %c0_13 = arith.constant 0 : index
    %40 = vector.load %arg5[%c0_12, %c0_13] : memref<72x8xbf16, #tpu.memory_space<vmem>>, vector<72x8xbf16>
    %cst_14 = arith.constant dense<0.000000e+00> : vector<256x8xf32>
    %41 = tpu.matmul %39, %40, %cst_14 {dimension_numbers = #tpu.dot_dimension_numbers<[1], [0], [0], [1], [0, 0, 1, 1], [], []>} : vector<256x72xbf16>, vector<72x8xbf16>, vector<256x8xf32> -> vector<256x8xf32>
    %c0_15 = arith.constant 0 : index
    %c0_16 = arith.constant 0 : index
    %42 = vector.load %arg6[%c0_15, %c0_16] : memref<1x8xf32, #tpu.memory_space<vmem>>, vector<1x8xf32>
    %43 = vector.broadcast %42 : vector<1x8xf32> to vector<256x8xf32>
    %44 = arith.mulf %41, %43 : vector<256x8xf32>
    %c0_17 = arith.constant 0 : index
    %c0_18 = arith.constant 0 : index
    %45 = vector.load %arg7[%c0_17, %c0_18] : memref<1x8xf32, #tpu.memory_space<vmem>>, vector<1x8xf32>
    %46 = vector.broadcast %45 : vector<1x8xf32> to vector<256x8xf32>
    %47 = arith.addf %44, %46 : vector<256x8xf32>
    %cst_19 = arith.constant 0.000000e+00 : f32
    %48 = vector.broadcast %cst_19 : f32 to vector<256x8xf32>
    %49 = arith.maximumf %47, %48 : vector<256x8xf32>
    %50 = arith.truncf %49 : vector<256x8xf32> to vector<256x8xbf16>
    %51 = vector.shape_cast %50 : vector<256x8xbf16> to vector<16x16x8xbf16>
    %cst_20 = arith.constant 0.000000e+00 : bf16
    %52 = vector.broadcast %cst_20 : bf16 to vector<1x16x8xbf16>
    %53 = tpu.concatenate %52, %51, %52 in 0 : vector<1x16x8xbf16>, vector<16x16x8xbf16>, vector<1x16x8xbf16> -> vector<18x16x8xbf16>
    %cst_21 = arith.constant 0.000000e+00 : bf16
    %54 = vector.broadcast %cst_21 : bf16 to vector<18x1x8xbf16>
    %55 = tpu.concatenate %54, %53, %54 in 1 : vector<18x1x8xbf16>, vector<18x16x8xbf16>, vector<18x1x8xbf16> -> vector<18x18x8xbf16>
    %56 = vector.extract_strided_slice %55 {offsets = [0, 0, 0], sizes = [16, 16, 8], strides = [1, 1, 1]} : vector<18x18x8xbf16> to vector<16x16x8xbf16>
    %57 = vector.extract_strided_slice %55 {offsets = [0, 1, 0], sizes = [16, 16, 8], strides = [1, 1, 1]} : vector<18x18x8xbf16> to vector<16x16x8xbf16>
    %58 = vector.extract_strided_slice %55 {offsets = [0, 2, 0], sizes = [16, 16, 8], strides = [1, 1, 1]} : vector<18x18x8xbf16> to vector<16x16x8xbf16>
    %59 = vector.extract_strided_slice %55 {offsets = [1, 0, 0], sizes = [16, 16, 8], strides = [1, 1, 1]} : vector<18x18x8xbf16> to vector<16x16x8xbf16>
    %60 = vector.extract_strided_slice %55 {offsets = [1, 1, 0], sizes = [16, 16, 8], strides = [1, 1, 1]} : vector<18x18x8xbf16> to vector<16x16x8xbf16>
    %61 = vector.extract_strided_slice %55 {offsets = [1, 2, 0], sizes = [16, 16, 8], strides = [1, 1, 1]} : vector<18x18x8xbf16> to vector<16x16x8xbf16>
    %62 = vector.extract_strided_slice %55 {offsets = [2, 0, 0], sizes = [16, 16, 8], strides = [1, 1, 1]} : vector<18x18x8xbf16> to vector<16x16x8xbf16>
    %63 = vector.extract_strided_slice %55 {offsets = [2, 1, 0], sizes = [16, 16, 8], strides = [1, 1, 1]} : vector<18x18x8xbf16> to vector<16x16x8xbf16>
    %64 = vector.extract_strided_slice %55 {offsets = [2, 2, 0], sizes = [16, 16, 8], strides = [1, 1, 1]} : vector<18x18x8xbf16> to vector<16x16x8xbf16>
    %65 = tpu.concatenate %56, %57, %58, %59, %60, %61, %62, %63, %64 in 2 : vector<16x16x8xbf16>, vector<16x16x8xbf16>, vector<16x16x8xbf16>, vector<16x16x8xbf16>, vector<16x16x8xbf16>, vector<16x16x8xbf16>, vector<16x16x8xbf16>, vector<16x16x8xbf16>, vector<16x16x8xbf16> -> vector<16x16x72xbf16>
    %66 = vector.shape_cast %65 : vector<16x16x72xbf16> to vector<256x72xbf16>
    %c0_22 = arith.constant 0 : index
    %c0_23 = arith.constant 0 : index
    %67 = vector.load %arg8[%c0_22, %c0_23] : memref<72x8xbf16, #tpu.memory_space<vmem>>, vector<72x8xbf16>
    %cst_24 = arith.constant dense<0.000000e+00> : vector<256x8xf32>
    %68 = tpu.matmul %66, %67, %cst_24 {dimension_numbers = #tpu.dot_dimension_numbers<[1], [0], [0], [1], [0, 0, 1, 1], [], []>} : vector<256x72xbf16>, vector<72x8xbf16>, vector<256x8xf32> -> vector<256x8xf32>
    %c0_25 = arith.constant 0 : index
    %c0_26 = arith.constant 0 : index
    %69 = vector.load %arg9[%c0_25, %c0_26] : memref<1x8xf32, #tpu.memory_space<vmem>>, vector<1x8xf32>
    %70 = vector.broadcast %69 : vector<1x8xf32> to vector<256x8xf32>
    %71 = arith.mulf %68, %70 : vector<256x8xf32>
    %c0_27 = arith.constant 0 : index
    %c0_28 = arith.constant 0 : index
    %72 = vector.load %arg10[%c0_27, %c0_28] : memref<1x8xf32, #tpu.memory_space<vmem>>, vector<1x8xf32>
    %73 = vector.broadcast %72 : vector<1x8xf32> to vector<256x8xf32>
    %74 = arith.addf %71, %73 : vector<256x8xf32>
    %75 = vector.shape_cast %24 : vector<16x16x8xbf16> to vector<256x8xbf16>
    %76 = arith.extf %75 : vector<256x8xbf16> to vector<256x8xf32>
    %cst_29 = arith.constant 1.000000e+00 : f32
    %77 = vector.broadcast %cst_29 : f32 to vector<256x8xf32>
    %78 = arith.mulf %77, %74 : vector<256x8xf32>
    %79 = arith.addf %78, %76 : vector<256x8xf32>
    %cst_30 = arith.constant 0.000000e+00 : f32
    %80 = vector.broadcast %cst_30 : f32 to vector<256x8xf32>
    %81 = arith.maximumf %79, %80 : vector<256x8xf32>
    %82 = arith.truncf %81 : vector<256x8xf32> to vector<256x8xbf16>
    %83 = vector.shape_cast %82 : vector<256x8xbf16> to vector<16x16x8xbf16>
    %cst_31 = arith.constant 0.000000e+00 : bf16
    %84 = vector.broadcast %cst_31 : bf16 to vector<1x16x8xbf16>
    %85 = tpu.concatenate %84, %83, %84 in 0 : vector<1x16x8xbf16>, vector<16x16x8xbf16>, vector<1x16x8xbf16> -> vector<18x16x8xbf16>
    %cst_32 = arith.constant 0.000000e+00 : bf16
    %86 = vector.broadcast %cst_32 : bf16 to vector<18x1x8xbf16>
    %87 = tpu.concatenate %86, %85, %86 in 1 : vector<18x1x8xbf16>, vector<18x16x8xbf16>, vector<18x1x8xbf16> -> vector<18x18x8xbf16>
    %88 = vector.extract_strided_slice %87 {offsets = [0, 0, 0], sizes = [16, 16, 8], strides = [1, 1, 1]} : vector<18x18x8xbf16> to vector<16x16x8xbf16>
    %89 = vector.extract_strided_slice %87 {offsets = [0, 1, 0], sizes = [16, 16, 8], strides = [1, 1, 1]} : vector<18x18x8xbf16> to vector<16x16x8xbf16>
    %90 = vector.extract_strided_slice %87 {offsets = [0, 2, 0], sizes = [16, 16, 8], strides = [1, 1, 1]} : vector<18x18x8xbf16> to vector<16x16x8xbf16>
    %91 = vector.extract_strided_slice %87 {offsets = [1, 0, 0], sizes = [16, 16, 8], strides = [1, 1, 1]} : vector<18x18x8xbf16> to vector<16x16x8xbf16>
    %92 = vector.extract_strided_slice %87 {offsets = [1, 1, 0], sizes = [16, 16, 8], strides = [1, 1, 1]} : vector<18x18x8xbf16> to vector<16x16x8xbf16>
    %93 = vector.extract_strided_slice %87 {offsets = [1, 2, 0], sizes = [16, 16, 8], strides = [1, 1, 1]} : vector<18x18x8xbf16> to vector<16x16x8xbf16>
    %94 = vector.extract_strided_slice %87 {offsets = [2, 0, 0], sizes = [16, 16, 8], strides = [1, 1, 1]} : vector<18x18x8xbf16> to vector<16x16x8xbf16>
    %95 = vector.extract_strided_slice %87 {offsets = [2, 1, 0], sizes = [16, 16, 8], strides = [1, 1, 1]} : vector<18x18x8xbf16> to vector<16x16x8xbf16>
    %96 = vector.extract_strided_slice %87 {offsets = [2, 2, 0], sizes = [16, 16, 8], strides = [1, 1, 1]} : vector<18x18x8xbf16> to vector<16x16x8xbf16>
    %97 = tpu.concatenate %88, %89, %90, %91, %92, %93, %94, %95, %96 in 2 : vector<16x16x8xbf16>, vector<16x16x8xbf16>, vector<16x16x8xbf16>, vector<16x16x8xbf16>, vector<16x16x8xbf16>, vector<16x16x8xbf16>, vector<16x16x8xbf16>, vector<16x16x8xbf16>, vector<16x16x8xbf16> -> vector<16x16x72xbf16>
    %98 = vector.shape_cast %97 : vector<16x16x72xbf16> to vector<256x72xbf16>
    %c0_33 = arith.constant 0 : index
    %c0_34 = arith.constant 0 : index
    %99 = vector.load %arg11[%c0_33, %c0_34] : memref<72x16xbf16, #tpu.memory_space<vmem>>, vector<72x16xbf16>
    %cst_35 = arith.constant dense<0.000000e+00> : vector<256x16xf32>
    %100 = tpu.matmul %98, %99, %cst_35 {dimension_numbers = #tpu.dot_dimension_numbers<[1], [0], [0], [1], [0, 0, 1, 1], [], []>} : vector<256x72xbf16>, vector<72x16xbf16>, vector<256x16xf32> -> vector<256x16xf32>
    %c0_36 = arith.constant 0 : index
    %c0_37 = arith.constant 0 : index
    %101 = vector.load %arg12[%c0_36, %c0_37] : memref<1x16xf32, #tpu.memory_space<vmem>>, vector<1x16xf32>
    %102 = vector.broadcast %101 : vector<1x16xf32> to vector<256x16xf32>
    %103 = arith.mulf %100, %102 : vector<256x16xf32>
    %c0_38 = arith.constant 0 : index
    %c0_39 = arith.constant 0 : index
    %104 = vector.load %arg13[%c0_38, %c0_39] : memref<1x16xf32, #tpu.memory_space<vmem>>, vector<1x16xf32>
    %105 = vector.broadcast %104 : vector<1x16xf32> to vector<256x16xf32>
    %106 = arith.addf %103, %105 : vector<256x16xf32>
    %cst_40 = arith.constant 0.000000e+00 : f32
    %107 = vector.broadcast %cst_40 : f32 to vector<256x16xf32>
    %108 = arith.maximumf %106, %107 : vector<256x16xf32>
    %109 = arith.truncf %108 : vector<256x16xf32> to vector<256x16xbf16>
    %110 = vector.shape_cast %109 : vector<256x16xbf16> to vector<16x16x16xbf16>
    %cst_41 = arith.constant 0.000000e+00 : bf16
    %111 = vector.broadcast %cst_41 : bf16 to vector<1x16x16xbf16>
    %112 = tpu.concatenate %111, %110, %111 in 0 : vector<1x16x16xbf16>, vector<16x16x16xbf16>, vector<1x16x16xbf16> -> vector<18x16x16xbf16>
    %cst_42 = arith.constant 0.000000e+00 : bf16
    %113 = vector.broadcast %cst_42 : bf16 to vector<18x1x16xbf16>
    %114 = tpu.concatenate %113, %112, %113 in 1 : vector<18x1x16xbf16>, vector<18x16x16xbf16>, vector<18x1x16xbf16> -> vector<18x18x16xbf16>
    %115 = vector.extract_strided_slice %114 {offsets = [0, 0, 0], sizes = [16, 16, 16], strides = [1, 1, 1]} : vector<18x18x16xbf16> to vector<16x16x16xbf16>
    %116 = vector.extract_strided_slice %114 {offsets = [0, 1, 0], sizes = [16, 16, 16], strides = [1, 1, 1]} : vector<18x18x16xbf16> to vector<16x16x16xbf16>
    %117 = vector.extract_strided_slice %114 {offsets = [0, 2, 0], sizes = [16, 16, 16], strides = [1, 1, 1]} : vector<18x18x16xbf16> to vector<16x16x16xbf16>
    %118 = vector.extract_strided_slice %114 {offsets = [1, 0, 0], sizes = [16, 16, 16], strides = [1, 1, 1]} : vector<18x18x16xbf16> to vector<16x16x16xbf16>
    %119 = vector.extract_strided_slice %114 {offsets = [1, 1, 0], sizes = [16, 16, 16], strides = [1, 1, 1]} : vector<18x18x16xbf16> to vector<16x16x16xbf16>
    %120 = vector.extract_strided_slice %114 {offsets = [1, 2, 0], sizes = [16, 16, 16], strides = [1, 1, 1]} : vector<18x18x16xbf16> to vector<16x16x16xbf16>
    %121 = vector.extract_strided_slice %114 {offsets = [2, 0, 0], sizes = [16, 16, 16], strides = [1, 1, 1]} : vector<18x18x16xbf16> to vector<16x16x16xbf16>
    %122 = vector.extract_strided_slice %114 {offsets = [2, 1, 0], sizes = [16, 16, 16], strides = [1, 1, 1]} : vector<18x18x16xbf16> to vector<16x16x16xbf16>
    %123 = vector.extract_strided_slice %114 {offsets = [2, 2, 0], sizes = [16, 16, 16], strides = [1, 1, 1]} : vector<18x18x16xbf16> to vector<16x16x16xbf16>
    %124 = tpu.concatenate %115, %116, %117, %118, %119, %120, %121, %122, %123 in 2 : vector<16x16x16xbf16>, vector<16x16x16xbf16>, vector<16x16x16xbf16>, vector<16x16x16xbf16>, vector<16x16x16xbf16>, vector<16x16x16xbf16>, vector<16x16x16xbf16>, vector<16x16x16xbf16>, vector<16x16x16xbf16> -> vector<16x16x144xbf16>
    %125 = vector.shape_cast %124 : vector<16x16x144xbf16> to vector<256x144xbf16>
    %c0_43 = arith.constant 0 : index
    %c0_44 = arith.constant 0 : index
    %126 = vector.load %arg14[%c0_43, %c0_44] : memref<144x16xbf16, #tpu.memory_space<vmem>>, vector<144x16xbf16>
    %cst_45 = arith.constant dense<0.000000e+00> : vector<256x16xf32>
    %127 = tpu.matmul %125, %126, %cst_45 {dimension_numbers = #tpu.dot_dimension_numbers<[1], [0], [0], [1], [0, 0, 1, 1], [], []>} : vector<256x144xbf16>, vector<144x16xbf16>, vector<256x16xf32> -> vector<256x16xf32>
    %c0_46 = arith.constant 0 : index
    %c0_47 = arith.constant 0 : index
    %128 = vector.load %arg15[%c0_46, %c0_47] : memref<1x16xf32, #tpu.memory_space<vmem>>, vector<1x16xf32>
    %129 = vector.broadcast %128 : vector<1x16xf32> to vector<256x16xf32>
    %130 = arith.mulf %127, %129 : vector<256x16xf32>
    %c0_48 = arith.constant 0 : index
    %c0_49 = arith.constant 0 : index
    %131 = vector.load %arg16[%c0_48, %c0_49] : memref<1x16xf32, #tpu.memory_space<vmem>>, vector<1x16xf32>
    %132 = vector.broadcast %131 : vector<1x16xf32> to vector<256x16xf32>
    %133 = arith.addf %130, %132 : vector<256x16xf32>
    %134 = vector.shape_cast %83 : vector<16x16x8xbf16> to vector<256x8xbf16>
    %c0_50 = arith.constant 0 : index
    %c0_51 = arith.constant 0 : index
    %135 = vector.load %arg17[%c0_50, %c0_51] : memref<8x16xbf16, #tpu.memory_space<vmem>>, vector<8x16xbf16>
    %cst_52 = arith.constant dense<0.000000e+00> : vector<256x16xf32>
    %136 = tpu.matmul %134, %135, %cst_52 {dimension_numbers = #tpu.dot_dimension_numbers<[1], [0], [0], [1], [0, 0, 1, 1], [], []>} : vector<256x8xbf16>, vector<8x16xbf16>, vector<256x16xf32> -> vector<256x16xf32>
    %c0_53 = arith.constant 0 : index
    %c0_54 = arith.constant 0 : index
    %137 = vector.load %arg18[%c0_53, %c0_54] : memref<1x16xf32, #tpu.memory_space<vmem>>, vector<1x16xf32>
    %138 = vector.broadcast %137 : vector<1x16xf32> to vector<256x16xf32>
    %139 = arith.mulf %136, %138 : vector<256x16xf32>
    %c0_55 = arith.constant 0 : index
    %c0_56 = arith.constant 0 : index
    %140 = vector.load %arg19[%c0_55, %c0_56] : memref<1x16xf32, #tpu.memory_space<vmem>>, vector<1x16xf32>
    %141 = vector.broadcast %140 : vector<1x16xf32> to vector<256x16xf32>
    %142 = arith.addf %139, %141 : vector<256x16xf32>
    %cst_57 = arith.constant 1.000000e+00 : f32
    %143 = vector.broadcast %cst_57 : f32 to vector<256x16xf32>
    %144 = arith.mulf %143, %133 : vector<256x16xf32>
    %145 = arith.addf %144, %142 : vector<256x16xf32>
    %cst_58 = arith.constant 0.000000e+00 : f32
    %146 = vector.broadcast %cst_58 : f32 to vector<256x16xf32>
    %147 = arith.maximumf %145, %146 : vector<256x16xf32>
    %148 = arith.truncf %147 : vector<256x16xf32> to vector<256x16xbf16>
    %149 = vector.shape_cast %148 : vector<256x16xbf16> to vector<16x16x16xbf16>
    %cst_59 = arith.constant 0.000000e+00 : bf16
    %150 = vector.broadcast %cst_59 : bf16 to vector<1x16x16xbf16>
    %151 = tpu.concatenate %150, %149, %150 in 0 : vector<1x16x16xbf16>, vector<16x16x16xbf16>, vector<1x16x16xbf16> -> vector<18x16x16xbf16>
    %cst_60 = arith.constant 0.000000e+00 : bf16
    %152 = vector.broadcast %cst_60 : bf16 to vector<18x1x16xbf16>
    %153 = tpu.concatenate %152, %151, %152 in 1 : vector<18x1x16xbf16>, vector<18x16x16xbf16>, vector<18x1x16xbf16> -> vector<18x18x16xbf16>
    %154 = vector.extract_strided_slice %153 {offsets = [0, 0, 0], sizes = [16, 16, 16], strides = [1, 1, 1]} : vector<18x18x16xbf16> to vector<16x16x16xbf16>
    %155 = vector.extract_strided_slice %153 {offsets = [0, 1, 0], sizes = [16, 16, 16], strides = [1, 1, 1]} : vector<18x18x16xbf16> to vector<16x16x16xbf16>
    %156 = vector.extract_strided_slice %153 {offsets = [0, 2, 0], sizes = [16, 16, 16], strides = [1, 1, 1]} : vector<18x18x16xbf16> to vector<16x16x16xbf16>
    %157 = vector.extract_strided_slice %153 {offsets = [1, 0, 0], sizes = [16, 16, 16], strides = [1, 1, 1]} : vector<18x18x16xbf16> to vector<16x16x16xbf16>
    %158 = vector.extract_strided_slice %153 {offsets = [1, 1, 0], sizes = [16, 16, 16], strides = [1, 1, 1]} : vector<18x18x16xbf16> to vector<16x16x16xbf16>
    %159 = vector.extract_strided_slice %153 {offsets = [1, 2, 0], sizes = [16, 16, 16], strides = [1, 1, 1]} : vector<18x18x16xbf16> to vector<16x16x16xbf16>
    %160 = vector.extract_strided_slice %153 {offsets = [2, 0, 0], sizes = [16, 16, 16], strides = [1, 1, 1]} : vector<18x18x16xbf16> to vector<16x16x16xbf16>
    %161 = vector.extract_strided_slice %153 {offsets = [2, 1, 0], sizes = [16, 16, 16], strides = [1, 1, 1]} : vector<18x18x16xbf16> to vector<16x16x16xbf16>
    %162 = vector.extract_strided_slice %153 {offsets = [2, 2, 0], sizes = [16, 16, 16], strides = [1, 1, 1]} : vector<18x18x16xbf16> to vector<16x16x16xbf16>
    %163 = tpu.concatenate %154, %155, %156, %157, %158, %159, %160, %161, %162 in 2 : vector<16x16x16xbf16>, vector<16x16x16xbf16>, vector<16x16x16xbf16>, vector<16x16x16xbf16>, vector<16x16x16xbf16>, vector<16x16x16xbf16>, vector<16x16x16xbf16>, vector<16x16x16xbf16>, vector<16x16x16xbf16> -> vector<16x16x144xbf16>
    %164 = vector.shape_cast %163 : vector<16x16x144xbf16> to vector<256x144xbf16>
    %c0_61 = arith.constant 0 : index
    %c0_62 = arith.constant 0 : index
    %165 = vector.load %arg20[%c0_61, %c0_62] : memref<144x16xbf16, #tpu.memory_space<vmem>>, vector<144x16xbf16>
    %cst_63 = arith.constant dense<0.000000e+00> : vector<256x16xf32>
    %166 = tpu.matmul %164, %165, %cst_63 {dimension_numbers = #tpu.dot_dimension_numbers<[1], [0], [0], [1], [0, 0, 1, 1], [], []>} : vector<256x144xbf16>, vector<144x16xbf16>, vector<256x16xf32> -> vector<256x16xf32>
    %c0_64 = arith.constant 0 : index
    %c0_65 = arith.constant 0 : index
    %167 = vector.load %arg21[%c0_64, %c0_65] : memref<1x16xf32, #tpu.memory_space<vmem>>, vector<1x16xf32>
    %168 = vector.broadcast %167 : vector<1x16xf32> to vector<256x16xf32>
    %169 = arith.mulf %166, %168 : vector<256x16xf32>
    %c0_66 = arith.constant 0 : index
    %c0_67 = arith.constant 0 : index
    %170 = vector.load %arg22[%c0_66, %c0_67] : memref<1x16xf32, #tpu.memory_space<vmem>>, vector<1x16xf32>
    %171 = vector.broadcast %170 : vector<1x16xf32> to vector<256x16xf32>
    %172 = arith.addf %169, %171 : vector<256x16xf32>
    %cst_68 = arith.constant 0.000000e+00 : f32
    %173 = vector.broadcast %cst_68 : f32 to vector<256x16xf32>
    %174 = arith.maximumf %172, %173 : vector<256x16xf32>
    %175 = arith.truncf %174 : vector<256x16xf32> to vector<256x16xbf16>
    %176 = vector.shape_cast %175 : vector<256x16xbf16> to vector<16x16x16xbf16>
    %cst_69 = arith.constant 0.000000e+00 : bf16
    %177 = vector.broadcast %cst_69 : bf16 to vector<1x16x16xbf16>
    %178 = tpu.concatenate %177, %176, %177 in 0 : vector<1x16x16xbf16>, vector<16x16x16xbf16>, vector<1x16x16xbf16> -> vector<18x16x16xbf16>
    %cst_70 = arith.constant 0.000000e+00 : bf16
    %179 = vector.broadcast %cst_70 : bf16 to vector<18x1x16xbf16>
    %180 = tpu.concatenate %179, %178, %179 in 1 : vector<18x1x16xbf16>, vector<18x16x16xbf16>, vector<18x1x16xbf16> -> vector<18x18x16xbf16>
    %181 = vector.extract_strided_slice %180 {offsets = [0, 0, 0], sizes = [16, 16, 16], strides = [1, 1, 1]} : vector<18x18x16xbf16> to vector<16x16x16xbf16>
    %182 = vector.extract_strided_slice %180 {offsets = [0, 1, 0], sizes = [16, 16, 16], strides = [1, 1, 1]} : vector<18x18x16xbf16> to vector<16x16x16xbf16>
    %183 = vector.extract_strided_slice %180 {offsets = [0, 2, 0], sizes = [16, 16, 16], strides = [1, 1, 1]} : vector<18x18x16xbf16> to vector<16x16x16xbf16>
    %184 = vector.extract_strided_slice %180 {offsets = [1, 0, 0], sizes = [16, 16, 16], strides = [1, 1, 1]} : vector<18x18x16xbf16> to vector<16x16x16xbf16>
    %185 = vector.extract_strided_slice %180 {offsets = [1, 1, 0], sizes = [16, 16, 16], strides = [1, 1, 1]} : vector<18x18x16xbf16> to vector<16x16x16xbf16>
    %186 = vector.extract_strided_slice %180 {offsets = [1, 2, 0], sizes = [16, 16, 16], strides = [1, 1, 1]} : vector<18x18x16xbf16> to vector<16x16x16xbf16>
    %187 = vector.extract_strided_slice %180 {offsets = [2, 0, 0], sizes = [16, 16, 16], strides = [1, 1, 1]} : vector<18x18x16xbf16> to vector<16x16x16xbf16>
    %188 = vector.extract_strided_slice %180 {offsets = [2, 1, 0], sizes = [16, 16, 16], strides = [1, 1, 1]} : vector<18x18x16xbf16> to vector<16x16x16xbf16>
    %189 = vector.extract_strided_slice %180 {offsets = [2, 2, 0], sizes = [16, 16, 16], strides = [1, 1, 1]} : vector<18x18x16xbf16> to vector<16x16x16xbf16>
    %190 = tpu.concatenate %181, %182, %183, %184, %185, %186, %187, %188, %189 in 2 : vector<16x16x16xbf16>, vector<16x16x16xbf16>, vector<16x16x16xbf16>, vector<16x16x16xbf16>, vector<16x16x16xbf16>, vector<16x16x16xbf16>, vector<16x16x16xbf16>, vector<16x16x16xbf16>, vector<16x16x16xbf16> -> vector<16x16x144xbf16>
    %191 = vector.shape_cast %190 : vector<16x16x144xbf16> to vector<256x144xbf16>
    %c0_71 = arith.constant 0 : index
    %c0_72 = arith.constant 0 : index
    %192 = vector.load %arg23[%c0_71, %c0_72] : memref<144x16xbf16, #tpu.memory_space<vmem>>, vector<144x16xbf16>
    %cst_73 = arith.constant dense<0.000000e+00> : vector<256x16xf32>
    %193 = tpu.matmul %191, %192, %cst_73 {dimension_numbers = #tpu.dot_dimension_numbers<[1], [0], [0], [1], [0, 0, 1, 1], [], []>} : vector<256x144xbf16>, vector<144x16xbf16>, vector<256x16xf32> -> vector<256x16xf32>
    %c0_74 = arith.constant 0 : index
    %c0_75 = arith.constant 0 : index
    %194 = vector.load %arg24[%c0_74, %c0_75] : memref<1x16xf32, #tpu.memory_space<vmem>>, vector<1x16xf32>
    %195 = vector.broadcast %194 : vector<1x16xf32> to vector<256x16xf32>
    %196 = arith.mulf %193, %195 : vector<256x16xf32>
    %c0_76 = arith.constant 0 : index
    %c0_77 = arith.constant 0 : index
    %197 = vector.load %arg25[%c0_76, %c0_77] : memref<1x16xf32, #tpu.memory_space<vmem>>, vector<1x16xf32>
    %198 = vector.broadcast %197 : vector<1x16xf32> to vector<256x16xf32>
    %199 = arith.addf %196, %198 : vector<256x16xf32>
    %200 = vector.shape_cast %149 : vector<16x16x16xbf16> to vector<256x16xbf16>
    %201 = arith.extf %200 : vector<256x16xbf16> to vector<256x16xf32>
    %cst_78 = arith.constant 1.000000e+00 : f32
    %202 = vector.broadcast %cst_78 : f32 to vector<256x16xf32>
    %203 = arith.mulf %202, %199 : vector<256x16xf32>
    %204 = arith.addf %203, %201 : vector<256x16xf32>
    %cst_79 = arith.constant 0.000000e+00 : f32
    %205 = vector.broadcast %cst_79 : f32 to vector<256x16xf32>
    %206 = arith.maximumf %204, %205 : vector<256x16xf32>
    %207 = arith.truncf %206 : vector<256x16xf32> to vector<256x16xbf16>
    %208 = vector.shape_cast %207 : vector<256x16xbf16> to vector<16x16x16xbf16>
    %cst_80 = arith.constant 0.000000e+00 : bf16
    %209 = vector.broadcast %cst_80 : bf16 to vector<1x16x16xbf16>
    %210 = tpu.concatenate %209, %208, %209 in 0 : vector<1x16x16xbf16>, vector<16x16x16xbf16>, vector<1x16x16xbf16> -> vector<18x16x16xbf16>
    %cst_81 = arith.constant 0.000000e+00 : bf16
    %211 = vector.broadcast %cst_81 : bf16 to vector<18x1x16xbf16>
    %212 = tpu.concatenate %211, %210, %211 in 1 : vector<18x1x16xbf16>, vector<18x16x16xbf16>, vector<18x1x16xbf16> -> vector<18x18x16xbf16>
    %213 = vector.extract_strided_slice %212 {offsets = [0, 0, 0], sizes = [16, 16, 16], strides = [1, 1, 1]} : vector<18x18x16xbf16> to vector<16x16x16xbf16>
    %214 = vector.extract_strided_slice %212 {offsets = [0, 1, 0], sizes = [16, 16, 16], strides = [1, 1, 1]} : vector<18x18x16xbf16> to vector<16x16x16xbf16>
    %215 = vector.extract_strided_slice %212 {offsets = [0, 2, 0], sizes = [16, 16, 16], strides = [1, 1, 1]} : vector<18x18x16xbf16> to vector<16x16x16xbf16>
    %216 = vector.extract_strided_slice %212 {offsets = [1, 0, 0], sizes = [16, 16, 16], strides = [1, 1, 1]} : vector<18x18x16xbf16> to vector<16x16x16xbf16>
    %217 = vector.extract_strided_slice %212 {offsets = [1, 1, 0], sizes = [16, 16, 16], strides = [1, 1, 1]} : vector<18x18x16xbf16> to vector<16x16x16xbf16>
    %218 = vector.extract_strided_slice %212 {offsets = [1, 2, 0], sizes = [16, 16, 16], strides = [1, 1, 1]} : vector<18x18x16xbf16> to vector<16x16x16xbf16>
    %219 = vector.extract_strided_slice %212 {offsets = [2, 0, 0], sizes = [16, 16, 16], strides = [1, 1, 1]} : vector<18x18x16xbf16> to vector<16x16x16xbf16>
    %220 = vector.extract_strided_slice %212 {offsets = [2, 1, 0], sizes = [16, 16, 16], strides = [1, 1, 1]} : vector<18x18x16xbf16> to vector<16x16x16xbf16>
    %221 = vector.extract_strided_slice %212 {offsets = [2, 2, 0], sizes = [16, 16, 16], strides = [1, 1, 1]} : vector<18x18x16xbf16> to vector<16x16x16xbf16>
    %222 = tpu.concatenate %213, %214, %215, %216, %217, %218, %219, %220, %221 in 2 : vector<16x16x16xbf16>, vector<16x16x16xbf16>, vector<16x16x16xbf16>, vector<16x16x16xbf16>, vector<16x16x16xbf16>, vector<16x16x16xbf16>, vector<16x16x16xbf16>, vector<16x16x16xbf16>, vector<16x16x16xbf16> -> vector<16x16x144xbf16>
    %223 = vector.shape_cast %222 : vector<16x16x144xbf16> to vector<256x144xbf16>
    %c0_82 = arith.constant 0 : index
    %c0_83 = arith.constant 0 : index
    %224 = vector.load %arg26[%c0_82, %c0_83] : memref<144x16xbf16, #tpu.memory_space<vmem>>, vector<144x16xbf16>
    %cst_84 = arith.constant dense<0.000000e+00> : vector<256x16xf32>
    %225 = tpu.matmul %223, %224, %cst_84 {dimension_numbers = #tpu.dot_dimension_numbers<[1], [0], [0], [1], [0, 0, 1, 1], [], []>} : vector<256x144xbf16>, vector<144x16xbf16>, vector<256x16xf32> -> vector<256x16xf32>
    %c0_85 = arith.constant 0 : index
    %c0_86 = arith.constant 0 : index
    %226 = vector.load %arg27[%c0_85, %c0_86] : memref<1x16xf32, #tpu.memory_space<vmem>>, vector<1x16xf32>
    %227 = vector.broadcast %226 : vector<1x16xf32> to vector<256x16xf32>
    %228 = arith.mulf %225, %227 : vector<256x16xf32>
    %c0_87 = arith.constant 0 : index
    %c0_88 = arith.constant 0 : index
    %229 = vector.load %arg28[%c0_87, %c0_88] : memref<1x16xf32, #tpu.memory_space<vmem>>, vector<1x16xf32>
    %230 = vector.broadcast %229 : vector<1x16xf32> to vector<256x16xf32>
    %231 = arith.addf %228, %230 : vector<256x16xf32>
    %cst_89 = arith.constant 0.000000e+00 : f32
    %232 = vector.broadcast %cst_89 : f32 to vector<256x16xf32>
    %233 = arith.maximumf %231, %232 : vector<256x16xf32>
    %234 = arith.truncf %233 : vector<256x16xf32> to vector<256x16xbf16>
    %235 = vector.shape_cast %234 : vector<256x16xbf16> to vector<16x16x16xbf16>
    %cst_90 = arith.constant 0.000000e+00 : bf16
    %236 = vector.broadcast %cst_90 : bf16 to vector<1x16x16xbf16>
    %237 = tpu.concatenate %236, %235, %236 in 0 : vector<1x16x16xbf16>, vector<16x16x16xbf16>, vector<1x16x16xbf16> -> vector<18x16x16xbf16>
    %cst_91 = arith.constant 0.000000e+00 : bf16
    %238 = vector.broadcast %cst_91 : bf16 to vector<18x1x16xbf16>
    %239 = tpu.concatenate %238, %237, %238 in 1 : vector<18x1x16xbf16>, vector<18x16x16xbf16>, vector<18x1x16xbf16> -> vector<18x18x16xbf16>
    %240 = vector.extract_strided_slice %239 {offsets = [0, 0, 0], sizes = [16, 16, 16], strides = [1, 1, 1]} : vector<18x18x16xbf16> to vector<16x16x16xbf16>
    %241 = vector.extract_strided_slice %239 {offsets = [0, 1, 0], sizes = [16, 16, 16], strides = [1, 1, 1]} : vector<18x18x16xbf16> to vector<16x16x16xbf16>
    %242 = vector.extract_strided_slice %239 {offsets = [0, 2, 0], sizes = [16, 16, 16], strides = [1, 1, 1]} : vector<18x18x16xbf16> to vector<16x16x16xbf16>
    %243 = vector.extract_strided_slice %239 {offsets = [1, 0, 0], sizes = [16, 16, 16], strides = [1, 1, 1]} : vector<18x18x16xbf16> to vector<16x16x16xbf16>
    %244 = vector.extract_strided_slice %239 {offsets = [1, 1, 0], sizes = [16, 16, 16], strides = [1, 1, 1]} : vector<18x18x16xbf16> to vector<16x16x16xbf16>
    %245 = vector.extract_strided_slice %239 {offsets = [1, 2, 0], sizes = [16, 16, 16], strides = [1, 1, 1]} : vector<18x18x16xbf16> to vector<16x16x16xbf16>
    %246 = vector.extract_strided_slice %239 {offsets = [2, 0, 0], sizes = [16, 16, 16], strides = [1, 1, 1]} : vector<18x18x16xbf16> to vector<16x16x16xbf16>
    %247 = vector.extract_strided_slice %239 {offsets = [2, 1, 0], sizes = [16, 16, 16], strides = [1, 1, 1]} : vector<18x18x16xbf16> to vector<16x16x16xbf16>
    %248 = vector.extract_strided_slice %239 {offsets = [2, 2, 0], sizes = [16, 16, 16], strides = [1, 1, 1]} : vector<18x18x16xbf16> to vector<16x16x16xbf16>
    %249 = tpu.concatenate %240, %241, %242, %243, %244, %245, %246, %247, %248 in 2 : vector<16x16x16xbf16>, vector<16x16x16xbf16>, vector<16x16x16xbf16>, vector<16x16x16xbf16>, vector<16x16x16xbf16>, vector<16x16x16xbf16>, vector<16x16x16xbf16>, vector<16x16x16xbf16>, vector<16x16x16xbf16> -> vector<16x16x144xbf16>
    %250 = vector.shape_cast %249 : vector<16x16x144xbf16> to vector<256x144xbf16>
    %c0_92 = arith.constant 0 : index
    %c0_93 = arith.constant 0 : index
    %251 = vector.load %arg29[%c0_92, %c0_93] : memref<144x16xbf16, #tpu.memory_space<vmem>>, vector<144x16xbf16>
    %cst_94 = arith.constant dense<0.000000e+00> : vector<256x16xf32>
    %252 = tpu.matmul %250, %251, %cst_94 {dimension_numbers = #tpu.dot_dimension_numbers<[1], [0], [0], [1], [0, 0, 1, 1], [], []>} : vector<256x144xbf16>, vector<144x16xbf16>, vector<256x16xf32> -> vector<256x16xf32>
    %c0_95 = arith.constant 0 : index
    %c0_96 = arith.constant 0 : index
    %253 = vector.load %arg30[%c0_95, %c0_96] : memref<1x16xf32, #tpu.memory_space<vmem>>, vector<1x16xf32>
    %254 = vector.broadcast %253 : vector<1x16xf32> to vector<256x16xf32>
    %255 = arith.mulf %252, %254 : vector<256x16xf32>
    %c0_97 = arith.constant 0 : index
    %c0_98 = arith.constant 0 : index
    %256 = vector.load %arg31[%c0_97, %c0_98] : memref<1x16xf32, #tpu.memory_space<vmem>>, vector<1x16xf32>
    %257 = vector.broadcast %256 : vector<1x16xf32> to vector<256x16xf32>
    %258 = arith.addf %255, %257 : vector<256x16xf32>
    %259 = vector.shape_cast %208 : vector<16x16x16xbf16> to vector<256x16xbf16>
    %260 = arith.extf %259 : vector<256x16xbf16> to vector<256x16xf32>
    %cst_99 = arith.constant 1.000000e+00 : f32
    %261 = vector.broadcast %cst_99 : f32 to vector<256x16xf32>
    %262 = arith.mulf %261, %258 : vector<256x16xf32>
    %263 = arith.addf %262, %260 : vector<256x16xf32>
    %cst_100 = arith.constant 0.000000e+00 : f32
    %264 = vector.broadcast %cst_100 : f32 to vector<256x16xf32>
    %265 = arith.maximumf %263, %264 : vector<256x16xf32>
    %266 = arith.truncf %265 : vector<256x16xf32> to vector<256x16xbf16>
    %267 = vector.shape_cast %266 : vector<256x16xbf16> to vector<16x16x16xbf16>
    %268 = vector.shape_cast %267 : vector<16x16x16xbf16> to vector<256x16xbf16>
    %269 = arith.extf %268 : vector<256x16xbf16> to vector<256x16xf32>
    %cst_101 = arith.constant dense<0.000000e+00> : vector<16xf32>
    %270 = vector.multi_reduction <add>, %269, %cst_101 [0] : vector<256x16xf32> to vector<16xf32>
    %271 = vector.shape_cast %270 : vector<16xf32> to vector<1x16xf32>
    %cst_102 = arith.constant 2.560000e+02 : f32
    %272 = vector.broadcast %cst_102 : f32 to vector<1x16xf32>
    %273 = arith.divf %271, %272 : vector<1x16xf32>
    %c0_103 = arith.constant 0 : index
    %c0_104 = arith.constant 0 : index
    %274 = vector.load %arg32[%c0_103, %c0_104] : memref<16x128xf32, #tpu.memory_space<vmem>>, vector<16x128xf32>
    %cst_105 = arith.constant dense<0.000000e+00> : vector<1x128xf32>
    %275 = tpu.matmul %273, %274, %cst_105 {dimension_numbers = #tpu.dot_dimension_numbers<[1], [0], [0], [1], [0, 0, 1, 1], [], []>} : vector<1x16xf32>, vector<16x128xf32>, vector<1x128xf32> -> vector<1x128xf32>
    %c0_106 = arith.constant 0 : index
    %c0_107 = arith.constant 0 : index
    %276 = vector.load %arg33[%c0_106, %c0_107] : memref<1x128xf32, #tpu.memory_space<vmem>>, vector<1x128xf32>
    %277 = arith.addf %275, %276 : vector<1x128xf32>
    %278 = vector.shape_cast %277 : vector<1x128xf32> to vector<1x128xf32>
    %279 = vector.broadcast %278 : vector<1x128xf32> to vector<8x128xf32>
    %c0_108 = arith.constant 0 : index
    %c0_109 = arith.constant 0 : index
    %c0_110 = arith.constant 0 : index
    %280 = vector.load %arg34[%c0_108, %c0_109, %c0_110] : memref<1x8x128xf32, #tpu.memory_space<vmem>>, vector<1x8x128xf32>
    %281 = vector.shape_cast %280 : vector<1x8x128xf32> to vector<8x128xf32>
    %282 = vector.shape_cast %279 : vector<8x128xf32> to vector<1x8x128xf32>
    tpu.vector_store %arg34[%c0_108, %c0_109, %c0_110], %282 {strides = array<i32>} : memref<1x8x128xf32, #tpu.memory_space<vmem>>, vector<1x8x128xf32>,
    return
  }
  func.func @transform_0(%arg0: i32) -> (i32, i32, i32, i32) {
    %c0_i32 = arith.constant 0 : i32
    %c0_i32_0 = arith.constant 0 : i32
    %c0_i32_1 = arith.constant 0 : i32
    %c0_i32_2 = arith.constant 0 : i32
    return %arg0, %c0_i32, %c0_i32_0, %c0_i32_1 : i32, i32, i32, i32
  }
  func.func @transform_1(%arg0: i32) -> (i32, i32) {
    %c0_i32 = arith.constant 0 : i32
    %c0_i32_0 = arith.constant 0 : i32
    %c0_i32_1 = arith.constant 0 : i32
    return %c0_i32, %c0_i32_0 : i32, i32
  }
  func.func @transform_2(%arg0: i32) -> (i32, i32) {
    %c0_i32 = arith.constant 0 : i32
    %c0_i32_0 = arith.constant 0 : i32
    %c0_i32_1 = arith.constant 0 : i32
    return %c0_i32, %c0_i32_0 : i32, i32
  }
  func.func @transform_3(%arg0: i32) -> (i32, i32) {
    %c0_i32 = arith.constant 0 : i32
    %c0_i32_0 = arith.constant 0 : i32
    %c0_i32_1 = arith.constant 0 : i32
    return %c0_i32, %c0_i32_0 : i32, i32
  }
  func.func @transform_4(%arg0: i32) -> (i32, i32) {
    %c0_i32 = arith.constant 0 : i32
    %c0_i32_0 = arith.constant 0 : i32
    %c0_i32_1 = arith.constant 0 : i32
    return %c0_i32, %c0_i32_0 : i32, i32
  }
  func.func @transform_5(%arg0: i32) -> (i32, i32) {
    %c0_i32 = arith.constant 0 : i32
    %c0_i32_0 = arith.constant 0 : i32
    %c0_i32_1 = arith.constant 0 : i32
    return %c0_i32, %c0_i32_0 : i32, i32
  }
  func.func @transform_6(%arg0: i32) -> (i32, i32) {
    %c0_i32 = arith.constant 0 : i32
    %c0_i32_0 = arith.constant 0 : i32
    %c0_i32_1 = arith.constant 0 : i32
    return %c0_i32, %c0_i32_0 : i32, i32
  }
  func.func @transform_7(%arg0: i32) -> (i32, i32) {
    %c0_i32 = arith.constant 0 : i32
    %c0_i32_0 = arith.constant 0 : i32
    %c0_i32_1 = arith.constant 0 : i32
    return %c0_i32, %c0_i32_0 : i32, i32
  }
  func.func @transform_8(%arg0: i32) -> (i32, i32) {
    %c0_i32 = arith.constant 0 : i32
    %c0_i32_0 = arith.constant 0 : i32
    %c0_i32_1 = arith.constant 0 : i32
    return %c0_i32, %c0_i32_0 : i32, i32
  }
  func.func @transform_9(%arg0: i32) -> (i32, i32) {
    %c0_i32 = arith.constant 0 : i32
    %c0_i32_0 = arith.constant 0 : i32
    %c0_i32_1 = arith.constant 0 : i32
    return %c0_i32, %c0_i32_0 : i32, i32
  }
  func.func @transform_10(%arg0: i32) -> (i32, i32) {
    %c0_i32 = arith.constant 0 : i32
    %c0_i32_0 = arith.constant 0 : i32
    %c0_i32_1 = arith.constant 0 : i32
    return %c0_i32, %c0_i32_0 : i32, i32
  }
  func.func @transform_11(%arg0: i32) -> (i32, i32) {
    %c0_i32 = arith.constant 0 : i32
    %c0_i32_0 = arith.constant 0 : i32
    %c0_i32_1 = arith.constant 0 : i32
    return %c0_i32, %c0_i32_0 : i32, i32
  }
  func.func @transform_12(%arg0: i32) -> (i32, i32) {
    %c0_i32 = arith.constant 0 : i32
    %c0_i32_0 = arith.constant 0 : i32
    %c0_i32_1 = arith.constant 0 : i32
    return %c0_i32, %c0_i32_0 : i32, i32
  }
  func.func @transform_13(%arg0: i32) -> (i32, i32) {
    %c0_i32 = arith.constant 0 : i32
    %c0_i32_0 = arith.constant 0 : i32
    %c0_i32_1 = arith.constant 0 : i32
    return %c0_i32, %c0_i32_0 : i32, i32
  }
  func.func @transform_14(%arg0: i32) -> (i32, i32) {
    %c0_i32 = arith.constant 0 : i32
    %c0_i32_0 = arith.constant 0 : i32
    %c0_i32_1 = arith.constant 0 : i32
    return %c0_i32, %c0_i32_0 : i32, i32
  }
  func.func @transform_15(%arg0: i32) -> (i32, i32) {
    %c0_i32 = arith.constant 0 : i32
    %c0_i32_0 = arith.constant 0 : i32
    %c0_i32_1 = arith.constant 0 : i32
    return %c0_i32, %c0_i32_0 : i32, i32
  }
  func.func @transform_16(%arg0: i32) -> (i32, i32) {
    %c0_i32 = arith.constant 0 : i32
    %c0_i32_0 = arith.constant 0 : i32
    %c0_i32_1 = arith.constant 0 : i32
    return %c0_i32, %c0_i32_0 : i32, i32
  }
  func.func @transform_17(%arg0: i32) -> (i32, i32) {
    %c0_i32 = arith.constant 0 : i32
    %c0_i32_0 = arith.constant 0 : i32
    %c0_i32_1 = arith.constant 0 : i32
    return %c0_i32, %c0_i32_0 : i32, i32
  }
  func.func @transform_18(%arg0: i32) -> (i32, i32) {
    %c0_i32 = arith.constant 0 : i32
    %c0_i32_0 = arith.constant 0 : i32
    %c0_i32_1 = arith.constant 0 : i32
    return %c0_i32, %c0_i32_0 : i32, i32
  }
  func.func @transform_19(%arg0: i32) -> (i32, i32) {
    %c0_i32 = arith.constant 0 : i32
    %c0_i32_0 = arith.constant 0 : i32
    %c0_i32_1 = arith.constant 0 : i32
    return %c0_i32, %c0_i32_0 : i32, i32
  }
  func.func @transform_20(%arg0: i32) -> (i32, i32) {
    %c0_i32 = arith.constant 0 : i32
    %c0_i32_0 = arith.constant 0 : i32
    %c0_i32_1 = arith.constant 0 : i32
    return %c0_i32, %c0_i32_0 : i32, i32
  }
  func.func @transform_21(%arg0: i32) -> (i32, i32) {
    %c0_i32 = arith.constant 0 : i32
    %c0_i32_0 = arith.constant 0 : i32
    %c0_i32_1 = arith.constant 0 : i32
    return %c0_i32, %c0_i32_0 : i32, i32
  }
  func.func @transform_22(%arg0: i32) -> (i32, i32) {
    %c0_i32 = arith.constant 0 : i32
    %c0_i32_0 = arith.constant 0 : i32
    %c0_i32_1 = arith.constant 0 : i32
    return %c0_i32, %c0_i32_0 : i32, i32
  }
  func.func @transform_23(%arg0: i32) -> (i32, i32) {
    %c0_i32 = arith.constant 0 : i32
    %c0_i32_0 = arith.constant 0 : i32
    %c0_i32_1 = arith.constant 0 : i32
    return %c0_i32, %c0_i32_0 : i32, i32
  }
  func.func @transform_24(%arg0: i32) -> (i32, i32) {
    %c0_i32 = arith.constant 0 : i32
    %c0_i32_0 = arith.constant 0 : i32
    %c0_i32_1 = arith.constant 0 : i32
    return %c0_i32, %c0_i32_0 : i32, i32
  }
  func.func @transform_25(%arg0: i32) -> (i32, i32) {
    %c0_i32 = arith.constant 0 : i32
    %c0_i32_0 = arith.constant 0 : i32
    %c0_i32_1 = arith.constant 0 : i32
    return %c0_i32, %c0_i32_0 : i32, i32
  }
  func.func @transform_26(%arg0: i32) -> (i32, i32) {
    %c0_i32 = arith.constant 0 : i32
    %c0_i32_0 = arith.constant 0 : i32
    %c0_i32_1 = arith.constant 0 : i32
    return %c0_i32, %c0_i32_0 : i32, i32
  }
  func.func @transform_27(%arg0: i32) -> (i32, i32) {
    %c0_i32 = arith.constant 0 : i32
    %c0_i32_0 = arith.constant 0 : i32
    %c0_i32_1 = arith.constant 0 : i32
    return %c0_i32, %c0_i32_0 : i32, i32
  }
  func.func @transform_28(%arg0: i32) -> (i32, i32) {
    %c0_i32 = arith.constant 0 : i32
    %c0_i32_0 = arith.constant 0 : i32
    %c0_i32_1 = arith.constant 0 : i32
    return %c0_i32, %c0_i32_0 : i32, i32
  }
  func.func @transform_29(%arg0: i32) -> (i32, i32) {
    %c0_i32 = arith.constant 0 : i32
    %c0_i32_0 = arith.constant 0 : i32
    %c0_i32_1 = arith.constant 0 : i32
    return %c0_i32, %c0_i32_0 : i32, i32
  }
  func.func @transform_30(%arg0: i32) -> (i32, i32) {
    %c0_i32 = arith.constant 0 : i32
    %c0_i32_0 = arith.constant 0 : i32
    %c0_i32_1 = arith.constant 0 : i32
    return %c0_i32, %c0_i32_0 : i32, i32
  }
  func.func @transform_31(%arg0: i32) -> (i32, i32) {
    %c0_i32 = arith.constant 0 : i32
    %c0_i32_0 = arith.constant 0 : i32
    %c0_i32_1 = arith.constant 0 : i32
    return %c0_i32, %c0_i32_0 : i32, i32
  }
  func.func @transform_32(%arg0: i32) -> (i32, i32) {
    %c0_i32 = arith.constant 0 : i32
    %c0_i32_0 = arith.constant 0 : i32
    %c0_i32_1 = arith.constant 0 : i32
    return %c0_i32, %c0_i32_0 : i32, i32
  }
  func.func @transform_33(%arg0: i32) -> (i32, i32, i32) {
    %c0_i32 = arith.constant 0 : i32
    %c0_i32_0 = arith.constant 0 : i32
    %c0_i32_1 = arith.constant 0 : i32
    return %arg0, %c0_i32, %c0_i32_0 : i32, i32, i32
  }
}

</mosaic_0001>

<llo_original>
// kernel: _lambda_.1
$region0: #{_lambda_.1}
  #allocation0 [shape = 'u32[]', space=smem, size = 0x4, offset = 0x4, fixed_abs, tag = 'smem constant byte address 0x4 - core index']
  #allocation1 [shape = 'u32[72,128]{1,0:T(1,128)}', space=vmem, size = 0x9000, scoped, tag = 'internal scratch']
  %s0 = inlined_call_operand.smem [shape: u32[34], index: -1, kind: input, shape index: {}]
  %s1 = sld [smem:[%s0]]
  %s2 = scalar_lea.smem %s0, 1
  %s3 = sld [smem:[%s2]]
  %s4 = scalar_lea.smem %s0, 2
  %s5 = sld [smem:[%s4]]
  %s6 = scalar_lea.smem %s0, 3
  %s7 = sld [smem:[%s6]]
  %s8 = scalar_lea.smem %s0, 4
  %s9 = sld [smem:[%s8]]
  %s10 = scalar_lea.smem %s0, 5
  %s11 = sld [smem:[%s10]]
  %s12 = scalar_lea.smem %s0, 6
  %s13 = sld [smem:[%s12]]
  %s14 = scalar_lea.smem %s0, 7
  %s15 = sld [smem:[%s14]]
  %s16 = scalar_lea.smem %s0, 8
  %s17 = sld [smem:[%s16]]
  %s18 = scalar_lea.smem %s0, 9
  %s19 = sld [smem:[%s18]]
  %s20 = scalar_lea.smem %s0, 10
  %s21 = sld [smem:[%s20]]
  %s22 = scalar_lea.smem %s0, 11
  %s23 = sld [smem:[%s22]]
  %s24 = scalar_lea.smem %s0, 12
  %s25 = sld [smem:[%s24]]
  %s26 = scalar_lea.smem %s0, 13
  %s27 = sld [smem:[%s26]]
  %s28 = scalar_lea.smem %s0, 14
  %s29 = sld [smem:[%s28]]
  %s30 = scalar_lea.smem %s0, 15
  %s31 = sld [smem:[%s30]]
  %s32 = scalar_lea.smem %s0, 16
  %s33 = sld [smem:[%s32]]
  %s34 = scalar_lea.smem %s0, 17
  %s35 = sld [smem:[%s34]]
  %s36 = scalar_lea.smem %s0, 18
  %s37 = sld [smem:[%s36]]
  %s38 = scalar_lea.smem %s0, 19
  %s39 = sld [smem:[%s38]]
  %s40 = scalar_lea.smem %s0, 20
  %s41 = sld [smem:[%s40]]
  %s42 = scalar_lea.smem %s0, 21
  %s43 = sld [smem:[%s42]]
  %s44 = scalar_lea.smem %s0, 22
  %s45 = sld [smem:[%s44]]
  %s46 = scalar_lea.smem %s0, 23
  %s47 = sld [smem:[%s46]]
  %s48 = scalar_lea.smem %s0, 24
  %s49 = sld [smem:[%s48]]
  %s50 = scalar_lea.smem %s0, 25
  %s51 = sld [smem:[%s50]]
  %s52 = scalar_lea.smem %s0, 26
  %s53 = sld [smem:[%s52]]
  %s54 = scalar_lea.smem %s0, 27
  %s55 = sld [smem:[%s54]]
  %s56 = scalar_lea.smem %s0, 28
  %s57 = sld [smem:[%s56]]
  %s58 = scalar_lea.smem %s0, 29
  %s59 = sld [smem:[%s58]]
  %s60 = scalar_lea.smem %s0, 30
  %s61 = sld [smem:[%s60]]
  %s62 = scalar_lea.smem %s0, 31
  %s63 = sld [smem:[%s62]]
  %s64 = scalar_lea.smem %s0, 32
  %s65 = sld [smem:[%s64]]
  %s66 = scalar_lea.smem %s0, 33
  %s67 = sld [smem:[%s66]]
  %s68 = sld [smem:[#allocation0]]
  $region165: #{_lambda_.1} parent=0
    _
  %s70 = ssub.s32 1, %s68
  %s71 = scalar_select 0, %s70, %s68
  loop: start=0, step=1, limit=4
  $region2: #{_lambda_.1} parent=0 // loop_pre_header
    _
  $region3: #{_lambda_.1} parent=0 // loop_header
    %s73 = sphi 0, %s77
    %p74 = scmp.ge.s32.totalorder %s73, 4
    %s83 = sphi 0, %s85
    %s86 = sphi 0, %s83
    %s87 = sphi 0, %s86
    %s103 = sphi 0, %s87
    %s107 = sphi 0, %s107
    %s109 = sphi 0, %s107
    %s110 = sphi 0, %s109
    %s124 = sphi 0, %s110
    %s128 = sphi 0, %s128
    %s130 = sphi 0, %s128
    %s131 = sphi 0, %s130
    %s145 = sphi 0, %s131
    %s149 = sphi 0, %s149
    %s151 = sphi 0, %s149
    %s152 = sphi 0, %s151
    %s166 = sphi 0, %s152
    %s170 = sphi 0, %s170
    %s172 = sphi 0, %s170
    %s173 = sphi 0, %s172
    %s187 = sphi 0, %s173
    %s191 = sphi 0, %s191
    %s193 = sphi 0, %s191
    %s194 = sphi 0, %s193
    %s208 = sphi 0, %s194
    %s212 = sphi 0, %s212
    %s214 = sphi 0, %s212
    %s215 = sphi 0, %s214
    %s229 = sphi 0, %s215
    %s233 = sphi 0, %s233
    %s235 = sphi 0, %s233
    %s236 = sphi 0, %s235
    %s250 = sphi 0, %s236
    %s254 = sphi 0, %s254
    %s256 = sphi 0, %s254
    %s257 = sphi 0, %s256
    %s271 = sphi 0, %s257
    %s275 = sphi 0, %s275
    %s277 = sphi 0, %s275
    %s278 = sphi 0, %s277
    %s292 = sphi 0, %s278
    %s296 = sphi 0, %s296
    %s298 = sphi 0, %s296
    %s299 = sphi 0, %s298
    %s313 = sphi 0, %s299
    %s317 = sphi 0, %s317
    %s319 = sphi 0, %s317
    %s320 = sphi 0, %s319
    %s334 = sphi 0, %s320
    %s338 = sphi 0, %s338
    %s340 = sphi 0, %s338
    %s341 = sphi 0, %s340
    %s355 = sphi 0, %s341
    %s359 = sphi 0, %s359
    %s361 = sphi 0, %s359
    %s362 = sphi 0, %s361
    %s376 = sphi 0, %s362
    %s380 = sphi 0, %s380
    %s382 = sphi 0, %s380
    %s383 = sphi 0, %s382
    %s397 = sphi 0, %s383
    %s401 = sphi 0, %s401
    %s403 = sphi 0, %s401
    %s404 = sphi 0, %s403
    %s418 = sphi 0, %s404
    %s422 = sphi 0, %s422
    %s424 = sphi 0, %s422
    %s425 = sphi 0, %s424
    %s439 = sphi 0, %s425
    %s443 = sphi 0, %s443
    %s445 = sphi 0, %s443
    %s446 = sphi 0, %s445
    %s460 = sphi 0, %s446
    %s464 = sphi 0, %s464
    %s466 = sphi 0, %s464
    %s467 = sphi 0, %s466
    %s481 = sphi 0, %s467
    %s485 = sphi 0, %s485
    %s487 = sphi 0, %s485
    %s488 = sphi 0, %s487
    %s502 = sphi 0, %s488
    %s506 = sphi 0, %s506
    %s508 = sphi 0, %s506
    %s509 = sphi 0, %s508
    %s523 = sphi 0, %s509
    %s527 = sphi 0, %s527
    %s529 = sphi 0, %s527
    %s530 = sphi 0, %s529
    %s544 = sphi 0, %s530
    %s548 = sphi 0, %s548
    %s550 = sphi 0, %s548
    %s551 = sphi 0, %s550
    %s565 = sphi 0, %s551
    %s569 = sphi 0, %s569
    %s571 = sphi 0, %s569
    %s572 = sphi 0, %s571
    %s586 = sphi 0, %s572
    %s590 = sphi 0, %s590
    %s592 = sphi 0, %s590
    %s593 = sphi 0, %s592
    %s607 = sphi 0, %s593
    %s611 = sphi 0, %s611
    %s613 = sphi 0, %s611
    %s614 = sphi 0, %s613
    %s628 = sphi 0, %s614
    %s632 = sphi 0, %s632
    %s634 = sphi 0, %s632
    %s635 = sphi 0, %s634
    %s649 = sphi 0, %s635
    %s653 = sphi 0, %s653
    %s655 = sphi 0, %s653
    %s656 = sphi 0, %s655
    %s670 = sphi 0, %s656
    %s674 = sphi 0, %s674
    %s676 = sphi 0, %s674
    %s677 = sphi 0, %s676
    %s691 = sphi 0, %s677
    %s695 = sphi 0, %s695
    %s697 = sphi 0, %s695
    %s698 = sphi 0, %s697
    %s712 = sphi 0, %s698
    %s716 = sphi 0, %s716
    %s718 = sphi 0, %s716
    %s719 = sphi 0, %s718
    %s733 = sphi 0, %s719
    %s737 = sphi 0, %s737
    %s739 = sphi 0, %s737
    %s740 = sphi 0, %s739
    %s754 = sphi 0, %s740
    %s758 = sphi 0, %s758
    %s760 = sphi 0, %s758
    %s761 = sphi 0, %s760
    %s775 = sphi 0, %s761
    %s781 = sphi 0, %s783
    %s784 = sphi 0, %s781
    %s785 = sphi 0, %s784
    %s801 = sphi 0, %s785
  $region4: #{_lambda_.1} parent=0 // loop_header_branch
    %76 = sbr.rel (%p74) target = $region8
  $region5: #{_lambda_.1} parent=0 // loop_body
    %s78 = ssub.s32 %s73, 1
    %s79 = ssub.s32 %s73, 2
    %s80 = sadd.s32 %s73, 1
    %s81 = ssub.s32 %s73, %s80
    %p82 = scmp.eq.s32.totalorder %s81, 0
    %s84 = sadd.s32 %s83, 1
    %s85 = scalar_select %p82, %s83, %s84
    %p88 = pneg %p82
    %p89 = scmp.eq.s32.totalorder %s73, 1
    %p90 = por %p88, %p89
    %p91 = scmp.ne.s32.totalorder %s83, %s86
    %p92 = scmp.eq.s32.totalorder %s73, 0
    %p93 = por %p91, %p92
    %p94 = scmp.ne.s32.totalorder %s83, %s86
    %p95 = scmp.eq.s32.totalorder %s78, 1
    %p96 = por %p94, %p95
    %p97 = scmp.ne.s32.totalorder %s86, %s87
    %p98 = scmp.eq.s32.totalorder %s78, 0
    %p99 = por %p97, %p98
    %p100 = scmp.ne.s32.totalorder %s86, %s87
    %p101 = scmp.eq.s32.totalorder %s79, 1
    %p102 = por %p100, %p101
    %p104 = scmp.ne.s32.totalorder %s87, %s103
    %p105 = scmp.eq.s32.totalorder %s79, 0
    %p106 = por %p104, %p105
    %s108 = sadd.s32 %s107, 1
    %p111 = scmp.eq.s32.totalorder %s73, 1
    %p112 = scmp.ne.s32.totalorder %s107, %s109
    %p113 = scmp.eq.s32.totalorder %s73, 0
    %p114 = por %p112, %p113
    %p115 = scmp.ne.s32.totalorder %s107, %s109
    %p116 = scmp.eq.s32.totalorder %s78, 1
    %p117 = por %p115, %p116
    %p118 = scmp.ne.s32.totalorder %s109, %s110
    %p119 = scmp.eq.s32.totalorder %s78, 0
    %p120 = por %p118, %p119
    %p121 = scmp.ne.s32.totalorder %s109, %s110
    %p122 = scmp.eq.s32.totalorder %s79, 1
    %p123 = por %p121, %p122
    %p125 = scmp.ne.s32.totalorder %s110, %s124
    %p126 = scmp.eq.s32.totalorder %s79, 0
    %p127 = por %p125, %p126
    %s129 = sadd.s32 %s128, 1
    %p132 = scmp.eq.s32.totalorder %s73, 1
    %p133 = scmp.ne.s32.totalorder %s128, %s130
    %p134 = scmp.eq.s32.totalorder %s73, 0
    %p135 = por %p133, %p134
    %p136 = scmp.ne.s32.totalorder %s128, %s130
    %p137 = scmp.eq.s32.totalorder %s78, 1
    %p138 = por %p136, %p137
    %p139 = scmp.ne.s32.totalorder %s130, %s131
    %p140 = scmp.eq.s32.totalorder %s78, 0
    %p141 = por %p139, %p140
    %p142 = scmp.ne.s32.totalorder %s130, %s131
    %p143 = scmp.eq.s32.totalorder %s79, 1
    %p144 = por %p142, %p143
    %p146 = scmp.ne.s32.totalorder %s131, %s145
    %p147 = scmp.eq.s32.totalorder %s79, 0
    %p148 = por %p146, %p147
    %s150 = sadd.s32 %s149, 1
    %p153 = scmp.eq.s32.totalorder %s73, 1
    %p154 = scmp.ne.s32.totalorder %s149, %s151
    %p155 = scmp.eq.s32.totalorder %s73, 0
    %p156 = por %p154, %p155
    %p157 = scmp.ne.s32.totalorder %s149, %s151
    %p158 = scmp.eq.s32.totalorder %s78, 1
    %p159 = por %p157, %p158
    %p160 = scmp.ne.s32.totalorder %s151, %s152
    %p161 = scmp.eq.s32.totalorder %s78, 0
    %p162 = por %p160, %p161
    %p163 = scmp.ne.s32.totalorder %s151, %s152
    %p164 = scmp.eq.s32.totalorder %s79, 1
    %p165 = por %p163, %p164
    %p167 = scmp.ne.s32.totalorder %s152, %s166
    %p168 = scmp.eq.s32.totalorder %s79, 0
    %p169 = por %p167, %p168
    %s171 = sadd.s32 %s170, 1
    %p174 = scmp.eq.s32.totalorder %s73, 1
    %p175 = scmp.ne.s32.totalorder %s170, %s172
    %p176 = scmp.eq.s32.totalorder %s73, 0
    %p177 = por %p175, %p176
    %p178 = scmp.ne.s32.totalorder %s170, %s172
    %p179 = scmp.eq.s32.totalorder %s78, 1
    %p180 = por %p178, %p179
    %p181 = scmp.ne.s32.totalorder %s172, %s173
    %p182 = scmp.eq.s32.totalorder %s78, 0
    %p183 = por %p181, %p182
    %p184 = scmp.ne.s32.totalorder %s172, %s173
    %p185 = scmp.eq.s32.totalorder %s79, 1
    %p186 = por %p184, %p185
    %p188 = scmp.ne.s32.totalorder %s173, %s187
    %p189 = scmp.eq.s32.totalorder %s79, 0
    %p190 = por %p188, %p189
    %s192 = sadd.s32 %s191, 1
    %p195 = scmp.eq.s32.totalorder %s73, 1
    %p196 = scmp.ne.s32.totalorder %s191, %s193
    %p197 = scmp.eq.s32.totalorder %s73, 0
    %p198 = por %p196, %p197
    %p199 = scmp.ne.s32.totalorder %s191, %s193
    %p200 = scmp.eq.s32.totalorder %s78, 1
    %p201 = por %p199, %p200
    %p202 = scmp.ne.s32.totalorder %s193, %s194
    %p203 = scmp.eq.s32.totalorder %s78, 0
    %p204 = por %p202, %p203
    %p205 = scmp.ne.s32.totalorder %s193, %s194
    %p206 = scmp.eq.s32.totalorder %s79, 1
    %p207 = por %p205, %p206
    %p209 = scmp.ne.s32.totalorder %s194, %s208
    %p210 = scmp.eq.s32.totalorder %s79, 0
    %p211 = por %p209, %p210
    %s213 = sadd.s32 %s212, 1
    %p216 = scmp.eq.s32.totalorder %s73, 1
    %p217 = scmp.ne.s32.totalorder %s212, %s214
    %p218 = scmp.eq.s32.totalorder %s73, 0
    %p219 = por %p217, %p218
    %p220 = scmp.ne.s32.totalorder %s212, %s214
    %p221 = scmp.eq.s32.totalorder %s78, 1
    %p222 = por %p220, %p221
    %p223 = scmp.ne.s32.totalorder %s214, %s215
    %p224 = scmp.eq.s32.totalorder %s78, 0
    %p225 = por %p223, %p224
    %p226 = scmp.ne.s32.totalorder %s214, %s215
    %p227 = scmp.eq.s32.totalorder %s79, 1
    %p228 = por %p226, %p227
    %p230 = scmp.ne.s32.totalorder %s215, %s229
    %p231 = scmp.eq.s32.totalorder %s79, 0
    %p232 = por %p230, %p231
    %s234 = sadd.s32 %s233, 1
    %p237 = scmp.eq.s32.totalorder %s73, 1
    %p238 = scmp.ne.s32.totalorder %s233, %s235
    %p239 = scmp.eq.s32.totalorder %s73, 0
    %p240 = por %p238, %p239
    %p241 = scmp.ne.s32.totalorder %s233, %s235
    %p242 = scmp.eq.s32.totalorder %s78, 1
    %p243 = por %p241, %p242
    %p244 = scmp.ne.s32.totalorder %s235, %s236
    %p245 = scmp.eq.s32.totalorder %s78, 0
    %p246 = por %p244, %p245
    %p247 = scmp.ne.s32.totalorder %s235, %s236
    %p248 = scmp.eq.s32.totalorder %s79, 1
    %p249 = por %p247, %p248
    %p251 = scmp.ne.s32.totalorder %s236, %s250
    %p252 = scmp.eq.s32.totalorder %s79, 0
    %p253 = por %p251, %p252
    %s255 = sadd.s32 %s254, 1
    %p258 = scmp.eq.s32.totalorder %s73, 1
    %p259 = scmp.ne.s32.totalorder %s254, %s256
    %p260 = scmp.eq.s32.totalorder %s73, 0
    %p261 = por %p259, %p260
    %p262 = scmp.ne.s32.totalorder %s254, %s256
    %p263 = scmp.eq.s32.totalorder %s78, 1
    %p264 = por %p262, %p263
    %p265 = scmp.ne.s32.totalorder %s256, %s257
    %p266 = scmp.eq.s32.totalorder %s78, 0
    %p267 = por %p265, %p266
    %p268 = scmp.ne.s32.totalorder %s256, %s257
    %p269 = scmp.eq.s32.totalorder %s79, 1
    %p270 = por %p268, %p269
    %p272 = scmp.ne.s32.totalorder %s257, %s271
    %p273 = scmp.eq.s32.totalorder %s79, 0
    %p274 = por %p272, %p273
    %s276 = sadd.s32 %s275, 1
    %p279 = scmp.eq.s32.totalorder %s73, 1
    %p280 = scmp.ne.s32.totalorder %s275, %s277
    %p281 = scmp.eq.s32.totalorder %s73, 0
    %p282 = por %p280, %p281
    %p283 = scmp.ne.s32.totalorder %s275, %s277
    %p284 = scmp.eq.s32.totalorder %s78, 1
    %p285 = por %p283, %p284
    %p286 = scmp.ne.s32.totalorder %s277, %s278
    %p287 = scmp.eq.s32.totalorder %s78, 0
    %p288 = por %p286, %p287
    %p289 = scmp.ne.s32.totalorder %s277, %s278
    %p290 = scmp.eq.s32.totalorder %s79, 1
    %p291 = por %p289, %p290
    %p293 = scmp.ne.s32.totalorder %s278, %s292
    %p294 = scmp.eq.s32.totalorder %s79, 0
    %p295 = por %p293, %p294
    %s297 = sadd.s32 %s296, 1
    %p300 = scmp.eq.s32.totalorder %s73, 1
    %p301 = scmp.ne.s32.totalorder %s296, %s298
    %p302 = scmp.eq.s32.totalorder %s73, 0
    %p303 = por %p301, %p302
    %p304 = scmp.ne.s32.totalorder %s296, %s298
    %p305 = scmp.eq.s32.totalorder %s78, 1
    %p306 = por %p304, %p305
    %p307 = scmp.ne.s32.totalorder %s298, %s299
    %p308 = scmp.eq.s32.totalorder %s78, 0
    %p309 = por %p307, %p308
    %p310 = scmp.ne.s32.totalorder %s298, %s299
    %p311 = scmp.eq.s32.totalorder %s79, 1
    %p312 = por %p310, %p311
    %p314 = scmp.ne.s32.totalorder %s299, %s313
    %p315 = scmp.eq.s32.totalorder %s79, 0
    %p316 = por %p314, %p315
    %s318 = sadd.s32 %s317, 1
    %p321 = scmp.eq.s32.totalorder %s73, 1
    %p322 = scmp.ne.s32.totalorder %s317, %s319
    %p323 = scmp.eq.s32.totalorder %s73, 0
    %p324 = por %p322, %p323
    %p325 = scmp.ne.s32.totalorder %s317, %s319
    %p326 = scmp.eq.s32.totalorder %s78, 1
    %p327 = por %p325, %p326
    %p328 = scmp.ne.s32.totalorder %s319, %s320
    %p329 = scmp.eq.s32.totalorder %s78, 0
    %p330 = por %p328, %p329
    %p331 = scmp.ne.s32.totalorder %s319, %s320
    %p332 = scmp.eq.s32.totalorder %s79, 1
    %p333 = por %p331, %p332
    %p335 = scmp.ne.s32.totalorder %s320, %s334
    %p336 = scmp.eq.s32.totalorder %s79, 0
    %p337 = por %p335, %p336
    %s339 = sadd.s32 %s338, 1
    %p342 = scmp.eq.s32.totalorder %s73, 1
    %p343 = scmp.ne.s32.totalorder %s338, %s340
    %p344 = scmp.eq.s32.totalorder %s73, 0
    %p345 = por %p343, %p344
    %p346 = scmp.ne.s32.totalorder %s338, %s340
    %p347 = scmp.eq.s32.totalorder %s78, 1
    %p348 = por %p346, %p347
    %p349 = scmp.ne.s32.totalorder %s340, %s341
    %p350 = scmp.eq.s32.totalorder %s78, 0
    %p351 = por %p349, %p350
    %p352 = scmp.ne.s32.totalorder %s340, %s341
    %p353 = scmp.eq.s32.totalorder %s79, 1
    %p354 = por %p352, %p353
    %p356 = scmp.ne.s32.totalorder %s341, %s355
    %p357 = scmp.eq.s32.totalorder %s79, 0
    %p358 = por %p356, %p357
    %s360 = sadd.s32 %s359, 1
    %p363 = scmp.eq.s32.totalorder %s73, 1
    %p364 = scmp.ne.s32.totalorder %s359, %s361
    %p365 = scmp.eq.s32.totalorder %s73, 0
    %p366 = por %p364, %p365
    %p367 = scmp.ne.s32.totalorder %s359, %s361
    %p368 = scmp.eq.s32.totalorder %s78, 1
    %p369 = por %p367, %p368
    %p370 = scmp.ne.s32.totalorder %s361, %s362
    %p371 = scmp.eq.s32.totalorder %s78, 0
    %p372 = por %p370, %p371
    %p373 = scmp.ne.s32.totalorder %s361, %s362
    %p374 = scmp.eq.s32.totalorder %s79, 1
    %p375 = por %p373, %p374
    %p377 = scmp.ne.s32.totalorder %s362, %s376
    %p378 = scmp.eq.s32.totalorder %s79, 0
    %p379 = por %p377, %p378
    %s381 = sadd.s32 %s380, 1
    %p384 = scmp.eq.s32.totalorder %s73, 1
    %p385 = scmp.ne.s32.totalorder %s380, %s382
    %p386 = scmp.eq.s32.totalorder %s73, 0
    %p387 = por %p385, %p386
    %p388 = scmp.ne.s32.totalorder %s380, %s382
    %p389 = scmp.eq.s32.totalorder %s78, 1
    %p390 = por %p388, %p389
    %p391 = scmp.ne.s32.totalorder %s382, %s383
    %p392 = scmp.eq.s32.totalorder %s78, 0
    %p393 = por %p391, %p392
    %p394 = scmp.ne.s32.totalorder %s382, %s383
    %p395 = scmp.eq.s32.totalorder %s79, 1
    %p396 = por %p394, %p395
    %p398 = scmp.ne.s32.totalorder %s383, %s397
    %p399 = scmp.eq.s32.totalorder %s79, 0
    %p400 = por %p398, %p399
    %s402 = sadd.s32 %s401, 1
    %p405 = scmp.eq.s32.totalorder %s73, 1
    %p406 = scmp.ne.s32.totalorder %s401, %s403
    %p407 = scmp.eq.s32.totalorder %s73, 0
    %p408 = por %p406, %p407
    %p409 = scmp.ne.s32.totalorder %s401, %s403
    %p410 = scmp.eq.s32.totalorder %s78, 1
    %p411 = por %p409, %p410
    %p412 = scmp.ne.s32.totalorder %s403, %s404
    %p413 = scmp.eq.s32.totalorder %s78, 0
    %p414 = por %p412, %p413
    %p415 = scmp.ne.s32.totalorder %s403, %s404
    %p416 = scmp.eq.s32.totalorder %s79, 1
    %p417 = por %p415, %p416
    %p419 = scmp.ne.s32.totalorder %s404, %s418
    %p420 = scmp.eq.s32.totalorder %s79, 0
    %p421 = por %p419, %p420
    %s423 = sadd.s32 %s422, 1
    %p426 = scmp.eq.s32.totalorder %s73, 1
    %p427 = scmp.ne.s32.totalorder %s422, %s424
    %p428 = scmp.eq.s32.totalorder %s73, 0
    %p429 = por %p427, %p428
    %p430 = scmp.ne.s32.totalorder %s422, %s424
    %p431 = scmp.eq.s32.totalorder %s78, 1
    %p432 = por %p430, %p431
    %p433 = scmp.ne.s32.totalorder %s424, %s425
    %p434 = scmp.eq.s32.totalorder %s78, 0
    %p435 = por %p433, %p434
    %p436 = scmp.ne.s32.totalorder %s424, %s425
    %p437 = scmp.eq.s32.totalorder %s79, 1
    %p438 = por %p436, %p437
    %p440 = scmp.ne.s32.totalorder %s425, %s439
    %p441 = scmp.eq.s32.totalorder %s79, 0
    %p442 = por %p440, %p441
    %s444 = sadd.s32 %s443, 1
    %p447 = scmp.eq.s32.totalorder %s73, 1
    %p448 = scmp.ne.s32.totalorder %s443, %s445
    %p449 = scmp.eq.s32.totalorder %s73, 0
    %p450 = por %p448, %p449
    %p451 = scmp.ne.s32.totalorder %s443, %s445
    %p452 = scmp.eq.s32.totalorder %s78, 1
    %p453 = por %p451, %p452
    %p454 = scmp.ne.s32.totalorder %s445, %s446
    %p455 = scmp.eq.s32.totalorder %s78, 0
    %p456 = por %p454, %p455
    %p457 = scmp.ne.s32.totalorder %s445, %s446
    %p458 = scmp.eq.s32.totalorder %s79, 1
    %p459 = por %p457, %p458
    %p461 = scmp.ne.s32.totalorder %s446, %s460
    %p462 = scmp.eq.s32.totalorder %s79, 0
    %p463 = por %p461, %p462
    %s465 = sadd.s32 %s464, 1
    %p468 = scmp.eq.s32.totalorder %s73, 1
    %p469 = scmp.ne.s32.totalorder %s464, %s466
    %p470 = scmp.eq.s32.totalorder %s73, 0
    %p471 = por %p469, %p470
    %p472 = scmp.ne.s32.totalorder %s464, %s466
    %p473 = scmp.eq.s32.totalorder %s78, 1
    %p474 = por %p472, %p473
    %p475 = scmp.ne.s32.totalorder %s466, %s467
    %p476 = scmp.eq.s32.totalorder %s78, 0
    %p477 = por %p475, %p476
    %p478 = scmp.ne.s32.totalorder %s466, %s467
    %p479 = scmp.eq.s32.totalorder %s79, 1
    %p480 = por %p478, %p479
    %p482 = scmp.ne.s32.totalorder %s467, %s481
    %p483 = scmp.eq.s32.totalorder %s79, 0
    %p484 = por %p482, %p483
    %s486 = sadd.s32 %s485, 1
    %p489 = scmp.eq.s32.totalorder %s73, 1
    %p490 = scmp.ne.s32.totalorder %s485, %s487
    %p491 = scmp.eq.s32.totalorder %s73, 0
    %p492 = por %p490, %p491
    %p493 = scmp.ne.s32.totalorder %s485, %s487
    %p494 = scmp.eq.s32.totalorder %s78, 1
    %p495 = por %p493, %p494
    %p496 = scmp.ne.s32.totalorder %s487, %s488
    %p497 = scmp.eq.s32.totalorder %s78, 0
    %p498 = por %p496, %p497
    %p499 = scmp.ne.s32.totalorder %s487, %s488
    %p500 = scmp.eq.s32.totalorder %s79, 1
    %p501 = por %p499, %p500
    %p503 = scmp.ne.s32.totalorder %s488, %s502
    %p504 = scmp.eq.s32.totalorder %s79, 0
    %p505 = por %p503, %p504
    %s507 = sadd.s32 %s506, 1
    %p510 = scmp.eq.s32.totalorder %s73, 1
    %p511 = scmp.ne.s32.totalorder %s506, %s508
    %p512 = scmp.eq.s32.totalorder %s73, 0
    %p513 = por %p511, %p512
    %p514 = scmp.ne.s32.totalorder %s506, %s508
    %p515 = scmp.eq.s32.totalorder %s78, 1
    %p516 = por %p514, %p515
    %p517 = scmp.ne.s32.totalorder %s508, %s509
    %p518 = scmp.eq.s32.totalorder %s78, 0
    %p519 = por %p517, %p518
    %p520 = scmp.ne.s32.totalorder %s508, %s509
    %p521 = scmp.eq.s32.totalorder %s79, 1
    %p522 = por %p520, %p521
    %p524 = scmp.ne.s32.totalorder %s509, %s523
    %p525 = scmp.eq.s32.totalorder %s79, 0
    %p526 = por %p524, %p525
    %s528 = sadd.s32 %s527, 1
    %p531 = scmp.eq.s32.totalorder %s73, 1
    %p532 = scmp.ne.s32.totalorder %s527, %s529
    %p533 = scmp.eq.s32.totalorder %s73, 0
    %p534 = por %p532, %p533
    %p535 = scmp.ne.s32.totalorder %s527, %s529
    %p536 = scmp.eq.s32.totalorder %s78, 1
    %p537 = por %p535, %p536
    %p538 = scmp.ne.s32.totalorder %s529, %s530
    %p539 = scmp.eq.s32.totalorder %s78, 0
    %p540 = por %p538, %p539
    %p541 = scmp.ne.s32.totalorder %s529, %s530
    %p542 = scmp.eq.s32.totalorder %s79, 1
    %p543 = por %p541, %p542
    %p545 = scmp.ne.s32.totalorder %s530, %s544
    %p546 = scmp.eq.s32.totalorder %s79, 0
    %p547 = por %p545, %p546
    %s549 = sadd.s32 %s548, 1
    %p552 = scmp.eq.s32.totalorder %s73, 1
    %p553 = scmp.ne.s32.totalorder %s548, %s550
    %p554 = scmp.eq.s32.totalorder %s73, 0
    %p555 = por %p553, %p554
    %p556 = scmp.ne.s32.totalorder %s548, %s550
    %p557 = scmp.eq.s32.totalorder %s78, 1
    %p558 = por %p556, %p557
    %p559 = scmp.ne.s32.totalorder %s550, %s551
    %p560 = scmp.eq.s32.totalorder %s78, 0
    %p561 = por %p559, %p560
    %p562 = scmp.ne.s32.totalorder %s550, %s551
    %p563 = scmp.eq.s32.totalorder %s79, 1
    %p564 = por %p562, %p563
    %p566 = scmp.ne.s32.totalorder %s551, %s565
    %p567 = scmp.eq.s32.totalorder %s79, 0
    %p568 = por %p566, %p567
    %s570 = sadd.s32 %s569, 1
    %p573 = scmp.eq.s32.totalorder %s73, 1
    %p574 = scmp.ne.s32.totalorder %s569, %s571
    %p575 = scmp.eq.s32.totalorder %s73, 0
    %p576 = por %p574, %p575
    %p577 = scmp.ne.s32.totalorder %s569, %s571
    %p578 = scmp.eq.s32.totalorder %s78, 1
    %p579 = por %p577, %p578
    %p580 = scmp.ne.s32.totalorder %s571, %s572
    %p581 = scmp.eq.s32.totalorder %s78, 0
    %p582 = por %p580, %p581
    %p583 = scmp.ne.s32.totalorder %s571, %s572
    %p584 = scmp.eq.s32.totalorder %s79, 1
    %p585 = por %p583, %p584
    %p587 = scmp.ne.s32.totalorder %s572, %s586
    %p588 = scmp.eq.s32.totalorder %s79, 0
    %p589 = por %p587, %p588
    %s591 = sadd.s32 %s590, 1
    %p594 = scmp.eq.s32.totalorder %s73, 1
    %p595 = scmp.ne.s32.totalorder %s590, %s592
    %p596 = scmp.eq.s32.totalorder %s73, 0
    %p597 = por %p595, %p596
    %p598 = scmp.ne.s32.totalorder %s590, %s592
    %p599 = scmp.eq.s32.totalorder %s78, 1
    %p600 = por %p598, %p599
    %p601 = scmp.ne.s32.totalorder %s592, %s593
    %p602 = scmp.eq.s32.totalorder %s78, 0
    %p603 = por %p601, %p602
    %p604 = scmp.ne.s32.totalorder %s592, %s593
    %p605 = scmp.eq.s32.totalorder %s79, 1
    %p606 = por %p604, %p605
    %p608 = scmp.ne.s32.totalorder %s593, %s607
    %p609 = scmp.eq.s32.totalorder %s79, 0
    %p610 = por %p608, %p609
    %s612 = sadd.s32 %s611, 1
    %p615 = scmp.eq.s32.totalorder %s73, 1
    %p616 = scmp.ne.s32.totalorder %s611, %s613
    %p617 = scmp.eq.s32.totalorder %s73, 0
    %p618 = por %p616, %p617
    %p619 = scmp.ne.s32.totalorder %s611, %s613
    %p620 = scmp.eq.s32.totalorder %s78, 1
    %p621 = por %p619, %p620
    %p622 = scmp.ne.s32.totalorder %s613, %s614
    %p623 = scmp.eq.s32.totalorder %s78, 0
    %p624 = por %p622, %p623
    %p625 = scmp.ne.s32.totalorder %s613, %s614
    %p626 = scmp.eq.s32.totalorder %s79, 1
    %p627 = por %p625, %p626
    %p629 = scmp.ne.s32.totalorder %s614, %s628
    %p630 = scmp.eq.s32.totalorder %s79, 0
    %p631 = por %p629, %p630
    %s633 = sadd.s32 %s632, 1
    %p636 = scmp.eq.s32.totalorder %s73, 1
    %p637 = scmp.ne.s32.totalorder %s632, %s634
    %p638 = scmp.eq.s32.totalorder %s73, 0
    %p639 = por %p637, %p638
    %p640 = scmp.ne.s32.totalorder %s632, %s634
    %p641 = scmp.eq.s32.totalorder %s78, 1
    %p642 = por %p640, %p641
    %p643 = scmp.ne.s32.totalorder %s634, %s635
    %p644 = scmp.eq.s32.totalorder %s78, 0
    %p645 = por %p643, %p644
    %p646 = scmp.ne.s32.totalorder %s634, %s635
    %p647 = scmp.eq.s32.totalorder %s79, 1
    %p648 = por %p646, %p647
    %p650 = scmp.ne.s32.totalorder %s635, %s649
    %p651 = scmp.eq.s32.totalorder %s79, 0
    %p652 = por %p650, %p651
    %s654 = sadd.s32 %s653, 1
    %p657 = scmp.eq.s32.totalorder %s73, 1
    %p658 = scmp.ne.s32.totalorder %s653, %s655
    %p659 = scmp.eq.s32.totalorder %s73, 0
    %p660 = por %p658, %p659
    %p661 = scmp.ne.s32.totalorder %s653, %s655
    %p662 = scmp.eq.s32.totalorder %s78, 1
    %p663 = por %p661, %p662
    %p664 = scmp.ne.s32.totalorder %s655, %s656
    %p665 = scmp.eq.s32.totalorder %s78, 0
    %p666 = por %p664, %p665
    %p667 = scmp.ne.s32.totalorder %s655, %s656
    %p668 = scmp.eq.s32.totalorder %s79, 1
    %p669 = por %p667, %p668
    %p671 = scmp.ne.s32.totalorder %s656, %s670
    %p672 = scmp.eq.s32.totalorder %s79, 0
    %p673 = por %p671, %p672
    %s675 = sadd.s32 %s674, 1
    %p678 = scmp.eq.s32.totalorder %s73, 1
    %p679 = scmp.ne.s32.totalorder %s674, %s676
    %p680 = scmp.eq.s32.totalorder %s73, 0
    %p681 = por %p679, %p680
    %p682 = scmp.ne.s32.totalorder %s674, %s676
    %p683 = scmp.eq.s32.totalorder %s78, 1
    %p684 = por %p682, %p683
    %p685 = scmp.ne.s32.totalorder %s676, %s677
    %p686 = scmp.eq.s32.totalorder %s78, 0
    %p687 = por %p685, %p686
    %p688 = scmp.ne.s32.totalorder %s676, %s677
    %p689 = scmp.eq.s32.totalorder %s79, 1
    %p690 = por %p688, %p689
    %p692 = scmp.ne.s32.totalorder %s677, %s691
    %p693 = scmp.eq.s32.totalorder %s79, 0
    %p694 = por %p692, %p693
    %s696 = sadd.s32 %s695, 1
    %p699 = scmp.eq.s32.totalorder %s73, 1
    %p700 = scmp.ne.s32.totalorder %s695, %s697
    %p701 = scmp.eq.s32.totalorder %s73, 0
    %p702 = por %p700, %p701
    %p703 = scmp.ne.s32.totalorder %s695, %s697
    %p704 = scmp.eq.s32.totalorder %s78, 1
    %p705 = por %p703, %p704
    %p706 = scmp.ne.s32.totalorder %s697, %s698
    %p707 = scmp.eq.s32.totalorder %s78, 0
    %p708 = por %p706, %p707
    %p709 = scmp.ne.s32.totalorder %s697, %s698
    %p710 = scmp.eq.s32.totalorder %s79, 1
    %p711 = por %p709, %p710
    %p713 = scmp.ne.s32.totalorder %s698, %s712
    %p714 = scmp.eq.s32.totalorder %s79, 0
    %p715 = por %p713, %p714
    %s717 = sadd.s32 %s716, 1
    %p720 = scmp.eq.s32.totalorder %s73, 1
    %p721 = scmp.ne.s32.totalorder %s716, %s718
    %p722 = scmp.eq.s32.totalorder %s73, 0
    %p723 = por %p721, %p722
    %p724 = scmp.ne.s32.totalorder %s716, %s718
    %p725 = scmp.eq.s32.totalorder %s78, 1
    %p726 = por %p724, %p725
    %p727 = scmp.ne.s32.totalorder %s718, %s719
    %p728 = scmp.eq.s32.totalorder %s78, 0
    %p729 = por %p727, %p728
    %p730 = scmp.ne.s32.totalorder %s718, %s719
    %p731 = scmp.eq.s32.totalorder %s79, 1
    %p732 = por %p730, %p731
    %p734 = scmp.ne.s32.totalorder %s719, %s733
    %p735 = scmp.eq.s32.totalorder %s79, 0
    %p736 = por %p734, %p735
    %s738 = sadd.s32 %s737, 1
    %p741 = scmp.eq.s32.totalorder %s73, 1
    %p742 = scmp.ne.s32.totalorder %s737, %s739
    %p743 = scmp.eq.s32.totalorder %s73, 0
    %p744 = por %p742, %p743
    %p745 = scmp.ne.s32.totalorder %s737, %s739
    %p746 = scmp.eq.s32.totalorder %s78, 1
    %p747 = por %p745, %p746
    %p748 = scmp.ne.s32.totalorder %s739, %s740
    %p749 = scmp.eq.s32.totalorder %s78, 0
    %p750 = por %p748, %p749
    %p751 = scmp.ne.s32.totalorder %s739, %s740
    %p752 = scmp.eq.s32.totalorder %s79, 1
    %p753 = por %p751, %p752
    %p755 = scmp.ne.s32.totalorder %s740, %s754
    %p756 = scmp.eq.s32.totalorder %s79, 0
    %p757 = por %p755, %p756
    %s759 = sadd.s32 %s758, 1
    %p762 = scmp.eq.s32.totalorder %s73, 1
    %p763 = scmp.ne.s32.totalorder %s758, %s760
    %p764 = scmp.eq.s32.totalorder %s73, 0
    %p765 = por %p763, %p764
    %p766 = scmp.ne.s32.totalorder %s758, %s760
    %p767 = scmp.eq.s32.totalorder %s78, 1
    %p768 = por %p766, %p767
    %p769 = scmp.ne.s32.totalorder %s760, %s761
    %p770 = scmp.eq.s32.totalorder %s78, 0
    %p771 = por %p769, %p770
    %p772 = scmp.ne.s32.totalorder %s760, %s761
    %p773 = scmp.eq.s32.totalorder %s79, 1
    %p774 = por %p772, %p773
    %p776 = scmp.ne.s32.totalorder %s761, %s775
    %p777 = scmp.eq.s32.totalorder %s79, 0
    %p778 = por %p776, %p777
    %s779 = ssub.s32 %s73, %s80
    %p780 = scmp.eq.s32.totalorder %s779, 0
    %s782 = sadd.s32 %s781, 1
    %s783 = scalar_select %p780, %s781, %s782
    %p786 = pneg %p780
    %p787 = scmp.eq.s32.totalorder %s73, 1
    %p788 = por %p786, %p787
    %p789 = scmp.ne.s32.totalorder %s781, %s784
    %p790 = scmp.eq.s32.totalorder %s73, 0
    %p791 = por %p789, %p790
    %p792 = scmp.ne.s32.totalorder %s781, %s784
    %p793 = scmp.eq.s32.totalorder %s78, 1
    %p794 = por %p792, %p793
    %p795 = scmp.ne.s32.totalorder %s784, %s785
    %p796 = scmp.eq.s32.totalorder %s78, 0
    %p797 = por %p795, %p796
    %p798 = scmp.ne.s32.totalorder %s784, %s785
    %p799 = scmp.eq.s32.totalorder %s79, 1
    %p800 = por %p798, %p799
    %p802 = scmp.ne.s32.totalorder %s785, %s801
    %p803 = scmp.eq.s32.totalorder %s79, 0
    %p804 = por %p802, %p803
    %p805 = scmp.le.s32.totalorder 1, %s73
    %p806 = scmp.lt.s32.totalorder %s73, 3
    %p807 = pnand %p805, %p806
    %p808 = pneg %p807
    // Predicated region
    $region9: #{_lambda_.1} parent=5 // pred_check
      _
    $region10: #{_lambda_.1} parent=5 // pred_check_branch
      %810 = sbr.rel (%p807) target = $region12
    $region11: #{_lambda_.1} parent=5 // pred_region
      %s811 = ssub.s32 %s73, 1
      // Predicated region
      $region13: #{_lambda_.1} parent=11 // pred_check
        %p812 = pneg %p120
      $region14: #{_lambda_.1} parent=11 // pred_check_branch
        %814 = sbr.rel (%p812) target = $region16
      $region15: #{_lambda_.1} parent=11 // pred_region
        _
      $region16: #{_lambda_.1} parent=11 // pred_fallthru
        _
      // Predicated region
      $region17: #{_lambda_.1} parent=11 // pred_check
        %p815 = pneg %p141
      $region18: #{_lambda_.1} parent=11 // pred_check_branch
        %817 = sbr.rel (%p815) target = $region20
      $region19: #{_lambda_.1} parent=11 // pred_region
        _
      $region20: #{_lambda_.1} parent=11 // pred_fallthru
        _
      // Predicated region
      $region21: #{_lambda_.1} parent=11 // pred_check
        %p818 = pneg %p162
      $region22: #{_lambda_.1} parent=11 // pred_check_branch
        %820 = sbr.rel (%p818) target = $region24
      $region23: #{_lambda_.1} parent=11 // pred_region
        _
      $region24: #{_lambda_.1} parent=11 // pred_fallthru
        _
      // Predicated region
      $region25: #{_lambda_.1} parent=11 // pred_check
        %p821 = pneg %p183
      $region26: #{_lambda_.1} parent=11 // pred_check_branch
        %823 = sbr.rel (%p821) target = $region28
      $region27: #{_lambda_.1} parent=11 // pred_region
        _
      $region28: #{_lambda_.1} parent=11 // pred_fallthru
        _
      // Predicated region
      $region29: #{_lambda_.1} parent=11 // pred_check
        %p824 = pneg %p204
      $region30: #{_lambda_.1} parent=11 // pred_check_branch
        %826 = sbr.rel (%p824) target = $region32
      $region31: #{_lambda_.1} parent=11 // pred_region
        _
      $region32: #{_lambda_.1} parent=11 // pred_fallthru
        _
      // Predicated region
      $region33: #{_lambda_.1} parent=11 // pred_check
        %p827 = pneg %p225
      $region34: #{_lambda_.1} parent=11 // pred_check_branch
        %829 = sbr.rel (%p827) target = $region36
      $region35: #{_lambda_.1} parent=11 // pred_region
        _
      $region36: #{_lambda_.1} parent=11 // pred_fallthru
        _
      // Predicated region
      $region37: #{_lambda_.1} parent=11 // pred_check
        %p830 = pneg %p246
      $region38: #{_lambda_.1} parent=11 // pred_check_branch
        %832 = sbr.rel (%p830) target = $region40
      $region39: #{_lambda_.1} parent=11 // pred_region
        _
      $region40: #{_lambda_.1} parent=11 // pred_fallthru
        _
      // Predicated region
      $region41: #{_lambda_.1} parent=11 // pred_check
        %p833 = pneg %p267
      $region42: #{_lambda_.1} parent=11 // pred_check_branch
        %835 = sbr.rel (%p833) target = $region44
      $region43: #{_lambda_.1} parent=11 // pred_region
        _
      $region44: #{_lambda_.1} parent=11 // pred_fallthru
        _
      // Predicated region
      $region45: #{_lambda_.1} parent=11 // pred_check
        %p836 = pneg %p288
      $region46: #{_lambda_.1} parent=11 // pred_check_branch
        %838 = sbr.rel (%p836) target = $region48
      $region47: #{_lambda_.1} parent=11 // pred_region
        _
      $region48: #{_lambda_.1} parent=11 // pred_fallthru
        _
      // Predicated region
      $region49: #{_lambda_.1} parent=11 // pred_check
        %p839 = pneg %p309
      $region50: #{_lambda_.1} parent=11 // pred_check_branch
        %841 = sbr.rel (%p839) target = $region52
      $region51: #{_lambda_.1} parent=11 // pred_region
        _
      $region52: #{_lambda_.1} parent=11 // pred_fallthru
        _
      // Predicated region
      $region53: #{_lambda_.1} parent=11 // pred_check
        %p842 = pneg %p330
      $region54: #{_lambda_.1} parent=11 // pred_check_branch
        %844 = sbr.rel (%p842) target = $region56
      $region55: #{_lambda_.1} parent=11 // pred_region
        _
      $region56: #{_lambda_.1} parent=11 // pred_fallthru
        _
      // Predicated region
      $region57: #{_lambda_.1} parent=11 // pred_check
        %p845 = pneg %p351
      $region58: #{_lambda_.1} parent=11 // pred_check_branch
        %847 = sbr.rel (%p845) target = $region60
      $region59: #{_lambda_.1} parent=11 // pred_region
        _
      $region60: #{_lambda_.1} parent=11 // pred_fallthru
        _
      // Predicated region
      $region61: #{_lambda_.1} parent=11 // pred_check
        %p848 = pneg %p372
      $region62: #{_lambda_.1} parent=11 // pred_check_branch
        %850 = sbr.rel (%p848) target = $region64
      $region63: #{_lambda_.1} parent=11 // pred_region
        _
      $region64: #{_lambda_.1} parent=11 // pred_fallthru
        _
      // Predicated region
      $region65: #{_lambda_.1} parent=11 // pred_check
        %p851 = pneg %p393
      $region66: #{_lambda_.1} parent=11 // pred_check_branch
        %853 = sbr.rel (%p851) target = $region68
      $region67: #{_lambda_.1} parent=11 // pred_region
        _
      $region68: #{_lambda_.1} parent=11 // pred_fallthru
        _
      // Predicated region
      $region69: #{_lambda_.1} parent=11 // pred_check
        %p854 = pneg %p414
      $region70: #{_lambda_.1} parent=11 // pred_check_branch
        %856 = sbr.rel (%p854) target = $region72
      $region71: #{_lambda_.1} parent=11 // pred_region
        _
      $region72: #{_lambda_.1} parent=11 // pred_fallthru
        _
      // Predicated region
      $region73: #{_lambda_.1} parent=11 // pred_check
        %p857 = pneg %p435
      $region74: #{_lambda_.1} parent=11 // pred_check_branch
        %859 = sbr.rel (%p857) target = $region76
      $region75: #{_lambda_.1} parent=11 // pred_region
        _
      $region76: #{_lambda_.1} parent=11 // pred_fallthru
        _
      // Predicated region
      $region77: #{_lambda_.1} parent=11 // pred_check
        %p860 = pneg %p456
      $region78: #{_lambda_.1} parent=11 // pred_check_branch
        %862 = sbr.rel (%p860) target = $region80
      $region79: #{_lambda_.1} parent=11 // pred_region
        _
      $region80: #{_lambda_.1} parent=11 // pred_fallthru
        _
      // Predicated region
      $region81: #{_lambda_.1} parent=11 // pred_check
        %p863 = pneg %p477
      $region82: #{_lambda_.1} parent=11 // pred_check_branch
        %865 = sbr.rel (%p863) target = $region84
      $region83: #{_lambda_.1} parent=11 // pred_region
        _
      $region84: #{_lambda_.1} parent=11 // pred_fallthru
        _
      // Predicated region
      $region85: #{_lambda_.1} parent=11 // pred_check
        %p866 = pneg %p498
      $region86: #{_lambda_.1} parent=11 // pred_check_branch
        %868 = sbr.rel (%p866) target = $region88
      $region87: #{_lambda_.1} parent=11 // pred_region
        _
      $region88: #{_lambda_.1} parent=11 // pred_fallthru
        _
      // Predicated region
      $region89: #{_lambda_.1} parent=11 // pred_check
        %p869 = pneg %p519
      $region90: #{_lambda_.1} parent=11 // pred_check_branch
        %871 = sbr.rel (%p869) target = $region92
      $region91: #{_lambda_.1} parent=11 // pred_region
        _
      $region92: #{_lambda_.1} parent=11 // pred_fallthru
        _
      // Predicated region
      $region93: #{_lambda_.1} parent=11 // pred_check
        %p872 = pneg %p540
      $region94: #{_lambda_.1} parent=11 // pred_check_branch
        %874 = sbr.rel (%p872) target = $region96
      $region95: #{_lambda_.1} parent=11 // pred_region
        _
      $region96: #{_lambda_.1} parent=11 // pred_fallthru
        _
      // Predicated region
      $region97: #{_lambda_.1} parent=11 // pred_check
        %p875 = pneg %p561
      $region98: #{_lambda_.1} parent=11 // pred_check_branch
        %877 = sbr.rel (%p875) target = $region100
      $region99: #{_lambda_.1} parent=11 // pred_region
        _
      $region100: #{_lambda_.1} parent=11 // pred_fallthru
        _
      // Predicated region
      $region101: #{_lambda_.1} parent=11 // pred_check
        %p878 = pneg %p582
      $region102: #{_lambda_.1} parent=11 // pred_check_branch
        %880 = sbr.rel (%p878) target = $region104
      $region103: #{_lambda_.1} parent=11 // pred_region
        _
      $region104: #{_lambda_.1} parent=11 // pred_fallthru
        _
      // Predicated region
      $region105: #{_lambda_.1} parent=11 // pred_check
        %p881 = pneg %p603
      $region106: #{_lambda_.1} parent=11 // pred_check_branch
        %883 = sbr.rel (%p881) target = $region108
      $region107: #{_lambda_.1} parent=11 // pred_region
        _
      $region108: #{_lambda_.1} parent=11 // pred_fallthru
        _
      // Predicated region
      $region109: #{_lambda_.1} parent=11 // pred_check
        %p884 = pneg %p624
      $region110: #{_lambda_.1} parent=11 // pred_check_branch
        %886 = sbr.rel (%p884) target = $region112
      $region111: #{_lambda_.1} parent=11 // pred_region
        _
      $region112: #{_lambda_.1} parent=11 // pred_fallthru
        _
      // Predicated region
      $region113: #{_lambda_.1} parent=11 // pred_check
        %p887 = pneg %p645
      $region114: #{_lambda_.1} parent=11 // pred_check_branch
        %889 = sbr.rel (%p887) target = $region116
      $region115: #{_lambda_.1} parent=11 // pred_region
        _
      $region116: #{_lambda_.1} parent=11 // pred_fallthru
        _
      // Predicated region
      $region117: #{_lambda_.1} parent=11 // pred_check
        %p890 = pneg %p666
      $region118: #{_lambda_.1} parent=11 // pred_check_branch
        %892 = sbr.rel (%p890) target = $region120
      $region119: #{_lambda_.1} parent=11 // pred_region
        _
      $region120: #{_lambda_.1} parent=11 // pred_fallthru
        _
      // Predicated region
      $region121: #{_lambda_.1} parent=11 // pred_check
        %p893 = pneg %p687
      $region122: #{_lambda_.1} parent=11 // pred_check_branch
        %895 = sbr.rel (%p893) target = $region124
      $region123: #{_lambda_.1} parent=11 // pred_region
        _
      $region124: #{_lambda_.1} parent=11 // pred_fallthru
        _
      // Predicated region
      $region125: #{_lambda_.1} parent=11 // pred_check
        %p896 = pneg %p708
      $region126: #{_lambda_.1} parent=11 // pred_check_branch
        %898 = sbr.rel (%p896) target = $region128
      $region127: #{_lambda_.1} parent=11 // pred_region
        _
      $region128: #{_lambda_.1} parent=11 // pred_fallthru
        _
      // Predicated region
      $region129: #{_lambda_.1} parent=11 // pred_check
        %p899 = pneg %p729
      $region130: #{_lambda_.1} parent=11 // pred_check_branch
        %901 = sbr.rel (%p899) target = $region132
      $region131: #{_lambda_.1} parent=11 // pred_region
        _
      $region132: #{_lambda_.1} parent=11 // pred_fallthru
        _
      // Predicated region
      $region133: #{_lambda_.1} parent=11 // pred_check
        %p902 = pneg %p750
      $region134: #{_lambda_.1} parent=11 // pred_check_branch
        %904 = sbr.rel (%p902) target = $region136
      $region135: #{_lambda_.1} parent=11 // pred_region
        _
      $region136: #{_lambda_.1} parent=11 // pred_fallthru
        _
      // Predicated region
      $region137: #{_lambda_.1} parent=11 // pred_check
        %p905 = pneg %p771
      $region138: #{_lambda_.1} parent=11 // pred_check_branch
        %907 = sbr.rel (%p905) target = $region140
      $region139: #{_lambda_.1} parent=11 // pred_region
        _
      $region140: #{_lambda_.1} parent=11 // pred_fallthru
        _
    $region12: #{_lambda_.1} parent=5 // pred_fallthru
      _
    %p908 = scmp.lt.s32.totalorder %s73, 2
    // Predicated region
    $region141: #{_lambda_.1} parent=5 // pred_check
      %p909 = pneg %p908
    $region142: #{_lambda_.1} parent=5 // pred_check_branch
      %911 = sbr.rel (%p909) target = $region144
    $region143: #{_lambda_.1} parent=5 // pred_region
      // Predicated region
      $region145: #{_lambda_.1} parent=143 // pred_check
        %p912 = pneg %p93
      $region146: #{_lambda_.1} parent=143 // pred_check_branch
        %914 = sbr.rel (%p912) target = $region148
      $region147: #{_lambda_.1} parent=143 // pred_region
        %p915 = scmp.lt.s32.totalorder %s73, 1
        %s916 = scalar_select %p915, %s73, 1
        %s917 = smul.addr %s916, 54
        %s918 = smul.addr %s917, 4
        %s919 = scalar_lea.vmem %s1, %s918
      $region148: #{_lambda_.1} parent=143 // pred_fallthru
        _
    $region144: #{_lambda_.1} parent=5 // pred_fallthru
      _
    %p920 = scmp.le.s32.totalorder 1, %s73
    %p921 = scmp.lt.s32.totalorder %s73, 3
    %p922 = pnand %p920, %p921
    %p923 = pneg %p922
    // Predicated region
    $region149: #{_lambda_.1} parent=5 // pred_check
      _
    $region150: #{_lambda_.1} parent=5 // pred_check_branch
      %925 = sbr.rel (%p922) target = $region152
    $region151: #{_lambda_.1} parent=5 // pred_region
      %s926 = ssub.s32 %s73, 1
      %p927 = scmp.lt.s32.totalorder %s78, 1
      %s928 = scalar_select %p927, %s78, 1
      %s929 = smul.addr %s928, 54
      %s930 = smul.addr %s929, 4
      %s931 = scalar_lea.vmem %s1, %s930
      %p932 = pneg %p99
      %p933 = pneg %p96
      %p934 = pneg %p120
      %p935 = pneg %p117
      %p936 = pneg %p141
      %p937 = pneg %p138
      %p938 = pneg %p162
      %p939 = pneg %p159
      %p940 = pneg %p183
      %p941 = pneg %p180
      %p942 = pneg %p204
      %p943 = pneg %p201
      %p944 = pneg %p225
      %p945 = pneg %p222
      %p946 = pneg %p246
      %p947 = pneg %p243
      %p948 = pneg %p267
      %p949 = pneg %p264
      %p950 = pneg %p288
      %p951 = pneg %p285
      %p952 = pneg %p309
      %p953 = pneg %p306
      %p954 = pneg %p330
      %p955 = pneg %p327
      %p956 = pneg %p351
      %p957 = pneg %p348
      %p958 = pneg %p372
      %p959 = pneg %p369
      %p960 = pneg %p393
      %p961 = pneg %p390
      %p962 = pneg %p414
      %p963 = pneg %p411
      %p964 = pneg %p435
      %p965 = pneg %p432
      %p966 = pneg %p456
      %p967 = pneg %p453
      %p968 = pneg %p477
      %p969 = pneg %p474
      %p970 = pneg %p498
      %p971 = pneg %p495
      %p972 = pneg %p519
      %p973 = pneg %p516
      %p974 = pneg %p540
      %p975 = pneg %p537
      %p976 = pneg %p561
      %p977 = pneg %p558
      %p978 = pneg %p582
      %p979 = pneg %p579
      %p980 = pneg %p603
      %p981 = pneg %p600
      %p982 = pneg %p624
      %p983 = pneg %p621
      %p984 = pneg %p645
      %p985 = pneg %p642
      %p986 = pneg %p666
      %p987 = pneg %p663
      %p988 = pneg %p687
      %p989 = pneg %p684
      %p990 = pneg %p708
      %p991 = pneg %p705
      %p992 = pneg %p729
      %p993 = pneg %p726
      %p994 = pneg %p750
      %p995 = pneg %p747
      %p996 = pneg %p771
      %p997 = pneg %p768
      %p998 = pneg %p797
      %p999 = pneg %p794
      %p1000 = scmp.lt.s32.totalorder %s78, 1
      %s1001 = scalar_select %p1000, %s78, 1
      %s1002 = smul.addr %s1001, 8
      %s1003 = scalar_lea.vmem %s67, %s1002
      %p1004 = scmp.lt.s32.totalorder %s78, 1
      %s1005 = scalar_select %p1004, %s78, 1
      %s1006 = smul.addr %s1005, 54
      %s1007 = smul.addr %s1006, 4
      %s1008 = scalar_lea.vmem %s1, %s1007
      %p1009 = scmp.lt.s32.totalorder %s78, 1
      %s1010 = scalar_select %p1009, %s78, 1
      %s1011 = smul.addr %s1010, 8
      %s1012 = scalar_lea.vmem %s67, %s1011
      %v1014 = vld [vmem:[%s1008] sm:$0xf]
      %v1015 = vld [vmem:[%s1008 + $0x4] sm:$0xf]
      %v1016 = vld [vmem:[%s1008 + $0x8] sm:$0x1]
      %v1017 = vld [vmem:[%s1008 + $0xc] sm:$0xf]
      %v1018 = vld [vmem:[%s1008 + $0x10] sm:$0xf]
      %v1019 = vld [vmem:[%s1008 + $0x14] sm:$0x1]
      %v1020 = vld [vmem:[%s1008 + $0x18] sm:$0xf]
      %v1021 = vld [vmem:[%s1008 + $0x1c] sm:$0xf]
      %v1022 = vld [vmem:[%s1008 + $0x20] sm:$0x1]
      %v1023 = vld [vmem:[%s1008 + $0x24] sm:$0xf]
      %v1024 = vld [vmem:[%s1008 + $0x28] sm:$0xf]
      %v1025 = vld [vmem:[%s1008 + $0x2c] sm:$0x1]
      %v1026 = vld [vmem:[%s1008 + $0x30] sm:$0xf]
      %v1027 = vld [vmem:[%s1008 + $0x34] sm:$0xf]
      %v1028 = vld [vmem:[%s1008 + $0x38] sm:$0x1]
      %v1029 = vld [vmem:[%s1008 + $0x3c] sm:$0xf]
      %v1030 = vld [vmem:[%s1008 + $0x40] sm:$0xf]
      %v1031 = vld [vmem:[%s1008 + $0x44] sm:$0x1]
      %v1032 = vld [vmem:[%s1008 + $0x48] sm:$0xf]
      %v1033 = vld [vmem:[%s1008 + $0x4c] sm:$0xf]
      %v1034 = vld [vmem:[%s1008 + $0x50] sm:$0x1]
      %v1035 = vld [vmem:[%s1008 + $0x54] sm:$0xf]
      %v1036 = vld [vmem:[%s1008 + $0x58] sm:$0xf]
      %v1037 = vld [vmem:[%s1008 + $0x5c] sm:$0x1]
      %v1038 = vld [vmem:[%s1008 + $0x60] sm:$0xf]
      %v1039 = vld [vmem:[%s1008 + $0x64] sm:$0xf]
      %v1040 = vld [vmem:[%s1008 + $0x68] sm:$0x1]
      %v1041 = vld [vmem:[%s1008 + $0x6c] sm:$0xf]
      %v1042 = vld [vmem:[%s1008 + $0x70] sm:$0xf]
      %v1043 = vld [vmem:[%s1008 + $0x74] sm:$0x1]
      %v1044 = vld [vmem:[%s1008 + $0x78] sm:$0xf]
      %v1045 = vld [vmem:[%s1008 + $0x7c] sm:$0xf]
      %v1046 = vld [vmem:[%s1008 + $0x80] sm:$0x1]
      %v1047 = vld [vmem:[%s1008 + $0x84] sm:$0xf]
      %v1048 = vld [vmem:[%s1008 + $0x88] sm:$0xf]
      %v1049 = vld [vmem:[%s1008 + $0x8c] sm:$0x1]
      %v1050 = vld [vmem:[%s1008 + $0x90] sm:$0xf]
      %v1051 = vld [vmem:[%s1008 + $0x94] sm:$0xf]
      %v1052 = vld [vmem:[%s1008 + $0x98] sm:$0x1]
      %v1053 = vld [vmem:[%s1008 + $0x9c] sm:$0xf]
      %v1054 = vld [vmem:[%s1008 + $0xa0] sm:$0xf]
      %v1055 = vld [vmem:[%s1008 + $0xa4] sm:$0x1]
      %v1056 = vld [vmem:[%s1008 + $0xa8] sm:$0xf]
      %v1057 = vld [vmem:[%s1008 + $0xac] sm:$0xf]
      %v1058 = vld [vmem:[%s1008 + $0xb0] sm:$0x1]
      %v1059 = vld [vmem:[%s1008 + $0xb4] sm:$0xf]
      %v1060 = vld [vmem:[%s1008 + $0xb8] sm:$0xf]
      %v1061 = vld [vmem:[%s1008 + $0xbc] sm:$0x1]
      %v1062 = vld [vmem:[%s1008 + $0xc0] sm:$0xf]
      %v1063 = vld [vmem:[%s1008 + $0xc4] sm:$0xf]
      %v1064 = vld [vmem:[%s1008 + $0xc8] sm:$0x1]
      %v1065 = vld [vmem:[%s1008 + $0xcc] sm:$0xf]
      %v1066 = vld [vmem:[%s1008 + $0xd0] sm:$0xf]
      %v1067 = vld [vmem:[%s1008 + $0xd4] sm:$0x1]
      %v1100 = vunpack.c.l.b16 %v1014
      %v1101 = vunpack.c.l.b16 %v1015
      %v1102 = vunpack.c.l.b16 %v1017
      %v1103 = vunpack.c.l.b16 %v1018
      %v1104 = vunpack.c.l.b16 %v1020
      %v1105 = vunpack.c.l.b16 %v1021
      %v1106 = vunpack.c.l.b16 %v1023
      %v1107 = vunpack.c.l.b16 %v1024
      %v1108 = vunpack.c.l.b16 %v1026
      %v1109 = vunpack.c.l.b16 %v1027
      %v1110 = vunpack.c.l.b16 %v1029
      %v1111 = vunpack.c.l.b16 %v1030
      %v1112 = vunpack.c.l.b16 %v1032
      %v1113 = vunpack.c.l.b16 %v1033
      %v1114 = vunpack.c.l.b16 %v1035
      %v1115 = vunpack.c.l.b16 %v1036
      %v1116 = vunpack.c.l.b16 %v1038
      %v1117 = vunpack.c.l.b16 %v1039
      %v1118 = vunpack.c.l.b16 %v1041
      %v1119 = vunpack.c.l.b16 %v1042
      %v1120 = vunpack.c.l.b16 %v1044
      %v1121 = vunpack.c.l.b16 %v1045
      %v1122 = vunpack.c.l.b16 %v1047
      %v1123 = vunpack.c.l.b16 %v1048
      %v1124 = vunpack.c.l.b16 %v1050
      %v1125 = vunpack.c.l.b16 %v1051
      %v1126 = vunpack.c.l.b16 %v1053
      %v1127 = vunpack.c.l.b16 %v1054
      %v1128 = vunpack.c.l.b16 %v1056
      %v1129 = vunpack.c.l.b16 %v1057
      %v1130 = vunpack.c.l.b16 %v1059
      %v1131 = vunpack.c.l.b16 %v1060
      %v1132 = vpack.c.b16 %v1101, %v1100
      %v1133 = vpack.c.b16 %v1103, %v1102
      %v1134 = vpack.c.b16 %v1105, %v1104
      %v1135 = vpack.c.b16 %v1107, %v1106
      %v1136 = vpack.c.b16 %v1109, %v1108
      %v1137 = vpack.c.b16 %v1111, %v1110
      %v1138 = vpack.c.b16 %v1113, %v1112
      %v1139 = vpack.c.b16 %v1115, %v1114
      %v1140 = vpack.c.b16 %v1117, %v1116
      %v1141 = vpack.c.b16 %v1119, %v1118
      %v1142 = vpack.c.b16 %v1121, %v1120
      %v1143 = vpack.c.b16 %v1123, %v1122
      %v1144 = vpack.c.b16 %v1125, %v1124
      %v1145 = vpack.c.b16 %v1127, %v1126
      %v1146 = vpack.c.b16 %v1129, %v1128
      %v1147 = vpack.c.b16 %v1131, %v1130
      %v1164 = vunpack.c.l.b16 %v1016
      %v1165 = vunpack.c.l.b16 %v1019
      %v1166 = vunpack.c.l.b16 %v1022
      %v1167 = vunpack.c.l.b16 %v1025
      %v1168 = vunpack.c.l.b16 %v1028
      %v1169 = vunpack.c.l.b16 %v1031
      %v1170 = vunpack.c.l.b16 %v1034
      %v1171 = vunpack.c.l.b16 %v1037
      %v1172 = vunpack.c.l.b16 %v1040
      %v1173 = vunpack.c.l.b16 %v1043
      %v1174 = vunpack.c.l.b16 %v1046
      %v1175 = vunpack.c.l.b16 %v1049
      %v1176 = vunpack.c.l.b16 %v1052
      %v1177 = vunpack.c.l.b16 %v1055
      %v1178 = vunpack.c.l.b16 %v1058
      %v1179 = vunpack.c.l.b16 %v1061
      %v1180 = vpack.c.b16 %v1164, %v1164
      %v1181 = vpack.c.b16 %v1165, %v1165
      %v1182 = vpack.c.b16 %v1166, %v1166
      %v1183 = vpack.c.b16 %v1167, %v1167
      %v1184 = vpack.c.b16 %v1168, %v1168
      %v1185 = vpack.c.b16 %v1169, %v1169
      %v1186 = vpack.c.b16 %v1170, %v1170
      %v1187 = vpack.c.b16 %v1171, %v1171
      %v1188 = vpack.c.b16 %v1172, %v1172
      %v1189 = vpack.c.b16 %v1173, %v1173
      %v1190 = vpack.c.b16 %v1174, %v1174
      %v1191 = vpack.c.b16 %v1175, %v1175
      %v1192 = vpack.c.b16 %v1176, %v1176
      %v1193 = vpack.c.b16 %v1177, %v1177
      %v1194 = vpack.c.b16 %v1178, %v1178
      %v1195 = vpack.c.b16 %v1179, %v1179
      %vm1196 = vsmask.f32 7424
      %v1198 = vshrl.u32 %v1132, 16
      %v1200 = vshll.u32 %v1132, 16
      %v1202 = vrot.slane %v1200, 1
      %v1203 = vor.u32 %v1198, %v1202
      %v1205 = vshll.u32 %v1180, 16
      %v1207 = vrot.slane %v1205, 1
      %v1208 = vsel %vm1196, %v1203, %v1207
      %v1210 = vshrl.u32 %v1133, 16
      %v1212 = vshll.u32 %v1133, 16
      %v1214 = vrot.slane %v1212, 1
      %v1215 = vor.u32 %v1210, %v1214
      %v1217 = vshll.u32 %v1181, 16
      %v1219 = vrot.slane %v1217, 1
      %v1220 = vsel %vm1196, %v1215, %v1219
      %v1222 = vshrl.u32 %v1134, 16
      %v1224 = vshll.u32 %v1134, 16
      %v1226 = vrot.slane %v1224, 1
      %v1227 = vor.u32 %v1222, %v1226
      %v1229 = vshll.u32 %v1182, 16
      %v1231 = vrot.slane %v1229, 1
      %v1232 = vsel %vm1196, %v1227, %v1231
      %v1234 = vshrl.u32 %v1135, 16
      %v1236 = vshll.u32 %v1135, 16
      %v1238 = vrot.slane %v1236, 1
      %v1239 = vor.u32 %v1234, %v1238
      %v1241 = vshll.u32 %v1183, 16
      %v1243 = vrot.slane %v1241, 1
      %v1244 = vsel %vm1196, %v1239, %v1243
      %v1246 = vshrl.u32 %v1136, 16
      %v1248 = vshll.u32 %v1136, 16
      %v1250 = vrot.slane %v1248, 1
      %v1251 = vor.u32 %v1246, %v1250
      %v1253 = vshll.u32 %v1184, 16
      %v1255 = vrot.slane %v1253, 1
      %v1256 = vsel %vm1196, %v1251, %v1255
      %v1258 = vshrl.u32 %v1137, 16
      %v1260 = vshll.u32 %v1137, 16
      %v1262 = vrot.slane %v1260, 1
      %v1263 = vor.u32 %v1258, %v1262
      %v1265 = vshll.u32 %v1185, 16
      %v1267 = vrot.slane %v1265, 1
      %v1268 = vsel %vm1196, %v1263, %v1267
      %v1270 = vshrl.u32 %v1138, 16
      %v1272 = vshll.u32 %v1138, 16
      %v1274 = vrot.slane %v1272, 1
      %v1275 = vor.u32 %v1270, %v1274
      %v1277 = vshll.u32 %v1186, 16
      %v1279 = vrot.slane %v1277, 1
      %v1280 = vsel %vm1196, %v1275, %v1279
      %v1282 = vshrl.u32 %v1139, 16
      %v1284 = vshll.u32 %v1139, 16
      %v1286 = vrot.slane %v1284, 1
      %v1287 = vor.u32 %v1282, %v1286
      %v1289 = vshll.u32 %v1187, 16
      %v1291 = vrot.slane %v1289, 1
      %v1292 = vsel %vm1196, %v1287, %v1291
      %v1294 = vshrl.u32 %v1140, 16
      %v1296 = vshll.u32 %v1140, 16
      %v1298 = vrot.slane %v1296, 1
      %v1299 = vor.u32 %v1294, %v1298
      %v1301 = vshll.u32 %v1188, 16
      %v1303 = vrot.slane %v1301, 1
      %v1304 = vsel %vm1196, %v1299, %v1303
      %v1306 = vshrl.u32 %v1141, 16
      %v1308 = vshll.u32 %v1141, 16
      %v1310 = vrot.slane %v1308, 1
      %v1311 = vor.u32 %v1306, %v1310
      %v1313 = vshll.u32 %v1189, 16
      %v1315 = vrot.slane %v1313, 1
      %v1316 = vsel %vm1196, %v1311, %v1315
      %v1318 = vshrl.u32 %v1142, 16
      %v1320 = vshll.u32 %v1142, 16
      %v1322 = vrot.slane %v1320, 1
      %v1323 = vor.u32 %v1318, %v1322
      %v1325 = vshll.u32 %v1190, 16
      %v1327 = vrot.slane %v1325, 1
      %v1328 = vsel %vm1196, %v1323, %v1327
      %v1330 = vshrl.u32 %v1143, 16
      %v1332 = vshll.u32 %v1143, 16
      %v1334 = vrot.slane %v1332, 1
      %v1335 = vor.u32 %v1330, %v1334
      %v1337 = vshll.u32 %v1191, 16
      %v1339 = vrot.slane %v1337, 1
      %v1340 = vsel %vm1196, %v1335, %v1339
      %v1342 = vshrl.u32 %v1144, 16
      %v1344 = vshll.u32 %v1144, 16
      %v1346 = vrot.slane %v1344, 1
      %v1347 = vor.u32 %v1342, %v1346
      %v1349 = vshll.u32 %v1192, 16
      %v1351 = vrot.slane %v1349, 1
      %v1352 = vsel %vm1196, %v1347, %v1351
      %v1354 = vshrl.u32 %v1145, 16
      %v1356 = vshll.u32 %v1145, 16
      %v1358 = vrot.slane %v1356, 1
      %v1359 = vor.u32 %v1354, %v1358
      %v1361 = vshll.u32 %v1193, 16
      %v1363 = vrot.slane %v1361, 1
      %v1364 = vsel %vm1196, %v1359, %v1363
      %v1366 = vshrl.u32 %v1146, 16
      %v1368 = vshll.u32 %v1146, 16
      %v1370 = vrot.slane %v1368, 1
      %v1371 = vor.u32 %v1366, %v1370
      %v1373 = vshll.u32 %v1194, 16
      %v1375 = vrot.slane %v1373, 1
      %v1376 = vsel %vm1196, %v1371, %v1375
      %v1378 = vshrl.u32 %v1147, 16
      %v1380 = vshll.u32 %v1147, 16
      %v1382 = vrot.slane %v1380, 1
      %v1383 = vor.u32 %v1378, %v1382
      %v1385 = vshll.u32 %v1195, 16
      %v1387 = vrot.slane %v1385, 1
      %v1388 = vsel %vm1196, %v1383, %v1387
      %1389 = vrot.lane.b32.xlu0 %v1208, 8
      %v1390 = vpop.permute.xlu0 %1389
      %1391 = vrot.lane.b32.xlu0 %v1220, 8
      %v1392 = vpop.permute.xlu0 %1391
      %1393 = vrot.lane.b32.xlu0 %v1232, 8
      %v1394 = vpop.permute.xlu0 %1393
      %1395 = vrot.lane.b32.xlu0 %v1244, 8
      %v1396 = vpop.permute.xlu0 %1395
      %1397 = vrot.lane.b32.xlu0 %v1256, 8
      %v1398 = vpop.permute.xlu0 %1397
      %1399 = vrot.lane.b32.xlu0 %v1268, 8
      %v1400 = vpop.permute.xlu0 %1399
      %1401 = vrot.lane.b32.xlu0 %v1280, 8
      %v1402 = vpop.permute.xlu0 %1401
      %1403 = vrot.lane.b32.xlu0 %v1292, 8
      %v1404 = vpop.permute.xlu0 %1403
      %1405 = vrot.lane.b32.xlu0 %v1304, 8
      %v1406 = vpop.permute.xlu0 %1405
      %1407 = vrot.lane.b32.xlu0 %v1316, 8
      %v1408 = vpop.permute.xlu0 %1407
      %1409 = vrot.lane.b32.xlu0 %v1328, 8
      %v1410 = vpop.permute.xlu0 %1409
      %1411 = vrot.lane.b32.xlu0 %v1340, 8
      %v1412 = vpop.permute.xlu0 %1411
      %1413 = vrot.lane.b32.xlu0 %v1352, 8
      %v1414 = vpop.permute.xlu0 %1413
      %1415 = vrot.lane.b32.xlu0 %v1364, 8
      %v1416 = vpop.permute.xlu0 %1415
      %1417 = vrot.lane.b32.xlu0 %v1376, 8
      %v1418 = vpop.permute.xlu0 %1417
      %1419 = vrot.lane.b32.xlu0 %v1388, 8
      %v1420 = vpop.permute.xlu0 %1419
      %vm1421 = vcmask 1046528
      %v1422 = vrot.slane %v1132, 1
      %v1423 = vrot.slane %v1180, 1
      %v1424 = vsel %vm1421, %v1422, %v1423
      %v1425 = vrot.slane %v1133, 1
      %v1426 = vrot.slane %v1181, 1
      %v1427 = vsel %vm1421, %v1425, %v1426
      %v1428 = vrot.slane %v1134, 1
      %v1429 = vrot.slane %v1182, 1
      %v1430 = vsel %vm1421, %v1428, %v1429
      %v1431 = vrot.slane %v1135, 1
      %v1432 = vrot.slane %v1183, 1
      %v1433 = vsel %vm1421, %v1431, %v1432
      %v1434 = vrot.slane %v1136, 1
      %v1435 = vrot.slane %v1184, 1
      %v1436 = vsel %vm1421, %v1434, %v1435
      %v1437 = vrot.slane %v1137, 1
      %v1438 = vrot.slane %v1185, 1
      %v1439 = vsel %vm1421, %v1437, %v1438
      %v1440 = vrot.slane %v1138, 1
      %v1441 = vrot.slane %v1186, 1
      %v1442 = vsel %vm1421, %v1440, %v1441
      %v1443 = vrot.slane %v1139, 1
      %v1444 = vrot.slane %v1187, 1
      %v1445 = vsel %vm1421, %v1443, %v1444
      %v1446 = vrot.slane %v1140, 1
      %v1447 = vrot.slane %v1188, 1
      %v1448 = vsel %vm1421, %v1446, %v1447
      %v1449 = vrot.slane %v1141, 1
      %v1450 = vrot.slane %v1189, 1
      %v1451 = vsel %vm1421, %v1449, %v1450
      %v1452 = vrot.slane %v1142, 1
      %v1453 = vrot.slane %v1190, 1
      %v1454 = vsel %vm1421, %v1452, %v1453
      %v1455 = vrot.slane %v1143, 1
      %v1456 = vrot.slane %v1191, 1
      %v1457 = vsel %vm1421, %v1455, %v1456
      %v1458 = vrot.slane %v1144, 1
      %v1459 = vrot.slane %v1192, 1
      %v1460 = vsel %vm1421, %v1458, %v1459
      %v1461 = vrot.slane %v1145, 1
      %v1462 = vrot.slane %v1193, 1
      %v1463 = vsel %vm1421, %v1461, %v1462
      %v1464 = vrot.slane %v1146, 1
      %v1465 = vrot.slane %v1194, 1
      %v1466 = vsel %vm1421, %v1464, %v1465
      %v1467 = vrot.slane %v1147, 1
      %v1468 = vrot.slane %v1195, 1
      %v1469 = vsel %vm1421, %v1467, %v1468
      %1470 = vrot.lane.b32.xlu0 %v1424, 16
      %v1471 = vpop.permute.xlu0 %1470
      %1472 = vrot.lane.b32.xlu0 %v1427, 16
      %v1473 = vpop.permute.xlu0 %1472
      %1474 = vrot.lane.b32.xlu0 %v1430, 16
      %v1475 = vpop.permute.xlu0 %1474
      %1476 = vrot.lane.b32.xlu0 %v1433, 16
      %v1477 = vpop.permute.xlu0 %1476
      %1478 = vrot.lane.b32.xlu0 %v1436, 16
      %v1479 = vpop.permute.xlu0 %1478
      %1480 = vrot.lane.b32.xlu0 %v1439, 16
      %v1481 = vpop.permute.xlu0 %1480
      %1482 = vrot.lane.b32.xlu0 %v1442, 16
      %v1483 = vpop.permute.xlu0 %1482
      %1484 = vrot.lane.b32.xlu0 %v1445, 16
      %v1485 = vpop.permute.xlu0 %1484
      %1486 = vrot.lane.b32.xlu0 %v1448, 16
      %v1487 = vpop.permute.xlu0 %1486
      %1488 = vrot.lane.b32.xlu0 %v1451, 16
      %v1489 = vpop.permute.xlu0 %1488
      %1490 = vrot.lane.b32.xlu0 %v1454, 16
      %v1491 = vpop.permute.xlu0 %1490
      %1492 = vrot.lane.b32.xlu0 %v1457, 16
      %v1493 = vpop.permute.xlu0 %1492
      %1494 = vrot.lane.b32.xlu0 %v1460, 16
      %v1495 = vpop.permute.xlu0 %1494
      %1496 = vrot.lane.b32.xlu0 %v1463, 16
      %v1497 = vpop.permute.xlu0 %1496
      %1498 = vrot.lane.b32.xlu0 %v1466, 16
      %v1499 = vpop.permute.xlu0 %1498
      %1500 = vrot.lane.b32.xlu0 %v1469, 16
      %v1501 = vpop.permute.xlu0 %1500
      %v1504 = vunpack.c.l.b16 %v1062
      %v1505 = vunpack.c.l.b16 %v1063
      %v1506 = vpack.c.b16 %v1505, %v1504
      %1507 = vrot.lane.b32.xlu0 %v1133, 24
      %v1508 = vpop.permute.xlu0 %1507
      %1509 = vrot.lane.b32.xlu0 %v1134, 24
      %v1510 = vpop.permute.xlu0 %1509
      %1511 = vrot.lane.b32.xlu0 %v1135, 24
      %v1512 = vpop.permute.xlu0 %1511
      %1513 = vrot.lane.b32.xlu0 %v1136, 24
      %v1514 = vpop.permute.xlu0 %1513
      %1515 = vrot.lane.b32.xlu0 %v1137, 24
      %v1516 = vpop.permute.xlu0 %1515
      %1517 = vrot.lane.b32.xlu0 %v1138, 24
      %v1518 = vpop.permute.xlu0 %1517
      %1519 = vrot.lane.b32.xlu0 %v1139, 24
      %v1520 = vpop.permute.xlu0 %1519
      %1521 = vrot.lane.b32.xlu0 %v1140, 24
      %v1522 = vpop.permute.xlu0 %1521
      %1523 = vrot.lane.b32.xlu0 %v1141, 24
      %v1524 = vpop.permute.xlu0 %1523
      %1525 = vrot.lane.b32.xlu0 %v1142, 24
      %v1526 = vpop.permute.xlu0 %1525
      %1527 = vrot.lane.b32.xlu0 %v1143, 24
      %v1528 = vpop.permute.xlu0 %1527
      %1529 = vrot.lane.b32.xlu0 %v1144, 24
      %v1530 = vpop.permute.xlu0 %1529
      %1531 = vrot.lane.b32.xlu0 %v1145, 24
      %v1532 = vpop.permute.xlu0 %1531
      %1533 = vrot.lane.b32.xlu0 %v1146, 24
      %v1534 = vpop.permute.xlu0 %1533
      %1535 = vrot.lane.b32.xlu0 %v1147, 24
      %v1536 = vpop.permute.xlu0 %1535
      %1537 = vrot.lane.b32.xlu0 %v1506, 24
      %v1538 = vpop.permute.xlu0 %1537
      %v1540 = vunpack.c.l.b16 %v1064
      %v1541 = vpack.c.b16 %v1540, %v1540
      %v1543 = vshrl.u32 %v1506, 16
      %v1545 = vshll.u32 %v1506, 16
      %v1547 = vrot.slane %v1545, 1
      %v1548 = vor.u32 %v1543, %v1547
      %v1550 = vshll.u32 %v1541, 16
      %v1552 = vrot.slane %v1550, 1
      %v1553 = vsel %vm1196, %v1548, %v1552
      %1554 = vrot.lane.b32.xlu0 %v1220, 32
      %v1555 = vpop.permute.xlu0 %1554
      %1556 = vrot.lane.b32.xlu0 %v1232, 32
      %v1557 = vpop.permute.xlu0 %1556
      %1558 = vrot.lane.b32.xlu0 %v1244, 32
      %v1559 = vpop.permute.xlu0 %1558
      %1560 = vrot.lane.b32.xlu0 %v1256, 32
      %v1561 = vpop.permute.xlu0 %1560
      %1562 = vrot.lane.b32.xlu0 %v1268, 32
      %v1563 = vpop.permute.xlu0 %1562
      %1564 = vrot.lane.b32.xlu0 %v1280, 32
      %v1565 = vpop.permute.xlu0 %1564
      %1566 = vrot.lane.b32.xlu0 %v1292, 32
      %v1567 = vpop.permute.xlu0 %1566
      %1568 = vrot.lane.b32.xlu0 %v1304, 32
      %v1569 = vpop.permute.xlu0 %1568
      %1570 = vrot.lane.b32.xlu0 %v1316, 32
      %v1571 = vpop.permute.xlu0 %1570
      %1572 = vrot.lane.b32.xlu0 %v1328, 32
      %v1573 = vpop.permute.xlu0 %1572
      %1574 = vrot.lane.b32.xlu0 %v1340, 32
      %v1575 = vpop.permute.xlu0 %1574
      %1576 = vrot.lane.b32.xlu0 %v1352, 32
      %v1577 = vpop.permute.xlu0 %1576
      %1578 = vrot.lane.b32.xlu0 %v1364, 32
      %v1579 = vpop.permute.xlu0 %1578
      %1580 = vrot.lane.b32.xlu0 %v1376, 32
      %v1581 = vpop.permute.xlu0 %1580
      %1582 = vrot.lane.b32.xlu0 %v1388, 32
      %v1583 = vpop.permute.xlu0 %1582
      %1584 = vrot.lane.b32.xlu0 %v1553, 32
      %v1585 = vpop.permute.xlu0 %1584
      %v1586 = vrot.slane %v1506, 1
      %v1587 = vrot.slane %v1541, 1
      %v1588 = vsel %vm1421, %v1586, %v1587
      %1589 = vrot.lane.b32.xlu0 %v1427, 40
      %v1590 = vpop.permute.xlu0 %1589
      %1591 = vrot.lane.b32.xlu0 %v1430, 40
      %v1592 = vpop.permute.xlu0 %1591
      %1593 = vrot.lane.b32.xlu0 %v1433, 40
      %v1594 = vpop.permute.xlu0 %1593
      %1595 = vrot.lane.b32.xlu0 %v1436, 40
      %v1596 = vpop.permute.xlu0 %1595
      %1597 = vrot.lane.b32.xlu0 %v1439, 40
      %v1598 = vpop.permute.xlu0 %1597
      %1599 = vrot.lane.b32.xlu0 %v1442, 40
      %v1600 = vpop.permute.xlu0 %1599
      %1601 = vrot.lane.b32.xlu0 %v1445, 40
      %v1602 = vpop.permute.xlu0 %1601
      %1603 = vrot.lane.b32.xlu0 %v1448, 40
      %v1604 = vpop.permute.xlu0 %1603
      %1605 = vrot.lane.b32.xlu0 %v1451, 40
      %v1606 = vpop.permute.xlu0 %1605
      %1607 = vrot.lane.b32.xlu0 %v1454, 40
      %v1608 = vpop.permute.xlu0 %1607
      %1609 = vrot.lane.b32.xlu0 %v1457, 40
      %v1610 = vpop.permute.xlu0 %1609
      %1611 = vrot.lane.b32.xlu0 %v1460, 40
      %v1612 = vpop.permute.xlu0 %1611
      %1613 = vrot.lane.b32.xlu0 %v1463, 40
      %v1614 = vpop.permute.xlu0 %1613
      %1615 = vrot.lane.b32.xlu0 %v1466, 40
      %v1616 = vpop.permute.xlu0 %1615
      %1617 = vrot.lane.b32.xlu0 %v1469, 40
      %v1618 = vpop.permute.xlu0 %1617
      %1619 = vrot.lane.b32.xlu0 %v1588, 40
      %v1620 = vpop.permute.xlu0 %1619
      %v1623 = vunpack.c.l.b16 %v1065
      %v1624 = vunpack.c.l.b16 %v1066
      %v1625 = vpack.c.b16 %v1624, %v1623
      %1626 = vrot.lane.b32.xlu0 %v1134, 48
      %v1627 = vpop.permute.xlu0 %1626
      %1628 = vrot.lane.b32.xlu0 %v1135, 48
      %v1629 = vpop.permute.xlu0 %1628
      %1630 = vrot.lane.b32.xlu0 %v1136, 48
      %v1631 = vpop.permute.xlu0 %1630
      %1632 = vrot.lane.b32.xlu0 %v1137, 48
      %v1633 = vpop.permute.xlu0 %1632
      %1634 = vrot.lane.b32.xlu0 %v1138, 48
      %v1635 = vpop.permute.xlu0 %1634
      %1636 = vrot.lane.b32.xlu0 %v1139, 48
      %v1637 = vpop.permute.xlu0 %1636
      %1638 = vrot.lane.b32.xlu0 %v1140, 48
      %v1639 = vpop.permute.xlu0 %1638
      %1640 = vrot.lane.b32.xlu0 %v1141, 48
      %v1641 = vpop.permute.xlu0 %1640
      %1642 = vrot.lane.b32.xlu0 %v1142, 48
      %v1643 = vpop.permute.xlu0 %1642
      %1644 = vrot.lane.b32.xlu0 %v1143, 48
      %v1645 = vpop.permute.xlu0 %1644
      %1646 = vrot.lane.b32.xlu0 %v1144, 48
      %v1647 = vpop.permute.xlu0 %1646
      %1648 = vrot.lane.b32.xlu0 %v1145, 48
      %v1649 = vpop.permute.xlu0 %1648
      %1650 = vrot.lane.b32.xlu0 %v1146, 48
      %v1651 = vpop.permute.xlu0 %1650
      %1652 = vrot.lane.b32.xlu0 %v1147, 48
      %v1653 = vpop.permute.xlu0 %1652
      %1654 = vrot.lane.b32.xlu0 %v1506, 48
      %v1655 = vpop.permute.xlu0 %1654
      %1656 = vrot.lane.b32.xlu0 %v1625, 48
      %v1657 = vpop.permute.xlu0 %1656
      %v1659 = vunpack.c.l.b16 %v1067
      %v1660 = vpack.c.b16 %v1659, %v1659
      %v1662 = vshrl.u32 %v1625, 16
      %v1664 = vshll.u32 %v1625, 16
      %v1666 = vrot.slane %v1664, 1
      %v1667 = vor.u32 %v1662, %v1666
      %v1669 = vshll.u32 %v1660, 16
      %v1671 = vrot.slane %v1669, 1
      %v1672 = vsel %vm1196, %v1667, %v1671
      %1673 = vrot.lane.b32.xlu0 %v1232, 56
      %v1674 = vpop.permute.xlu0 %1673
      %1675 = vrot.lane.b32.xlu0 %v1244, 56
      %v1676 = vpop.permute.xlu0 %1675
      %1677 = vrot.lane.b32.xlu0 %v1256, 56
      %v1678 = vpop.permute.xlu0 %1677
      %1679 = vrot.lane.b32.xlu0 %v1268, 56
      %v1680 = vpop.permute.xlu0 %1679
      %1681 = vrot.lane.b32.xlu0 %v1280, 56
      %v1682 = vpop.permute.xlu0 %1681
      %1683 = vrot.lane.b32.xlu0 %v1292, 56
      %v1684 = vpop.permute.xlu0 %1683
      %1685 = vrot.lane.b32.xlu0 %v1304, 56
      %v1686 = vpop.permute.xlu0 %1685
      %1687 = vrot.lane.b32.xlu0 %v1316, 56
      %v1688 = vpop.permute.xlu0 %1687
      %1689 = vrot.lane.b32.xlu0 %v1328, 56
      %v1690 = vpop.permute.xlu0 %1689
      %1691 = vrot.lane.b32.xlu0 %v1340, 56
      %v1692 = vpop.permute.xlu0 %1691
      %1693 = vrot.lane.b32.xlu0 %v1352, 56
      %v1694 = vpop.permute.xlu0 %1693
      %1695 = vrot.lane.b32.xlu0 %v1364, 56
      %v1696 = vpop.permute.xlu0 %1695
      %1697 = vrot.lane.b32.xlu0 %v1376, 56
      %v1698 = vpop.permute.xlu0 %1697
      %1699 = vrot.lane.b32.xlu0 %v1388, 56
      %v1700 = vpop.permute.xlu0 %1699
      %1701 = vrot.lane.b32.xlu0 %v1553, 56
      %v1702 = vpop.permute.xlu0 %1701
      %1703 = vrot.lane.b32.xlu0 %v1672, 56
      %v1704 = vpop.permute.xlu0 %1703
      %v1705 = vrot.slane %v1625, 1
      %v1706 = vrot.slane %v1660, 1
      %v1707 = vsel %vm1421, %v1705, %v1706
      %1708 = vrot.lane.b32.xlu0 %v1430, 64
      %v1709 = vpop.permute.xlu0 %1708
      %1710 = vrot.lane.b32.xlu0 %v1433, 64
      %v1711 = vpop.permute.xlu0 %1710
      %1712 = vrot.lane.b32.xlu0 %v1436, 64
      %v1713 = vpop.permute.xlu0 %1712
      %1714 = vrot.lane.b32.xlu0 %v1439, 64
      %v1715 = vpop.permute.xlu0 %1714
      %1716 = vrot.lane.b32.xlu0 %v1442, 64
      %v1717 = vpop.permute.xlu0 %1716
      %1718 = vrot.lane.b32.xlu0 %v1445, 64
      %v1719 = vpop.permute.xlu0 %1718
      %1720 = vrot.lane.b32.xlu0 %v1448, 64
      %v1721 = vpop.permute.xlu0 %1720
      %1722 = vrot.lane.b32.xlu0 %v1451, 64
      %v1723 = vpop.permute.xlu0 %1722
      %1724 = vrot.lane.b32.xlu0 %v1454, 64
      %v1725 = vpop.permute.xlu0 %1724
      %1726 = vrot.lane.b32.xlu0 %v1457, 64
      %v1727 = vpop.permute.xlu0 %1726
      %1728 = vrot.lane.b32.xlu0 %v1460, 64
      %v1729 = vpop.permute.xlu0 %1728
      %1730 = vrot.lane.b32.xlu0 %v1463, 64
      %v1731 = vpop.permute.xlu0 %1730
      %1732 = vrot.lane.b32.xlu0 %v1466, 64
      %v1733 = vpop.permute.xlu0 %1732
      %1734 = vrot.lane.b32.xlu0 %v1469, 64
      %v1735 = vpop.permute.xlu0 %1734
      %1736 = vrot.lane.b32.xlu0 %v1588, 64
      %v1737 = vpop.permute.xlu0 %1736
      %1738 = vrot.lane.b32.xlu0 %v1707, 64
      %v1739 = vpop.permute.xlu0 %1738
      %vm1740 = vcmask 64512
      %v1742 = vsel %vm1740, %v1132, %v1390
      %v1744 = vsel %vm1740, %v1133, %v1392
      %v1746 = vsel %vm1740, %v1134, %v1394
      %v1748 = vsel %vm1740, %v1135, %v1396
      %v1750 = vsel %vm1740, %v1136, %v1398
      %v1752 = vsel %vm1740, %v1137, %v1400
      %v1754 = vsel %vm1740, %v1138, %v1402
      %v1756 = vsel %vm1740, %v1139, %v1404
      %v1758 = vsel %vm1740, %v1140, %v1406
      %v1760 = vsel %vm1740, %v1141, %v1408
      %v1762 = vsel %vm1740, %v1142, %v1410
      %v1764 = vsel %vm1740, %v1143, %v1412
      %v1766 = vsel %vm1740, %v1144, %v1414
      %v1768 = vsel %vm1740, %v1145, %v1416
      %v1770 = vsel %vm1740, %v1146, %v1418
      %v1772 = vsel %vm1740, %v1147, %v1420
      %vm1773 = vcmask 130048
      %v1775 = vsel %vm1773, %v1742, %v1471
      %v1777 = vsel %vm1773, %v1744, %v1473
      %v1779 = vsel %vm1773, %v1746, %v1475
      %v1781 = vsel %vm1773, %v1748, %v1477
      %v1783 = vsel %vm1773, %v1750, %v1479
      %v1785 = vsel %vm1773, %v1752, %v1481
      %v1787 = vsel %vm1773, %v1754, %v1483
      %v1789 = vsel %vm1773, %v1756, %v1485
      %v1791 = vsel %vm1773, %v1758, %v1487
      %v1793 = vsel %vm1773, %v1760, %v1489
      %v1795 = vsel %vm1773, %v1762, %v1491
      %v1797 = vsel %vm1773, %v1764, %v1493
      %v1799 = vsel %vm1773, %v1766, %v1495
      %v1801 = vsel %vm1773, %v1768, %v1497
      %v1803 = vsel %vm1773, %v1770, %v1499
      %v1805 = vsel %vm1773, %v1772, %v1501
      %vm1806 = vcmask 195584
      %v1808 = vsel %vm1806, %v1775, %v1508
      %v1810 = vsel %vm1806, %v1777, %v1510
      %v1812 = vsel %vm1806, %v1779, %v1512
      %v1814 = vsel %vm1806, %v1781, %v1514
      %v1816 = vsel %vm1806, %v1783, %v1516
      %v1818 = vsel %vm1806, %v1785, %v1518
      %v1820 = vsel %vm1806, %v1787, %v1520
      %v1822 = vsel %vm1806, %v1789, %v1522
      %v1824 = vsel %vm1806, %v1791, %v1524
      %v1826 = vsel %vm1806, %v1793, %v1526
      %v1828 = vsel %vm1806, %v1795, %v1528
      %v1830 = vsel %vm1806, %v1797, %v1530
      %v1832 = vsel %vm1806, %v1799, %v1532
      %v1834 = vsel %vm1806, %v1801, %v1534
      %v1836 = vsel %vm1806, %v1803, %v1536
      %v1838 = vsel %vm1806, %v1805, %v1538
      %vm1839 = vcmask 261120
      %v1841 = vsel %vm1839, %v1808, %v1555
      %v1843 = vsel %vm1839, %v1810, %v1557
      %v1845 = vsel %vm1839, %v1812, %v1559
      %v1847 = vsel %vm1839, %v1814, %v1561
      %v1849 = vsel %vm1839, %v1816, %v1563
      %v1851 = vsel %vm1839, %v1818, %v1565
      %v1853 = vsel %vm1839, %v1820, %v1567
      %v1855 = vsel %vm1839, %v1822, %v1569
      %v1857 = vsel %vm1839, %v1824, %v1571
      %v1859 = vsel %vm1839, %v1826, %v1573
      %v1861 = vsel %vm1839, %v1828, %v1575
      %v1863 = vsel %vm1839, %v1830, %v1577
      %v1865 = vsel %vm1839, %v1832, %v1579
      %v1867 = vsel %vm1839, %v1834, %v1581
      %v1869 = vsel %vm1839, %v1836, %v1583
      %v1871 = vsel %vm1839, %v1838, %v1585
      %vm1872 = vcmask 326656
      %v1874 = vsel %vm1872, %v1841, %v1590
      %v1876 = vsel %vm1872, %v1843, %v1592
      %v1878 = vsel %vm1872, %v1845, %v1594
      %v1880 = vsel %vm1872, %v1847, %v1596
      %v1882 = vsel %vm1872, %v1849, %v1598
      %v1884 = vsel %vm1872, %v1851, %v1600
      %v1886 = vsel %vm1872, %v1853, %v1602
      %v1888 = vsel %vm1872, %v1855, %v1604
      %v1890 = vsel %vm1872, %v1857, %v1606
      %v1892 = vsel %vm1872, %v1859, %v1608
      %v1894 = vsel %vm1872, %v1861, %v1610
      %v1896 = vsel %vm1872, %v1863, %v1612
      %v1898 = vsel %vm1872, %v1865, %v1614
      %v1900 = vsel %vm1872, %v1867, %v1616
      %v1902 = vsel %vm1872, %v1869, %v1618
      %v1904 = vsel %vm1872, %v1871, %v1620
      %vm1905 = vcmask 392192
      %v1907 = vsel %vm1905, %v1874, %v1627
      %v1909 = vsel %vm1905, %v1876, %v1629
      %v1911 = vsel %vm1905, %v1878, %v1631
      %v1913 = vsel %vm1905, %v1880, %v1633
      %v1915 = vsel %vm1905, %v1882, %v1635
      %v1917 = vsel %vm1905, %v1884, %v1637
      %v1919 = vsel %vm1905, %v1886, %v1639
      %v1921 = vsel %vm1905, %v1888, %v1641
      %v1923 = vsel %vm1905, %v1890, %v1643
      %v1925 = vsel %vm1905, %v1892, %v1645
      %v1927 = vsel %vm1905, %v1894, %v1647
      %v1929 = vsel %vm1905, %v1896, %v1649
      %v1931 = vsel %vm1905, %v1898, %v1651
      %v1933 = vsel %vm1905, %v1900, %v1653
      %v1935 = vsel %vm1905, %v1902, %v1655
      %v1937 = vsel %vm1905, %v1904, %v1657
      %vm1938 = vcmask 457728
      %v1940 = vsel %vm1938, %v1907, %v1674
      %v1942 = vsel %vm1938, %v1909, %v1676
      %v1944 = vsel %vm1938, %v1911, %v1678
      %v1946 = vsel %vm1938, %v1913, %v1680
      %v1948 = vsel %vm1938, %v1915, %v1682
      %v1950 = vsel %vm1938, %v1917, %v1684
      %v1952 = vsel %vm1938, %v1919, %v1686
      %v1954 = vsel %vm1938, %v1921, %v1688
      %v1956 = vsel %vm1938, %v1923, %v1690
      %v1958 = vsel %vm1938, %v1925, %v1692
      %v1960 = vsel %vm1938, %v1927, %v1694
      %v1962 = vsel %vm1938, %v1929, %v1696
      %v1964 = vsel %vm1938, %v1931, %v1698
      %v1966 = vsel %vm1938, %v1933, %v1700
      %v1968 = vsel %vm1938, %v1935, %v1702
      %v1970 = vsel %vm1938, %v1937, %v1704
      %vm1971 = vcmask 523264
      %v1973 = vsel %vm1971, %v1940, %v1709
      %v1975 = vsel %vm1971, %v1942, %v1711
      %v1977 = vsel %vm1971, %v1944, %v1713
      %v1979 = vsel %vm1971, %v1946, %v1715
      %v1981 = vsel %vm1971, %v1948, %v1717
      %v1983 = vsel %vm1971, %v1950, %v1719
      %v1985 = vsel %vm1971, %v1952, %v1721
      %v1987 = vsel %vm1971, %v1954, %v1723
      %v1989 = vsel %vm1971, %v1956, %v1725
      %v1991 = vsel %vm1971, %v1958, %v1727
      %v1993 = vsel %vm1971, %v1960, %v1729
      %v1995 = vsel %vm1971, %v1962, %v1731
      %v1997 = vsel %vm1971, %v1964, %v1733
      %v1999 = vsel %vm1971, %v1966, %v1735
      %v2001 = vsel %vm1971, %v1968, %v1737
      %v2003 = vsel %vm1971, %v1970, %v1739
      %v2004 = vld [vmem:[%s3] sm:$0xf]
      %v2005 = vld [vmem:[%s3 + $0x4] sm:$0xf]
      %v2006 = vld [vmem:[%s3 + $0x8] sm:$0xf]
      %v2007 = vld [vmem:[%s3 + $0xc] sm:$0xf]
      %v2008 = vld [vmem:[%s3 + $0x10] sm:$0xf]
      %v2009 = vld [vmem:[%s3 + $0x14] sm:$0xf]
      %v2010 = vld [vmem:[%s3 + $0x18] sm:$0xf]
      %v2011 = vld [vmem:[%s3 + $0x1c] sm:$0xf]
      %v2012 = vld [vmem:[%s3 + $0x20] sm:$0xf]
      %v2022 = vunpack.c.l.b16 %v2004
      %v2023 = vunpack.c.l.b16 %v2005
      %v2024 = vunpack.c.l.b16 %v2006
      %v2025 = vunpack.c.l.b16 %v2007
      %v2026 = vunpack.c.l.b16 %v2008
      %v2027 = vunpack.c.l.b16 %v2009
      %v2028 = vunpack.c.l.b16 %v2010
      %v2029 = vunpack.c.l.b16 %v2011
      %v2030 = vunpack.c.l.b16 %v2012
      %v2031 = vpack.c.b16 %v2023, %v2022
      %v2032 = vpack.c.b16 %v2025, %v2024
      %v2033 = vpack.c.b16 %v2027, %v2026
      %v2034 = vpack.c.b16 %v2029, %v2028
      %v2035 = vpack.c.b16 %v2030, %v2030
      %vm2040 = vcmask 588800
      %v2041 = vsel %vm2040, %v1973, 0
      %v2043 = vsel %vm2040, %v1975, 0
      %v2045 = vsel %vm2040, %v1977, 0
      %v2047 = vsel %vm2040, %v1979, 0
      %v2049 = vsel %vm2040, %v1981, 0
      %v2051 = vsel %vm2040, %v1983, 0
      %v2053 = vsel %vm2040, %v1985, 0
      %v2055 = vsel %vm2040, %v1987, 0
      %v2057 = vsel %vm2040, %v1989, 0
      %v2059 = vsel %vm2040, %v1991, 0
      %v2061 = vsel %vm2040, %v1993, 0
      %v2063 = vsel %vm2040, %v1995, 0
      %v2065 = vsel %vm2040, %v1997, 0
      %v2067 = vsel %vm2040, %v1999, 0
      %v2069 = vsel %vm2040, %v2001, 0
      %v2071 = vsel %vm2040, %v2003, 0
      %vm2073 = vcmask 1043456
      %v2075 = vsel %vm2073, %v2035, 0
      %2077 = vmatpush.bf16.msra.mxu0 0
      %2078 = vmatpush.bf16.msra.mxu0 0
      %2079 = vmatpush.bf16.msra.mxu0 0
      %2080 = vmatpush.bf16.msra.mxu0 %v2075
      %2081 = vmatpush.bf16.msra.mxu0 %v2034
      %2082 = vmatpush.bf16.msra.mxu0 %v2033
      %2083 = vmatpush.bf16.msra.mxu0 %v2032
      %2084 = vmatpush.bf16.msra.mxu0 %v2031
      %2085 = vmatmul.bf16.gmra.mxu0 %v2041
      %v2086 = vpop.f32.mrf.mxu0
      %v2087 = vadd.f32 0.0, %v2086
      %v2088 = vpop.f32.mrf.mxu0
      %v2089 = vadd.f32 0.0, %v2088
      %2090 = vmatmul.bf16.gmra.mxu0 %v2043
      %v2091 = vpop.f32.mrf.mxu0
      %v2092 = vadd.f32 0.0, %v2091
      %v2093 = vpop.f32.mrf.mxu0
      %v2094 = vadd.f32 0.0, %v2093
      %2095 = vmatmul.bf16.gmra.mxu0 %v2045
      %v2096 = vpop.f32.mrf.mxu0
      %v2097 = vadd.f32 0.0, %v2096
      %v2098 = vpop.f32.mrf.mxu0
      %v2099 = vadd.f32 0.0, %v2098
      %2100 = vmatmul.bf16.gmra.mxu0 %v2047
      %v2101 = vpop.f32.mrf.mxu0
      %v2102 = vadd.f32 0.0, %v2101
      %v2103 = vpop.f32.mrf.mxu0
      %v2104 = vadd.f32 0.0, %v2103
      %2105 = vmatmul.bf16.gmra.mxu0 %v2049
      %v2106 = vpop.f32.mrf.mxu0
      %v2107 = vadd.f32 0.0, %v2106
      %v2108 = vpop.f32.mrf.mxu0
      %v2109 = vadd.f32 0.0, %v2108
      %2110 = vmatmul.bf16.gmra.mxu0 %v2051
      %v2111 = vpop.f32.mrf.mxu0
      %v2112 = vadd.f32 0.0, %v2111
      %v2113 = vpop.f32.mrf.mxu0
      %v2114 = vadd.f32 0.0, %v2113
      %2115 = vmatmul.bf16.gmra.mxu0 %v2053
      %v2116 = vpop.f32.mrf.mxu0
      %v2117 = vadd.f32 0.0, %v2116
      %v2118 = vpop.f32.mrf.mxu0
      %v2119 = vadd.f32 0.0, %v2118
      %2120 = vmatmul.bf16.gmra.mxu0 %v2055
      %v2121 = vpop.f32.mrf.mxu0
      %v2122 = vadd.f32 0.0, %v2121
      %v2123 = vpop.f32.mrf.mxu0
      %v2124 = vadd.f32 0.0, %v2123
      %2125 = vmatmul.bf16.gmra.mxu0 %v2057
      %v2126 = vpop.f32.mrf.mxu0
      %v2127 = vadd.f32 0.0, %v2126
      %v2128 = vpop.f32.mrf.mxu0
      %v2129 = vadd.f32 0.0, %v2128
      %2130 = vmatmul.bf16.gmra.mxu0 %v2059
      %v2131 = vpop.f32.mrf.mxu0
      %v2132 = vadd.f32 0.0, %v2131
      %v2133 = vpop.f32.mrf.mxu0
      %v2134 = vadd.f32 0.0, %v2133
      %2135 = vmatmul.bf16.gmra.mxu0 %v2061
      %v2136 = vpop.f32.mrf.mxu0
      %v2137 = vadd.f32 0.0, %v2136
      %v2138 = vpop.f32.mrf.mxu0
      %v2139 = vadd.f32 0.0, %v2138
      %2140 = vmatmul.bf16.gmra.mxu0 %v2063
      %v2141 = vpop.f32.mrf.mxu0
      %v2142 = vadd.f32 0.0, %v2141
      %v2143 = vpop.f32.mrf.mxu0
      %v2144 = vadd.f32 0.0, %v2143
      %2145 = vmatmul.bf16.gmra.mxu0 %v2065
      %v2146 = vpop.f32.mrf.mxu0
      %v2147 = vadd.f32 0.0, %v2146
      %v2148 = vpop.f32.mrf.mxu0
      %v2149 = vadd.f32 0.0, %v2148
      %2150 = vmatmul.bf16.gmra.mxu0 %v2067
      %v2151 = vpop.f32.mrf.mxu0
      %v2152 = vadd.f32 0.0, %v2151
      %v2153 = vpop.f32.mrf.mxu0
      %v2154 = vadd.f32 0.0, %v2153
      %2155 = vmatmul.bf16.gmra.mxu0 %v2069
      %v2156 = vpop.f32.mrf.mxu0
      %v2157 = vadd.f32 0.0, %v2156
      %v2158 = vpop.f32.mrf.mxu0
      %v2159 = vadd.f32 0.0, %v2158
      %2160 = vmatmul.bf16.gmra.mxu0 %v2071
      %v2161 = vpop.f32.mrf.mxu0
      %v2162 = vadd.f32 0.0, %v2161
      %v2163 = vpop.f32.mrf.mxu0
      %v2164 = vadd.f32 0.0, %v2163
      %2165 = vdwg.mxu0
      %v2166 = vld [vmem:[%s5] sm:$0x1]
      %v2168 = vperm.slane %v2166, 0
      %v2170 = vmul.f32 %v2087, %v2168
      %v2171 = vmul.f32 %v2089, %v2168
      %v2172 = vmul.f32 %v2092, %v2168
      %v2173 = vmul.f32 %v2094, %v2168
      %v2174 = vmul.f32 %v2097, %v2168
      %v2175 = vmul.f32 %v2099, %v2168
      %v2176 = vmul.f32 %v2102, %v2168
      %v2177 = vmul.f32 %v2104, %v2168
      %v2178 = vmul.f32 %v2107, %v2168
      %v2179 = vmul.f32 %v2109, %v2168
      %v2180 = vmul.f32 %v2112, %v2168
      %v2181 = vmul.f32 %v2114, %v2168
      %v2182 = vmul.f32 %v2117, %v2168
      %v2183 = vmul.f32 %v2119, %v2168
      %v2184 = vmul.f32 %v2122, %v2168
      %v2185 = vmul.f32 %v2124, %v2168
      %v2186 = vmul.f32 %v2127, %v2168
      %v2187 = vmul.f32 %v2129, %v2168
      %v2188 = vmul.f32 %v2132, %v2168
      %v2189 = vmul.f32 %v2134, %v2168
      %v2190 = vmul.f32 %v2137, %v2168
      %v2191 = vmul.f32 %v2139, %v2168
      %v2192 = vmul.f32 %v2142, %v2168
      %v2193 = vmul.f32 %v2144, %v2168
      %v2194 = vmul.f32 %v2147, %v2168
      %v2195 = vmul.f32 %v2149, %v2168
      %v2196 = vmul.f32 %v2152, %v2168
      %v2197 = vmul.f32 %v2154, %v2168
      %v2198 = vmul.f32 %v2157, %v2168
      %v2199 = vmul.f32 %v2159, %v2168
      %v2200 = vmul.f32 %v2162, %v2168
      %v2201 = vmul.f32 %v2164, %v2168
      %v2202 = vld [vmem:[%s7] sm:$0x1]
      %v2204 = vperm.slane %v2202, 0
      %v2206 = vadd.f32 %v2170, %v2204
      %v2207 = vadd.f32 %v2171, %v2204
      %v2208 = vadd.f32 %v2172, %v2204
      %v2209 = vadd.f32 %v2173, %v2204
      %v2210 = vadd.f32 %v2174, %v2204
      %v2211 = vadd.f32 %v2175, %v2204
      %v2212 = vadd.f32 %v2176, %v2204
      %v2213 = vadd.f32 %v2177, %v2204
      %v2214 = vadd.f32 %v2178, %v2204
      %v2215 = vadd.f32 %v2179, %v2204
      %v2216 = vadd.f32 %v2180, %v2204
      %v2217 = vadd.f32 %v2181, %v2204
      %v2218 = vadd.f32 %v2182, %v2204
      %v2219 = vadd.f32 %v2183, %v2204
      %v2220 = vadd.f32 %v2184, %v2204
      %v2221 = vadd.f32 %v2185, %v2204
      %v2222 = vadd.f32 %v2186, %v2204
      %v2223 = vadd.f32 %v2187, %v2204
      %v2224 = vadd.f32 %v2188, %v2204
      %v2225 = vadd.f32 %v2189, %v2204
      %v2226 = vadd.f32 %v2190, %v2204
      %v2227 = vadd.f32 %v2191, %v2204
      %v2228 = vadd.f32 %v2192, %v2204
      %v2229 = vadd.f32 %v2193, %v2204
      %v2230 = vadd.f32 %v2194, %v2204
      %v2231 = vadd.f32 %v2195, %v2204
      %v2232 = vadd.f32 %v2196, %v2204
      %v2233 = vadd.f32 %v2197, %v2204
      %v2234 = vadd.f32 %v2198, %v2204
      %v2235 = vadd.f32 %v2199, %v2204
      %v2236 = vadd.f32 %v2200, %v2204
      %v2237 = vadd.f32 %v2201, %v2204
      %v2238 = vmax.f32 %v2206, 0.0
      %v2239 = vmax.f32 %v2207, 0.0
      %v2240 = vmax.f32 %v2208, 0.0
      %v2241 = vmax.f32 %v2209, 0.0
      %v2242 = vmax.f32 %v2210, 0.0
      %v2243 = vmax.f32 %v2211, 0.0
      %v2244 = vmax.f32 %v2212, 0.0
      %v2245 = vmax.f32 %v2213, 0.0
      %v2246 = vmax.f32 %v2214, 0.0
      %v2247 = vmax.f32 %v2215, 0.0
      %v2248 = vmax.f32 %v2216, 0.0
      %v2249 = vmax.f32 %v2217, 0.0
      %v2250 = vmax.f32 %v2218, 0.0
      %v2251 = vmax.f32 %v2219, 0.0
      %v2252 = vmax.f32 %v2220, 0.0
      %v2253 = vmax.f32 %v2221, 0.0
      %v2254 = vmax.f32 %v2222, 0.0
      %v2255 = vmax.f32 %v2223, 0.0
      %v2256 = vmax.f32 %v2224, 0.0
      %v2257 = vmax.f32 %v2225, 0.0
      %v2258 = vmax.f32 %v2226, 0.0
      %v2259 = vmax.f32 %v2227, 0.0
      %v2260 = vmax.f32 %v2228, 0.0
      %v2261 = vmax.f32 %v2229, 0.0
      %v2262 = vmax.f32 %v2230, 0.0
      %v2263 = vmax.f32 %v2231, 0.0
      %v2264 = vmax.f32 %v2232, 0.0
      %v2265 = vmax.f32 %v2233, 0.0
      %v2266 = vmax.f32 %v2234, 0.0
      %v2267 = vmax.f32 %v2235, 0.0
      %v2268 = vmax.f32 %v2236, 0.0
      %v2269 = vmax.f32 %v2237, 0.0
      %v2270 = vpack.c.bf16 %v2238, %v2238
      %v2271 = vpack.c.bf16 %v2239, %v2239
      %v2272 = vpack.c.bf16 %v2240, %v2240
      %v2273 = vpack.c.bf16 %v2241, %v2241
      %v2274 = vpack.c.bf16 %v2242, %v2242
      %v2275 = vpack.c.bf16 %v2243, %v2243
      %v2276 = vpack.c.bf16 %v2244, %v2244
      %v2277 = vpack.c.bf16 %v2245, %v2245
      %v2278 = vpack.c.bf16 %v2246, %v2246
      %v2279 = vpack.c.bf16 %v2247, %v2247
      %v2280 = vpack.c.bf16 %v2248, %v2248
      %v2281 = vpack.c.bf16 %v2249, %v2249
      %v2282 = vpack.c.bf16 %v2250, %v2250
      %v2283 = vpack.c.bf16 %v2251, %v2251
      %v2284 = vpack.c.bf16 %v2252, %v2252
      %v2285 = vpack.c.bf16 %v2253, %v2253
      %v2286 = vpack.c.bf16 %v2254, %v2254
      %v2287 = vpack.c.bf16 %v2255, %v2255
      %v2288 = vpack.c.bf16 %v2256, %v2256
      %v2289 = vpack.c.bf16 %v2257, %v2257
      %v2290 = vpack.c.bf16 %v2258, %v2258
      %v2291 = vpack.c.bf16 %v2259, %v2259
      %v2292 = vpack.c.bf16 %v2260, %v2260
      %v2293 = vpack.c.bf16 %v2261, %v2261
      %v2294 = vpack.c.bf16 %v2262, %v2262
      %v2295 = vpack.c.bf16 %v2263, %v2263
      %v2296 = vpack.c.bf16 %v2264, %v2264
      %v2297 = vpack.c.bf16 %v2265, %v2265
      %v2298 = vpack.c.bf16 %v2266, %v2266
      %v2299 = vpack.c.bf16 %v2267, %v2267
      %v2300 = vpack.c.bf16 %v2268, %v2268
      %v2301 = vpack.c.bf16 %v2269, %v2269
      %v2334 = vunpack.c.l.b16 %v2270
      %v2335 = vunpack.c.l.b16 %v2271
      %v2336 = vunpack.c.l.b16 %v2272
      %v2337 = vunpack.c.l.b16 %v2273
      %v2338 = vunpack.c.l.b16 %v2274
      %v2339 = vunpack.c.l.b16 %v2275
      %v2340 = vunpack.c.l.b16 %v2276
      %v2341 = vunpack.c.l.b16 %v2277
      %v2342 = vunpack.c.l.b16 %v2278
      %v2343 = vunpack.c.l.b16 %v2279
      %v2344 = vunpack.c.l.b16 %v2280
      %v2345 = vunpack.c.l.b16 %v2281
      %v2346 = vunpack.c.l.b16 %v2282
      %v2347 = vunpack.c.l.b16 %v2283
      %v2348 = vunpack.c.l.b16 %v2284
      %v2349 = vunpack.c.l.b16 %v2285
      %v2350 = vunpack.c.l.b16 %v2286
      %v2351 = vunpack.c.l.b16 %v2287
      %v2352 = vunpack.c.l.b16 %v2288
      %v2353 = vunpack.c.l.b16 %v2289
      %v2354 = vunpack.c.l.b16 %v2290
      %v2355 = vunpack.c.l.b16 %v2291
      %v2356 = vunpack.c.l.b16 %v2292
      %v2357 = vunpack.c.l.b16 %v2293
      %v2358 = vunpack.c.l.b16 %v2294
      %v2359 = vunpack.c.l.b16 %v2295
      %v2360 = vunpack.c.l.b16 %v2296
      %v2361 = vunpack.c.l.b16 %v2297
      %v2362 = vunpack.c.l.b16 %v2298
      %v2363 = vunpack.c.l.b16 %v2299
      %v2364 = vunpack.c.l.b16 %v2300
      %v2365 = vunpack.c.l.b16 %v2301
      %v2366 = vpack.c.b16 %v2335, %v2334
      %v2367 = vpack.c.b16 %v2337, %v2336
      %v2368 = vpack.c.b16 %v2339, %v2338
      %v2369 = vpack.c.b16 %v2341, %v2340
      %v2370 = vpack.c.b16 %v2343, %v2342
      %v2371 = vpack.c.b16 %v2345, %v2344
      %v2372 = vpack.c.b16 %v2347, %v2346
      %v2373 = vpack.c.b16 %v2349, %v2348
      %v2374 = vpack.c.b16 %v2351, %v2350
      %v2375 = vpack.c.b16 %v2353, %v2352
      %v2376 = vpack.c.b16 %v2355, %v2354
      %v2377 = vpack.c.b16 %v2357, %v2356
      %v2378 = vpack.c.b16 %v2359, %v2358
      %v2379 = vpack.c.b16 %v2361, %v2360
      %v2380 = vpack.c.b16 %v2363, %v2362
      %v2381 = vpack.c.b16 %v2365, %v2364
      %v2383 = vshrl.u32 0, 16
      %v2385 = vrot.slane %v2383, 7
      %v2386 = vshll.u32 0, 16
      %v2388 = vor.u32 %v2385, %v2386
      %v2390 = vshrl.u32 %v2366, 16
      %v2392 = vrot.slane %v2390, 7
      %v2393 = vshll.u32 %v2366, 16
      %v2395 = vor.u32 %v2392, %v2393
      %v2397 = vshrl.u32 %v2367, 16
      %v2399 = vrot.slane %v2397, 7
      %v2400 = vshll.u32 %v2367, 16
      %v2402 = vor.u32 %v2399, %v2400
      %v2404 = vshrl.u32 %v2368, 16
      %v2406 = vrot.slane %v2404, 7
      %v2407 = vshll.u32 %v2368, 16
      %v2409 = vor.u32 %v2406, %v2407
      %v2411 = vshrl.u32 %v2369, 16
      %v2413 = vrot.slane %v2411, 7
      %v2414 = vshll.u32 %v2369, 16
      %v2416 = vor.u32 %v2413, %v2414
      %v2418 = vshrl.u32 %v2370, 16
      %v2420 = vrot.slane %v2418, 7
      %v2421 = vshll.u32 %v2370, 16
      %v2423 = vor.u32 %v2420, %v2421
      %v2425 = vshrl.u32 %v2371, 16
      %v2427 = vrot.slane %v2425, 7
      %v2428 = vshll.u32 %v2371, 16
      %v2430 = vor.u32 %v2427, %v2428
      %v2432 = vshrl.u32 %v2372, 16
      %v2434 = vrot.slane %v2432, 7
      %v2435 = vshll.u32 %v2372, 16
      %v2437 = vor.u32 %v2434, %v2435
      %v2439 = vshrl.u32 %v2373, 16
      %v2441 = vrot.slane %v2439, 7
      %v2442 = vshll.u32 %v2373, 16
      %v2444 = vor.u32 %v2441, %v2442
      %v2446 = vshrl.u32 %v2374, 16
      %v2448 = vrot.slane %v2446, 7
      %v2449 = vshll.u32 %v2374, 16
      %v2451 = vor.u32 %v2448, %v2449
      %v2453 = vshrl.u32 %v2375, 16
      %v2455 = vrot.slane %v2453, 7
      %v2456 = vshll.u32 %v2375, 16
      %v2458 = vor.u32 %v2455, %v2456
      %v2460 = vshrl.u32 %v2376, 16
      %v2462 = vrot.slane %v2460, 7
      %v2463 = vshll.u32 %v2376, 16
      %v2465 = vor.u32 %v2462, %v2463
      %v2467 = vshrl.u32 %v2377, 16
      %v2469 = vrot.slane %v2467, 7
      %v2470 = vshll.u32 %v2377, 16
      %v2472 = vor.u32 %v2469, %v2470
      %v2474 = vshrl.u32 %v2378, 16
      %v2476 = vrot.slane %v2474, 7
      %v2477 = vshll.u32 %v2378, 16
      %v2479 = vor.u32 %v2476, %v2477
      %v2481 = vshrl.u32 %v2379, 16
      %v2483 = vrot.slane %v2481, 7
      %v2484 = vshll.u32 %v2379, 16
      %v2486 = vor.u32 %v2483, %v2484
      %v2488 = vshrl.u32 %v2380, 16
      %v2490 = vrot.slane %v2488, 7
      %v2491 = vshll.u32 %v2380, 16
      %v2493 = vor.u32 %v2490, %v2491
      %v2495 = vshrl.u32 %v2381, 16
      %v2497 = vrot.slane %v2495, 7
      %v2498 = vshll.u32 %v2381, 16
      %v2500 = vor.u32 %v2497, %v2498
      %vm2535 = vcmask 1040384
      %vm2536 = vsmask.f32 256
      %vm2537 = vmand %vm2535, %vm2536
      %v2538 = vsel %vm2537, 0, %v2388
      %v2539 = vsel %vm2537, 0, %v2395
      %v2540 = vsel %vm2537, 0, %v2402
      %v2541 = vsel %vm2537, 0, %v2409
      %v2542 = vsel %vm2537, 0, %v2416
      %v2543 = vsel %vm2537, 0, %v2423
      %v2544 = vsel %vm2537, 0, %v2430
      %v2545 = vsel %vm2537, 0, %v2437
      %v2546 = vsel %vm2537, 0, %v2444
      %v2547 = vsel %vm2537, 0, %v2451
      %v2548 = vsel %vm2537, 0, %v2458
      %v2549 = vsel %vm2537, 0, %v2465
      %v2550 = vsel %vm2537, 0, %v2472
      %v2551 = vsel %vm2537, 0, %v2479
      %v2552 = vsel %vm2537, 0, %v2486
      %v2553 = vsel %vm2537, 0, %v2493
      %v2554 = vsel %vm2537, 0, %v2500
      %v2555 = vsel %vm2537, %v2385, 0
      %v2556 = vsel %vm2537, %v2392, 0
      %v2557 = vsel %vm2537, %v2399, 0
      %v2558 = vsel %vm2537, %v2406, 0
      %v2559 = vsel %vm2537, %v2413, 0
      %v2560 = vsel %vm2537, %v2420, 0
      %v2561 = vsel %vm2537, %v2427, 0
      %v2562 = vsel %vm2537, %v2434, 0
      %v2563 = vsel %vm2537, %v2441, 0
      %v2564 = vsel %vm2537, %v2448, 0
      %v2565 = vsel %vm2537, %v2455, 0
      %v2566 = vsel %vm2537, %v2462, 0
      %v2567 = vsel %vm2537, %v2469, 0
      %v2568 = vsel %vm2537, %v2476, 0
      %v2569 = vsel %vm2537, %v2483, 0
      %v2570 = vsel %vm2537, %v2490, 0
      %v2571 = vsel %vm2537, %v2497, 0
      %v2573 = vshrl.u32 %v2538, 16
      %v2575 = vshll.u32 %v2538, 16
      %v2577 = vrot.slane %v2575, 1
      %v2578 = vor.u32 %v2573, %v2577
      %v2580 = vshll.u32 %v2555, 16
      %v2582 = vrot.slane %v2580, 1
      %v2583 = vsel %vm1196, %v2578, %v2582
      %v2585 = vshrl.u32 %v2539, 16
      %v2587 = vshll.u32 %v2539, 16
      %v2589 = vrot.slane %v2587, 1
      %v2590 = vor.u32 %v2585, %v2589
      %v2592 = vshll.u32 %v2556, 16
      %v2594 = vrot.slane %v2592, 1
      %v2595 = vsel %vm1196, %v2590, %v2594
      %v2597 = vshrl.u32 %v2540, 16
      %v2599 = vshll.u32 %v2540, 16
      %v2601 = vrot.slane %v2599, 1
      %v2602 = vor.u32 %v2597, %v2601
      %v2604 = vshll.u32 %v2557, 16
      %v2606 = vrot.slane %v2604, 1
      %v2607 = vsel %vm1196, %v2602, %v2606
      %v2609 = vshrl.u32 %v2541, 16
      %v2611 = vshll.u32 %v2541, 16
      %v2613 = vrot.slane %v2611, 1
      %v2614 = vor.u32 %v2609, %v2613
      %v2616 = vshll.u32 %v2558, 16
      %v2618 = vrot.slane %v2616, 1
      %v2619 = vsel %vm1196, %v2614, %v2618
      %v2621 = vshrl.u32 %v2542, 16
      %v2623 = vshll.u32 %v2542, 16
      %v2625 = vrot.slane %v2623, 1
      %v2626 = vor.u32 %v2621, %v2625
      %v2628 = vshll.u32 %v2559, 16
      %v2630 = vrot.slane %v2628, 1
      %v2631 = vsel %vm1196, %v2626, %v2630
      %v2633 = vshrl.u32 %v2543, 16
      %v2635 = vshll.u32 %v2543, 16
      %v2637 = vrot.slane %v2635, 1
      %v2638 = vor.u32 %v2633, %v2637
      %v2640 = vshll.u32 %v2560, 16
      %v2642 = vrot.slane %v2640, 1
      %v2643 = vsel %vm1196, %v2638, %v2642
      %v2645 = vshrl.u32 %v2544, 16
      %v2647 = vshll.u32 %v2544, 16
      %v2649 = vrot.slane %v2647, 1
      %v2650 = vor.u32 %v2645, %v2649
      %v2652 = vshll.u32 %v2561, 16
      %v2654 = vrot.slane %v2652, 1
      %v2655 = vsel %vm1196, %v2650, %v2654
      %v2657 = vshrl.u32 %v2545, 16
      %v2659 = vshll.u32 %v2545, 16
      %v2661 = vrot.slane %v2659, 1
      %v2662 = vor.u32 %v2657, %v2661
      %v2664 = vshll.u32 %v2562, 16
      %v2666 = vrot.slane %v2664, 1
      %v2667 = vsel %vm1196, %v2662, %v2666
      %v2669 = vshrl.u32 %v2546, 16
      %v2671 = vshll.u32 %v2546, 16
      %v2673 = vrot.slane %v2671, 1
      %v2674 = vor.u32 %v2669, %v2673
      %v2676 = vshll.u32 %v2563, 16
      %v2678 = vrot.slane %v2676, 1
      %v2679 = vsel %vm1196, %v2674, %v2678
      %v2681 = vshrl.u32 %v2547, 16
      %v2683 = vshll.u32 %v2547, 16
      %v2685 = vrot.slane %v2683, 1
      %v2686 = vor.u32 %v2681, %v2685
      %v2688 = vshll.u32 %v2564, 16
      %v2690 = vrot.slane %v2688, 1
      %v2691 = vsel %vm1196, %v2686, %v2690
      %v2693 = vshrl.u32 %v2548, 16
      %v2695 = vshll.u32 %v2548, 16
      %v2697 = vrot.slane %v2695, 1
      %v2698 = vor.u32 %v2693, %v2697
      %v2700 = vshll.u32 %v2565, 16
      %v2702 = vrot.slane %v2700, 1
      %v2703 = vsel %vm1196, %v2698, %v2702
      %v2705 = vshrl.u32 %v2549, 16
      %v2707 = vshll.u32 %v2549, 16
      %v2709 = vrot.slane %v2707, 1
      %v2710 = vor.u32 %v2705, %v2709
      %v2712 = vshll.u32 %v2566, 16
      %v2714 = vrot.slane %v2712, 1
      %v2715 = vsel %vm1196, %v2710, %v2714
      %v2717 = vshrl.u32 %v2550, 16
      %v2719 = vshll.u32 %v2550, 16
      %v2721 = vrot.slane %v2719, 1
      %v2722 = vor.u32 %v2717, %v2721
      %v2724 = vshll.u32 %v2567, 16
      %v2726 = vrot.slane %v2724, 1
      %v2727 = vsel %vm1196, %v2722, %v2726
      %v2729 = vshrl.u32 %v2551, 16
      %v2731 = vshll.u32 %v2551, 16
      %v2733 = vrot.slane %v2731, 1
      %v2734 = vor.u32 %v2729, %v2733
      %v2736 = vshll.u32 %v2568, 16
      %v2738 = vrot.slane %v2736, 1
      %v2739 = vsel %vm1196, %v2734, %v2738
      %v2741 = vshrl.u32 %v2552, 16
      %v2743 = vshll.u32 %v2552, 16
      %v2745 = vrot.slane %v2743, 1
      %v2746 = vor.u32 %v2741, %v2745
      %v2748 = vshll.u32 %v2569, 16
      %v2750 = vrot.slane %v2748, 1
      %v2751 = vsel %vm1196, %v2746, %v2750
      %v2753 = vshrl.u32 %v2553, 16
      %v2755 = vshll.u32 %v2553, 16
      %v2757 = vrot.slane %v2755, 1
      %v2758 = vor.u32 %v2753, %v2757
      %v2760 = vshll.u32 %v2570, 16
      %v2762 = vrot.slane %v2760, 1
      %v2763 = vsel %vm1196, %v2758, %v2762
      %2764 = vrot.lane.b32.xlu0 %v2583, 8
      %v2765 = vpop.permute.xlu0 %2764
      %2766 = vrot.lane.b32.xlu0 %v2595, 8
      %v2767 = vpop.permute.xlu0 %2766
      %2768 = vrot.lane.b32.xlu0 %v2607, 8
      %v2769 = vpop.permute.xlu0 %2768
      %2770 = vrot.lane.b32.xlu0 %v2619, 8
      %v2771 = vpop.permute.xlu0 %2770
      %2772 = vrot.lane.b32.xlu0 %v2631, 8
      %v2773 = vpop.permute.xlu0 %2772
      %2774 = vrot.lane.b32.xlu0 %v2643, 8
      %v2775 = vpop.permute.xlu0 %2774
      %2776 = vrot.lane.b32.xlu0 %v2655, 8
      %v2777 = vpop.permute.xlu0 %2776
      %2778 = vrot.lane.b32.xlu0 %v2667, 8
      %v2779 = vpop.permute.xlu0 %2778
      %2780 = vrot.lane.b32.xlu0 %v2679, 8
      %v2781 = vpop.permute.xlu0 %2780
      %2782 = vrot.lane.b32.xlu0 %v2691, 8
      %v2783 = vpop.permute.xlu0 %2782
      %2784 = vrot.lane.b32.xlu0 %v2703, 8
      %v2785 = vpop.permute.xlu0 %2784
      %2786 = vrot.lane.b32.xlu0 %v2715, 8
      %v2787 = vpop.permute.xlu0 %2786
      %2788 = vrot.lane.b32.xlu0 %v2727, 8
      %v2789 = vpop.permute.xlu0 %2788
      %2790 = vrot.lane.b32.xlu0 %v2739, 8
      %v2791 = vpop.permute.xlu0 %2790
      %2792 = vrot.lane.b32.xlu0 %v2751, 8
      %v2793 = vpop.permute.xlu0 %2792
      %2794 = vrot.lane.b32.xlu0 %v2763, 8
      %v2795 = vpop.permute.xlu0 %2794
      %v2828 = vrot.slane %v2538, 1
      %v2829 = vrot.slane %v2555, 1
      %v2830 = vsel %vm1421, %v2828, %v2829
      %v2831 = vrot.slane %v2539, 1
      %v2832 = vrot.slane %v2556, 1
      %v2833 = vsel %vm1421, %v2831, %v2832
      %v2834 = vrot.slane %v2540, 1
      %v2835 = vrot.slane %v2557, 1
      %v2836 = vsel %vm1421, %v2834, %v2835
      %v2837 = vrot.slane %v2541, 1
      %v2838 = vrot.slane %v2558, 1
      %v2839 = vsel %vm1421, %v2837, %v2838
      %v2840 = vrot.slane %v2542, 1
      %v2841 = vrot.slane %v2559, 1
      %v2842 = vsel %vm1421, %v2840, %v2841
      %v2843 = vrot.slane %v2543, 1
      %v2844 = vrot.slane %v2560, 1
      %v2845 = vsel %vm1421, %v2843, %v2844
      %v2846 = vrot.slane %v2544, 1
      %v2847 = vrot.slane %v2561, 1
      %v2848 = vsel %vm1421, %v2846, %v2847
      %v2849 = vrot.slane %v2545, 1
      %v2850 = vrot.slane %v2562, 1
      %v2851 = vsel %vm1421, %v2849, %v2850
      %v2852 = vrot.slane %v2546, 1
      %v2853 = vrot.slane %v2563, 1
      %v2854 = vsel %vm1421, %v2852, %v2853
      %v2855 = vrot.slane %v2547, 1
      %v2856 = vrot.slane %v2564, 1
      %v2857 = vsel %vm1421, %v2855, %v2856
      %v2858 = vrot.slane %v2548, 1
      %v2859 = vrot.slane %v2565, 1
      %v2860 = vsel %vm1421, %v2858, %v2859
      %v2861 = vrot.slane %v2549, 1
      %v2862 = vrot.slane %v2566, 1
      %v2863 = vsel %vm1421, %v2861, %v2862
      %v2864 = vrot.slane %v2550, 1
      %v2865 = vrot.slane %v2567, 1
      %v2866 = vsel %vm1421, %v2864, %v2865
      %v2867 = vrot.slane %v2551, 1
      %v2868 = vrot.slane %v2568, 1
      %v2869 = vsel %vm1421, %v2867, %v2868
      %v2870 = vrot.slane %v2552, 1
      %v2871 = vrot.slane %v2569, 1
      %v2872 = vsel %vm1421, %v2870, %v2871
      %v2873 = vrot.slane %v2553, 1
      %v2874 = vrot.slane %v2570, 1
      %v2875 = vsel %vm1421, %v2873, %v2874
      %2876 = vrot.lane.b32.xlu0 %v2830, 16
      %v2877 = vpop.permute.xlu0 %2876
      %2878 = vrot.lane.b32.xlu0 %v2833, 16
      %v2879 = vpop.permute.xlu0 %2878
      %2880 = vrot.lane.b32.xlu0 %v2836, 16
      %v2881 = vpop.permute.xlu0 %2880
      %2882 = vrot.lane.b32.xlu0 %v2839, 16
      %v2883 = vpop.permute.xlu0 %2882
      %2884 = vrot.lane.b32.xlu0 %v2842, 16
      %v2885 = vpop.permute.xlu0 %2884
      %2886 = vrot.lane.b32.xlu0 %v2845, 16
      %v2887 = vpop.permute.xlu0 %2886
      %2888 = vrot.lane.b32.xlu0 %v2848, 16
      %v2889 = vpop.permute.xlu0 %2888
      %2890 = vrot.lane.b32.xlu0 %v2851, 16
      %v2891 = vpop.permute.xlu0 %2890
      %2892 = vrot.lane.b32.xlu0 %v2854, 16
      %v2893 = vpop.permute.xlu0 %2892
      %2894 = vrot.lane.b32.xlu0 %v2857, 16
      %v2895 = vpop.permute.xlu0 %2894
      %2896 = vrot.lane.b32.xlu0 %v2860, 16
      %v2897 = vpop.permute.xlu0 %2896
      %2898 = vrot.lane.b32.xlu0 %v2863, 16
      %v2899 = vpop.permute.xlu0 %2898
      %2900 = vrot.lane.b32.xlu0 %v2866, 16
      %v2901 = vpop.permute.xlu0 %2900
      %2902 = vrot.lane.b32.xlu0 %v2869, 16
      %v2903 = vpop.permute.xlu0 %2902
      %2904 = vrot.lane.b32.xlu0 %v2872, 16
      %v2905 = vpop.permute.xlu0 %2904
      %2906 = vrot.lane.b32.xlu0 %v2875, 16
      %v2907 = vpop.permute.xlu0 %2906
      %2909 = vrot.lane.b32.xlu0 %v2539, 24
      %v2910 = vpop.permute.xlu0 %2909
      %2911 = vrot.lane.b32.xlu0 %v2540, 24
      %v2912 = vpop.permute.xlu0 %2911
      %2913 = vrot.lane.b32.xlu0 %v2541, 24
      %v2914 = vpop.permute.xlu0 %2913
      %2915 = vrot.lane.b32.xlu0 %v2542, 24
      %v2916 = vpop.permute.xlu0 %2915
      %2917 = vrot.lane.b32.xlu0 %v2543, 24
      %v2918 = vpop.permute.xlu0 %2917
      %2919 = vrot.lane.b32.xlu0 %v2544, 24
      %v2920 = vpop.permute.xlu0 %2919
      %2921 = vrot.lane.b32.xlu0 %v2545, 24
      %v2922 = vpop.permute.xlu0 %2921
      %2923 = vrot.lane.b32.xlu0 %v2546, 24
      %v2924 = vpop.permute.xlu0 %2923
      %2925 = vrot.lane.b32.xlu0 %v2547, 24
      %v2926 = vpop.permute.xlu0 %2925
      %2927 = vrot.lane.b32.xlu0 %v2548, 24
      %v2928 = vpop.permute.xlu0 %2927
      %2929 = vrot.lane.b32.xlu0 %v2549, 24
      %v2930 = vpop.permute.xlu0 %2929
      %2931 = vrot.lane.b32.xlu0 %v2550, 24
      %v2932 = vpop.permute.xlu0 %2931
      %2933 = vrot.lane.b32.xlu0 %v2551, 24
      %v2934 = vpop.permute.xlu0 %2933
      %2935 = vrot.lane.b32.xlu0 %v2552, 24
      %v2936 = vpop.permute.xlu0 %2935
      %2937 = vrot.lane.b32.xlu0 %v2553, 24
      %v2938 = vpop.permute.xlu0 %2937
      %2939 = vrot.lane.b32.xlu0 %v2554, 24
      %v2940 = vpop.permute.xlu0 %2939
      %v2942 = vshrl.u32 %v2554, 16
      %v2944 = vshll.u32 %v2554, 16
      %v2946 = vrot.slane %v2944, 1
      %v2947 = vor.u32 %v2942, %v2946
      %v2949 = vshll.u32 %v2571, 16
      %v2951 = vrot.slane %v2949, 1
      %v2952 = vsel %vm1196, %v2947, %v2951
      %2953 = vrot.lane.b32.xlu0 %v2595, 32
      %v2954 = vpop.permute.xlu0 %2953
      %2955 = vrot.lane.b32.xlu0 %v2607, 32
      %v2956 = vpop.permute.xlu0 %2955
      %2957 = vrot.lane.b32.xlu0 %v2619, 32
      %v2958 = vpop.permute.xlu0 %2957
      %2959 = vrot.lane.b32.xlu0 %v2631, 32
      %v2960 = vpop.permute.xlu0 %2959
      %2961 = vrot.lane.b32.xlu0 %v2643, 32
      %v2962 = vpop.permute.xlu0 %2961
      %2963 = vrot.lane.b32.xlu0 %v2655, 32
      %v2964 = vpop.permute.xlu0 %2963
      %2965 = vrot.lane.b32.xlu0 %v2667, 32
      %v2966 = vpop.permute.xlu0 %2965
      %2967 = vrot.lane.b32.xlu0 %v2679, 32
      %v2968 = vpop.permute.xlu0 %2967
      %2969 = vrot.lane.b32.xlu0 %v2691, 32
      %v2970 = vpop.permute.xlu0 %2969
      %2971 = vrot.lane.b32.xlu0 %v2703, 32
      %v2972 = vpop.permute.xlu0 %2971
      %2973 = vrot.lane.b32.xlu0 %v2715, 32
      %v2974 = vpop.permute.xlu0 %2973
      %2975 = vrot.lane.b32.xlu0 %v2727, 32
      %v2976 = vpop.permute.xlu0 %2975
      %2977 = vrot.lane.b32.xlu0 %v2739, 32
      %v2978 = vpop.permute.xlu0 %2977
      %2979 = vrot.lane.b32.xlu0 %v2751, 32
      %v2980 = vpop.permute.xlu0 %2979
      %2981 = vrot.lane.b32.xlu0 %v2763, 32
      %v2982 = vpop.permute.xlu0 %2981
      %2983 = vrot.lane.b32.xlu0 %v2952, 32
      %v2984 = vpop.permute.xlu0 %2983
      %v2986 = vrot.slane %v2554, 1
      %v2987 = vrot.slane %v2571, 1
      %v2988 = vsel %vm1421, %v2986, %v2987
      %2989 = vrot.lane.b32.xlu0 %v2833, 40
      %v2990 = vpop.permute.xlu0 %2989
      %2991 = vrot.lane.b32.xlu0 %v2836, 40
      %v2992 = vpop.permute.xlu0 %2991
      %2993 = vrot.lane.b32.xlu0 %v2839, 40
      %v2994 = vpop.permute.xlu0 %2993
      %2995 = vrot.lane.b32.xlu0 %v2842, 40
      %v2996 = vpop.permute.xlu0 %2995
      %2997 = vrot.lane.b32.xlu0 %v2845, 40
      %v2998 = vpop.permute.xlu0 %2997
      %2999 = vrot.lane.b32.xlu0 %v2848, 40
      %v3000 = vpop.permute.xlu0 %2999
      %3001 = vrot.lane.b32.xlu0 %v2851, 40
      %v3002 = vpop.permute.xlu0 %3001
      %3003 = vrot.lane.b32.xlu0 %v2854, 40
      %v3004 = vpop.permute.xlu0 %3003
      %3005 = vrot.lane.b32.xlu0 %v2857, 40
      %v3006 = vpop.permute.xlu0 %3005
      %3007 = vrot.lane.b32.xlu0 %v2860, 40
      %v3008 = vpop.permute.xlu0 %3007
      %3009 = vrot.lane.b32.xlu0 %v2863, 40
      %v3010 = vpop.permute.xlu0 %3009
      %3011 = vrot.lane.b32.xlu0 %v2866, 40
      %v3012 = vpop.permute.xlu0 %3011
      %3013 = vrot.lane.b32.xlu0 %v2869, 40
      %v3014 = vpop.permute.xlu0 %3013
      %3015 = vrot.lane.b32.xlu0 %v2872, 40
      %v3016 = vpop.permute.xlu0 %3015
      %3017 = vrot.lane.b32.xlu0 %v2875, 40
      %v3018 = vpop.permute.xlu0 %3017
      %3019 = vrot.lane.b32.xlu0 %v2988, 40
      %v3020 = vpop.permute.xlu0 %3019
      %3021 = vrot.lane.b32.xlu0 %v2540, 48
      %v3022 = vpop.permute.xlu0 %3021
      %3023 = vrot.lane.b32.xlu0 %v2541, 48
      %v3024 = vpop.permute.xlu0 %3023
      %3025 = vrot.lane.b32.xlu0 %v2542, 48
      %v3026 = vpop.permute.xlu0 %3025
      %3027 = vrot.lane.b32.xlu0 %v2543, 48
      %v3028 = vpop.permute.xlu0 %3027
      %3029 = vrot.lane.b32.xlu0 %v2544, 48
      %v3030 = vpop.permute.xlu0 %3029
      %3031 = vrot.lane.b32.xlu0 %v2545, 48
      %v3032 = vpop.permute.xlu0 %3031
      %3033 = vrot.lane.b32.xlu0 %v2546, 48
      %v3034 = vpop.permute.xlu0 %3033
      %3035 = vrot.lane.b32.xlu0 %v2547, 48
      %v3036 = vpop.permute.xlu0 %3035
      %3037 = vrot.lane.b32.xlu0 %v2548, 48
      %v3038 = vpop.permute.xlu0 %3037
      %3039 = vrot.lane.b32.xlu0 %v2549, 48
      %v3040 = vpop.permute.xlu0 %3039
      %3041 = vrot.lane.b32.xlu0 %v2550, 48
      %v3042 = vpop.permute.xlu0 %3041
      %3043 = vrot.lane.b32.xlu0 %v2551, 48
      %v3044 = vpop.permute.xlu0 %3043
      %3045 = vrot.lane.b32.xlu0 %v2552, 48
      %v3046 = vpop.permute.xlu0 %3045
      %3047 = vrot.lane.b32.xlu0 %v2553, 48
      %v3048 = vpop.permute.xlu0 %3047
      %3049 = vrot.lane.b32.xlu0 %v2554, 48
      %v3050 = vpop.permute.xlu0 %3049
      %3051 = vrot.lane.b32.xlu0 %v2538, 48
      %v3052 = vpop.permute.xlu0 %3051
      %3053 = vrot.lane.b32.xlu0 %v2607, 56
      %v3054 = vpop.permute.xlu0 %3053
      %3055 = vrot.lane.b32.xlu0 %v2619, 56
      %v3056 = vpop.permute.xlu0 %3055
      %3057 = vrot.lane.b32.xlu0 %v2631, 56
      %v3058 = vpop.permute.xlu0 %3057
      %3059 = vrot.lane.b32.xlu0 %v2643, 56
      %v3060 = vpop.permute.xlu0 %3059
      %3061 = vrot.lane.b32.xlu0 %v2655, 56
      %v3062 = vpop.permute.xlu0 %3061
      %3063 = vrot.lane.b32.xlu0 %v2667, 56
      %v3064 = vpop.permute.xlu0 %3063
      %3065 = vrot.lane.b32.xlu0 %v2679, 56
      %v3066 = vpop.permute.xlu0 %3065
      %3067 = vrot.lane.b32.xlu0 %v2691, 56
      %v3068 = vpop.permute.xlu0 %3067
      %3069 = vrot.lane.b32.xlu0 %v2703, 56
      %v3070 = vpop.permute.xlu0 %3069
      %3071 = vrot.lane.b32.xlu0 %v2715, 56
      %v3072 = vpop.permute.xlu0 %3071
      %3073 = vrot.lane.b32.xlu0 %v2727, 56
      %v3074 = vpop.permute.xlu0 %3073
      %3075 = vrot.lane.b32.xlu0 %v2739, 56
      %v3076 = vpop.permute.xlu0 %3075
      %3077 = vrot.lane.b32.xlu0 %v2751, 56
      %v3078 = vpop.permute.xlu0 %3077
      %3079 = vrot.lane.b32.xlu0 %v2763, 56
      %v3080 = vpop.permute.xlu0 %3079
      %3081 = vrot.lane.b32.xlu0 %v2952, 56
      %v3082 = vpop.permute.xlu0 %3081
      %3083 = vrot.lane.b32.xlu0 %v2583, 56
      %v3084 = vpop.permute.xlu0 %3083
      %3085 = vrot.lane.b32.xlu0 %v2836, 64
      %v3086 = vpop.permute.xlu0 %3085
      %3087 = vrot.lane.b32.xlu0 %v2839, 64
      %v3088 = vpop.permute.xlu0 %3087
      %3089 = vrot.lane.b32.xlu0 %v2842, 64
      %v3090 = vpop.permute.xlu0 %3089
      %3091 = vrot.lane.b32.xlu0 %v2845, 64
      %v3092 = vpop.permute.xlu0 %3091
      %3093 = vrot.lane.b32.xlu0 %v2848, 64
      %v3094 = vpop.permute.xlu0 %3093
      %3095 = vrot.lane.b32.xlu0 %v2851, 64
      %v3096 = vpop.permute.xlu0 %3095
      %3097 = vrot.lane.b32.xlu0 %v2854, 64
      %v3098 = vpop.permute.xlu0 %3097
      %3099 = vrot.lane.b32.xlu0 %v2857, 64
      %v3100 = vpop.permute.xlu0 %3099
      %3101 = vrot.lane.b32.xlu0 %v2860, 64
      %v3102 = vpop.permute.xlu0 %3101
      %3103 = vrot.lane.b32.xlu0 %v2863, 64
      %v3104 = vpop.permute.xlu0 %3103
      %3105 = vrot.lane.b32.xlu0 %v2866, 64
      %v3106 = vpop.permute.xlu0 %3105
      %3107 = vrot.lane.b32.xlu0 %v2869, 64
      %v3108 = vpop.permute.xlu0 %3107
      %3109 = vrot.lane.b32.xlu0 %v2872, 64
      %v3110 = vpop.permute.xlu0 %3109
      %3111 = vrot.lane.b32.xlu0 %v2875, 64
      %v3112 = vpop.permute.xlu0 %3111
      %3113 = vrot.lane.b32.xlu0 %v2988, 64
      %v3114 = vpop.permute.xlu0 %3113
      %3115 = vrot.lane.b32.xlu0 %v2830, 64
      %v3116 = vpop.permute.xlu0 %3115
      %v3118 = vsel %vm1740, %v2538, %v2765
      %v3120 = vsel %vm1740, %v2539, %v2767
      %v3122 = vsel %vm1740, %v2540, %v2769
      %v3124 = vsel %vm1740, %v2541, %v2771
      %v3126 = vsel %vm1740, %v2542, %v2773
      %v3128 = vsel %vm1740, %v2543, %v2775
      %v3130 = vsel %vm1740, %v2544, %v2777
      %v3132 = vsel %vm1740, %v2545, %v2779
      %v3134 = vsel %vm1740, %v2546, %v2781
      %v3136 = vsel %vm1740, %v2547, %v2783
      %v3138 = vsel %vm1740, %v2548, %v2785
      %v3140 = vsel %vm1740, %v2549, %v2787
      %v3142 = vsel %vm1740, %v2550, %v2789
      %v3144 = vsel %vm1740, %v2551, %v2791
      %v3146 = vsel %vm1740, %v2552, %v2793
      %v3148 = vsel %vm1740, %v2553, %v2795
      %v3150 = vsel %vm1773, %v3118, %v2877
      %v3152 = vsel %vm1773, %v3120, %v2879
      %v3154 = vsel %vm1773, %v3122, %v2881
      %v3156 = vsel %vm1773, %v3124, %v2883
      %v3158 = vsel %vm1773, %v3126, %v2885
      %v3160 = vsel %vm1773, %v3128, %v2887
      %v3162 = vsel %vm1773, %v3130, %v2889
      %v3164 = vsel %vm1773, %v3132, %v2891
      %v3166 = vsel %vm1773, %v3134, %v2893
      %v3168 = vsel %vm1773, %v3136, %v2895
      %v3170 = vsel %vm1773, %v3138, %v2897
      %v3172 = vsel %vm1773, %v3140, %v2899
      %v3174 = vsel %vm1773, %v3142, %v2901
      %v3176 = vsel %vm1773, %v3144, %v2903
      %v3178 = vsel %vm1773, %v3146, %v2905
      %v3180 = vsel %vm1773, %v3148, %v2907
      %v3182 = vsel %vm1806, %v3150, %v2910
      %v3184 = vsel %vm1806, %v3152, %v2912
      %v3186 = vsel %vm1806, %v3154, %v2914
      %v3188 = vsel %vm1806, %v3156, %v2916
      %v3190 = vsel %vm1806, %v3158, %v2918
      %v3192 = vsel %vm1806, %v3160, %v2920
      %v3194 = vsel %vm1806, %v3162, %v2922
      %v3196 = vsel %vm1806, %v3164, %v2924
      %v3198 = vsel %vm1806, %v3166, %v2926
      %v3200 = vsel %vm1806, %v3168, %v2928
      %v3202 = vsel %vm1806, %v3170, %v2930
      %v3204 = vsel %vm1806, %v3172, %v2932
      %v3206 = vsel %vm1806, %v3174, %v2934
      %v3208 = vsel %vm1806, %v3176, %v2936
      %v3210 = vsel %vm1806, %v3178, %v2938
      %v3212 = vsel %vm1806, %v3180, %v2940
      %v3214 = vsel %vm1839, %v3182, %v2954
      %v3216 = vsel %vm1839, %v3184, %v2956
      %v3218 = vsel %vm1839, %v3186, %v2958
      %v3220 = vsel %vm1839, %v3188, %v2960
      %v3222 = vsel %vm1839, %v3190, %v2962
      %v3224 = vsel %vm1839, %v3192, %v2964
      %v3226 = vsel %vm1839, %v3194, %v2966
      %v3228 = vsel %vm1839, %v3196, %v2968
      %v3230 = vsel %vm1839, %v3198, %v2970
      %v3232 = vsel %vm1839, %v3200, %v2972
      %v3234 = vsel %vm1839, %v3202, %v2974
      %v3236 = vsel %vm1839, %v3204, %v2976
      %v3238 = vsel %vm1839, %v3206, %v2978
      %v3240 = vsel %vm1839, %v3208, %v2980
      %v3242 = vsel %vm1839, %v3210, %v2982
      %v3244 = vsel %vm1839, %v3212, %v2984
      %v3246 = vsel %vm1872, %v3214, %v2990
      %v3248 = vsel %vm1872, %v3216, %v2992
      %v3250 = vsel %vm1872, %v3218, %v2994
      %v3252 = vsel %vm1872, %v3220, %v2996
      %v3254 = vsel %vm1872, %v3222, %v2998
      %v3256 = vsel %vm1872, %v3224, %v3000
      %v3258 = vsel %vm1872, %v3226, %v3002
      %v3260 = vsel %vm1872, %v3228, %v3004
      %v3262 = vsel %vm1872, %v3230, %v3006
      %v3264 = vsel %vm1872, %v3232, %v3008
      %v3266 = vsel %vm1872, %v3234, %v3010
      %v3268 = vsel %vm1872, %v3236, %v3012
      %v3270 = vsel %vm1872, %v3238, %v3014
      %v3272 = vsel %vm1872, %v3240, %v3016
      %v3274 = vsel %vm1872, %v3242, %v3018
      %v3276 = vsel %vm1872, %v3244, %v3020
      %v3278 = vsel %vm1905, %v3246, %v3022
      %v3280 = vsel %vm1905, %v3248, %v3024
      %v3282 = vsel %vm1905, %v3250, %v3026
      %v3284 = vsel %vm1905, %v3252, %v3028
      %v3286 = vsel %vm1905, %v3254, %v3030
      %v3288 = vsel %vm1905, %v3256, %v3032
      %v3290 = vsel %vm1905, %v3258, %v3034
      %v3292 = vsel %vm1905, %v3260, %v3036
      %v3294 = vsel %vm1905, %v3262, %v3038
      %v3296 = vsel %vm1905, %v3264, %v3040
      %v3298 = vsel %vm1905, %v3266, %v3042
      %v3300 = vsel %vm1905, %v3268, %v3044
      %v3302 = vsel %vm1905, %v3270, %v3046
      %v3304 = vsel %vm1905, %v3272, %v3048
      %v3306 = vsel %vm1905, %v3274, %v3050
      %v3308 = vsel %vm1905, %v3276, %v3052
      %v3310 = vsel %vm1938, %v3278, %v3054
      %v3312 = vsel %vm1938, %v3280, %v3056
      %v3314 = vsel %vm1938, %v3282, %v3058
      %v3316 = vsel %vm1938, %v3284, %v3060
      %v3318 = vsel %vm1938, %v3286, %v3062
      %v3320 = vsel %vm1938, %v3288, %v3064
      %v3322 = vsel %vm1938, %v3290, %v3066
      %v3324 = vsel %vm1938, %v3292, %v3068
      %v3326 = vsel %vm1938, %v3294, %v3070
      %v3328 = vsel %vm1938, %v3296, %v3072
      %v3330 = vsel %vm1938, %v3298, %v3074
      %v3332 = vsel %vm1938, %v3300, %v3076
      %v3334 = vsel %vm1938, %v3302, %v3078
      %v3336 = vsel %vm1938, %v3304, %v3080
      %v3338 = vsel %vm1938, %v3306, %v3082
      %v3340 = vsel %vm1938, %v3308, %v3084
      %v3342 = vsel %vm1971, %v3310, %v3086
      %v3344 = vsel %vm1971, %v3312, %v3088
      %v3346 = vsel %vm1971, %v3314, %v3090
      %v3348 = vsel %vm1971, %v3316, %v3092
      %v3350 = vsel %vm1971, %v3318, %v3094
      %v3352 = vsel %vm1971, %v3320, %v3096
      %v3354 = vsel %vm1971, %v3322, %v3098
      %v3356 = vsel %vm1971, %v3324, %v3100
      %v3358 = vsel %vm1971, %v3326, %v3102
      %v3360 = vsel %vm1971, %v3328, %v3104
      %v3362 = vsel %vm1971, %v3330, %v3106
      %v3364 = vsel %vm1971, %v3332, %v3108
      %v3366 = vsel %vm1971, %v3334, %v3110
      %v3368 = vsel %vm1971, %v3336, %v3112
      %v3370 = vsel %vm1971, %v3338, %v3114
      %v3372 = vsel %vm1971, %v3340, %v3116
      %v3373 = vld [vmem:[%s9] sm:$0xf]
      %v3374 = vld [vmem:[%s9 + $0x4] sm:$0xf]
      %v3375 = vld [vmem:[%s9 + $0x8] sm:$0xf]
      %v3376 = vld [vmem:[%s9 + $0xc] sm:$0xf]
      %v3377 = vld [vmem:[%s9 + $0x10] sm:$0xf]
      %v3378 = vld [vmem:[%s9 + $0x14] sm:$0xf]
      %v3379 = vld [vmem:[%s9 + $0x18] sm:$0xf]
      %v3380 = vld [vmem:[%s9 + $0x1c] sm:$0xf]
      %v3381 = vld [vmem:[%s9 + $0x20] sm:$0xf]
      %v3391 = vunpack.c.l.b16 %v3373
      %v3392 = vunpack.c.l.b16 %v3374
      %v3393 = vunpack.c.l.b16 %v3375
      %v3394 = vunpack.c.l.b16 %v3376
      %v3395 = vunpack.c.l.b16 %v3377
      %v3396 = vunpack.c.l.b16 %v3378
      %v3397 = vunpack.c.l.b16 %v3379
      %v3398 = vunpack.c.l.b16 %v3380
      %v3399 = vunpack.c.l.b16 %v3381
      %v3400 = vpack.c.b16 %v3392, %v3391
      %v3401 = vpack.c.b16 %v3394, %v3393
      %v3402 = vpack.c.b16 %v3396, %v3395
      %v3403 = vpack.c.b16 %v3398, %v3397
      %v3404 = vpack.c.b16 %v3399, %v3399
      %v3409 = vsel %vm2040, %v3342, 0
      %v3411 = vsel %vm2040, %v3344, 0
      %v3413 = vsel %vm2040, %v3346, 0
      %v3415 = vsel %vm2040, %v3348, 0
      %v3417 = vsel %vm2040, %v3350, 0
      %v3419 = vsel %vm2040, %v3352, 0
      %v3421 = vsel %vm2040, %v3354, 0
      %v3423 = vsel %vm2040, %v3356, 0
      %v3425 = vsel %vm2040, %v3358, 0
      %v3427 = vsel %vm2040, %v3360, 0
      %v3429 = vsel %vm2040, %v3362, 0
      %v3431 = vsel %vm2040, %v3364, 0
      %v3433 = vsel %vm2040, %v3366, 0
      %v3435 = vsel %vm2040, %v3368, 0
      %v3437 = vsel %vm2040, %v3370, 0
      %v3439 = vsel %vm2040, %v3372, 0
      %v3442 = vsel %vm2073, %v3404, 0
      %3444 = vmatpush.bf16.msra.mxu0 0
      %3445 = vmatpush.bf16.msra.mxu0 0
      %3446 = vmatpush.bf16.msra.mxu0 0
      %3447 = vmatpush.bf16.msra.mxu0 %v3442
      %3448 = vmatpush.bf16.msra.mxu0 %v3403
      %3449 = vmatpush.bf16.msra.mxu0 %v3402
      %3450 = vmatpush.bf16.msra.mxu0 %v3401
      %3451 = vmatpush.bf16.msra.mxu0 %v3400
      %3452 = vmatmul.bf16.gmra.mxu0 %v3409
      %v3453 = vpop.f32.mrf.mxu0
      %v3454 = vadd.f32 0.0, %v3453
      %v3455 = vpop.f32.mrf.mxu0
      %v3456 = vadd.f32 0.0, %v3455
      %3457 = vmatmul.bf16.gmra.mxu0 %v3411
      %v3458 = vpop.f32.mrf.mxu0
      %v3459 = vadd.f32 0.0, %v3458
      %v3460 = vpop.f32.mrf.mxu0
      %v3461 = vadd.f32 0.0, %v3460
      %3462 = vmatmul.bf16.gmra.mxu0 %v3413
      %v3463 = vpop.f32.mrf.mxu0
      %v3464 = vadd.f32 0.0, %v3463
      %v3465 = vpop.f32.mrf.mxu0
      %v3466 = vadd.f32 0.0, %v3465
      %3467 = vmatmul.bf16.gmra.mxu0 %v3415
      %v3468 = vpop.f32.mrf.mxu0
      %v3469 = vadd.f32 0.0, %v3468
      %v3470 = vpop.f32.mrf.mxu0
      %v3471 = vadd.f32 0.0, %v3470
      %3472 = vmatmul.bf16.gmra.mxu0 %v3417
      %v3473 = vpop.f32.mrf.mxu0
      %v3474 = vadd.f32 0.0, %v3473
      %v3475 = vpop.f32.mrf.mxu0
      %v3476 = vadd.f32 0.0, %v3475
      %3477 = vmatmul.bf16.gmra.mxu0 %v3419
      %v3478 = vpop.f32.mrf.mxu0
      %v3479 = vadd.f32 0.0, %v3478
      %v3480 = vpop.f32.mrf.mxu0
      %v3481 = vadd.f32 0.0, %v3480
      %3482 = vmatmul.bf16.gmra.mxu0 %v3421
      %v3483 = vpop.f32.mrf.mxu0
      %v3484 = vadd.f32 0.0, %v3483
      %v3485 = vpop.f32.mrf.mxu0
      %v3486 = vadd.f32 0.0, %v3485
      %3487 = vmatmul.bf16.gmra.mxu0 %v3423
      %v3488 = vpop.f32.mrf.mxu0
      %v3489 = vadd.f32 0.0, %v3488
      %v3490 = vpop.f32.mrf.mxu0
      %v3491 = vadd.f32 0.0, %v3490
      %3492 = vmatmul.bf16.gmra.mxu0 %v3425
      %v3493 = vpop.f32.mrf.mxu0
      %v3494 = vadd.f32 0.0, %v3493
      %v3495 = vpop.f32.mrf.mxu0
      %v3496 = vadd.f32 0.0, %v3495
      %3497 = vmatmul.bf16.gmra.mxu0 %v3427
      %v3498 = vpop.f32.mrf.mxu0
      %v3499 = vadd.f32 0.0, %v3498
      %v3500 = vpop.f32.mrf.mxu0
      %v3501 = vadd.f32 0.0, %v3500
      %3502 = vmatmul.bf16.gmra.mxu0 %v3429
      %v3503 = vpop.f32.mrf.mxu0
      %v3504 = vadd.f32 0.0, %v3503
      %v3505 = vpop.f32.mrf.mxu0
      %v3506 = vadd.f32 0.0, %v3505
      %3507 = vmatmul.bf16.gmra.mxu0 %v3431
      %v3508 = vpop.f32.mrf.mxu0
      %v3509 = vadd.f32 0.0, %v3508
      %v3510 = vpop.f32.mrf.mxu0
      %v3511 = vadd.f32 0.0, %v3510
      %3512 = vmatmul.bf16.gmra.mxu0 %v3433
      %v3513 = vpop.f32.mrf.mxu0
      %v3514 = vadd.f32 0.0, %v3513
      %v3515 = vpop.f32.mrf.mxu0
      %v3516 = vadd.f32 0.0, %v3515
      %3517 = vmatmul.bf16.gmra.mxu0 %v3435
      %v3518 = vpop.f32.mrf.mxu0
      %v3519 = vadd.f32 0.0, %v3518
      %v3520 = vpop.f32.mrf.mxu0
      %v3521 = vadd.f32 0.0, %v3520
      %3522 = vmatmul.bf16.gmra.mxu0 %v3437
      %v3523 = vpop.f32.mrf.mxu0
      %v3524 = vadd.f32 0.0, %v3523
      %v3525 = vpop.f32.mrf.mxu0
      %v3526 = vadd.f32 0.0, %v3525
      %3527 = vmatmul.bf16.gmra.mxu0 %v3439
      %v3528 = vpop.f32.mrf.mxu0
      %v3529 = vadd.f32 0.0, %v3528
      %v3530 = vpop.f32.mrf.mxu0
      %v3531 = vadd.f32 0.0, %v3530
      %3532 = vdwg.mxu0
      %v3533 = vld [vmem:[%s11] sm:$0x1]
      %v3535 = vperm.slane %v3533, 0
      %v3537 = vmul.f32 %v3454, %v3535
      %v3538 = vmul.f32 %v3456, %v3535
      %v3539 = vmul.f32 %v3459, %v3535
      %v3540 = vmul.f32 %v3461, %v3535
      %v3541 = vmul.f32 %v3464, %v3535
      %v3542 = vmul.f32 %v3466, %v3535
      %v3543 = vmul.f32 %v3469, %v3535
      %v3544 = vmul.f32 %v3471, %v3535
      %v3545 = vmul.f32 %v3474, %v3535
      %v3546 = vmul.f32 %v3476, %v3535
      %v3547 = vmul.f32 %v3479, %v3535
      %v3548 = vmul.f32 %v3481, %v3535
      %v3549 = vmul.f32 %v3484, %v3535
      %v3550 = vmul.f32 %v3486, %v3535
      %v3551 = vmul.f32 %v3489, %v3535
      %v3552 = vmul.f32 %v3491, %v3535
      %v3553 = vmul.f32 %v3494, %v3535
      %v3554 = vmul.f32 %v3496, %v3535
      %v3555 = vmul.f32 %v3499, %v3535
      %v3556 = vmul.f32 %v3501, %v3535
      %v3557 = vmul.f32 %v3504, %v3535
      %v3558 = vmul.f32 %v3506, %v3535
      %v3559 = vmul.f32 %v3509, %v3535
      %v3560 = vmul.f32 %v3511, %v3535
      %v3561 = vmul.f32 %v3514, %v3535
      %v3562 = vmul.f32 %v3516, %v3535
      %v3563 = vmul.f32 %v3519, %v3535
      %v3564 = vmul.f32 %v3521, %v3535
      %v3565 = vmul.f32 %v3524, %v3535
      %v3566 = vmul.f32 %v3526, %v3535
      %v3567 = vmul.f32 %v3529, %v3535
      %v3568 = vmul.f32 %v3531, %v3535
      %v3569 = vld [vmem:[%s13] sm:$0x1]
      %v3571 = vperm.slane %v3569, 0
      %v3573 = vadd.f32 %v3537, %v3571
      %v3574 = vadd.f32 %v3538, %v3571
      %v3575 = vadd.f32 %v3539, %v3571
      %v3576 = vadd.f32 %v3540, %v3571
      %v3577 = vadd.f32 %v3541, %v3571
      %v3578 = vadd.f32 %v3542, %v3571
      %v3579 = vadd.f32 %v3543, %v3571
      %v3580 = vadd.f32 %v3544, %v3571
      %v3581 = vadd.f32 %v3545, %v3571
      %v3582 = vadd.f32 %v3546, %v3571
      %v3583 = vadd.f32 %v3547, %v3571
      %v3584 = vadd.f32 %v3548, %v3571
      %v3585 = vadd.f32 %v3549, %v3571
      %v3586 = vadd.f32 %v3550, %v3571
      %v3587 = vadd.f32 %v3551, %v3571
      %v3588 = vadd.f32 %v3552, %v3571
      %v3589 = vadd.f32 %v3553, %v3571
      %v3590 = vadd.f32 %v3554, %v3571
      %v3591 = vadd.f32 %v3555, %v3571
      %v3592 = vadd.f32 %v3556, %v3571
      %v3593 = vadd.f32 %v3557, %v3571
      %v3594 = vadd.f32 %v3558, %v3571
      %v3595 = vadd.f32 %v3559, %v3571
      %v3596 = vadd.f32 %v3560, %v3571
      %v3597 = vadd.f32 %v3561, %v3571
      %v3598 = vadd.f32 %v3562, %v3571
      %v3599 = vadd.f32 %v3563, %v3571
      %v3600 = vadd.f32 %v3564, %v3571
      %v3601 = vadd.f32 %v3565, %v3571
      %v3602 = vadd.f32 %v3566, %v3571
      %v3603 = vadd.f32 %v3567, %v3571
      %v3604 = vadd.f32 %v3568, %v3571
      %v3605 = vmax.f32 %v3573, 0.0
      %v3606 = vmax.f32 %v3574, 0.0
      %v3607 = vmax.f32 %v3575, 0.0
      %v3608 = vmax.f32 %v3576, 0.0
      %v3609 = vmax.f32 %v3577, 0.0
      %v3610 = vmax.f32 %v3578, 0.0
      %v3611 = vmax.f32 %v3579, 0.0
      %v3612 = vmax.f32 %v3580, 0.0
      %v3613 = vmax.f32 %v3581, 0.0
      %v3614 = vmax.f32 %v3582, 0.0
      %v3615 = vmax.f32 %v3583, 0.0
      %v3616 = vmax.f32 %v3584, 0.0
      %v3617 = vmax.f32 %v3585, 0.0
      %v3618 = vmax.f32 %v3586, 0.0
      %v3619 = vmax.f32 %v3587, 0.0
      %v3620 = vmax.f32 %v3588, 0.0
      %v3621 = vmax.f32 %v3589, 0.0
      %v3622 = vmax.f32 %v3590, 0.0
      %v3623 = vmax.f32 %v3591, 0.0
      %v3624 = vmax.f32 %v3592, 0.0
      %v3625 = vmax.f32 %v3593, 0.0
      %v3626 = vmax.f32 %v3594, 0.0
      %v3627 = vmax.f32 %v3595, 0.0
      %v3628 = vmax.f32 %v3596, 0.0
      %v3629 = vmax.f32 %v3597, 0.0
      %v3630 = vmax.f32 %v3598, 0.0
      %v3631 = vmax.f32 %v3599, 0.0
      %v3632 = vmax.f32 %v3600, 0.0
      %v3633 = vmax.f32 %v3601, 0.0
      %v3634 = vmax.f32 %v3602, 0.0
      %v3635 = vmax.f32 %v3603, 0.0
      %v3636 = vmax.f32 %v3604, 0.0
      %v3637 = vpack.c.bf16 %v3605, %v3605
      %v3638 = vpack.c.bf16 %v3606, %v3606
      %v3639 = vpack.c.bf16 %v3607, %v3607
      %v3640 = vpack.c.bf16 %v3608, %v3608
      %v3641 = vpack.c.bf16 %v3609, %v3609
      %v3642 = vpack.c.bf16 %v3610, %v3610
      %v3643 = vpack.c.bf16 %v3611, %v3611
      %v3644 = vpack.c.bf16 %v3612, %v3612
      %v3645 = vpack.c.bf16 %v3613, %v3613
      %v3646 = vpack.c.bf16 %v3614, %v3614
      %v3647 = vpack.c.bf16 %v3615, %v3615
      %v3648 = vpack.c.bf16 %v3616, %v3616
      %v3649 = vpack.c.bf16 %v3617, %v3617
      %v3650 = vpack.c.bf16 %v3618, %v3618
      %v3651 = vpack.c.bf16 %v3619, %v3619
      %v3652 = vpack.c.bf16 %v3620, %v3620
      %v3653 = vpack.c.bf16 %v3621, %v3621
      %v3654 = vpack.c.bf16 %v3622, %v3622
      %v3655 = vpack.c.bf16 %v3623, %v3623
      %v3656 = vpack.c.bf16 %v3624, %v3624
      %v3657 = vpack.c.bf16 %v3625, %v3625
      %v3658 = vpack.c.bf16 %v3626, %v3626
      %v3659 = vpack.c.bf16 %v3627, %v3627
      %v3660 = vpack.c.bf16 %v3628, %v3628
      %v3661 = vpack.c.bf16 %v3629, %v3629
      %v3662 = vpack.c.bf16 %v3630, %v3630
      %v3663 = vpack.c.bf16 %v3631, %v3631
      %v3664 = vpack.c.bf16 %v3632, %v3632
      %v3665 = vpack.c.bf16 %v3633, %v3633
      %v3666 = vpack.c.bf16 %v3634, %v3634
      %v3667 = vpack.c.bf16 %v3635, %v3635
      %v3668 = vpack.c.bf16 %v3636, %v3636
      %v3701 = vunpack.c.l.b16 %v3637
      %v3702 = vunpack.c.l.b16 %v3638
      %v3703 = vunpack.c.l.b16 %v3639
      %v3704 = vunpack.c.l.b16 %v3640
      %v3705 = vunpack.c.l.b16 %v3641
      %v3706 = vunpack.c.l.b16 %v3642
      %v3707 = vunpack.c.l.b16 %v3643
      %v3708 = vunpack.c.l.b16 %v3644
      %v3709 = vunpack.c.l.b16 %v3645
      %v3710 = vunpack.c.l.b16 %v3646
      %v3711 = vunpack.c.l.b16 %v3647
      %v3712 = vunpack.c.l.b16 %v3648
      %v3713 = vunpack.c.l.b16 %v3649
      %v3714 = vunpack.c.l.b16 %v3650
      %v3715 = vunpack.c.l.b16 %v3651
      %v3716 = vunpack.c.l.b16 %v3652
      %v3717 = vunpack.c.l.b16 %v3653
      %v3718 = vunpack.c.l.b16 %v3654
      %v3719 = vunpack.c.l.b16 %v3655
      %v3720 = vunpack.c.l.b16 %v3656
      %v3721 = vunpack.c.l.b16 %v3657
      %v3722 = vunpack.c.l.b16 %v3658
      %v3723 = vunpack.c.l.b16 %v3659
      %v3724 = vunpack.c.l.b16 %v3660
      %v3725 = vunpack.c.l.b16 %v3661
      %v3726 = vunpack.c.l.b16 %v3662
      %v3727 = vunpack.c.l.b16 %v3663
      %v3728 = vunpack.c.l.b16 %v3664
      %v3729 = vunpack.c.l.b16 %v3665
      %v3730 = vunpack.c.l.b16 %v3666
      %v3731 = vunpack.c.l.b16 %v3667
      %v3732 = vunpack.c.l.b16 %v3668
      %v3733 = vpack.c.b16 %v3702, %v3701
      %v3734 = vpack.c.b16 %v3704, %v3703
      %v3735 = vpack.c.b16 %v3706, %v3705
      %v3736 = vpack.c.b16 %v3708, %v3707
      %v3737 = vpack.c.b16 %v3710, %v3709
      %v3738 = vpack.c.b16 %v3712, %v3711
      %v3739 = vpack.c.b16 %v3714, %v3713
      %v3740 = vpack.c.b16 %v3716, %v3715
      %v3741 = vpack.c.b16 %v3718, %v3717
      %v3742 = vpack.c.b16 %v3720, %v3719
      %v3743 = vpack.c.b16 %v3722, %v3721
      %v3744 = vpack.c.b16 %v3724, %v3723
      %v3745 = vpack.c.b16 %v3726, %v3725
      %v3746 = vpack.c.b16 %v3728, %v3727
      %v3747 = vpack.c.b16 %v3730, %v3729
      %v3748 = vpack.c.b16 %v3732, %v3731
      %v3750 = vshrl.u32 %v3733, 16
      %v3752 = vrot.slane %v3750, 7
      %v3753 = vshll.u32 %v3733, 16
      %v3755 = vor.u32 %v3752, %v3753
      %v3757 = vshrl.u32 %v3734, 16
      %v3759 = vrot.slane %v3757, 7
      %v3760 = vshll.u32 %v3734, 16
      %v3762 = vor.u32 %v3759, %v3760
      %v3764 = vshrl.u32 %v3735, 16
      %v3766 = vrot.slane %v3764, 7
      %v3767 = vshll.u32 %v3735, 16
      %v3769 = vor.u32 %v3766, %v3767
      %v3771 = vshrl.u32 %v3736, 16
      %v3773 = vrot.slane %v3771, 7
      %v3774 = vshll.u32 %v3736, 16
      %v3776 = vor.u32 %v3773, %v3774
      %v3778 = vshrl.u32 %v3737, 16
      %v3780 = vrot.slane %v3778, 7
      %v3781 = vshll.u32 %v3737, 16
      %v3783 = vor.u32 %v3780, %v3781
      %v3785 = vshrl.u32 %v3738, 16
      %v3787 = vrot.slane %v3785, 7
      %v3788 = vshll.u32 %v3738, 16
      %v3790 = vor.u32 %v3787, %v3788
      %v3792 = vshrl.u32 %v3739, 16
      %v3794 = vrot.slane %v3792, 7
      %v3795 = vshll.u32 %v3739, 16
      %v3797 = vor.u32 %v3794, %v3795
      %v3799 = vshrl.u32 %v3740, 16
      %v3801 = vrot.slane %v3799, 7
      %v3802 = vshll.u32 %v3740, 16
      %v3804 = vor.u32 %v3801, %v3802
      %v3806 = vshrl.u32 %v3741, 16
      %v3808 = vrot.slane %v3806, 7
      %v3809 = vshll.u32 %v3741, 16
      %v3811 = vor.u32 %v3808, %v3809
      %v3813 = vshrl.u32 %v3742, 16
      %v3815 = vrot.slane %v3813, 7
      %v3816 = vshll.u32 %v3742, 16
      %v3818 = vor.u32 %v3815, %v3816
      %v3820 = vshrl.u32 %v3743, 16
      %v3822 = vrot.slane %v3820, 7
      %v3823 = vshll.u32 %v3743, 16
      %v3825 = vor.u32 %v3822, %v3823
      %v3827 = vshrl.u32 %v3744, 16
      %v3829 = vrot.slane %v3827, 7
      %v3830 = vshll.u32 %v3744, 16
      %v3832 = vor.u32 %v3829, %v3830
      %v3834 = vshrl.u32 %v3745, 16
      %v3836 = vrot.slane %v3834, 7
      %v3837 = vshll.u32 %v3745, 16
      %v3839 = vor.u32 %v3836, %v3837
      %v3841 = vshrl.u32 %v3746, 16
      %v3843 = vrot.slane %v3841, 7
      %v3844 = vshll.u32 %v3746, 16
      %v3846 = vor.u32 %v3843, %v3844
      %v3848 = vshrl.u32 %v3747, 16
      %v3850 = vrot.slane %v3848, 7
      %v3851 = vshll.u32 %v3747, 16
      %v3853 = vor.u32 %v3850, %v3851
      %v3855 = vshrl.u32 %v3748, 16
      %v3857 = vrot.slane %v3855, 7
      %v3858 = vshll.u32 %v3748, 16
      %v3860 = vor.u32 %v3857, %v3858
      %v3893 = vsel %vm2537, 0, %v3755
      %v3894 = vsel %vm2537, 0, %v3762
      %v3895 = vsel %vm2537, 0, %v3769
      %v3896 = vsel %vm2537, 0, %v3776
      %v3897 = vsel %vm2537, 0, %v3783
      %v3898 = vsel %vm2537, 0, %v3790
      %v3899 = vsel %vm2537, 0, %v3797
      %v3900 = vsel %vm2537, 0, %v3804
      %v3901 = vsel %vm2537, 0, %v3811
      %v3902 = vsel %vm2537, 0, %v3818
      %v3903 = vsel %vm2537, 0, %v3825
      %v3904 = vsel %vm2537, 0, %v3832
      %v3905 = vsel %vm2537, 0, %v3839
      %v3906 = vsel %vm2537, 0, %v3846
      %v3907 = vsel %vm2537, 0, %v3853
      %v3908 = vsel %vm2537, 0, %v3860
      %v3909 = vsel %vm2537, %v3752, 0
      %v3910 = vsel %vm2537, %v3759, 0
      %v3911 = vsel %vm2537, %v3766, 0
      %v3912 = vsel %vm2537, %v3773, 0
      %v3913 = vsel %vm2537, %v3780, 0
      %v3914 = vsel %vm2537, %v3787, 0
      %v3915 = vsel %vm2537, %v3794, 0
      %v3916 = vsel %vm2537, %v3801, 0
      %v3917 = vsel %vm2537, %v3808, 0
      %v3918 = vsel %vm2537, %v3815, 0
      %v3919 = vsel %vm2537, %v3822, 0
      %v3920 = vsel %vm2537, %v3829, 0
      %v3921 = vsel %vm2537, %v3836, 0
      %v3922 = vsel %vm2537, %v3843, 0
      %v3923 = vsel %vm2537, %v3850, 0
      %v3924 = vsel %vm2537, %v3857, 0
      %v3926 = vshrl.u32 %v3893, 16
      %v3928 = vshll.u32 %v3893, 16
      %v3930 = vrot.slane %v3928, 1
      %v3931 = vor.u32 %v3926, %v3930
      %v3933 = vshll.u32 %v3909, 16
      %v3935 = vrot.slane %v3933, 1
      %v3936 = vsel %vm1196, %v3931, %v3935
      %v3938 = vshrl.u32 %v3894, 16
      %v3940 = vshll.u32 %v3894, 16
      %v3942 = vrot.slane %v3940, 1
      %v3943 = vor.u32 %v3938, %v3942
      %v3945 = vshll.u32 %v3910, 16
      %v3947 = vrot.slane %v3945, 1
      %v3948 = vsel %vm1196, %v3943, %v3947
      %v3950 = vshrl.u32 %v3895, 16
      %v3952 = vshll.u32 %v3895, 16
      %v3954 = vrot.slane %v3952, 1
      %v3955 = vor.u32 %v3950, %v3954
      %v3957 = vshll.u32 %v3911, 16
      %v3959 = vrot.slane %v3957, 1
      %v3960 = vsel %vm1196, %v3955, %v3959
      %v3962 = vshrl.u32 %v3896, 16
      %v3964 = vshll.u32 %v3896, 16
      %v3966 = vrot.slane %v3964, 1
      %v3967 = vor.u32 %v3962, %v3966
      %v3969 = vshll.u32 %v3912, 16
      %v3971 = vrot.slane %v3969, 1
      %v3972 = vsel %vm1196, %v3967, %v3971
      %v3974 = vshrl.u32 %v3897, 16
      %v3976 = vshll.u32 %v3897, 16
      %v3978 = vrot.slane %v3976, 1
      %v3979 = vor.u32 %v3974, %v3978
      %v3981 = vshll.u32 %v3913, 16
      %v3983 = vrot.slane %v3981, 1
      %v3984 = vsel %vm1196, %v3979, %v3983
      %v3986 = vshrl.u32 %v3898, 16
      %v3988 = vshll.u32 %v3898, 16
      %v3990 = vrot.slane %v3988, 1
      %v3991 = vor.u32 %v3986, %v3990
      %v3993 = vshll.u32 %v3914, 16
      %v3995 = vrot.slane %v3993, 1
      %v3996 = vsel %vm1196, %v3991, %v3995
      %v3998 = vshrl.u32 %v3899, 16
      %v4000 = vshll.u32 %v3899, 16
      %v4002 = vrot.slane %v4000, 1
      %v4003 = vor.u32 %v3998, %v4002
      %v4005 = vshll.u32 %v3915, 16
      %v4007 = vrot.slane %v4005, 1
      %v4008 = vsel %vm1196, %v4003, %v4007
      %v4010 = vshrl.u32 %v3900, 16
      %v4012 = vshll.u32 %v3900, 16
      %v4014 = vrot.slane %v4012, 1
      %v4015 = vor.u32 %v4010, %v4014
      %v4017 = vshll.u32 %v3916, 16
      %v4019 = vrot.slane %v4017, 1
      %v4020 = vsel %vm1196, %v4015, %v4019
      %v4022 = vshrl.u32 %v3901, 16
      %v4024 = vshll.u32 %v3901, 16
      %v4026 = vrot.slane %v4024, 1
      %v4027 = vor.u32 %v4022, %v4026
      %v4029 = vshll.u32 %v3917, 16
      %v4031 = vrot.slane %v4029, 1
      %v4032 = vsel %vm1196, %v4027, %v4031
      %v4034 = vshrl.u32 %v3902, 16
      %v4036 = vshll.u32 %v3902, 16
      %v4038 = vrot.slane %v4036, 1
      %v4039 = vor.u32 %v4034, %v4038
      %v4041 = vshll.u32 %v3918, 16
      %v4043 = vrot.slane %v4041, 1
      %v4044 = vsel %vm1196, %v4039, %v4043
      %v4046 = vshrl.u32 %v3903, 16
      %v4048 = vshll.u32 %v3903, 16
      %v4050 = vrot.slane %v4048, 1
      %v4051 = vor.u32 %v4046, %v4050
      %v4053 = vshll.u32 %v3919, 16
      %v4055 = vrot.slane %v4053, 1
      %v4056 = vsel %vm1196, %v4051, %v4055
      %v4058 = vshrl.u32 %v3904, 16
      %v4060 = vshll.u32 %v3904, 16
      %v4062 = vrot.slane %v4060, 1
      %v4063 = vor.u32 %v4058, %v4062
      %v4065 = vshll.u32 %v3920, 16
      %v4067 = vrot.slane %v4065, 1
      %v4068 = vsel %vm1196, %v4063, %v4067
      %v4070 = vshrl.u32 %v3905, 16
      %v4072 = vshll.u32 %v3905, 16
      %v4074 = vrot.slane %v4072, 1
      %v4075 = vor.u32 %v4070, %v4074
      %v4077 = vshll.u32 %v3921, 16
      %v4079 = vrot.slane %v4077, 1
      %v4080 = vsel %vm1196, %v4075, %v4079
      %v4082 = vshrl.u32 %v3906, 16
      %v4084 = vshll.u32 %v3906, 16
      %v4086 = vrot.slane %v4084, 1
      %v4087 = vor.u32 %v4082, %v4086
      %v4089 = vshll.u32 %v3922, 16
      %v4091 = vrot.slane %v4089, 1
      %v4092 = vsel %vm1196, %v4087, %v4091
      %v4094 = vshrl.u32 %v3907, 16
      %v4096 = vshll.u32 %v3907, 16
      %v4098 = vrot.slane %v4096, 1
      %v4099 = vor.u32 %v4094, %v4098
      %v4101 = vshll.u32 %v3923, 16
      %v4103 = vrot.slane %v4101, 1
      %v4104 = vsel %vm1196, %v4099, %v4103
      %4105 = vrot.lane.b32.xlu0 %v3936, 8
      %v4106 = vpop.permute.xlu0 %4105
      %4107 = vrot.lane.b32.xlu0 %v3948, 8
      %v4108 = vpop.permute.xlu0 %4107
      %4109 = vrot.lane.b32.xlu0 %v3960, 8
      %v4110 = vpop.permute.xlu0 %4109
      %4111 = vrot.lane.b32.xlu0 %v3972, 8
      %v4112 = vpop.permute.xlu0 %4111
      %4113 = vrot.lane.b32.xlu0 %v3984, 8
      %v4114 = vpop.permute.xlu0 %4113
      %4115 = vrot.lane.b32.xlu0 %v3996, 8
      %v4116 = vpop.permute.xlu0 %4115
      %4117 = vrot.lane.b32.xlu0 %v4008, 8
      %v4118 = vpop.permute.xlu0 %4117
      %4119 = vrot.lane.b32.xlu0 %v4020, 8
      %v4120 = vpop.permute.xlu0 %4119
      %4121 = vrot.lane.b32.xlu0 %v4032, 8
      %v4122 = vpop.permute.xlu0 %4121
      %4123 = vrot.lane.b32.xlu0 %v4044, 8
      %v4124 = vpop.permute.xlu0 %4123
      %4125 = vrot.lane.b32.xlu0 %v4056, 8
      %v4126 = vpop.permute.xlu0 %4125
      %4127 = vrot.lane.b32.xlu0 %v4068, 8
      %v4128 = vpop.permute.xlu0 %4127
      %4129 = vrot.lane.b32.xlu0 %v4080, 8
      %v4130 = vpop.permute.xlu0 %4129
      %4131 = vrot.lane.b32.xlu0 %v4092, 8
      %v4132 = vpop.permute.xlu0 %4131
      %4133 = vrot.lane.b32.xlu0 %v4104, 8
      %v4134 = vpop.permute.xlu0 %4133
      %v4165 = vrot.slane %v3893, 1
      %v4166 = vrot.slane %v3909, 1
      %v4167 = vsel %vm1421, %v4165, %v4166
      %v4168 = vrot.slane %v3894, 1
      %v4169 = vrot.slane %v3910, 1
      %v4170 = vsel %vm1421, %v4168, %v4169
      %v4171 = vrot.slane %v3895, 1
      %v4172 = vrot.slane %v3911, 1
      %v4173 = vsel %vm1421, %v4171, %v4172
      %v4174 = vrot.slane %v3896, 1
      %v4175 = vrot.slane %v3912, 1
      %v4176 = vsel %vm1421, %v4174, %v4175
      %v4177 = vrot.slane %v3897, 1
      %v4178 = vrot.slane %v3913, 1
      %v4179 = vsel %vm1421, %v4177, %v4178
      %v4180 = vrot.slane %v3898, 1
      %v4181 = vrot.slane %v3914, 1
      %v4182 = vsel %vm1421, %v4180, %v4181
      %v4183 = vrot.slane %v3899, 1
      %v4184 = vrot.slane %v3915, 1
      %v4185 = vsel %vm1421, %v4183, %v4184
      %v4186 = vrot.slane %v3900, 1
      %v4187 = vrot.slane %v3916, 1
      %v4188 = vsel %vm1421, %v4186, %v4187
      %v4189 = vrot.slane %v3901, 1
      %v4190 = vrot.slane %v3917, 1
      %v4191 = vsel %vm1421, %v4189, %v4190
      %v4192 = vrot.slane %v3902, 1
      %v4193 = vrot.slane %v3918, 1
      %v4194 = vsel %vm1421, %v4192, %v4193
      %v4195 = vrot.slane %v3903, 1
      %v4196 = vrot.slane %v3919, 1
      %v4197 = vsel %vm1421, %v4195, %v4196
      %v4198 = vrot.slane %v3904, 1
      %v4199 = vrot.slane %v3920, 1
      %v4200 = vsel %vm1421, %v4198, %v4199
      %v4201 = vrot.slane %v3905, 1
      %v4202 = vrot.slane %v3921, 1
      %v4203 = vsel %vm1421, %v4201, %v4202
      %v4204 = vrot.slane %v3906, 1
      %v4205 = vrot.slane %v3922, 1
      %v4206 = vsel %vm1421, %v4204, %v4205
      %v4207 = vrot.slane %v3907, 1
      %v4208 = vrot.slane %v3923, 1
      %v4209 = vsel %vm1421, %v4207, %v4208
      %4210 = vrot.lane.b32.xlu0 %v4167, 16
      %v4211 = vpop.permute.xlu0 %4210
      %4212 = vrot.lane.b32.xlu0 %v4170, 16
      %v4213 = vpop.permute.xlu0 %4212
      %4214 = vrot.lane.b32.xlu0 %v4173, 16
      %v4215 = vpop.permute.xlu0 %4214
      %4216 = vrot.lane.b32.xlu0 %v4176, 16
      %v4217 = vpop.permute.xlu0 %4216
      %4218 = vrot.lane.b32.xlu0 %v4179, 16
      %v4219 = vpop.permute.xlu0 %4218
      %4220 = vrot.lane.b32.xlu0 %v4182, 16
      %v4221 = vpop.permute.xlu0 %4220
      %4222 = vrot.lane.b32.xlu0 %v4185, 16
      %v4223 = vpop.permute.xlu0 %4222
      %4224 = vrot.lane.b32.xlu0 %v4188, 16
      %v4225 = vpop.permute.xlu0 %4224
      %4226 = vrot.lane.b32.xlu0 %v4191, 16
      %v4227 = vpop.permute.xlu0 %4226
      %4228 = vrot.lane.b32.xlu0 %v4194, 16
      %v4229 = vpop.permute.xlu0 %4228
      %4230 = vrot.lane.b32.xlu0 %v4197, 16
      %v4231 = vpop.permute.xlu0 %4230
      %4232 = vrot.lane.b32.xlu0 %v4200, 16
      %v4233 = vpop.permute.xlu0 %4232
      %4234 = vrot.lane.b32.xlu0 %v4203, 16
      %v4235 = vpop.permute.xlu0 %4234
      %4236 = vrot.lane.b32.xlu0 %v4206, 16
      %v4237 = vpop.permute.xlu0 %4236
      %4238 = vrot.lane.b32.xlu0 %v4209, 16
      %v4239 = vpop.permute.xlu0 %4238
      %4241 = vrot.lane.b32.xlu0 %v3893, 24
      %v4242 = vpop.permute.xlu0 %4241
      %4243 = vrot.lane.b32.xlu0 %v3894, 24
      %v4244 = vpop.permute.xlu0 %4243
      %4245 = vrot.lane.b32.xlu0 %v3895, 24
      %v4246 = vpop.permute.xlu0 %4245
      %4247 = vrot.lane.b32.xlu0 %v3896, 24
      %v4248 = vpop.permute.xlu0 %4247
      %4249 = vrot.lane.b32.xlu0 %v3897, 24
      %v4250 = vpop.permute.xlu0 %4249
      %4251 = vrot.lane.b32.xlu0 %v3898, 24
      %v4252 = vpop.permute.xlu0 %4251
      %4253 = vrot.lane.b32.xlu0 %v3899, 24
      %v4254 = vpop.permute.xlu0 %4253
      %4255 = vrot.lane.b32.xlu0 %v3900, 24
      %v4256 = vpop.permute.xlu0 %4255
      %4257 = vrot.lane.b32.xlu0 %v3901, 24
      %v4258 = vpop.permute.xlu0 %4257
      %4259 = vrot.lane.b32.xlu0 %v3902, 24
      %v4260 = vpop.permute.xlu0 %4259
      %4261 = vrot.lane.b32.xlu0 %v3903, 24
      %v4262 = vpop.permute.xlu0 %4261
      %4263 = vrot.lane.b32.xlu0 %v3904, 24
      %v4264 = vpop.permute.xlu0 %4263
      %4265 = vrot.lane.b32.xlu0 %v3905, 24
      %v4266 = vpop.permute.xlu0 %4265
      %4267 = vrot.lane.b32.xlu0 %v3906, 24
      %v4268 = vpop.permute.xlu0 %4267
      %4269 = vrot.lane.b32.xlu0 %v3907, 24
      %v4270 = vpop.permute.xlu0 %4269
      %4271 = vrot.lane.b32.xlu0 %v3908, 24
      %v4272 = vpop.permute.xlu0 %4271
      %v4274 = vshrl.u32 %v3908, 16
      %v4276 = vshll.u32 %v3908, 16
      %v4278 = vrot.slane %v4276, 1
      %v4279 = vor.u32 %v4274, %v4278
      %v4281 = vshll.u32 %v3924, 16
      %v4283 = vrot.slane %v4281, 1
      %v4284 = vsel %vm1196, %v4279, %v4283
      %4285 = vrot.lane.b32.xlu0 %v3936, 32
      %v4286 = vpop.permute.xlu0 %4285
      %4287 = vrot.lane.b32.xlu0 %v3948, 32
      %v4288 = vpop.permute.xlu0 %4287
      %4289 = vrot.lane.b32.xlu0 %v3960, 32
      %v4290 = vpop.permute.xlu0 %4289
      %4291 = vrot.lane.b32.xlu0 %v3972, 32
      %v4292 = vpop.permute.xlu0 %4291
      %4293 = vrot.lane.b32.xlu0 %v3984, 32
      %v4294 = vpop.permute.xlu0 %4293
      %4295 = vrot.lane.b32.xlu0 %v3996, 32
      %v4296 = vpop.permute.xlu0 %4295
      %4297 = vrot.lane.b32.xlu0 %v4008, 32
      %v4298 = vpop.permute.xlu0 %4297
      %4299 = vrot.lane.b32.xlu0 %v4020, 32
      %v4300 = vpop.permute.xlu0 %4299
      %4301 = vrot.lane.b32.xlu0 %v4032, 32
      %v4302 = vpop.permute.xlu0 %4301
      %4303 = vrot.lane.b32.xlu0 %v4044, 32
      %v4304 = vpop.permute.xlu0 %4303
      %4305 = vrot.lane.b32.xlu0 %v4056, 32
      %v4306 = vpop.permute.xlu0 %4305
      %4307 = vrot.lane.b32.xlu0 %v4068, 32
      %v4308 = vpop.permute.xlu0 %4307
      %4309 = vrot.lane.b32.xlu0 %v4080, 32
      %v4310 = vpop.permute.xlu0 %4309
      %4311 = vrot.lane.b32.xlu0 %v4092, 32
      %v4312 = vpop.permute.xlu0 %4311
      %4313 = vrot.lane.b32.xlu0 %v4104, 32
      %v4314 = vpop.permute.xlu0 %4313
      %4315 = vrot.lane.b32.xlu0 %v4284, 32
      %v4316 = vpop.permute.xlu0 %4315
      %v4318 = vrot.slane %v3908, 1
      %v4319 = vrot.slane %v3924, 1
      %v4320 = vsel %vm1421, %v4318, %v4319
      %4321 = vrot.lane.b32.xlu0 %v4167, 40
      %v4322 = vpop.permute.xlu0 %4321
      %4323 = vrot.lane.b32.xlu0 %v4170, 40
      %v4324 = vpop.permute.xlu0 %4323
      %4325 = vrot.lane.b32.xlu0 %v4173, 40
      %v4326 = vpop.permute.xlu0 %4325
      %4327 = vrot.lane.b32.xlu0 %v4176, 40
      %v4328 = vpop.permute.xlu0 %4327
      %4329 = vrot.lane.b32.xlu0 %v4179, 40
      %v4330 = vpop.permute.xlu0 %4329
      %4331 = vrot.lane.b32.xlu0 %v4182, 40
      %v4332 = vpop.permute.xlu0 %4331
      %4333 = vrot.lane.b32.xlu0 %v4185, 40
      %v4334 = vpop.permute.xlu0 %4333
      %4335 = vrot.lane.b32.xlu0 %v4188, 40
      %v4336 = vpop.permute.xlu0 %4335
      %4337 = vrot.lane.b32.xlu0 %v4191, 40
      %v4338 = vpop.permute.xlu0 %4337
      %4339 = vrot.lane.b32.xlu0 %v4194, 40
      %v4340 = vpop.permute.xlu0 %4339
      %4341 = vrot.lane.b32.xlu0 %v4197, 40
      %v4342 = vpop.permute.xlu0 %4341
      %4343 = vrot.lane.b32.xlu0 %v4200, 40
      %v4344 = vpop.permute.xlu0 %4343
      %4345 = vrot.lane.b32.xlu0 %v4203, 40
      %v4346 = vpop.permute.xlu0 %4345
      %4347 = vrot.lane.b32.xlu0 %v4206, 40
      %v4348 = vpop.permute.xlu0 %4347
      %4349 = vrot.lane.b32.xlu0 %v4209, 40
      %v4350 = vpop.permute.xlu0 %4349
      %4351 = vrot.lane.b32.xlu0 %v4320, 40
      %v4352 = vpop.permute.xlu0 %4351
      %4353 = vrot.lane.b32.xlu0 %v3894, 48
      %v4354 = vpop.permute.xlu0 %4353
      %4355 = vrot.lane.b32.xlu0 %v3895, 48
      %v4356 = vpop.permute.xlu0 %4355
      %4357 = vrot.lane.b32.xlu0 %v3896, 48
      %v4358 = vpop.permute.xlu0 %4357
      %4359 = vrot.lane.b32.xlu0 %v3897, 48
      %v4360 = vpop.permute.xlu0 %4359
      %4361 = vrot.lane.b32.xlu0 %v3898, 48
      %v4362 = vpop.permute.xlu0 %4361
      %4363 = vrot.lane.b32.xlu0 %v3899, 48
      %v4364 = vpop.permute.xlu0 %4363
      %4365 = vrot.lane.b32.xlu0 %v3900, 48
      %v4366 = vpop.permute.xlu0 %4365
      %4367 = vrot.lane.b32.xlu0 %v3901, 48
      %v4368 = vpop.permute.xlu0 %4367
      %4369 = vrot.lane.b32.xlu0 %v3902, 48
      %v4370 = vpop.permute.xlu0 %4369
      %4371 = vrot.lane.b32.xlu0 %v3903, 48
      %v4372 = vpop.permute.xlu0 %4371
      %4373 = vrot.lane.b32.xlu0 %v3904, 48
      %v4374 = vpop.permute.xlu0 %4373
      %4375 = vrot.lane.b32.xlu0 %v3905, 48
      %v4376 = vpop.permute.xlu0 %4375
      %4377 = vrot.lane.b32.xlu0 %v3906, 48
      %v4378 = vpop.permute.xlu0 %4377
      %4379 = vrot.lane.b32.xlu0 %v3907, 48
      %v4380 = vpop.permute.xlu0 %4379
      %4381 = vrot.lane.b32.xlu0 %v3908, 48
      %v4382 = vpop.permute.xlu0 %4381
      %4383 = vrot.lane.b32.xlu0 %v3948, 56
      %v4384 = vpop.permute.xlu0 %4383
      %4385 = vrot.lane.b32.xlu0 %v3960, 56
      %v4386 = vpop.permute.xlu0 %4385
      %4387 = vrot.lane.b32.xlu0 %v3972, 56
      %v4388 = vpop.permute.xlu0 %4387
      %4389 = vrot.lane.b32.xlu0 %v3984, 56
      %v4390 = vpop.permute.xlu0 %4389
      %4391 = vrot.lane.b32.xlu0 %v3996, 56
      %v4392 = vpop.permute.xlu0 %4391
      %4393 = vrot.lane.b32.xlu0 %v4008, 56
      %v4394 = vpop.permute.xlu0 %4393
      %4395 = vrot.lane.b32.xlu0 %v4020, 56
      %v4396 = vpop.permute.xlu0 %4395
      %4397 = vrot.lane.b32.xlu0 %v4032, 56
      %v4398 = vpop.permute.xlu0 %4397
      %4399 = vrot.lane.b32.xlu0 %v4044, 56
      %v4400 = vpop.permute.xlu0 %4399
      %4401 = vrot.lane.b32.xlu0 %v4056, 56
      %v4402 = vpop.permute.xlu0 %4401
      %4403 = vrot.lane.b32.xlu0 %v4068, 56
      %v4404 = vpop.permute.xlu0 %4403
      %4405 = vrot.lane.b32.xlu0 %v4080, 56
      %v4406 = vpop.permute.xlu0 %4405
      %4407 = vrot.lane.b32.xlu0 %v4092, 56
      %v4408 = vpop.permute.xlu0 %4407
      %4409 = vrot.lane.b32.xlu0 %v4104, 56
      %v4410 = vpop.permute.xlu0 %4409
      %4411 = vrot.lane.b32.xlu0 %v4284, 56
      %v4412 = vpop.permute.xlu0 %4411
      %4413 = vrot.lane.b32.xlu0 %v4170, 64
      %v4414 = vpop.permute.xlu0 %4413
      %4415 = vrot.lane.b32.xlu0 %v4173, 64
      %v4416 = vpop.permute.xlu0 %4415
      %4417 = vrot.lane.b32.xlu0 %v4176, 64
      %v4418 = vpop.permute.xlu0 %4417
      %4419 = vrot.lane.b32.xlu0 %v4179, 64
      %v4420 = vpop.permute.xlu0 %4419
      %4421 = vrot.lane.b32.xlu0 %v4182, 64
      %v4422 = vpop.permute.xlu0 %4421
      %4423 = vrot.lane.b32.xlu0 %v4185, 64
      %v4424 = vpop.permute.xlu0 %4423
      %4425 = vrot.lane.b32.xlu0 %v4188, 64
      %v4426 = vpop.permute.xlu0 %4425
      %4427 = vrot.lane.b32.xlu0 %v4191, 64
      %v4428 = vpop.permute.xlu0 %4427
      %4429 = vrot.lane.b32.xlu0 %v4194, 64
      %v4430 = vpop.permute.xlu0 %4429
      %4431 = vrot.lane.b32.xlu0 %v4197, 64
      %v4432 = vpop.permute.xlu0 %4431
      %4433 = vrot.lane.b32.xlu0 %v4200, 64
      %v4434 = vpop.permute.xlu0 %4433
      %4435 = vrot.lane.b32.xlu0 %v4203, 64
      %v4436 = vpop.permute.xlu0 %4435
      %4437 = vrot.lane.b32.xlu0 %v4206, 64
      %v4438 = vpop.permute.xlu0 %4437
      %4439 = vrot.lane.b32.xlu0 %v4209, 64
      %v4440 = vpop.permute.xlu0 %4439
      %4441 = vrot.lane.b32.xlu0 %v4320, 64
      %v4442 = vpop.permute.xlu0 %4441
      %v4444 = vsel %vm1740, %v3893, %v4106
      %v4446 = vsel %vm1740, %v3894, %v4108
      %v4448 = vsel %vm1740, %v3895, %v4110
      %v4450 = vsel %vm1740, %v3896, %v4112
      %v4452 = vsel %vm1740, %v3897, %v4114
      %v4454 = vsel %vm1740, %v3898, %v4116
      %v4456 = vsel %vm1740, %v3899, %v4118
      %v4458 = vsel %vm1740, %v3900, %v4120
      %v4460 = vsel %vm1740, %v3901, %v4122
      %v4462 = vsel %vm1740, %v3902, %v4124
      %v4464 = vsel %vm1740, %v3903, %v4126
      %v4466 = vsel %vm1740, %v3904, %v4128
      %v4468 = vsel %vm1740, %v3905, %v4130
      %v4470 = vsel %vm1740, %v3906, %v4132
      %v4472 = vsel %vm1740, %v3907, %v4134
      %v4474 = vsel %vm1773, %v4444, %v4211
      %v4476 = vsel %vm1773, %v4446, %v4213
      %v4478 = vsel %vm1773, %v4448, %v4215
      %v4480 = vsel %vm1773, %v4450, %v4217
      %v4482 = vsel %vm1773, %v4452, %v4219
      %v4484 = vsel %vm1773, %v4454, %v4221
      %v4486 = vsel %vm1773, %v4456, %v4223
      %v4488 = vsel %vm1773, %v4458, %v4225
      %v4490 = vsel %vm1773, %v4460, %v4227
      %v4492 = vsel %vm1773, %v4462, %v4229
      %v4494 = vsel %vm1773, %v4464, %v4231
      %v4496 = vsel %vm1773, %v4466, %v4233
      %v4498 = vsel %vm1773, %v4468, %v4235
      %v4500 = vsel %vm1773, %v4470, %v4237
      %v4502 = vsel %vm1773, %v4472, %v4239
      %v4504 = vsel %vm1806, %v3150, %v4242
      %v4506 = vsel %vm1806, %v4474, %v4244
      %v4508 = vsel %vm1806, %v4476, %v4246
      %v4510 = vsel %vm1806, %v4478, %v4248
      %v4512 = vsel %vm1806, %v4480, %v4250
      %v4514 = vsel %vm1806, %v4482, %v4252
      %v4516 = vsel %vm1806, %v4484, %v4254
      %v4518 = vsel %vm1806, %v4486, %v4256
      %v4520 = vsel %vm1806, %v4488, %v4258
      %v4522 = vsel %vm1806, %v4490, %v4260
      %v4524 = vsel %vm1806, %v4492, %v4262
      %v4526 = vsel %vm1806, %v4494, %v4264
      %v4528 = vsel %vm1806, %v4496, %v4266
      %v4530 = vsel %vm1806, %v4498, %v4268
      %v4532 = vsel %vm1806, %v4500, %v4270
      %v4534 = vsel %vm1806, %v4502, %v4272
      %v4536 = vsel %vm1839, %v4504, %v4286
      %v4538 = vsel %vm1839, %v4506, %v4288
      %v4540 = vsel %vm1839, %v4508, %v4290
      %v4542 = vsel %vm1839, %v4510, %v4292
      %v4544 = vsel %vm1839, %v4512, %v4294
      %v4546 = vsel %vm1839, %v4514, %v4296
      %v4548 = vsel %vm1839, %v4516, %v4298
      %v4550 = vsel %vm1839, %v4518, %v4300
      %v4552 = vsel %vm1839, %v4520, %v4302
      %v4554 = vsel %vm1839, %v4522, %v4304
      %v4556 = vsel %vm1839, %v4524, %v4306
      %v4558 = vsel %vm1839, %v4526, %v4308
      %v4560 = vsel %vm1839, %v4528, %v4310
      %v4562 = vsel %vm1839, %v4530, %v4312
      %v4564 = vsel %vm1839, %v4532, %v4314
      %v4566 = vsel %vm1839, %v4534, %v4316
      %v4568 = vsel %vm1872, %v4536, %v4322
      %v4570 = vsel %vm1872, %v4538, %v4324
      %v4572 = vsel %vm1872, %v4540, %v4326
      %v4574 = vsel %vm1872, %v4542, %v4328
      %v4576 = vsel %vm1872, %v4544, %v4330
      %v4578 = vsel %vm1872, %v4546, %v4332
      %v4580 = vsel %vm1872, %v4548, %v4334
      %v4582 = vsel %vm1872, %v4550, %v4336
      %v4584 = vsel %vm1872, %v4552, %v4338
      %v4586 = vsel %vm1872, %v4554, %v4340
      %v4588 = vsel %vm1872, %v4556, %v4342
      %v4590 = vsel %vm1872, %v4558, %v4344
      %v4592 = vsel %vm1872, %v4560, %v4346
      %v4594 = vsel %vm1872, %v4562, %v4348
      %v4596 = vsel %vm1872, %v4564, %v4350
      %v4598 = vsel %vm1872, %v4566, %v4352
      %v4600 = vsel %vm1905, %v4568, %v4354
      %v4602 = vsel %vm1905, %v4570, %v4356
      %v4604 = vsel %vm1905, %v4572, %v4358
      %v4606 = vsel %vm1905, %v4574, %v4360
      %v4608 = vsel %vm1905, %v4576, %v4362
      %v4610 = vsel %vm1905, %v4578, %v4364
      %v4612 = vsel %vm1905, %v4580, %v4366
      %v4614 = vsel %vm1905, %v4582, %v4368
      %v4616 = vsel %vm1905, %v4584, %v4370
      %v4618 = vsel %vm1905, %v4586, %v4372
      %v4620 = vsel %vm1905, %v4588, %v4374
      %v4622 = vsel %vm1905, %v4590, %v4376
      %v4624 = vsel %vm1905, %v4592, %v4378
      %v4626 = vsel %vm1905, %v4594, %v4380
      %v4628 = vsel %vm1905, %v4596, %v4382
      %v4629 = vsel %vm1905, %v4598, %v3052
      %v4631 = vsel %vm1938, %v4600, %v4384
      %v4633 = vsel %vm1938, %v4602, %v4386
      %v4635 = vsel %vm1938, %v4604, %v4388
      %v4637 = vsel %vm1938, %v4606, %v4390
      %v4639 = vsel %vm1938, %v4608, %v4392
      %v4641 = vsel %vm1938, %v4610, %v4394
      %v4643 = vsel %vm1938, %v4612, %v4396
      %v4645 = vsel %vm1938, %v4614, %v4398
      %v4647 = vsel %vm1938, %v4616, %v4400
      %v4649 = vsel %vm1938, %v4618, %v4402
      %v4651 = vsel %vm1938, %v4620, %v4404
      %v4653 = vsel %vm1938, %v4622, %v4406
      %v4655 = vsel %vm1938, %v4624, %v4408
      %v4657 = vsel %vm1938, %v4626, %v4410
      %v4659 = vsel %vm1938, %v4628, %v4412
      %v4660 = vsel %vm1938, %v4629, %v3084
      %v4662 = vsel %vm1971, %v4631, %v4414
      %v4664 = vsel %vm1971, %v4633, %v4416
      %v4666 = vsel %vm1971, %v4635, %v4418
      %v4668 = vsel %vm1971, %v4637, %v4420
      %v4670 = vsel %vm1971, %v4639, %v4422
      %v4672 = vsel %vm1971, %v4641, %v4424
      %v4674 = vsel %vm1971, %v4643, %v4426
      %v4676 = vsel %vm1971, %v4645, %v4428
      %v4678 = vsel %vm1971, %v4647, %v4430
      %v4680 = vsel %vm1971, %v4649, %v4432
      %v4682 = vsel %vm1971, %v4651, %v4434
      %v4684 = vsel %vm1971, %v4653, %v4436
      %v4686 = vsel %vm1971, %v4655, %v4438
      %v4688 = vsel %vm1971, %v4657, %v4440
      %v4690 = vsel %vm1971, %v4659, %v4442
      %v4691 = vsel %vm1971, %v4660, %v3116
      %v4692 = vld [vmem:[%s15] sm:$0xf]
      %v4693 = vld [vmem:[%s15 + $0x4] sm:$0xf]
      %v4694 = vld [vmem:[%s15 + $0x8] sm:$0xf]
      %v4695 = vld [vmem:[%s15 + $0xc] sm:$0xf]
      %v4696 = vld [vmem:[%s15 + $0x10] sm:$0xf]
      %v4697 = vld [vmem:[%s15 + $0x14] sm:$0xf]
      %v4698 = vld [vmem:[%s15 + $0x18] sm:$0xf]
      %v4699 = vld [vmem:[%s15 + $0x1c] sm:$0xf]
      %v4700 = vld [vmem:[%s15 + $0x20] sm:$0xf]
      %v4710 = vunpack.c.l.b16 %v4692
      %v4711 = vunpack.c.l.b16 %v4693
      %v4712 = vunpack.c.l.b16 %v4694
      %v4713 = vunpack.c.l.b16 %v4695
      %v4714 = vunpack.c.l.b16 %v4696
      %v4715 = vunpack.c.l.b16 %v4697
      %v4716 = vunpack.c.l.b16 %v4698
      %v4717 = vunpack.c.l.b16 %v4699
      %v4718 = vunpack.c.l.b16 %v4700
      %v4719 = vpack.c.b16 %v4711, %v4710
      %v4720 = vpack.c.b16 %v4713, %v4712
      %v4721 = vpack.c.b16 %v4715, %v4714
      %v4722 = vpack.c.b16 %v4717, %v4716
      %v4723 = vpack.c.b16 %v4718, %v4718
      %v4728 = vsel %vm2040, %v4662, 0
      %v4730 = vsel %vm2040, %v4664, 0
      %v4732 = vsel %vm2040, %v4666, 0
      %v4734 = vsel %vm2040, %v4668, 0
      %v4736 = vsel %vm2040, %v4670, 0
      %v4738 = vsel %vm2040, %v4672, 0
      %v4740 = vsel %vm2040, %v4674, 0
      %v4742 = vsel %vm2040, %v4676, 0
      %v4744 = vsel %vm2040, %v4678, 0
      %v4746 = vsel %vm2040, %v4680, 0
      %v4748 = vsel %vm2040, %v4682, 0
      %v4750 = vsel %vm2040, %v4684, 0
      %v4752 = vsel %vm2040, %v4686, 0
      %v4754 = vsel %vm2040, %v4688, 0
      %v4756 = vsel %vm2040, %v4690, 0
      %v4758 = vsel %vm2040, %v4691, 0
      %v4761 = vsel %vm2073, %v4723, 0
      %4763 = vmatpush.bf16.msra.mxu0 0
      %4764 = vmatpush.bf16.msra.mxu0 0
      %4765 = vmatpush.bf16.msra.mxu0 0
      %4766 = vmatpush.bf16.msra.mxu0 %v4761
      %4767 = vmatpush.bf16.msra.mxu0 %v4722
      %4768 = vmatpush.bf16.msra.mxu0 %v4721
      %4769 = vmatpush.bf16.msra.mxu0 %v4720
      %4770 = vmatpush.bf16.msra.mxu0 %v4719
      %4771 = vmatmul.bf16.gmra.mxu0 %v4728
      %v4772 = vpop.f32.mrf.mxu0
      %v4773 = vadd.f32 0.0, %v4772
      %v4774 = vpop.f32.mrf.mxu0
      %v4775 = vadd.f32 0.0, %v4774
      %4776 = vmatmul.bf16.gmra.mxu0 %v4730
      %v4777 = vpop.f32.mrf.mxu0
      %v4778 = vadd.f32 0.0, %v4777
      %v4779 = vpop.f32.mrf.mxu0
      %v4780 = vadd.f32 0.0, %v4779
      %4781 = vmatmul.bf16.gmra.mxu0 %v4732
      %v4782 = vpop.f32.mrf.mxu0
      %v4783 = vadd.f32 0.0, %v4782
      %v4784 = vpop.f32.mrf.mxu0
      %v4785 = vadd.f32 0.0, %v4784
      %4786 = vmatmul.bf16.gmra.mxu0 %v4734
      %v4787 = vpop.f32.mrf.mxu0
      %v4788 = vadd.f32 0.0, %v4787
      %v4789 = vpop.f32.mrf.mxu0
      %v4790 = vadd.f32 0.0, %v4789
      %4791 = vmatmul.bf16.gmra.mxu0 %v4736
      %v4792 = vpop.f32.mrf.mxu0
      %v4793 = vadd.f32 0.0, %v4792
      %v4794 = vpop.f32.mrf.mxu0
      %v4795 = vadd.f32 0.0, %v4794
      %4796 = vmatmul.bf16.gmra.mxu0 %v4738
      %v4797 = vpop.f32.mrf.mxu0
      %v4798 = vadd.f32 0.0, %v4797
      %v4799 = vpop.f32.mrf.mxu0
      %v4800 = vadd.f32 0.0, %v4799
      %4801 = vmatmul.bf16.gmra.mxu0 %v4740
      %v4802 = vpop.f32.mrf.mxu0
      %v4803 = vadd.f32 0.0, %v4802
      %v4804 = vpop.f32.mrf.mxu0
      %v4805 = vadd.f32 0.0, %v4804
      %4806 = vmatmul.bf16.gmra.mxu0 %v4742
      %v4807 = vpop.f32.mrf.mxu0
      %v4808 = vadd.f32 0.0, %v4807
      %v4809 = vpop.f32.mrf.mxu0
      %v4810 = vadd.f32 0.0, %v4809
      %4811 = vmatmul.bf16.gmra.mxu0 %v4744
      %v4812 = vpop.f32.mrf.mxu0
      %v4813 = vadd.f32 0.0, %v4812
      %v4814 = vpop.f32.mrf.mxu0
      %v4815 = vadd.f32 0.0, %v4814
      %4816 = vmatmul.bf16.gmra.mxu0 %v4746
      %v4817 = vpop.f32.mrf.mxu0
      %v4818 = vadd.f32 0.0, %v4817
      %v4819 = vpop.f32.mrf.mxu0
      %v4820 = vadd.f32 0.0, %v4819
      %4821 = vmatmul.bf16.gmra.mxu0 %v4748
      %v4822 = vpop.f32.mrf.mxu0
      %v4823 = vadd.f32 0.0, %v4822
      %v4824 = vpop.f32.mrf.mxu0
      %v4825 = vadd.f32 0.0, %v4824
      %4826 = vmatmul.bf16.gmra.mxu0 %v4750
      %v4827 = vpop.f32.mrf.mxu0
      %v4828 = vadd.f32 0.0, %v4827
      %v4829 = vpop.f32.mrf.mxu0
      %v4830 = vadd.f32 0.0, %v4829
      %4831 = vmatmul.bf16.gmra.mxu0 %v4752
      %v4832 = vpop.f32.mrf.mxu0
      %v4833 = vadd.f32 0.0, %v4832
      %v4834 = vpop.f32.mrf.mxu0
      %v4835 = vadd.f32 0.0, %v4834
      %4836 = vmatmul.bf16.gmra.mxu0 %v4754
      %v4837 = vpop.f32.mrf.mxu0
      %v4838 = vadd.f32 0.0, %v4837
      %v4839 = vpop.f32.mrf.mxu0
      %v4840 = vadd.f32 0.0, %v4839
      %4841 = vmatmul.bf16.gmra.mxu0 %v4756
      %v4842 = vpop.f32.mrf.mxu0
      %v4843 = vadd.f32 0.0, %v4842
      %v4844 = vpop.f32.mrf.mxu0
      %v4845 = vadd.f32 0.0, %v4844
      %4846 = vmatmul.bf16.gmra.mxu0 %v4758
      %v4847 = vpop.f32.mrf.mxu0
      %v4848 = vadd.f32 0.0, %v4847
      %v4849 = vpop.f32.mrf.mxu0
      %v4850 = vadd.f32 0.0, %v4849
      %4851 = vdwg.mxu0
      %v4852 = vld [vmem:[%s17] sm:$0x1]
      %v4854 = vperm.slane %v4852, 0
      %v4856 = vmul.f32 %v4773, %v4854
      %v4857 = vmul.f32 %v4775, %v4854
      %v4858 = vmul.f32 %v4778, %v4854
      %v4859 = vmul.f32 %v4780, %v4854
      %v4860 = vmul.f32 %v4783, %v4854
      %v4861 = vmul.f32 %v4785, %v4854
      %v4862 = vmul.f32 %v4788, %v4854
      %v4863 = vmul.f32 %v4790, %v4854
      %v4864 = vmul.f32 %v4793, %v4854
      %v4865 = vmul.f32 %v4795, %v4854
      %v4866 = vmul.f32 %v4798, %v4854
      %v4867 = vmul.f32 %v4800, %v4854
      %v4868 = vmul.f32 %v4803, %v4854
      %v4869 = vmul.f32 %v4805, %v4854
      %v4870 = vmul.f32 %v4808, %v4854
      %v4871 = vmul.f32 %v4810, %v4854
      %v4872 = vmul.f32 %v4813, %v4854
      %v4873 = vmul.f32 %v4815, %v4854
      %v4874 = vmul.f32 %v4818, %v4854
      %v4875 = vmul.f32 %v4820, %v4854
      %v4876 = vmul.f32 %v4823, %v4854
      %v4877 = vmul.f32 %v4825, %v4854
      %v4878 = vmul.f32 %v4828, %v4854
      %v4879 = vmul.f32 %v4830, %v4854
      %v4880 = vmul.f32 %v4833, %v4854
      %v4881 = vmul.f32 %v4835, %v4854
      %v4882 = vmul.f32 %v4838, %v4854
      %v4883 = vmul.f32 %v4840, %v4854
      %v4884 = vmul.f32 %v4843, %v4854
      %v4885 = vmul.f32 %v4845, %v4854
      %v4886 = vmul.f32 %v4848, %v4854
      %v4887 = vmul.f32 %v4850, %v4854
      %v4888 = vld [vmem:[%s19] sm:$0x1]
      %v4890 = vperm.slane %v4888, 0
      %v4892 = vadd.f32 %v4856, %v4890
      %v4893 = vadd.f32 %v4857, %v4890
      %v4894 = vadd.f32 %v4858, %v4890
      %v4895 = vadd.f32 %v4859, %v4890
      %v4896 = vadd.f32 %v4860, %v4890
      %v4897 = vadd.f32 %v4861, %v4890
      %v4898 = vadd.f32 %v4862, %v4890
      %v4899 = vadd.f32 %v4863, %v4890
      %v4900 = vadd.f32 %v4864, %v4890
      %v4901 = vadd.f32 %v4865, %v4890
      %v4902 = vadd.f32 %v4866, %v4890
      %v4903 = vadd.f32 %v4867, %v4890
      %v4904 = vadd.f32 %v4868, %v4890
      %v4905 = vadd.f32 %v4869, %v4890
      %v4906 = vadd.f32 %v4870, %v4890
      %v4907 = vadd.f32 %v4871, %v4890
      %v4908 = vadd.f32 %v4872, %v4890
      %v4909 = vadd.f32 %v4873, %v4890
      %v4910 = vadd.f32 %v4874, %v4890
      %v4911 = vadd.f32 %v4875, %v4890
      %v4912 = vadd.f32 %v4876, %v4890
      %v4913 = vadd.f32 %v4877, %v4890
      %v4914 = vadd.f32 %v4878, %v4890
      %v4915 = vadd.f32 %v4879, %v4890
      %v4916 = vadd.f32 %v4880, %v4890
      %v4917 = vadd.f32 %v4881, %v4890
      %v4918 = vadd.f32 %v4882, %v4890
      %v4919 = vadd.f32 %v4883, %v4890
      %v4920 = vadd.f32 %v4884, %v4890
      %v4921 = vadd.f32 %v4885, %v4890
      %v4922 = vadd.f32 %v4886, %v4890
      %v4923 = vadd.f32 %v4887, %v4890
      %v4924 = vunpack.c.l.bf16 %v2270
      %v4925 = vunpack.c.l.bf16 %v2271
      %v4926 = vunpack.c.l.bf16 %v2272
      %v4927 = vunpack.c.l.bf16 %v2273
      %v4928 = vunpack.c.l.bf16 %v2274
      %v4929 = vunpack.c.l.bf16 %v2275
      %v4930 = vunpack.c.l.bf16 %v2276
      %v4931 = vunpack.c.l.bf16 %v2277
      %v4932 = vunpack.c.l.bf16 %v2278
      %v4933 = vunpack.c.l.bf16 %v2279
      %v4934 = vunpack.c.l.bf16 %v2280
      %v4935 = vunpack.c.l.bf16 %v2281
      %v4936 = vunpack.c.l.bf16 %v2282
      %v4937 = vunpack.c.l.bf16 %v2283
      %v4938 = vunpack.c.l.bf16 %v2284
      %v4939 = vunpack.c.l.bf16 %v2285
      %v4940 = vunpack.c.l.bf16 %v2286
      %v4941 = vunpack.c.l.bf16 %v2287
      %v4942 = vunpack.c.l.bf16 %v2288
      %v4943 = vunpack.c.l.bf16 %v2289
      %v4944 = vunpack.c.l.bf16 %v2290
      %v4945 = vunpack.c.l.bf16 %v2291
      %v4946 = vunpack.c.l.bf16 %v2292
      %v4947 = vunpack.c.l.bf16 %v2293
      %v4948 = vunpack.c.l.bf16 %v2294
      %v4949 = vunpack.c.l.bf16 %v2295
      %v4950 = vunpack.c.l.bf16 %v2296
      %v4951 = vunpack.c.l.bf16 %v2297
      %v4952 = vunpack.c.l.bf16 %v2298
      %v4953 = vunpack.c.l.bf16 %v2299
      %v4954 = vunpack.c.l.bf16 %v2300
      %v4955 = vunpack.c.l.bf16 %v2301
      %v4956 = vadd.f32 %v4892, %v4924
      %v4957 = vadd.f32 %v4893, %v4925
      %v4958 = vadd.f32 %v4894, %v4926
      %v4959 = vadd.f32 %v4895, %v4927
      %v4960 = vadd.f32 %v4896, %v4928
      %v4961 = vadd.f32 %v4897, %v4929
      %v4962 = vadd.f32 %v4898, %v4930
      %v4963 = vadd.f32 %v4899, %v4931
      %v4964 = vadd.f32 %v4900, %v4932
      %v4965 = vadd.f32 %v4901, %v4933
      %v4966 = vadd.f32 %v4902, %v4934
      %v4967 = vadd.f32 %v4903, %v4935
      %v4968 = vadd.f32 %v4904, %v4936
      %v4969 = vadd.f32 %v4905, %v4937
      %v4970 = vadd.f32 %v4906, %v4938
      %v4971 = vadd.f32 %v4907, %v4939
      %v4972 = vadd.f32 %v4908, %v4940
      %v4973 = vadd.f32 %v4909, %v4941
      %v4974 = vadd.f32 %v4910, %v4942
      %v4975 = vadd.f32 %v4911, %v4943
      %v4976 = vadd.f32 %v4912, %v4944
      %v4977 = vadd.f32 %v4913, %v4945
      %v4978 = vadd.f32 %v4914, %v4946
      %v4979 = vadd.f32 %v4915, %v4947
      %v4980 = vadd.f32 %v4916, %v4948
      %v4981 = vadd.f32 %v4917, %v4949
      %v4982 = vadd.f32 %v4918, %v4950
      %v4983 = vadd.f32 %v4919, %v4951
      %v4984 = vadd.f32 %v4920, %v4952
      %v4985 = vadd.f32 %v4921, %v4953
      %v4986 = vadd.f32 %v4922, %v4954
      %v4987 = vadd.f32 %v4923, %v4955
      %v4988 = vmax.f32 %v4956, 0.0
      %v4989 = vmax.f32 %v4957, 0.0
      %v4990 = vmax.f32 %v4958, 0.0
      %v4991 = vmax.f32 %v4959, 0.0
      %v4992 = vmax.f32 %v4960, 0.0
      %v4993 = vmax.f32 %v4961, 0.0
      %v4994 = vmax.f32 %v4962, 0.0
      %v4995 = vmax.f32 %v4963, 0.0
      %v4996 = vmax.f32 %v4964, 0.0
      %v4997 = vmax.f32 %v4965, 0.0
      %v4998 = vmax.f32 %v4966, 0.0
      %v4999 = vmax.f32 %v4967, 0.0
      %v5000 = vmax.f32 %v4968, 0.0
      %v5001 = vmax.f32 %v4969, 0.0
      %v5002 = vmax.f32 %v4970, 0.0
      %v5003 = vmax.f32 %v4971, 0.0
      %v5004 = vmax.f32 %v4972, 0.0
      %v5005 = vmax.f32 %v4973, 0.0
      %v5006 = vmax.f32 %v4974, 0.0
      %v5007 = vmax.f32 %v4975, 0.0
      %v5008 = vmax.f32 %v4976, 0.0
      %v5009 = vmax.f32 %v4977, 0.0
      %v5010 = vmax.f32 %v4978, 0.0
      %v5011 = vmax.f32 %v4979, 0.0
      %v5012 = vmax.f32 %v4980, 0.0
      %v5013 = vmax.f32 %v4981, 0.0
      %v5014 = vmax.f32 %v4982, 0.0
      %v5015 = vmax.f32 %v4983, 0.0
      %v5016 = vmax.f32 %v4984, 0.0
      %v5017 = vmax.f32 %v4985, 0.0
      %v5018 = vmax.f32 %v4986, 0.0
      %v5019 = vmax.f32 %v4987, 0.0
      %v5020 = vpack.c.bf16 %v4988, %v4988
      %v5021 = vpack.c.bf16 %v4989, %v4989
      %v5022 = vpack.c.bf16 %v4990, %v4990
      %v5023 = vpack.c.bf16 %v4991, %v4991
      %v5024 = vpack.c.bf16 %v4992, %v4992
      %v5025 = vpack.c.bf16 %v4993, %v4993
      %v5026 = vpack.c.bf16 %v4994, %v4994
      %v5027 = vpack.c.bf16 %v4995, %v4995
      %v5028 = vpack.c.bf16 %v4996, %v4996
      %v5029 = vpack.c.bf16 %v4997, %v4997
      %v5030 = vpack.c.bf16 %v4998, %v4998
      %v5031 = vpack.c.bf16 %v4999, %v4999
      %v5032 = vpack.c.bf16 %v5000, %v5000
      %v5033 = vpack.c.bf16 %v5001, %v5001
      %v5034 = vpack.c.bf16 %v5002, %v5002
      %v5035 = vpack.c.bf16 %v5003, %v5003
      %v5036 = vpack.c.bf16 %v5004, %v5004
      %v5037 = vpack.c.bf16 %v5005, %v5005
      %v5038 = vpack.c.bf16 %v5006, %v5006
      %v5039 = vpack.c.bf16 %v5007, %v5007
      %v5040 = vpack.c.bf16 %v5008, %v5008
      %v5041 = vpack.c.bf16 %v5009, %v5009
      %v5042 = vpack.c.bf16 %v5010, %v5010
      %v5043 = vpack.c.bf16 %v5011, %v5011
      %v5044 = vpack.c.bf16 %v5012, %v5012
      %v5045 = vpack.c.bf16 %v5013, %v5013
      %v5046 = vpack.c.bf16 %v5014, %v5014
      %v5047 = vpack.c.bf16 %v5015, %v5015
      %v5048 = vpack.c.bf16 %v5016, %v5016
      %v5049 = vpack.c.bf16 %v5017, %v5017
      %v5050 = vpack.c.bf16 %v5018, %v5018
      %v5051 = vpack.c.bf16 %v5019, %v5019
      %v5084 = vunpack.c.l.b16 %v5020
      %v5085 = vunpack.c.l.b16 %v5021
      %v5086 = vunpack.c.l.b16 %v5022
      %v5087 = vunpack.c.l.b16 %v5023
      %v5088 = vunpack.c.l.b16 %v5024
      %v5089 = vunpack.c.l.b16 %v5025
      %v5090 = vunpack.c.l.b16 %v5026
      %v5091 = vunpack.c.l.b16 %v5027
      %v5092 = vunpack.c.l.b16 %v5028
      %v5093 = vunpack.c.l.b16 %v5029
      %v5094 = vunpack.c.l.b16 %v5030
      %v5095 = vunpack.c.l.b16 %v5031
      %v5096 = vunpack.c.l.b16 %v5032
      %v5097 = vunpack.c.l.b16 %v5033
      %v5098 = vunpack.c.l.b16 %v5034
      %v5099 = vunpack.c.l.b16 %v5035
      %v5100 = vunpack.c.l.b16 %v5036
      %v5101 = vunpack.c.l.b16 %v5037
      %v5102 = vunpack.c.l.b16 %v5038
      %v5103 = vunpack.c.l.b16 %v5039
      %v5104 = vunpack.c.l.b16 %v5040
      %v5105 = vunpack.c.l.b16 %v5041
      %v5106 = vunpack.c.l.b16 %v5042
      %v5107 = vunpack.c.l.b16 %v5043
      %v5108 = vunpack.c.l.b16 %v5044
      %v5109 = vunpack.c.l.b16 %v5045
      %v5110 = vunpack.c.l.b16 %v5046
      %v5111 = vunpack.c.l.b16 %v5047
      %v5112 = vunpack.c.l.b16 %v5048
      %v5113 = vunpack.c.l.b16 %v5049
      %v5114 = vunpack.c.l.b16 %v5050
      %v5115 = vunpack.c.l.b16 %v5051
      %v5116 = vpack.c.b16 %v5085, %v5084
      %v5117 = vpack.c.b16 %v5087, %v5086
      %v5118 = vpack.c.b16 %v5089, %v5088
      %v5119 = vpack.c.b16 %v5091, %v5090
      %v5120 = vpack.c.b16 %v5093, %v5092
      %v5121 = vpack.c.b16 %v5095, %v5094
      %v5122 = vpack.c.b16 %v5097, %v5096
      %v5123 = vpack.c.b16 %v5099, %v5098
      %v5124 = vpack.c.b16 %v5101, %v5100
      %v5125 = vpack.c.b16 %v5103, %v5102
      %v5126 = vpack.c.b16 %v5105, %v5104
      %v5127 = vpack.c.b16 %v5107, %v5106
      %v5128 = vpack.c.b16 %v5109, %v5108
      %v5129 = vpack.c.b16 %v5111, %v5110
      %v5130 = vpack.c.b16 %v5113, %v5112
      %v5131 = vpack.c.b16 %v5115, %v5114
      %v5133 = vshrl.u32 %v5116, 16
      %v5135 = vrot.slane %v5133, 7
      %v5136 = vshll.u32 %v5116, 16
      %v5138 = vor.u32 %v5135, %v5136
      %v5140 = vshrl.u32 %v5117, 16
      %v5142 = vrot.slane %v5140, 7
      %v5143 = vshll.u32 %v5117, 16
      %v5145 = vor.u32 %v5142, %v5143
      %v5147 = vshrl.u32 %v5118, 16
      %v5149 = vrot.slane %v5147, 7
      %v5150 = vshll.u32 %v5118, 16
      %v5152 = vor.u32 %v5149, %v5150
      %v5154 = vshrl.u32 %v5119, 16
      %v5156 = vrot.slane %v5154, 7
      %v5157 = vshll.u32 %v5119, 16
      %v5159 = vor.u32 %v5156, %v5157
      %v5161 = vshrl.u32 %v5120, 16
      %v5163 = vrot.slane %v5161, 7
      %v5164 = vshll.u32 %v5120, 16
      %v5166 = vor.u32 %v5163, %v5164
      %v5168 = vshrl.u32 %v5121, 16
      %v5170 = vrot.slane %v5168, 7
      %v5171 = vshll.u32 %v5121, 16
      %v5173 = vor.u32 %v5170, %v5171
      %v5175 = vshrl.u32 %v5122, 16
      %v5177 = vrot.slane %v5175, 7
      %v5178 = vshll.u32 %v5122, 16
      %v5180 = vor.u32 %v5177, %v5178
      %v5182 = vshrl.u32 %v5123, 16
      %v5184 = vrot.slane %v5182, 7
      %v5185 = vshll.u32 %v5123, 16
      %v5187 = vor.u32 %v5184, %v5185
      %v5189 = vshrl.u32 %v5124, 16
      %v5191 = vrot.slane %v5189, 7
      %v5192 = vshll.u32 %v5124, 16
      %v5194 = vor.u32 %v5191, %v5192
      %v5196 = vshrl.u32 %v5125, 16
      %v5198 = vrot.slane %v5196, 7
      %v5199 = vshll.u32 %v5125, 16
      %v5201 = vor.u32 %v5198, %v5199
      %v5203 = vshrl.u32 %v5126, 16
      %v5205 = vrot.slane %v5203, 7
      %v5206 = vshll.u32 %v5126, 16
      %v5208 = vor.u32 %v5205, %v5206
      %v5210 = vshrl.u32 %v5127, 16
      %v5212 = vrot.slane %v5210, 7
      %v5213 = vshll.u32 %v5127, 16
      %v5215 = vor.u32 %v5212, %v5213
      %v5217 = vshrl.u32 %v5128, 16
      %v5219 = vrot.slane %v5217, 7
      %v5220 = vshll.u32 %v5128, 16
      %v5222 = vor.u32 %v5219, %v5220
      %v5224 = vshrl.u32 %v5129, 16
      %v5226 = vrot.slane %v5224, 7
      %v5227 = vshll.u32 %v5129, 16
      %v5229 = vor.u32 %v5226, %v5227
      %v5231 = vshrl.u32 %v5130, 16
      %v5233 = vrot.slane %v5231, 7
      %v5234 = vshll.u32 %v5130, 16
      %v5236 = vor.u32 %v5233, %v5234
      %v5238 = vshrl.u32 %v5131, 16
      %v5240 = vrot.slane %v5238, 7
      %v5241 = vshll.u32 %v5131, 16
      %v5243 = vor.u32 %v5240, %v5241
      %v5276 = vsel %vm2537, 0, %v5138
      %v5277 = vsel %vm2537, 0, %v5145
      %v5278 = vsel %vm2537, 0, %v5152
      %v5279 = vsel %vm2537, 0, %v5159
      %v5280 = vsel %vm2537, 0, %v5166
      %v5281 = vsel %vm2537, 0, %v5173
      %v5282 = vsel %vm2537, 0, %v5180
      %v5283 = vsel %vm2537, 0, %v5187
      %v5284 = vsel %vm2537, 0, %v5194
      %v5285 = vsel %vm2537, 0, %v5201
      %v5286 = vsel %vm2537, 0, %v5208
      %v5287 = vsel %vm2537, 0, %v5215
      %v5288 = vsel %vm2537, 0, %v5222
      %v5289 = vsel %vm2537, 0, %v5229
      %v5290 = vsel %vm2537, 0, %v5236
      %v5291 = vsel %vm2537, 0, %v5243
      %v5292 = vsel %vm2537, %v5135, 0
      %v5293 = vsel %vm2537, %v5142, 0
      %v5294 = vsel %vm2537, %v5149, 0
      %v5295 = vsel %vm2537, %v5156, 0
      %v5296 = vsel %vm2537, %v5163, 0
      %v5297 = vsel %vm2537, %v5170, 0
      %v5298 = vsel %vm2537, %v5177, 0
      %v5299 = vsel %vm2537, %v5184, 0
      %v5300 = vsel %vm2537, %v5191, 0
      %v5301 = vsel %vm2537, %v5198, 0
      %v5302 = vsel %vm2537, %v5205, 0
      %v5303 = vsel %vm2537, %v5212, 0
      %v5304 = vsel %vm2537, %v5219, 0
      %v5305 = vsel %vm2537, %v5226, 0
      %v5306 = vsel %vm2537, %v5233, 0
      %v5307 = vsel %vm2537, %v5240, 0
      %v5309 = vshrl.u32 %v5276, 16
      %v5311 = vshll.u32 %v5276, 16
      %v5313 = vrot.slane %v5311, 1
      %v5314 = vor.u32 %v5309, %v5313
      %v5316 = vshll.u32 %v5292, 16
      %v5318 = vrot.slane %v5316, 1
      %v5319 = vsel %vm1196, %v5314, %v5318
      %v5321 = vshrl.u32 %v5277, 16
      %v5323 = vshll.u32 %v5277, 16
      %v5325 = vrot.slane %v5323, 1
      %v5326 = vor.u32 %v5321, %v5325
      %v5328 = vshll.u32 %v5293, 16
      %v5330 = vrot.slane %v5328, 1
      %v5331 = vsel %vm1196, %v5326, %v5330
      %v5333 = vshrl.u32 %v5278, 16
      %v5335 = vshll.u32 %v5278, 16
      %v5337 = vrot.slane %v5335, 1
      %v5338 = vor.u32 %v5333, %v5337
      %v5340 = vshll.u32 %v5294, 16
      %v5342 = vrot.slane %v5340, 1
      %v5343 = vsel %vm1196, %v5338, %v5342
      %v5345 = vshrl.u32 %v5279, 16
      %v5347 = vshll.u32 %v5279, 16
      %v5349 = vrot.slane %v5347, 1
      %v5350 = vor.u32 %v5345, %v5349
      %v5352 = vshll.u32 %v5295, 16
      %v5354 = vrot.slane %v5352, 1
      %v5355 = vsel %vm1196, %v5350, %v5354
      %v5357 = vshrl.u32 %v5280, 16
      %v5359 = vshll.u32 %v5280, 16
      %v5361 = vrot.slane %v5359, 1
      %v5362 = vor.u32 %v5357, %v5361
      %v5364 = vshll.u32 %v5296, 16
      %v5366 = vrot.slane %v5364, 1
      %v5367 = vsel %vm1196, %v5362, %v5366
      %v5369 = vshrl.u32 %v5281, 16
      %v5371 = vshll.u32 %v5281, 16
      %v5373 = vrot.slane %v5371, 1
      %v5374 = vor.u32 %v5369, %v5373
      %v5376 = vshll.u32 %v5297, 16
      %v5378 = vrot.slane %v5376, 1
      %v5379 = vsel %vm1196, %v5374, %v5378
      %v5381 = vshrl.u32 %v5282, 16
      %v5383 = vshll.u32 %v5282, 16
      %v5385 = vrot.slane %v5383, 1
      %v5386 = vor.u32 %v5381, %v5385
      %v5388 = vshll.u32 %v5298, 16
      %v5390 = vrot.slane %v5388, 1
      %v5391 = vsel %vm1196, %v5386, %v5390
      %v5393 = vshrl.u32 %v5283, 16
      %v5395 = vshll.u32 %v5283, 16
      %v5397 = vrot.slane %v5395, 1
      %v5398 = vor.u32 %v5393, %v5397
      %v5400 = vshll.u32 %v5299, 16
      %v5402 = vrot.slane %v5400, 1
      %v5403 = vsel %vm1196, %v5398, %v5402
      %v5405 = vshrl.u32 %v5284, 16
      %v5407 = vshll.u32 %v5284, 16
      %v5409 = vrot.slane %v5407, 1
      %v5410 = vor.u32 %v5405, %v5409
      %v5412 = vshll.u32 %v5300, 16
      %v5414 = vrot.slane %v5412, 1
      %v5415 = vsel %vm1196, %v5410, %v5414
      %v5417 = vshrl.u32 %v5285, 16
      %v5419 = vshll.u32 %v5285, 16
      %v5421 = vrot.slane %v5419, 1
      %v5422 = vor.u32 %v5417, %v5421
      %v5424 = vshll.u32 %v5301, 16
      %v5426 = vrot.slane %v5424, 1
      %v5427 = vsel %vm1196, %v5422, %v5426
      %v5429 = vshrl.u32 %v5286, 16
      %v5431 = vshll.u32 %v5286, 16
      %v5433 = vrot.slane %v5431, 1
      %v5434 = vor.u32 %v5429, %v5433
      %v5436 = vshll.u32 %v5302, 16
      %v5438 = vrot.slane %v5436, 1
      %v5439 = vsel %vm1196, %v5434, %v5438
      %v5441 = vshrl.u32 %v5287, 16
      %v5443 = vshll.u32 %v5287, 16
      %v5445 = vrot.slane %v5443, 1
      %v5446 = vor.u32 %v5441, %v5445
      %v5448 = vshll.u32 %v5303, 16
      %v5450 = vrot.slane %v5448, 1
      %v5451 = vsel %vm1196, %v5446, %v5450
      %v5453 = vshrl.u32 %v5288, 16
      %v5455 = vshll.u32 %v5288, 16
      %v5457 = vrot.slane %v5455, 1
      %v5458 = vor.u32 %v5453, %v5457
      %v5460 = vshll.u32 %v5304, 16
      %v5462 = vrot.slane %v5460, 1
      %v5463 = vsel %vm1196, %v5458, %v5462
      %v5465 = vshrl.u32 %v5289, 16
      %v5467 = vshll.u32 %v5289, 16
      %v5469 = vrot.slane %v5467, 1
      %v5470 = vor.u32 %v5465, %v5469
      %v5472 = vshll.u32 %v5305, 16
      %v5474 = vrot.slane %v5472, 1
      %v5475 = vsel %vm1196, %v5470, %v5474
      %v5477 = vshrl.u32 %v5290, 16
      %v5479 = vshll.u32 %v5290, 16
      %v5481 = vrot.slane %v5479, 1
      %v5482 = vor.u32 %v5477, %v5481
      %v5484 = vshll.u32 %v5306, 16
      %v5486 = vrot.slane %v5484, 1
      %v5487 = vsel %vm1196, %v5482, %v5486
      %5488 = vrot.lane.b32.xlu0 %v5319, 8
      %v5489 = vpop.permute.xlu0 %5488
      %5490 = vrot.lane.b32.xlu0 %v5331, 8
      %v5491 = vpop.permute.xlu0 %5490
      %5492 = vrot.lane.b32.xlu0 %v5343, 8
      %v5493 = vpop.permute.xlu0 %5492
      %5494 = vrot.lane.b32.xlu0 %v5355, 8
      %v5495 = vpop.permute.xlu0 %5494
      %5496 = vrot.lane.b32.xlu0 %v5367, 8
      %v5497 = vpop.permute.xlu0 %5496
      %5498 = vrot.lane.b32.xlu0 %v5379, 8
      %v5499 = vpop.permute.xlu0 %5498
      %5500 = vrot.lane.b32.xlu0 %v5391, 8
      %v5501 = vpop.permute.xlu0 %5500
      %5502 = vrot.lane.b32.xlu0 %v5403, 8
      %v5503 = vpop.permute.xlu0 %5502
      %5504 = vrot.lane.b32.xlu0 %v5415, 8
      %v5505 = vpop.permute.xlu0 %5504
      %5506 = vrot.lane.b32.xlu0 %v5427, 8
      %v5507 = vpop.permute.xlu0 %5506
      %5508 = vrot.lane.b32.xlu0 %v5439, 8
      %v5509 = vpop.permute.xlu0 %5508
      %5510 = vrot.lane.b32.xlu0 %v5451, 8
      %v5511 = vpop.permute.xlu0 %5510
      %5512 = vrot.lane.b32.xlu0 %v5463, 8
      %v5513 = vpop.permute.xlu0 %5512
      %5514 = vrot.lane.b32.xlu0 %v5475, 8
      %v5515 = vpop.permute.xlu0 %5514
      %5516 = vrot.lane.b32.xlu0 %v5487, 8
      %v5517 = vpop.permute.xlu0 %5516
      %v5548 = vrot.slane %v5276, 1
      %v5549 = vrot.slane %v5292, 1
      %v5550 = vsel %vm1421, %v5548, %v5549
      %v5551 = vrot.slane %v5277, 1
      %v5552 = vrot.slane %v5293, 1
      %v5553 = vsel %vm1421, %v5551, %v5552
      %v5554 = vrot.slane %v5278, 1
      %v5555 = vrot.slane %v5294, 1
      %v5556 = vsel %vm1421, %v5554, %v5555
      %v5557 = vrot.slane %v5279, 1
      %v5558 = vrot.slane %v5295, 1
      %v5559 = vsel %vm1421, %v5557, %v5558
      %v5560 = vrot.slane %v5280, 1
      %v5561 = vrot.slane %v5296, 1
      %v5562 = vsel %vm1421, %v5560, %v5561
      %v5563 = vrot.slane %v5281, 1
      %v5564 = vrot.slane %v5297, 1
      %v5565 = vsel %vm1421, %v5563, %v5564
      %v5566 = vrot.slane %v5282, 1
      %v5567 = vrot.slane %v5298, 1
      %v5568 = vsel %vm1421, %v5566, %v5567
      %v5569 = vrot.slane %v5283, 1
      %v5570 = vrot.slane %v5299, 1
      %v5571 = vsel %vm1421, %v5569, %v5570
      %v5572 = vrot.slane %v5284, 1
      %v5573 = vrot.slane %v5300, 1
      %v5574 = vsel %vm1421, %v5572, %v5573
      %v5575 = vrot.slane %v5285, 1
      %v5576 = vrot.slane %v5301, 1
      %v5577 = vsel %vm1421, %v5575, %v5576
      %v5578 = vrot.slane %v5286, 1
      %v5579 = vrot.slane %v5302, 1
      %v5580 = vsel %vm1421, %v5578, %v5579
      %v5581 = vrot.slane %v5287, 1
      %v5582 = vrot.slane %v5303, 1
      %v5583 = vsel %vm1421, %v5581, %v5582
      %v5584 = vrot.slane %v5288, 1
      %v5585 = vrot.slane %v5304, 1
      %v5586 = vsel %vm1421, %v5584, %v5585
      %v5587 = vrot.slane %v5289, 1
      %v5588 = vrot.slane %v5305, 1
      %v5589 = vsel %vm1421, %v5587, %v5588
      %v5590 = vrot.slane %v5290, 1
      %v5591 = vrot.slane %v5306, 1
      %v5592 = vsel %vm1421, %v5590, %v5591
      %5593 = vrot.lane.b32.xlu0 %v5550, 16
      %v5594 = vpop.permute.xlu0 %5593
      %5595 = vrot.lane.b32.xlu0 %v5553, 16
      %v5596 = vpop.permute.xlu0 %5595
      %5597 = vrot.lane.b32.xlu0 %v5556, 16
      %v5598 = vpop.permute.xlu0 %5597
      %5599 = vrot.lane.b32.xlu0 %v5559, 16
      %v5600 = vpop.permute.xlu0 %5599
      %5601 = vrot.lane.b32.xlu0 %v5562, 16
      %v5602 = vpop.permute.xlu0 %5601
      %5603 = vrot.lane.b32.xlu0 %v5565, 16
      %v5604 = vpop.permute.xlu0 %5603
      %5605 = vrot.lane.b32.xlu0 %v5568, 16
      %v5606 = vpop.permute.xlu0 %5605
      %5607 = vrot.lane.b32.xlu0 %v5571, 16
      %v5608 = vpop.permute.xlu0 %5607
      %5609 = vrot.lane.b32.xlu0 %v5574, 16
      %v5610 = vpop.permute.xlu0 %5609
      %5611 = vrot.lane.b32.xlu0 %v5577, 16
      %v5612 = vpop.permute.xlu0 %5611
      %5613 = vrot.lane.b32.xlu0 %v5580, 16
      %v5614 = vpop.permute.xlu0 %5613
      %5615 = vrot.lane.b32.xlu0 %v5583, 16
      %v5616 = vpop.permute.xlu0 %5615
      %5617 = vrot.lane.b32.xlu0 %v5586, 16
      %v5618 = vpop.permute.xlu0 %5617
      %5619 = vrot.lane.b32.xlu0 %v5589, 16
      %v5620 = vpop.permute.xlu0 %5619
      %5621 = vrot.lane.b32.xlu0 %v5592, 16
      %v5622 = vpop.permute.xlu0 %5621
      %5624 = vrot.lane.b32.xlu0 %v5276, 24
      %v5625 = vpop.permute.xlu0 %5624
      %5626 = vrot.lane.b32.xlu0 %v5277, 24
      %v5627 = vpop.permute.xlu0 %5626
      %5628 = vrot.lane.b32.xlu0 %v5278, 24
      %v5629 = vpop.permute.xlu0 %5628
      %5630 = vrot.lane.b32.xlu0 %v5279, 24
      %v5631 = vpop.permute.xlu0 %5630
      %5632 = vrot.lane.b32.xlu0 %v5280, 24
      %v5633 = vpop.permute.xlu0 %5632
      %5634 = vrot.lane.b32.xlu0 %v5281, 24
      %v5635 = vpop.permute.xlu0 %5634
      %5636 = vrot.lane.b32.xlu0 %v5282, 24
      %v5637 = vpop.permute.xlu0 %5636
      %5638 = vrot.lane.b32.xlu0 %v5283, 24
      %v5639 = vpop.permute.xlu0 %5638
      %5640 = vrot.lane.b32.xlu0 %v5284, 24
      %v5641 = vpop.permute.xlu0 %5640
      %5642 = vrot.lane.b32.xlu0 %v5285, 24
      %v5643 = vpop.permute.xlu0 %5642
      %5644 = vrot.lane.b32.xlu0 %v5286, 24
      %v5645 = vpop.permute.xlu0 %5644
      %5646 = vrot.lane.b32.xlu0 %v5287, 24
      %v5647 = vpop.permute.xlu0 %5646
      %5648 = vrot.lane.b32.xlu0 %v5288, 24
      %v5649 = vpop.permute.xlu0 %5648
      %5650 = vrot.lane.b32.xlu0 %v5289, 24
      %v5651 = vpop.permute.xlu0 %5650
      %5652 = vrot.lane.b32.xlu0 %v5290, 24
      %v5653 = vpop.permute.xlu0 %5652
      %5654 = vrot.lane.b32.xlu0 %v5291, 24
      %v5655 = vpop.permute.xlu0 %5654
      %v5657 = vshrl.u32 %v5291, 16
      %v5659 = vshll.u32 %v5291, 16
      %v5661 = vrot.slane %v5659, 1
      %v5662 = vor.u32 %v5657, %v5661
      %v5664 = vshll.u32 %v5307, 16
      %v5666 = vrot.slane %v5664, 1
      %v5667 = vsel %vm1196, %v5662, %v5666
      %5668 = vrot.lane.b32.xlu0 %v5319, 32
      %v5669 = vpop.permute.xlu0 %5668
      %5670 = vrot.lane.b32.xlu0 %v5331, 32
      %v5671 = vpop.permute.xlu0 %5670
      %5672 = vrot.lane.b32.xlu0 %v5343, 32
      %v5673 = vpop.permute.xlu0 %5672
      %5674 = vrot.lane.b32.xlu0 %v5355, 32
      %v5675 = vpop.permute.xlu0 %5674
      %5676 = vrot.lane.b32.xlu0 %v5367, 32
      %v5677 = vpop.permute.xlu0 %5676
      %5678 = vrot.lane.b32.xlu0 %v5379, 32
      %v5679 = vpop.permute.xlu0 %5678
      %5680 = vrot.lane.b32.xlu0 %v5391, 32
      %v5681 = vpop.permute.xlu0 %5680
      %5682 = vrot.lane.b32.xlu0 %v5403, 32
      %v5683 = vpop.permute.xlu0 %5682
      %5684 = vrot.lane.b32.xlu0 %v5415, 32
      %v5685 = vpop.permute.xlu0 %5684
      %5686 = vrot.lane.b32.xlu0 %v5427, 32
      %v5687 = vpop.permute.xlu0 %5686
      %5688 = vrot.lane.b32.xlu0 %v5439, 32
      %v5689 = vpop.permute.xlu0 %5688
      %5690 = vrot.lane.b32.xlu0 %v5451, 32
      %v5691 = vpop.permute.xlu0 %5690
      %5692 = vrot.lane.b32.xlu0 %v5463, 32
      %v5693 = vpop.permute.xlu0 %5692
      %5694 = vrot.lane.b32.xlu0 %v5475, 32
      %v5695 = vpop.permute.xlu0 %5694
      %5696 = vrot.lane.b32.xlu0 %v5487, 32
      %v5697 = vpop.permute.xlu0 %5696
      %5698 = vrot.lane.b32.xlu0 %v5667, 32
      %v5699 = vpop.permute.xlu0 %5698
      %v5701 = vrot.slane %v5291, 1
      %v5702 = vrot.slane %v5307, 1
      %v5703 = vsel %vm1421, %v5701, %v5702
      %5704 = vrot.lane.b32.xlu0 %v5550, 40
      %v5705 = vpop.permute.xlu0 %5704
      %5706 = vrot.lane.b32.xlu0 %v5553, 40
      %v5707 = vpop.permute.xlu0 %5706
      %5708 = vrot.lane.b32.xlu0 %v5556, 40
      %v5709 = vpop.permute.xlu0 %5708
      %5710 = vrot.lane.b32.xlu0 %v5559, 40
      %v5711 = vpop.permute.xlu0 %5710
      %5712 = vrot.lane.b32.xlu0 %v5562, 40
      %v5713 = vpop.permute.xlu0 %5712
      %5714 = vrot.lane.b32.xlu0 %v5565, 40
      %v5715 = vpop.permute.xlu0 %5714
      %5716 = vrot.lane.b32.xlu0 %v5568, 40
      %v5717 = vpop.permute.xlu0 %5716
      %5718 = vrot.lane.b32.xlu0 %v5571, 40
      %v5719 = vpop.permute.xlu0 %5718
      %5720 = vrot.lane.b32.xlu0 %v5574, 40
      %v5721 = vpop.permute.xlu0 %5720
      %5722 = vrot.lane.b32.xlu0 %v5577, 40
      %v5723 = vpop.permute.xlu0 %5722
      %5724 = vrot.lane.b32.xlu0 %v5580, 40
      %v5725 = vpop.permute.xlu0 %5724
      %5726 = vrot.lane.b32.xlu0 %v5583, 40
      %v5727 = vpop.permute.xlu0 %5726
      %5728 = vrot.lane.b32.xlu0 %v5586, 40
      %v5729 = vpop.permute.xlu0 %5728
      %5730 = vrot.lane.b32.xlu0 %v5589, 40
      %v5731 = vpop.permute.xlu0 %5730
      %5732 = vrot.lane.b32.xlu0 %v5592, 40
      %v5733 = vpop.permute.xlu0 %5732
      %5734 = vrot.lane.b32.xlu0 %v5703, 40
      %v5735 = vpop.permute.xlu0 %5734
      %5736 = vrot.lane.b32.xlu0 %v5277, 48
      %v5737 = vpop.permute.xlu0 %5736
      %5738 = vrot.lane.b32.xlu0 %v5278, 48
      %v5739 = vpop.permute.xlu0 %5738
      %5740 = vrot.lane.b32.xlu0 %v5279, 48
      %v5741 = vpop.permute.xlu0 %5740
      %5742 = vrot.lane.b32.xlu0 %v5280, 48
      %v5743 = vpop.permute.xlu0 %5742
      %5744 = vrot.lane.b32.xlu0 %v5281, 48
      %v5745 = vpop.permute.xlu0 %5744
      %5746 = vrot.lane.b32.xlu0 %v5282, 48
      %v5747 = vpop.permute.xlu0 %5746
      %5748 = vrot.lane.b32.xlu0 %v5283, 48
      %v5749 = vpop.permute.xlu0 %5748
      %5750 = vrot.lane.b32.xlu0 %v5284, 48
      %v5751 = vpop.permute.xlu0 %5750
      %5752 = vrot.lane.b32.xlu0 %v5285, 48
      %v5753 = vpop.permute.xlu0 %5752
      %5754 = vrot.lane.b32.xlu0 %v5286, 48
      %v5755 = vpop.permute.xlu0 %5754
      %5756 = vrot.lane.b32.xlu0 %v5287, 48
      %v5757 = vpop.permute.xlu0 %5756
      %5758 = vrot.lane.b32.xlu0 %v5288, 48
      %v5759 = vpop.permute.xlu0 %5758
      %5760 = vrot.lane.b32.xlu0 %v5289, 48
      %v5761 = vpop.permute.xlu0 %5760
      %5762 = vrot.lane.b32.xlu0 %v5290, 48
      %v5763 = vpop.permute.xlu0 %5762
      %5764 = vrot.lane.b32.xlu0 %v5291, 48
      %v5765 = vpop.permute.xlu0 %5764
      %5766 = vrot.lane.b32.xlu0 %v5331, 56
      %v5767 = vpop.permute.xlu0 %5766
      %5768 = vrot.lane.b32.xlu0 %v5343, 56
      %v5769 = vpop.permute.xlu0 %5768
      %5770 = vrot.lane.b32.xlu0 %v5355, 56
      %v5771 = vpop.permute.xlu0 %5770
      %5772 = vrot.lane.b32.xlu0 %v5367, 56
      %v5773 = vpop.permute.xlu0 %5772
      %5774 = vrot.lane.b32.xlu0 %v5379, 56
      %v5775 = vpop.permute.xlu0 %5774
      %5776 = vrot.lane.b32.xlu0 %v5391, 56
      %v5777 = vpop.permute.xlu0 %5776
      %5778 = vrot.lane.b32.xlu0 %v5403, 56
      %v5779 = vpop.permute.xlu0 %5778
      %5780 = vrot.lane.b32.xlu0 %v5415, 56
      %v5781 = vpop.permute.xlu0 %5780
      %5782 = vrot.lane.b32.xlu0 %v5427, 56
      %v5783 = vpop.permute.xlu0 %5782
      %5784 = vrot.lane.b32.xlu0 %v5439, 56
      %v5785 = vpop.permute.xlu0 %5784
      %5786 = vrot.lane.b32.xlu0 %v5451, 56
      %v5787 = vpop.permute.xlu0 %5786
      %5788 = vrot.lane.b32.xlu0 %v5463, 56
      %v5789 = vpop.permute.xlu0 %5788
      %5790 = vrot.lane.b32.xlu0 %v5475, 56
      %v5791 = vpop.permute.xlu0 %5790
      %5792 = vrot.lane.b32.xlu0 %v5487, 56
      %v5793 = vpop.permute.xlu0 %5792
      %5794 = vrot.lane.b32.xlu0 %v5667, 56
      %v5795 = vpop.permute.xlu0 %5794
      %5796 = vrot.lane.b32.xlu0 %v5553, 64
      %v5797 = vpop.permute.xlu0 %5796
      %5798 = vrot.lane.b32.xlu0 %v5556, 64
      %v5799 = vpop.permute.xlu0 %5798
      %5800 = vrot.lane.b32.xlu0 %v5559, 64
      %v5801 = vpop.permute.xlu0 %5800
      %5802 = vrot.lane.b32.xlu0 %v5562, 64
      %v5803 = vpop.permute.xlu0 %5802
      %5804 = vrot.lane.b32.xlu0 %v5565, 64
      %v5805 = vpop.permute.xlu0 %5804
      %5806 = vrot.lane.b32.xlu0 %v5568, 64
      %v5807 = vpop.permute.xlu0 %5806
      %5808 = vrot.lane.b32.xlu0 %v5571, 64
      %v5809 = vpop.permute.xlu0 %5808
      %5810 = vrot.lane.b32.xlu0 %v5574, 64
      %v5811 = vpop.permute.xlu0 %5810
      %5812 = vrot.lane.b32.xlu0 %v5577, 64
      %v5813 = vpop.permute.xlu0 %5812
      %5814 = vrot.lane.b32.xlu0 %v5580, 64
      %v5815 = vpop.permute.xlu0 %5814
      %5816 = vrot.lane.b32.xlu0 %v5583, 64
      %v5817 = vpop.permute.xlu0 %5816
      %5818 = vrot.lane.b32.xlu0 %v5586, 64
      %v5819 = vpop.permute.xlu0 %5818
      %5820 = vrot.lane.b32.xlu0 %v5589, 64
      %v5821 = vpop.permute.xlu0 %5820
      %5822 = vrot.lane.b32.xlu0 %v5592, 64
      %v5823 = vpop.permute.xlu0 %5822
      %5824 = vrot.lane.b32.xlu0 %v5703, 64
      %v5825 = vpop.permute.xlu0 %5824
      %v5827 = vsel %vm1740, %v5276, %v5489
      %v5829 = vsel %vm1740, %v5277, %v5491
      %v5831 = vsel %vm1740, %v5278, %v5493
      %v5833 = vsel %vm1740, %v5279, %v5495
      %v5835 = vsel %vm1740, %v5280, %v5497
      %v5837 = vsel %vm1740, %v5281, %v5499
      %v5839 = vsel %vm1740, %v5282, %v5501
      %v5841 = vsel %vm1740, %v5283, %v5503
      %v5843 = vsel %vm1740, %v5284, %v5505
      %v5845 = vsel %vm1740, %v5285, %v5507
      %v5847 = vsel %vm1740, %v5286, %v5509
      %v5849 = vsel %vm1740, %v5287, %v5511
      %v5851 = vsel %vm1740, %v5288, %v5513
      %v5853 = vsel %vm1740, %v5289, %v5515
      %v5855 = vsel %vm1740, %v5290, %v5517
      %v5857 = vsel %vm1773, %v5827, %v5594
      %v5859 = vsel %vm1773, %v5829, %v5596
      %v5861 = vsel %vm1773, %v5831, %v5598
      %v5863 = vsel %vm1773, %v5833, %v5600
      %v5865 = vsel %vm1773, %v5835, %v5602
      %v5867 = vsel %vm1773, %v5837, %v5604
      %v5869 = vsel %vm1773, %v5839, %v5606
      %v5871 = vsel %vm1773, %v5841, %v5608
      %v5873 = vsel %vm1773, %v5843, %v5610
      %v5875 = vsel %vm1773, %v5845, %v5612
      %v5877 = vsel %vm1773, %v5847, %v5614
      %v5879 = vsel %vm1773, %v5849, %v5616
      %v5881 = vsel %vm1773, %v5851, %v5618
      %v5883 = vsel %vm1773, %v5853, %v5620
      %v5885 = vsel %vm1773, %v5855, %v5622
      %v5887 = vsel %vm1806, %v3150, %v5625
      %v5889 = vsel %vm1806, %v5857, %v5627
      %v5891 = vsel %vm1806, %v5859, %v5629
      %v5893 = vsel %vm1806, %v5861, %v5631
      %v5895 = vsel %vm1806, %v5863, %v5633
      %v5897 = vsel %vm1806, %v5865, %v5635
      %v5899 = vsel %vm1806, %v5867, %v5637
      %v5901 = vsel %vm1806, %v5869, %v5639
      %v5903 = vsel %vm1806, %v5871, %v5641
      %v5905 = vsel %vm1806, %v5873, %v5643
      %v5907 = vsel %vm1806, %v5875, %v5645
      %v5909 = vsel %vm1806, %v5877, %v5647
      %v5911 = vsel %vm1806, %v5879, %v5649
      %v5913 = vsel %vm1806, %v5881, %v5651
      %v5915 = vsel %vm1806, %v5883, %v5653
      %v5917 = vsel %vm1806, %v5885, %v5655
      %v5919 = vsel %vm1839, %v5887, %v5669
      %v5921 = vsel %vm1839, %v5889, %v5671
      %v5923 = vsel %vm1839, %v5891, %v5673
      %v5925 = vsel %vm1839, %v5893, %v5675
      %v5927 = vsel %vm1839, %v5895, %v5677
      %v5929 = vsel %vm1839, %v5897, %v5679
      %v5931 = vsel %vm1839, %v5899, %v5681
      %v5933 = vsel %vm1839, %v5901, %v5683
      %v5935 = vsel %vm1839, %v5903, %v5685
      %v5937 = vsel %vm1839, %v5905, %v5687
      %v5939 = vsel %vm1839, %v5907, %v5689
      %v5941 = vsel %vm1839, %v5909, %v5691
      %v5943 = vsel %vm1839, %v5911, %v5693
      %v5945 = vsel %vm1839, %v5913, %v5695
      %v5947 = vsel %vm1839, %v5915, %v5697
      %v5949 = vsel %vm1839, %v5917, %v5699
      %v5951 = vsel %vm1872, %v5919, %v5705
      %v5953 = vsel %vm1872, %v5921, %v5707
      %v5955 = vsel %vm1872, %v5923, %v5709
      %v5957 = vsel %vm1872, %v5925, %v5711
      %v5959 = vsel %vm1872, %v5927, %v5713
      %v5961 = vsel %vm1872, %v5929, %v5715
      %v5963 = vsel %vm1872, %v5931, %v5717
      %v5965 = vsel %vm1872, %v5933, %v5719
      %v5967 = vsel %vm1872, %v5935, %v5721
      %v5969 = vsel %vm1872, %v5937, %v5723
      %v5971 = vsel %vm1872, %v5939, %v5725
      %v5973 = vsel %vm1872, %v5941, %v5727
      %v5975 = vsel %vm1872, %v5943, %v5729
      %v5977 = vsel %vm1872, %v5945, %v5731
      %v5979 = vsel %vm1872, %v5947, %v5733
      %v5981 = vsel %vm1872, %v5949, %v5735
      %v5983 = vsel %vm1905, %v5951, %v5737
      %v5985 = vsel %vm1905, %v5953, %v5739
      %v5987 = vsel %vm1905, %v5955, %v5741
      %v5989 = vsel %vm1905, %v5957, %v5743
      %v5991 = vsel %vm1905, %v5959, %v5745
      %v5993 = vsel %vm1905, %v5961, %v5747
      %v5995 = vsel %vm1905, %v5963, %v5749
      %v5997 = vsel %vm1905, %v5965, %v5751
      %v5999 = vsel %vm1905, %v5967, %v5753
      %v6001 = vsel %vm1905, %v5969, %v5755
      %v6003 = vsel %vm1905, %v5971, %v5757
      %v6005 = vsel %vm1905, %v5973, %v5759
      %v6007 = vsel %vm1905, %v5975, %v5761
      %v6009 = vsel %vm1905, %v5977, %v5763
      %v6011 = vsel %vm1905, %v5979, %v5765
      %v6012 = vsel %vm1905, %v5981, %v3052
      %v6014 = vsel %vm1938, %v5983, %v5767
      %v6016 = vsel %vm1938, %v5985, %v5769
      %v6018 = vsel %vm1938, %v5987, %v5771
      %v6020 = vsel %vm1938, %v5989, %v5773
      %v6022 = vsel %vm1938, %v5991, %v5775
      %v6024 = vsel %vm1938, %v5993, %v5777
      %v6026 = vsel %vm1938, %v5995, %v5779
      %v6028 = vsel %vm1938, %v5997, %v5781
      %v6030 = vsel %vm1938, %v5999, %v5783
      %v6032 = vsel %vm1938, %v6001, %v5785
      %v6034 = vsel %vm1938, %v6003, %v5787
      %v6036 = vsel %vm1938, %v6005, %v5789
      %v6038 = vsel %vm1938, %v6007, %v5791
      %v6040 = vsel %vm1938, %v6009, %v5793
      %v6042 = vsel %vm1938, %v6011, %v5795
      %v6043 = vsel %vm1938, %v6012, %v3084
      %v6045 = vsel %vm1971, %v6014, %v5797
      %v6047 = vsel %vm1971, %v6016, %v5799
      %v6049 = vsel %vm1971, %v6018, %v5801
      %v6051 = vsel %vm1971, %v6020, %v5803
      %v6053 = vsel %vm1971, %v6022, %v5805
      %v6055 = vsel %vm1971, %v6024, %v5807
      %v6057 = vsel %vm1971, %v6026, %v5809
      %v6059 = vsel %vm1971, %v6028, %v5811
      %v6061 = vsel %vm1971, %v6030, %v5813
      %v6063 = vsel %vm1971, %v6032, %v5815
      %v6065 = vsel %vm1971, %v6034, %v5817
      %v6067 = vsel %vm1971, %v6036, %v5819
      %v6069 = vsel %vm1971, %v6038, %v5821
      %v6071 = vsel %vm1971, %v6040, %v5823
      %v6073 = vsel %vm1971, %v6042, %v5825
      %v6074 = vsel %vm1971, %v6043, %v3116
      %v6075 = vld [vmem:[%s21] sm:$0xf]
      %v6076 = vld [vmem:[%s21 + $0x4] sm:$0xf]
      %v6077 = vld [vmem:[%s21 + $0x8] sm:$0xf]
      %v6078 = vld [vmem:[%s21 + $0xc] sm:$0xf]
      %v6079 = vld [vmem:[%s21 + $0x10] sm:$0xf]
      %v6080 = vld [vmem:[%s21 + $0x14] sm:$0xf]
      %v6081 = vld [vmem:[%s21 + $0x18] sm:$0xf]
      %v6082 = vld [vmem:[%s21 + $0x1c] sm:$0xf]
      %v6083 = vld [vmem:[%s21 + $0x20] sm:$0xf]
      %v6093 = vunpack.c.l.b16 %v6075
      %v6094 = vunpack.c.l.b16 %v6076
      %v6095 = vunpack.c.l.b16 %v6077
      %v6096 = vunpack.c.l.b16 %v6078
      %v6097 = vunpack.c.l.b16 %v6079
      %v6098 = vunpack.c.l.b16 %v6080
      %v6099 = vunpack.c.l.b16 %v6081
      %v6100 = vunpack.c.l.b16 %v6082
      %v6101 = vunpack.c.l.b16 %v6083
      %v6102 = vpack.c.b16 %v6094, %v6093
      %v6103 = vpack.c.b16 %v6096, %v6095
      %v6104 = vpack.c.b16 %v6098, %v6097
      %v6105 = vpack.c.b16 %v6100, %v6099
      %v6106 = vpack.c.b16 %v6101, %v6101
      %v6111 = vsel %vm2040, %v6045, 0
      %v6113 = vsel %vm2040, %v6047, 0
      %v6115 = vsel %vm2040, %v6049, 0
      %v6117 = vsel %vm2040, %v6051, 0
      %v6119 = vsel %vm2040, %v6053, 0
      %v6121 = vsel %vm2040, %v6055, 0
      %v6123 = vsel %vm2040, %v6057, 0
      %v6125 = vsel %vm2040, %v6059, 0
      %v6127 = vsel %vm2040, %v6061, 0
      %v6129 = vsel %vm2040, %v6063, 0
      %v6131 = vsel %vm2040, %v6065, 0
      %v6133 = vsel %vm2040, %v6067, 0
      %v6135 = vsel %vm2040, %v6069, 0
      %v6137 = vsel %vm2040, %v6071, 0
      %v6139 = vsel %vm2040, %v6073, 0
      %v6141 = vsel %vm2040, %v6074, 0
      %v6144 = vsel %vm2073, %v6106, 0
      %6146 = vmatpush.bf16.msra.mxu0 0
      %6147 = vmatpush.bf16.msra.mxu0 0
      %6148 = vmatpush.bf16.msra.mxu0 0
      %6149 = vmatpush.bf16.msra.mxu0 %v6144
      %6150 = vmatpush.bf16.msra.mxu0 %v6105
      %6151 = vmatpush.bf16.msra.mxu0 %v6104
      %6152 = vmatpush.bf16.msra.mxu0 %v6103
      %6153 = vmatpush.bf16.msra.mxu0 %v6102
      %6154 = vmatmul.bf16.gmra.mxu0 %v6111
      %v6155 = vpop.f32.mrf.mxu0
      %v6156 = vadd.f32 0.0, %v6155
      %v6157 = vpop.f32.mrf.mxu0
      %v6158 = vadd.f32 0.0, %v6157
      %6159 = vmatmul.bf16.gmra.mxu0 %v6113
      %v6160 = vpop.f32.mrf.mxu0
      %v6161 = vadd.f32 0.0, %v6160
      %v6162 = vpop.f32.mrf.mxu0
      %v6163 = vadd.f32 0.0, %v6162
      %6164 = vmatmul.bf16.gmra.mxu0 %v6115
      %v6165 = vpop.f32.mrf.mxu0
      %v6166 = vadd.f32 0.0, %v6165
      %v6167 = vpop.f32.mrf.mxu0
      %v6168 = vadd.f32 0.0, %v6167
      %6169 = vmatmul.bf16.gmra.mxu0 %v6117
      %v6170 = vpop.f32.mrf.mxu0
      %v6171 = vadd.f32 0.0, %v6170
      %v6172 = vpop.f32.mrf.mxu0
      %v6173 = vadd.f32 0.0, %v6172
      %6174 = vmatmul.bf16.gmra.mxu0 %v6119
      %v6175 = vpop.f32.mrf.mxu0
      %v6176 = vadd.f32 0.0, %v6175
      %v6177 = vpop.f32.mrf.mxu0
      %v6178 = vadd.f32 0.0, %v6177
      %6179 = vmatmul.bf16.gmra.mxu0 %v6121
      %v6180 = vpop.f32.mrf.mxu0
      %v6181 = vadd.f32 0.0, %v6180
      %v6182 = vpop.f32.mrf.mxu0
      %v6183 = vadd.f32 0.0, %v6182
      %6184 = vmatmul.bf16.gmra.mxu0 %v6123
      %v6185 = vpop.f32.mrf.mxu0
      %v6186 = vadd.f32 0.0, %v6185
      %v6187 = vpop.f32.mrf.mxu0
      %v6188 = vadd.f32 0.0, %v6187
      %6189 = vmatmul.bf16.gmra.mxu0 %v6125
      %v6190 = vpop.f32.mrf.mxu0
      %v6191 = vadd.f32 0.0, %v6190
      %v6192 = vpop.f32.mrf.mxu0
      %v6193 = vadd.f32 0.0, %v6192
      %6194 = vmatmul.bf16.gmra.mxu0 %v6127
      %v6195 = vpop.f32.mrf.mxu0
      %v6196 = vadd.f32 0.0, %v6195
      %v6197 = vpop.f32.mrf.mxu0
      %v6198 = vadd.f32 0.0, %v6197
      %6199 = vmatmul.bf16.gmra.mxu0 %v6129
      %v6200 = vpop.f32.mrf.mxu0
      %v6201 = vadd.f32 0.0, %v6200
      %v6202 = vpop.f32.mrf.mxu0
      %v6203 = vadd.f32 0.0, %v6202
      %6204 = vmatmul.bf16.gmra.mxu0 %v6131
      %v6205 = vpop.f32.mrf.mxu0
      %v6206 = vadd.f32 0.0, %v6205
      %v6207 = vpop.f32.mrf.mxu0
      %v6208 = vadd.f32 0.0, %v6207
      %6209 = vmatmul.bf16.gmra.mxu0 %v6133
      %v6210 = vpop.f32.mrf.mxu0
      %v6211 = vadd.f32 0.0, %v6210
      %v6212 = vpop.f32.mrf.mxu0
      %v6213 = vadd.f32 0.0, %v6212
      %6214 = vmatmul.bf16.gmra.mxu0 %v6135
      %v6215 = vpop.f32.mrf.mxu0
      %v6216 = vadd.f32 0.0, %v6215
      %v6217 = vpop.f32.mrf.mxu0
      %v6218 = vadd.f32 0.0, %v6217
      %6219 = vmatmul.bf16.gmra.mxu0 %v6137
      %v6220 = vpop.f32.mrf.mxu0
      %v6221 = vadd.f32 0.0, %v6220
      %v6222 = vpop.f32.mrf.mxu0
      %v6223 = vadd.f32 0.0, %v6222
      %6224 = vmatmul.bf16.gmra.mxu0 %v6139
      %v6225 = vpop.f32.mrf.mxu0
      %v6226 = vadd.f32 0.0, %v6225
      %v6227 = vpop.f32.mrf.mxu0
      %v6228 = vadd.f32 0.0, %v6227
      %6229 = vmatmul.bf16.gmra.mxu0 %v6141
      %v6230 = vpop.f32.mrf.mxu0
      %v6231 = vadd.f32 0.0, %v6230
      %v6232 = vpop.f32.mrf.mxu0
      %v6233 = vadd.f32 0.0, %v6232
      %6234 = vdwg.mxu0
      %v6235 = vld [vmem:[%s23] sm:$0x1]
      %v6237 = vperm.slane %v6235, 0
      %v6239 = vmul.f32 %v6156, %v6237
      %v6240 = vmul.f32 %v6158, %v6237
      %v6241 = vmul.f32 %v6161, %v6237
      %v6242 = vmul.f32 %v6163, %v6237
      %v6243 = vmul.f32 %v6166, %v6237
      %v6244 = vmul.f32 %v6168, %v6237
      %v6245 = vmul.f32 %v6171, %v6237
      %v6246 = vmul.f32 %v6173, %v6237
      %v6247 = vmul.f32 %v6176, %v6237
      %v6248 = vmul.f32 %v6178, %v6237
      %v6249 = vmul.f32 %v6181, %v6237
      %v6250 = vmul.f32 %v6183, %v6237
      %v6251 = vmul.f32 %v6186, %v6237
      %v6252 = vmul.f32 %v6188, %v6237
      %v6253 = vmul.f32 %v6191, %v6237
      %v6254 = vmul.f32 %v6193, %v6237
      %v6255 = vmul.f32 %v6196, %v6237
      %v6256 = vmul.f32 %v6198, %v6237
      %v6257 = vmul.f32 %v6201, %v6237
      %v6258 = vmul.f32 %v6203, %v6237
      %v6259 = vmul.f32 %v6206, %v6237
      %v6260 = vmul.f32 %v6208, %v6237
      %v6261 = vmul.f32 %v6211, %v6237
      %v6262 = vmul.f32 %v6213, %v6237
      %v6263 = vmul.f32 %v6216, %v6237
      %v6264 = vmul.f32 %v6218, %v6237
      %v6265 = vmul.f32 %v6221, %v6237
      %v6266 = vmul.f32 %v6223, %v6237
      %v6267 = vmul.f32 %v6226, %v6237
      %v6268 = vmul.f32 %v6228, %v6237
      %v6269 = vmul.f32 %v6231, %v6237
      %v6270 = vmul.f32 %v6233, %v6237
      %v6271 = vld [vmem:[%s25] sm:$0x1]
      %v6273 = vperm.slane %v6271, 0
      %v6275 = vadd.f32 %v6239, %v6273
      %v6276 = vadd.f32 %v6240, %v6273
      %v6277 = vadd.f32 %v6241, %v6273
      %v6278 = vadd.f32 %v6242, %v6273
      %v6279 = vadd.f32 %v6243, %v6273
      %v6280 = vadd.f32 %v6244, %v6273
      %v6281 = vadd.f32 %v6245, %v6273
      %v6282 = vadd.f32 %v6246, %v6273
      %v6283 = vadd.f32 %v6247, %v6273
      %v6284 = vadd.f32 %v6248, %v6273
      %v6285 = vadd.f32 %v6249, %v6273
      %v6286 = vadd.f32 %v6250, %v6273
      %v6287 = vadd.f32 %v6251, %v6273
      %v6288 = vadd.f32 %v6252, %v6273
      %v6289 = vadd.f32 %v6253, %v6273
      %v6290 = vadd.f32 %v6254, %v6273
      %v6291 = vadd.f32 %v6255, %v6273
      %v6292 = vadd.f32 %v6256, %v6273
      %v6293 = vadd.f32 %v6257, %v6273
      %v6294 = vadd.f32 %v6258, %v6273
      %v6295 = vadd.f32 %v6259, %v6273
      %v6296 = vadd.f32 %v6260, %v6273
      %v6297 = vadd.f32 %v6261, %v6273
      %v6298 = vadd.f32 %v6262, %v6273
      %v6299 = vadd.f32 %v6263, %v6273
      %v6300 = vadd.f32 %v6264, %v6273
      %v6301 = vadd.f32 %v6265, %v6273
      %v6302 = vadd.f32 %v6266, %v6273
      %v6303 = vadd.f32 %v6267, %v6273
      %v6304 = vadd.f32 %v6268, %v6273
      %v6305 = vadd.f32 %v6269, %v6273
      %v6306 = vadd.f32 %v6270, %v6273
      %v6307 = vmax.f32 %v6275, 0.0
      %v6308 = vmax.f32 %v6276, 0.0
      %v6309 = vmax.f32 %v6277, 0.0
      %v6310 = vmax.f32 %v6278, 0.0
      %v6311 = vmax.f32 %v6279, 0.0
      %v6312 = vmax.f32 %v6280, 0.0
      %v6313 = vmax.f32 %v6281, 0.0
      %v6314 = vmax.f32 %v6282, 0.0
      %v6315 = vmax.f32 %v6283, 0.0
      %v6316 = vmax.f32 %v6284, 0.0
      %v6317 = vmax.f32 %v6285, 0.0
      %v6318 = vmax.f32 %v6286, 0.0
      %v6319 = vmax.f32 %v6287, 0.0
      %v6320 = vmax.f32 %v6288, 0.0
      %v6321 = vmax.f32 %v6289, 0.0
      %v6322 = vmax.f32 %v6290, 0.0
      %v6323 = vmax.f32 %v6291, 0.0
      %v6324 = vmax.f32 %v6292, 0.0
      %v6325 = vmax.f32 %v6293, 0.0
      %v6326 = vmax.f32 %v6294, 0.0
      %v6327 = vmax.f32 %v6295, 0.0
      %v6328 = vmax.f32 %v6296, 0.0
      %v6329 = vmax.f32 %v6297, 0.0
      %v6330 = vmax.f32 %v6298, 0.0
      %v6331 = vmax.f32 %v6299, 0.0
      %v6332 = vmax.f32 %v6300, 0.0
      %v6333 = vmax.f32 %v6301, 0.0
      %v6334 = vmax.f32 %v6302, 0.0
      %v6335 = vmax.f32 %v6303, 0.0
      %v6336 = vmax.f32 %v6304, 0.0
      %v6337 = vmax.f32 %v6305, 0.0
      %v6338 = vmax.f32 %v6306, 0.0
      %v6339 = vpack.c.bf16 %v6307, %v6307
      %v6340 = vpack.c.bf16 %v6308, %v6308
      %v6341 = vpack.c.bf16 %v6309, %v6309
      %v6342 = vpack.c.bf16 %v6310, %v6310
      %v6343 = vpack.c.bf16 %v6311, %v6311
      %v6344 = vpack.c.bf16 %v6312, %v6312
      %v6345 = vpack.c.bf16 %v6313, %v6313
      %v6346 = vpack.c.bf16 %v6314, %v6314
      %v6347 = vpack.c.bf16 %v6315, %v6315
      %v6348 = vpack.c.bf16 %v6316, %v6316
      %v6349 = vpack.c.bf16 %v6317, %v6317
      %v6350 = vpack.c.bf16 %v6318, %v6318
      %v6351 = vpack.c.bf16 %v6319, %v6319
      %v6352 = vpack.c.bf16 %v6320, %v6320
      %v6353 = vpack.c.bf16 %v6321, %v6321
      %v6354 = vpack.c.bf16 %v6322, %v6322
      %v6355 = vpack.c.bf16 %v6323, %v6323
      %v6356 = vpack.c.bf16 %v6324, %v6324
      %v6357 = vpack.c.bf16 %v6325, %v6325
      %v6358 = vpack.c.bf16 %v6326, %v6326
      %v6359 = vpack.c.bf16 %v6327, %v6327
      %v6360 = vpack.c.bf16 %v6328, %v6328
      %v6361 = vpack.c.bf16 %v6329, %v6329
      %v6362 = vpack.c.bf16 %v6330, %v6330
      %v6363 = vpack.c.bf16 %v6331, %v6331
      %v6364 = vpack.c.bf16 %v6332, %v6332
      %v6365 = vpack.c.bf16 %v6333, %v6333
      %v6366 = vpack.c.bf16 %v6334, %v6334
      %v6367 = vpack.c.bf16 %v6335, %v6335
      %v6368 = vpack.c.bf16 %v6336, %v6336
      %v6369 = vpack.c.bf16 %v6337, %v6337
      %v6370 = vpack.c.bf16 %v6338, %v6338
      %v6403 = vunpack.c.l.b16 %v6339
      %v6404 = vunpack.c.l.b16 %v6340
      %v6405 = vunpack.c.l.b16 %v6341
      %v6406 = vunpack.c.l.b16 %v6342
      %v6407 = vunpack.c.l.b16 %v6343
      %v6408 = vunpack.c.l.b16 %v6344
      %v6409 = vunpack.c.l.b16 %v6345
      %v6410 = vunpack.c.l.b16 %v6346
      %v6411 = vunpack.c.l.b16 %v6347
      %v6412 = vunpack.c.l.b16 %v6348
      %v6413 = vunpack.c.l.b16 %v6349
      %v6414 = vunpack.c.l.b16 %v6350
      %v6415 = vunpack.c.l.b16 %v6351
      %v6416 = vunpack.c.l.b16 %v6352
      %v6417 = vunpack.c.l.b16 %v6353
      %v6418 = vunpack.c.l.b16 %v6354
      %v6419 = vunpack.c.l.b16 %v6355
      %v6420 = vunpack.c.l.b16 %v6356
      %v6421 = vunpack.c.l.b16 %v6357
      %v6422 = vunpack.c.l.b16 %v6358
      %v6423 = vunpack.c.l.b16 %v6359
      %v6424 = vunpack.c.l.b16 %v6360
      %v6425 = vunpack.c.l.b16 %v6361
      %v6426 = vunpack.c.l.b16 %v6362
      %v6427 = vunpack.c.l.b16 %v6363
      %v6428 = vunpack.c.l.b16 %v6364
      %v6429 = vunpack.c.l.b16 %v6365
      %v6430 = vunpack.c.l.b16 %v6366
      %v6431 = vunpack.c.l.b16 %v6367
      %v6432 = vunpack.c.l.b16 %v6368
      %v6433 = vunpack.c.l.b16 %v6369
      %v6434 = vunpack.c.l.b16 %v6370
      %v6435 = vpack.c.b16 %v6404, %v6403
      %v6436 = vpack.c.b16 %v6406, %v6405
      %v6437 = vpack.c.b16 %v6408, %v6407
      %v6438 = vpack.c.b16 %v6410, %v6409
      %v6439 = vpack.c.b16 %v6412, %v6411
      %v6440 = vpack.c.b16 %v6414, %v6413
      %v6441 = vpack.c.b16 %v6416, %v6415
      %v6442 = vpack.c.b16 %v6418, %v6417
      %v6443 = vpack.c.b16 %v6420, %v6419
      %v6444 = vpack.c.b16 %v6422, %v6421
      %v6445 = vpack.c.b16 %v6424, %v6423
      %v6446 = vpack.c.b16 %v6426, %v6425
      %v6447 = vpack.c.b16 %v6428, %v6427
      %v6448 = vpack.c.b16 %v6430, %v6429
      %v6449 = vpack.c.b16 %v6432, %v6431
      %v6450 = vpack.c.b16 %v6434, %v6433
      %v6452 = vshrl.u32 %v6435, 16
      %v6454 = vrot.slane %v6452, 7
      %v6455 = vshll.u32 %v6435, 16
      %v6457 = vor.u32 %v6454, %v6455
      %v6459 = vshrl.u32 %v6436, 16
      %v6461 = vrot.slane %v6459, 7
      %v6462 = vshll.u32 %v6436, 16
      %v6464 = vor.u32 %v6461, %v6462
      %v6466 = vshrl.u32 %v6437, 16
      %v6468 = vrot.slane %v6466, 7
      %v6469 = vshll.u32 %v6437, 16
      %v6471 = vor.u32 %v6468, %v6469
      %v6473 = vshrl.u32 %v6438, 16
      %v6475 = vrot.slane %v6473, 7
      %v6476 = vshll.u32 %v6438, 16
      %v6478 = vor.u32 %v6475, %v6476
      %v6480 = vshrl.u32 %v6439, 16
      %v6482 = vrot.slane %v6480, 7
      %v6483 = vshll.u32 %v6439, 16
      %v6485 = vor.u32 %v6482, %v6483
      %v6487 = vshrl.u32 %v6440, 16
      %v6489 = vrot.slane %v6487, 7
      %v6490 = vshll.u32 %v6440, 16
      %v6492 = vor.u32 %v6489, %v6490
      %v6494 = vshrl.u32 %v6441, 16
      %v6496 = vrot.slane %v6494, 7
      %v6497 = vshll.u32 %v6441, 16
      %v6499 = vor.u32 %v6496, %v6497
      %v6501 = vshrl.u32 %v6442, 16
      %v6503 = vrot.slane %v6501, 7
      %v6504 = vshll.u32 %v6442, 16
      %v6506 = vor.u32 %v6503, %v6504
      %v6508 = vshrl.u32 %v6443, 16
      %v6510 = vrot.slane %v6508, 7
      %v6511 = vshll.u32 %v6443, 16
      %v6513 = vor.u32 %v6510, %v6511
      %v6515 = vshrl.u32 %v6444, 16
      %v6517 = vrot.slane %v6515, 7
      %v6518 = vshll.u32 %v6444, 16
      %v6520 = vor.u32 %v6517, %v6518
      %v6522 = vshrl.u32 %v6445, 16
      %v6524 = vrot.slane %v6522, 7
      %v6525 = vshll.u32 %v6445, 16
      %v6527 = vor.u32 %v6524, %v6525
      %v6529 = vshrl.u32 %v6446, 16
      %v6531 = vrot.slane %v6529, 7
      %v6532 = vshll.u32 %v6446, 16
      %v6534 = vor.u32 %v6531, %v6532
      %v6536 = vshrl.u32 %v6447, 16
      %v6538 = vrot.slane %v6536, 7
      %v6539 = vshll.u32 %v6447, 16
      %v6541 = vor.u32 %v6538, %v6539
      %v6543 = vshrl.u32 %v6448, 16
      %v6545 = vrot.slane %v6543, 7
      %v6546 = vshll.u32 %v6448, 16
      %v6548 = vor.u32 %v6545, %v6546
      %v6550 = vshrl.u32 %v6449, 16
      %v6552 = vrot.slane %v6550, 7
      %v6553 = vshll.u32 %v6449, 16
      %v6555 = vor.u32 %v6552, %v6553
      %v6557 = vshrl.u32 %v6450, 16
      %v6559 = vrot.slane %v6557, 7
      %v6560 = vshll.u32 %v6450, 16
      %v6562 = vor.u32 %v6559, %v6560
      %v6595 = vsel %vm2537, 0, %v6457
      %v6596 = vsel %vm2537, 0, %v6464
      %v6597 = vsel %vm2537, 0, %v6471
      %v6598 = vsel %vm2537, 0, %v6478
      %v6599 = vsel %vm2537, 0, %v6485
      %v6600 = vsel %vm2537, 0, %v6492
      %v6601 = vsel %vm2537, 0, %v6499
      %v6602 = vsel %vm2537, 0, %v6506
      %v6603 = vsel %vm2537, 0, %v6513
      %v6604 = vsel %vm2537, 0, %v6520
      %v6605 = vsel %vm2537, 0, %v6527
      %v6606 = vsel %vm2537, 0, %v6534
      %v6607 = vsel %vm2537, 0, %v6541
      %v6608 = vsel %vm2537, 0, %v6548
      %v6609 = vsel %vm2537, 0, %v6555
      %v6610 = vsel %vm2537, 0, %v6562
      %v6611 = vsel %vm2537, %v6454, 0
      %v6612 = vsel %vm2537, %v6461, 0
      %v6613 = vsel %vm2537, %v6468, 0
      %v6614 = vsel %vm2537, %v6475, 0
      %v6615 = vsel %vm2537, %v6482, 0
      %v6616 = vsel %vm2537, %v6489, 0
      %v6617 = vsel %vm2537, %v6496, 0
      %v6618 = vsel %vm2537, %v6503, 0
      %v6619 = vsel %vm2537, %v6510, 0
      %v6620 = vsel %vm2537, %v6517, 0
      %v6621 = vsel %vm2537, %v6524, 0
      %v6622 = vsel %vm2537, %v6531, 0
      %v6623 = vsel %vm2537, %v6538, 0
      %v6624 = vsel %vm2537, %v6545, 0
      %v6625 = vsel %vm2537, %v6552, 0
      %v6626 = vsel %vm2537, %v6559, 0
      %v6628 = vshrl.u32 %v6595, 16
      %v6630 = vshll.u32 %v6595, 16
      %v6632 = vrot.slane %v6630, 1
      %v6633 = vor.u32 %v6628, %v6632
      %v6635 = vshll.u32 %v6611, 16
      %v6637 = vrot.slane %v6635, 1
      %v6638 = vsel %vm1196, %v6633, %v6637
      %v6640 = vshrl.u32 %v6596, 16
      %v6642 = vshll.u32 %v6596, 16
      %v6644 = vrot.slane %v6642, 1
      %v6645 = vor.u32 %v6640, %v6644
      %v6647 = vshll.u32 %v6612, 16
      %v6649 = vrot.slane %v6647, 1
      %v6650 = vsel %vm1196, %v6645, %v6649
      %v6652 = vshrl.u32 %v6597, 16
      %v6654 = vshll.u32 %v6597, 16
      %v6656 = vrot.slane %v6654, 1
      %v6657 = vor.u32 %v6652, %v6656
      %v6659 = vshll.u32 %v6613, 16
      %v6661 = vrot.slane %v6659, 1
      %v6662 = vsel %vm1196, %v6657, %v6661
      %v6664 = vshrl.u32 %v6598, 16
      %v6666 = vshll.u32 %v6598, 16
      %v6668 = vrot.slane %v6666, 1
      %v6669 = vor.u32 %v6664, %v6668
      %v6671 = vshll.u32 %v6614, 16
      %v6673 = vrot.slane %v6671, 1
      %v6674 = vsel %vm1196, %v6669, %v6673
      %v6676 = vshrl.u32 %v6599, 16
      %v6678 = vshll.u32 %v6599, 16
      %v6680 = vrot.slane %v6678, 1
      %v6681 = vor.u32 %v6676, %v6680
      %v6683 = vshll.u32 %v6615, 16
      %v6685 = vrot.slane %v6683, 1
      %v6686 = vsel %vm1196, %v6681, %v6685
      %v6688 = vshrl.u32 %v6600, 16
      %v6690 = vshll.u32 %v6600, 16
      %v6692 = vrot.slane %v6690, 1
      %v6693 = vor.u32 %v6688, %v6692
      %v6695 = vshll.u32 %v6616, 16
      %v6697 = vrot.slane %v6695, 1
      %v6698 = vsel %vm1196, %v6693, %v6697
      %v6700 = vshrl.u32 %v6601, 16
      %v6702 = vshll.u32 %v6601, 16
      %v6704 = vrot.slane %v6702, 1
      %v6705 = vor.u32 %v6700, %v6704
      %v6707 = vshll.u32 %v6617, 16
      %v6709 = vrot.slane %v6707, 1
      %v6710 = vsel %vm1196, %v6705, %v6709
      %v6712 = vshrl.u32 %v6602, 16
      %v6714 = vshll.u32 %v6602, 16
      %v6716 = vrot.slane %v6714, 1
      %v6717 = vor.u32 %v6712, %v6716
      %v6719 = vshll.u32 %v6618, 16
      %v6721 = vrot.slane %v6719, 1
      %v6722 = vsel %vm1196, %v6717, %v6721
      %v6724 = vshrl.u32 %v6603, 16
      %v6726 = vshll.u32 %v6603, 16
      %v6728 = vrot.slane %v6726, 1
      %v6729 = vor.u32 %v6724, %v6728
      %v6731 = vshll.u32 %v6619, 16
      %v6733 = vrot.slane %v6731, 1
      %v6734 = vsel %vm1196, %v6729, %v6733
      %v6736 = vshrl.u32 %v6604, 16
      %v6738 = vshll.u32 %v6604, 16
      %v6740 = vrot.slane %v6738, 1
      %v6741 = vor.u32 %v6736, %v6740
      %v6743 = vshll.u32 %v6620, 16
      %v6745 = vrot.slane %v6743, 1
      %v6746 = vsel %vm1196, %v6741, %v6745
      %v6748 = vshrl.u32 %v6605, 16
      %v6750 = vshll.u32 %v6605, 16
      %v6752 = vrot.slane %v6750, 1
      %v6753 = vor.u32 %v6748, %v6752
      %v6755 = vshll.u32 %v6621, 16
      %v6757 = vrot.slane %v6755, 1
      %v6758 = vsel %vm1196, %v6753, %v6757
      %v6760 = vshrl.u32 %v6606, 16
      %v6762 = vshll.u32 %v6606, 16
      %v6764 = vrot.slane %v6762, 1
      %v6765 = vor.u32 %v6760, %v6764
      %v6767 = vshll.u32 %v6622, 16
      %v6769 = vrot.slane %v6767, 1
      %v6770 = vsel %vm1196, %v6765, %v6769
      %v6772 = vshrl.u32 %v6607, 16
      %v6774 = vshll.u32 %v6607, 16
      %v6776 = vrot.slane %v6774, 1
      %v6777 = vor.u32 %v6772, %v6776
      %v6779 = vshll.u32 %v6623, 16
      %v6781 = vrot.slane %v6779, 1
      %v6782 = vsel %vm1196, %v6777, %v6781
      %v6784 = vshrl.u32 %v6608, 16
      %v6786 = vshll.u32 %v6608, 16
      %v6788 = vrot.slane %v6786, 1
      %v6789 = vor.u32 %v6784, %v6788
      %v6791 = vshll.u32 %v6624, 16
      %v6793 = vrot.slane %v6791, 1
      %v6794 = vsel %vm1196, %v6789, %v6793
      %v6796 = vshrl.u32 %v6609, 16
      %v6798 = vshll.u32 %v6609, 16
      %v6800 = vrot.slane %v6798, 1
      %v6801 = vor.u32 %v6796, %v6800
      %v6803 = vshll.u32 %v6625, 16
      %v6805 = vrot.slane %v6803, 1
      %v6806 = vsel %vm1196, %v6801, %v6805
      %6807 = vrot.lane.b32.xlu0 %v2583, 16
      %v6808 = vpop.permute.xlu0 %6807
      %6809 = vrot.lane.b32.xlu0 %v6638, 16
      %v6810 = vpop.permute.xlu0 %6809
      %6811 = vrot.lane.b32.xlu0 %v6650, 16
      %v6812 = vpop.permute.xlu0 %6811
      %6813 = vrot.lane.b32.xlu0 %v6662, 16
      %v6814 = vpop.permute.xlu0 %6813
      %6815 = vrot.lane.b32.xlu0 %v6674, 16
      %v6816 = vpop.permute.xlu0 %6815
      %6817 = vrot.lane.b32.xlu0 %v6686, 16
      %v6818 = vpop.permute.xlu0 %6817
      %6819 = vrot.lane.b32.xlu0 %v6698, 16
      %v6820 = vpop.permute.xlu0 %6819
      %6821 = vrot.lane.b32.xlu0 %v6710, 16
      %v6822 = vpop.permute.xlu0 %6821
      %6823 = vrot.lane.b32.xlu0 %v6722, 16
      %v6824 = vpop.permute.xlu0 %6823
      %6825 = vrot.lane.b32.xlu0 %v6734, 16
      %v6826 = vpop.permute.xlu0 %6825
      %6827 = vrot.lane.b32.xlu0 %v6746, 16
      %v6828 = vpop.permute.xlu0 %6827
      %6829 = vrot.lane.b32.xlu0 %v6758, 16
      %v6830 = vpop.permute.xlu0 %6829
      %6831 = vrot.lane.b32.xlu0 %v6770, 16
      %v6832 = vpop.permute.xlu0 %6831
      %6833 = vrot.lane.b32.xlu0 %v6782, 16
      %v6834 = vpop.permute.xlu0 %6833
      %6835 = vrot.lane.b32.xlu0 %v6794, 16
      %v6836 = vpop.permute.xlu0 %6835
      %6837 = vrot.lane.b32.xlu0 %v6806, 16
      %v6838 = vpop.permute.xlu0 %6837
      %v6869 = vrot.slane %v6595, 1
      %v6870 = vrot.slane %v6611, 1
      %v6871 = vsel %vm1421, %v6869, %v6870
      %v6872 = vrot.slane %v6596, 1
      %v6873 = vrot.slane %v6612, 1
      %v6874 = vsel %vm1421, %v6872, %v6873
      %v6875 = vrot.slane %v6597, 1
      %v6876 = vrot.slane %v6613, 1
      %v6877 = vsel %vm1421, %v6875, %v6876
      %v6878 = vrot.slane %v6598, 1
      %v6879 = vrot.slane %v6614, 1
      %v6880 = vsel %vm1421, %v6878, %v6879
      %v6881 = vrot.slane %v6599, 1
      %v6882 = vrot.slane %v6615, 1
      %v6883 = vsel %vm1421, %v6881, %v6882
      %v6884 = vrot.slane %v6600, 1
      %v6885 = vrot.slane %v6616, 1
      %v6886 = vsel %vm1421, %v6884, %v6885
      %v6887 = vrot.slane %v6601, 1
      %v6888 = vrot.slane %v6617, 1
      %v6889 = vsel %vm1421, %v6887, %v6888
      %v6890 = vrot.slane %v6602, 1
      %v6891 = vrot.slane %v6618, 1
      %v6892 = vsel %vm1421, %v6890, %v6891
      %v6893 = vrot.slane %v6603, 1
      %v6894 = vrot.slane %v6619, 1
      %v6895 = vsel %vm1421, %v6893, %v6894
      %v6896 = vrot.slane %v6604, 1
      %v6897 = vrot.slane %v6620, 1
      %v6898 = vsel %vm1421, %v6896, %v6897
      %v6899 = vrot.slane %v6605, 1
      %v6900 = vrot.slane %v6621, 1
      %v6901 = vsel %vm1421, %v6899, %v6900
      %v6902 = vrot.slane %v6606, 1
      %v6903 = vrot.slane %v6622, 1
      %v6904 = vsel %vm1421, %v6902, %v6903
      %v6905 = vrot.slane %v6607, 1
      %v6906 = vrot.slane %v6623, 1
      %v6907 = vsel %vm1421, %v6905, %v6906
      %v6908 = vrot.slane %v6608, 1
      %v6909 = vrot.slane %v6624, 1
      %v6910 = vsel %vm1421, %v6908, %v6909
      %v6911 = vrot.slane %v6609, 1
      %v6912 = vrot.slane %v6625, 1
      %v6913 = vsel %vm1421, %v6911, %v6912
      %6914 = vrot.lane.b32.xlu0 %v2830, 32
      %v6915 = vpop.permute.xlu0 %6914
      %6916 = vrot.lane.b32.xlu0 %v6871, 32
      %v6917 = vpop.permute.xlu0 %6916
      %6918 = vrot.lane.b32.xlu0 %v6874, 32
      %v6919 = vpop.permute.xlu0 %6918
      %6920 = vrot.lane.b32.xlu0 %v6877, 32
      %v6921 = vpop.permute.xlu0 %6920
      %6922 = vrot.lane.b32.xlu0 %v6880, 32
      %v6923 = vpop.permute.xlu0 %6922
      %6924 = vrot.lane.b32.xlu0 %v6883, 32
      %v6925 = vpop.permute.xlu0 %6924
      %6926 = vrot.lane.b32.xlu0 %v6886, 32
      %v6927 = vpop.permute.xlu0 %6926
      %6928 = vrot.lane.b32.xlu0 %v6889, 32
      %v6929 = vpop.permute.xlu0 %6928
      %6930 = vrot.lane.b32.xlu0 %v6892, 32
      %v6931 = vpop.permute.xlu0 %6930
      %6932 = vrot.lane.b32.xlu0 %v6895, 32
      %v6933 = vpop.permute.xlu0 %6932
      %6934 = vrot.lane.b32.xlu0 %v6898, 32
      %v6935 = vpop.permute.xlu0 %6934
      %6936 = vrot.lane.b32.xlu0 %v6901, 32
      %v6937 = vpop.permute.xlu0 %6936
      %6938 = vrot.lane.b32.xlu0 %v6904, 32
      %v6939 = vpop.permute.xlu0 %6938
      %6940 = vrot.lane.b32.xlu0 %v6907, 32
      %v6941 = vpop.permute.xlu0 %6940
      %6942 = vrot.lane.b32.xlu0 %v6910, 32
      %v6943 = vpop.permute.xlu0 %6942
      %6944 = vrot.lane.b32.xlu0 %v6913, 32
      %v6945 = vpop.permute.xlu0 %6944
      %6947 = vrot.lane.b32.xlu0 %v6595, 48
      %v6948 = vpop.permute.xlu0 %6947
      %6949 = vrot.lane.b32.xlu0 %v6596, 48
      %v6950 = vpop.permute.xlu0 %6949
      %6951 = vrot.lane.b32.xlu0 %v6597, 48
      %v6952 = vpop.permute.xlu0 %6951
      %6953 = vrot.lane.b32.xlu0 %v6598, 48
      %v6954 = vpop.permute.xlu0 %6953
      %6955 = vrot.lane.b32.xlu0 %v6599, 48
      %v6956 = vpop.permute.xlu0 %6955
      %6957 = vrot.lane.b32.xlu0 %v6600, 48
      %v6958 = vpop.permute.xlu0 %6957
      %6959 = vrot.lane.b32.xlu0 %v6601, 48
      %v6960 = vpop.permute.xlu0 %6959
      %6961 = vrot.lane.b32.xlu0 %v6602, 48
      %v6962 = vpop.permute.xlu0 %6961
      %6963 = vrot.lane.b32.xlu0 %v6603, 48
      %v6964 = vpop.permute.xlu0 %6963
      %6965 = vrot.lane.b32.xlu0 %v6604, 48
      %v6966 = vpop.permute.xlu0 %6965
      %6967 = vrot.lane.b32.xlu0 %v6605, 48
      %v6968 = vpop.permute.xlu0 %6967
      %6969 = vrot.lane.b32.xlu0 %v6606, 48
      %v6970 = vpop.permute.xlu0 %6969
      %6971 = vrot.lane.b32.xlu0 %v6607, 48
      %v6972 = vpop.permute.xlu0 %6971
      %6973 = vrot.lane.b32.xlu0 %v6608, 48
      %v6974 = vpop.permute.xlu0 %6973
      %6975 = vrot.lane.b32.xlu0 %v6609, 48
      %v6976 = vpop.permute.xlu0 %6975
      %6977 = vrot.lane.b32.xlu0 %v6610, 48
      %v6978 = vpop.permute.xlu0 %6977
      %v6980 = vshrl.u32 %v6610, 16
      %v6982 = vshll.u32 %v6610, 16
      %v6984 = vrot.slane %v6982, 1
      %v6985 = vor.u32 %v6980, %v6984
      %v6987 = vshll.u32 %v6626, 16
      %v6989 = vrot.slane %v6987, 1
      %v6990 = vsel %vm1196, %v6985, %v6989
      %6991 = vrot.lane.b32.xlu0 %v6638, 64
      %v6992 = vpop.permute.xlu0 %6991
      %6993 = vrot.lane.b32.xlu0 %v6650, 64
      %v6994 = vpop.permute.xlu0 %6993
      %6995 = vrot.lane.b32.xlu0 %v6662, 64
      %v6996 = vpop.permute.xlu0 %6995
      %6997 = vrot.lane.b32.xlu0 %v6674, 64
      %v6998 = vpop.permute.xlu0 %6997
      %6999 = vrot.lane.b32.xlu0 %v6686, 64
      %v7000 = vpop.permute.xlu0 %6999
      %7001 = vrot.lane.b32.xlu0 %v6698, 64
      %v7002 = vpop.permute.xlu0 %7001
      %7003 = vrot.lane.b32.xlu0 %v6710, 64
      %v7004 = vpop.permute.xlu0 %7003
      %7005 = vrot.lane.b32.xlu0 %v6722, 64
      %v7006 = vpop.permute.xlu0 %7005
      %7007 = vrot.lane.b32.xlu0 %v6734, 64
      %v7008 = vpop.permute.xlu0 %7007
      %7009 = vrot.lane.b32.xlu0 %v6746, 64
      %v7010 = vpop.permute.xlu0 %7009
      %7011 = vrot.lane.b32.xlu0 %v6758, 64
      %v7012 = vpop.permute.xlu0 %7011
      %7013 = vrot.lane.b32.xlu0 %v6770, 64
      %v7014 = vpop.permute.xlu0 %7013
      %7015 = vrot.lane.b32.xlu0 %v6782, 64
      %v7016 = vpop.permute.xlu0 %7015
      %7017 = vrot.lane.b32.xlu0 %v6794, 64
      %v7018 = vpop.permute.xlu0 %7017
      %7019 = vrot.lane.b32.xlu0 %v6806, 64
      %v7020 = vpop.permute.xlu0 %7019
      %7021 = vrot.lane.b32.xlu0 %v6990, 64
      %v7022 = vpop.permute.xlu0 %7021
      %v7024 = vrot.slane %v6610, 1
      %v7025 = vrot.slane %v6626, 1
      %v7026 = vsel %vm1421, %v7024, %v7025
      %7027 = vrot.lane.b32.xlu0 %v6871, 80
      %v7028 = vpop.permute.xlu0 %7027
      %7029 = vrot.lane.b32.xlu0 %v6874, 80
      %v7030 = vpop.permute.xlu0 %7029
      %7031 = vrot.lane.b32.xlu0 %v6877, 80
      %v7032 = vpop.permute.xlu0 %7031
      %7033 = vrot.lane.b32.xlu0 %v6880, 80
      %v7034 = vpop.permute.xlu0 %7033
      %7035 = vrot.lane.b32.xlu0 %v6883, 80
      %v7036 = vpop.permute.xlu0 %7035
      %7037 = vrot.lane.b32.xlu0 %v6886, 80
      %v7038 = vpop.permute.xlu0 %7037
      %7039 = vrot.lane.b32.xlu0 %v6889, 80
      %v7040 = vpop.permute.xlu0 %7039
      %7041 = vrot.lane.b32.xlu0 %v6892, 80
      %v7042 = vpop.permute.xlu0 %7041
      %7043 = vrot.lane.b32.xlu0 %v6895, 80
      %v7044 = vpop.permute.xlu0 %7043
      %7045 = vrot.lane.b32.xlu0 %v6898, 80
      %v7046 = vpop.permute.xlu0 %7045
      %7047 = vrot.lane.b32.xlu0 %v6901, 80
      %v7048 = vpop.permute.xlu0 %7047
      %7049 = vrot.lane.b32.xlu0 %v6904, 80
      %v7050 = vpop.permute.xlu0 %7049
      %7051 = vrot.lane.b32.xlu0 %v6907, 80
      %v7052 = vpop.permute.xlu0 %7051
      %7053 = vrot.lane.b32.xlu0 %v6910, 80
      %v7054 = vpop.permute.xlu0 %7053
      %7055 = vrot.lane.b32.xlu0 %v6913, 80
      %v7056 = vpop.permute.xlu0 %7055
      %7057 = vrot.lane.b32.xlu0 %v7026, 80
      %v7058 = vpop.permute.xlu0 %7057
      %7059 = vrot.lane.b32.xlu0 %v6596, 96
      %v7060 = vpop.permute.xlu0 %7059
      %7061 = vrot.lane.b32.xlu0 %v6597, 96
      %v7062 = vpop.permute.xlu0 %7061
      %7063 = vrot.lane.b32.xlu0 %v6598, 96
      %v7064 = vpop.permute.xlu0 %7063
      %7065 = vrot.lane.b32.xlu0 %v6599, 96
      %v7066 = vpop.permute.xlu0 %7065
      %7067 = vrot.lane.b32.xlu0 %v6600, 96
      %v7068 = vpop.permute.xlu0 %7067
      %7069 = vrot.lane.b32.xlu0 %v6601, 96
      %v7070 = vpop.permute.xlu0 %7069
      %7071 = vrot.lane.b32.xlu0 %v6602, 96
      %v7072 = vpop.permute.xlu0 %7071
      %7073 = vrot.lane.b32.xlu0 %v6603, 96
      %v7074 = vpop.permute.xlu0 %7073
      %7075 = vrot.lane.b32.xlu0 %v6604, 96
      %v7076 = vpop.permute.xlu0 %7075
      %7077 = vrot.lane.b32.xlu0 %v6605, 96
      %v7078 = vpop.permute.xlu0 %7077
      %7079 = vrot.lane.b32.xlu0 %v6606, 96
      %v7080 = vpop.permute.xlu0 %7079
      %7081 = vrot.lane.b32.xlu0 %v6607, 96
      %v7082 = vpop.permute.xlu0 %7081
      %7083 = vrot.lane.b32.xlu0 %v6608, 96
      %v7084 = vpop.permute.xlu0 %7083
      %7085 = vrot.lane.b32.xlu0 %v6609, 96
      %v7086 = vpop.permute.xlu0 %7085
      %7087 = vrot.lane.b32.xlu0 %v6610, 96
      %v7088 = vpop.permute.xlu0 %7087
      %7089 = vrot.lane.b32.xlu0 %v2538, 96
      %v7090 = vpop.permute.xlu0 %7089
      %7091 = vrot.lane.b32.xlu0 %v6650, 112
      %v7092 = vpop.permute.xlu0 %7091
      %7093 = vrot.lane.b32.xlu0 %v6662, 112
      %v7094 = vpop.permute.xlu0 %7093
      %7095 = vrot.lane.b32.xlu0 %v6674, 112
      %v7096 = vpop.permute.xlu0 %7095
      %7097 = vrot.lane.b32.xlu0 %v6686, 112
      %v7098 = vpop.permute.xlu0 %7097
      %7099 = vrot.lane.b32.xlu0 %v6698, 112
      %v7100 = vpop.permute.xlu0 %7099
      %7101 = vrot.lane.b32.xlu0 %v6710, 112
      %v7102 = vpop.permute.xlu0 %7101
      %7103 = vrot.lane.b32.xlu0 %v6722, 112
      %v7104 = vpop.permute.xlu0 %7103
      %7105 = vrot.lane.b32.xlu0 %v6734, 112
      %v7106 = vpop.permute.xlu0 %7105
      %7107 = vrot.lane.b32.xlu0 %v6746, 112
      %v7108 = vpop.permute.xlu0 %7107
      %7109 = vrot.lane.b32.xlu0 %v6758, 112
      %v7110 = vpop.permute.xlu0 %7109
      %7111 = vrot.lane.b32.xlu0 %v6770, 112
      %v7112 = vpop.permute.xlu0 %7111
      %7113 = vrot.lane.b32.xlu0 %v6782, 112
      %v7114 = vpop.permute.xlu0 %7113
      %7115 = vrot.lane.b32.xlu0 %v6794, 112
      %v7116 = vpop.permute.xlu0 %7115
      %7117 = vrot.lane.b32.xlu0 %v6806, 112
      %v7118 = vpop.permute.xlu0 %7117
      %7119 = vrot.lane.b32.xlu0 %v6990, 112
      %v7120 = vpop.permute.xlu0 %7119
      %7121 = vrot.lane.b32.xlu0 %v2583, 112
      %v7122 = vpop.permute.xlu0 %7121
      %v7124 = vsel %vm1773, %v2538, %v6808
      %v7126 = vsel %vm1773, %v6595, %v6810
      %v7128 = vsel %vm1773, %v6596, %v6812
      %v7130 = vsel %vm1773, %v6597, %v6814
      %v7132 = vsel %vm1773, %v6598, %v6816
      %v7134 = vsel %vm1773, %v6599, %v6818
      %v7136 = vsel %vm1773, %v6600, %v6820
      %v7138 = vsel %vm1773, %v6601, %v6822
      %v7140 = vsel %vm1773, %v6602, %v6824
      %v7142 = vsel %vm1773, %v6603, %v6826
      %v7144 = vsel %vm1773, %v6604, %v6828
      %v7146 = vsel %vm1773, %v6605, %v6830
      %v7148 = vsel %vm1773, %v6606, %v6832
      %v7150 = vsel %vm1773, %v6607, %v6834
      %v7152 = vsel %vm1773, %v6608, %v6836
      %v7154 = vsel %vm1773, %v6609, %v6838
      %v7156 = vsel %vm1839, %v7124, %v6915
      %v7158 = vsel %vm1839, %v7126, %v6917
      %v7160 = vsel %vm1839, %v7128, %v6919
      %v7162 = vsel %vm1839, %v7130, %v6921
      %v7164 = vsel %vm1839, %v7132, %v6923
      %v7166 = vsel %vm1839, %v7134, %v6925
      %v7168 = vsel %vm1839, %v7136, %v6927
      %v7170 = vsel %vm1839, %v7138, %v6929
      %v7172 = vsel %vm1839, %v7140, %v6931
      %v7174 = vsel %vm1839, %v7142, %v6933
      %v7176 = vsel %vm1839, %v7144, %v6935
      %v7178 = vsel %vm1839, %v7146, %v6937
      %v7180 = vsel %vm1839, %v7148, %v6939
      %v7182 = vsel %vm1839, %v7150, %v6941
      %v7184 = vsel %vm1839, %v7152, %v6943
      %v7186 = vsel %vm1839, %v7154, %v6945
      %v7188 = vsel %vm1905, %v7156, %v6948
      %v7190 = vsel %vm1905, %v7158, %v6950
      %v7192 = vsel %vm1905, %v7160, %v6952
      %v7194 = vsel %vm1905, %v7162, %v6954
      %v7196 = vsel %vm1905, %v7164, %v6956
      %v7198 = vsel %vm1905, %v7166, %v6958
      %v7200 = vsel %vm1905, %v7168, %v6960
      %v7202 = vsel %vm1905, %v7170, %v6962
      %v7204 = vsel %vm1905, %v7172, %v6964
      %v7206 = vsel %vm1905, %v7174, %v6966
      %v7208 = vsel %vm1905, %v7176, %v6968
      %v7210 = vsel %vm1905, %v7178, %v6970
      %v7212 = vsel %vm1905, %v7180, %v6972
      %v7214 = vsel %vm1905, %v7182, %v6974
      %v7216 = vsel %vm1905, %v7184, %v6976
      %v7218 = vsel %vm1905, %v7186, %v6978
      %v7220 = vsel %vm1971, %v7188, %v6992
      %v7222 = vsel %vm1971, %v7190, %v6994
      %v7224 = vsel %vm1971, %v7192, %v6996
      %v7226 = vsel %vm1971, %v7194, %v6998
      %v7228 = vsel %vm1971, %v7196, %v7000
      %v7230 = vsel %vm1971, %v7198, %v7002
      %v7232 = vsel %vm1971, %v7200, %v7004
      %v7234 = vsel %vm1971, %v7202, %v7006
      %v7236 = vsel %vm1971, %v7204, %v7008
      %v7238 = vsel %vm1971, %v7206, %v7010
      %v7240 = vsel %vm1971, %v7208, %v7012
      %v7242 = vsel %vm1971, %v7210, %v7014
      %v7244 = vsel %vm1971, %v7212, %v7016
      %v7246 = vsel %vm1971, %v7214, %v7018
      %v7248 = vsel %vm1971, %v7216, %v7020
      %v7250 = vsel %vm1971, %v7218, %v7022
      %vm7251 = vcmask 654336
      %v7253 = vsel %vm7251, %v7220, %v7028
      %v7255 = vsel %vm7251, %v7222, %v7030
      %v7257 = vsel %vm7251, %v7224, %v7032
      %v7259 = vsel %vm7251, %v7226, %v7034
      %v7261 = vsel %vm7251, %v7228, %v7036
      %v7263 = vsel %vm7251, %v7230, %v7038
      %v7265 = vsel %vm7251, %v7232, %v7040
      %v7267 = vsel %vm7251, %v7234, %v7042
      %v7269 = vsel %vm7251, %v7236, %v7044
      %v7271 = vsel %vm7251, %v7238, %v7046
      %v7273 = vsel %vm7251, %v7240, %v7048
      %v7275 = vsel %vm7251, %v7242, %v7050
      %v7277 = vsel %vm7251, %v7244, %v7052
      %v7279 = vsel %vm7251, %v7246, %v7054
      %v7281 = vsel %vm7251, %v7248, %v7056
      %v7283 = vsel %vm7251, %v7250, %v7058
      %vm7284 = vcmask 785408
      %v7286 = vsel %vm7284, %v7253, %v7060
      %v7288 = vsel %vm7284, %v7255, %v7062
      %v7290 = vsel %vm7284, %v7257, %v7064
      %v7292 = vsel %vm7284, %v7259, %v7066
      %v7294 = vsel %vm7284, %v7261, %v7068
      %v7296 = vsel %vm7284, %v7263, %v7070
      %v7298 = vsel %vm7284, %v7265, %v7072
      %v7300 = vsel %vm7284, %v7267, %v7074
      %v7302 = vsel %vm7284, %v7269, %v7076
      %v7304 = vsel %vm7284, %v7271, %v7078
      %v7306 = vsel %vm7284, %v7273, %v7080
      %v7308 = vsel %vm7284, %v7275, %v7082
      %v7310 = vsel %vm7284, %v7277, %v7084
      %v7312 = vsel %vm7284, %v7279, %v7086
      %v7314 = vsel %vm7284, %v7281, %v7088
      %v7316 = vsel %vm7284, %v7283, %v7090
      %vm7317 = vcmask 916480
      %v7319 = vsel %vm7317, %v7286, %v7092
      %v7322 = vsel %vm7317, %v7288, %v7094
      %v7325 = vsel %vm7317, %v7290, %v7096
      %v7328 = vsel %vm7317, %v7292, %v7098
      %v7331 = vsel %vm7317, %v7294, %v7100
      %v7334 = vsel %vm7317, %v7296, %v7102
      %v7337 = vsel %vm7317, %v7298, %v7104
      %v7340 = vsel %vm7317, %v7300, %v7106
      %v7343 = vsel %vm7317, %v7302, %v7108
      %v7346 = vsel %vm7317, %v7304, %v7110
      %v7349 = vsel %vm7317, %v7306, %v7112
      %v7352 = vsel %vm7317, %v7308, %v7114
      %v7355 = vsel %vm7317, %v7310, %v7116
      %v7358 = vsel %vm7317, %v7312, %v7118
      %v7361 = vsel %vm7317, %v7314, %v7120
      %v7364 = vsel %vm7317, %v7316, %v7122
      %v7366 = vld [vmem:[%s27] sm:$0xf]
      %v7367 = vld [vmem:[%s27 + $0x4] sm:$0xf]
      %v7368 = vld [vmem:[%s27 + $0x8] sm:$0xf]
      %v7369 = vld [vmem:[%s27 + $0xc] sm:$0xf]
      %v7370 = vld [vmem:[%s27 + $0x10] sm:$0xf]
      %v7371 = vld [vmem:[%s27 + $0x14] sm:$0xf]
      %v7372 = vld [vmem:[%s27 + $0x18] sm:$0xf]
      %v7373 = vld [vmem:[%s27 + $0x1c] sm:$0xf]
      %v7374 = vld [vmem:[%s27 + $0x20] sm:$0xf]
      %v7375 = vld [vmem:[%s27 + $0x24] sm:$0xf]
      %v7376 = vld [vmem:[%s27 + $0x28] sm:$0xf]
      %v7377 = vld [vmem:[%s27 + $0x2c] sm:$0xf]
      %v7378 = vld [vmem:[%s27 + $0x30] sm:$0xf]
      %v7379 = vld [vmem:[%s27 + $0x34] sm:$0xf]
      %v7380 = vld [vmem:[%s27 + $0x38] sm:$0xf]
      %v7381 = vld [vmem:[%s27 + $0x3c] sm:$0xf]
      %v7382 = vld [vmem:[%s27 + $0x40] sm:$0xf]
      %v7383 = vld [vmem:[%s27 + $0x44] sm:$0xf]
      %v7402 = vunpack.c.l.b16 %v7366
      %v7403 = vunpack.c.l.b16 %v7367
      %v7404 = vunpack.c.l.b16 %v7368
      %v7405 = vunpack.c.l.b16 %v7369
      %v7406 = vunpack.c.l.b16 %v7370
      %v7407 = vunpack.c.l.b16 %v7371
      %v7408 = vunpack.c.l.b16 %v7372
      %v7409 = vunpack.c.l.b16 %v7373
      %v7410 = vunpack.c.l.b16 %v7374
      %v7411 = vunpack.c.l.b16 %v7375
      %v7412 = vunpack.c.l.b16 %v7376
      %v7413 = vunpack.c.l.b16 %v7377
      %v7414 = vunpack.c.l.b16 %v7378
      %v7415 = vunpack.c.l.b16 %v7379
      %v7416 = vunpack.c.l.b16 %v7380
      %v7417 = vunpack.c.l.b16 %v7381
      %v7418 = vunpack.c.l.b16 %v7382
      %v7419 = vunpack.c.l.b16 %v7383
      %v7420 = vpack.c.b16 %v7403, %v7402
      %v7421 = vpack.c.b16 %v7405, %v7404
      %v7422 = vpack.c.b16 %v7407, %v7406
      %v7423 = vpack.c.b16 %v7409, %v7408
      %v7424 = vpack.c.b16 %v7411, %v7410
      %v7425 = vpack.c.b16 %v7413, %v7412
      %v7426 = vpack.c.b16 %v7415, %v7414
      %v7427 = vpack.c.b16 %v7417, %v7416
      %v7428 = vpack.c.b16 %v7419, %v7418
      %v7439 = vsel %vm1773, %v6874, 0
      %v7442 = vsel %vm1773, %v6877, 0
      %v7445 = vsel %vm1773, %v6880, 0
      %v7448 = vsel %vm1773, %v6883, 0
      %v7451 = vsel %vm1773, %v6886, 0
      %v7454 = vsel %vm1773, %v6889, 0
      %v7457 = vsel %vm1773, %v6892, 0
      %v7460 = vsel %vm1773, %v6895, 0
      %v7463 = vsel %vm1773, %v6898, 0
      %v7466 = vsel %vm1773, %v6901, 0
      %v7469 = vsel %vm1773, %v6904, 0
      %v7472 = vsel %vm1773, %v6907, 0
      %v7475 = vsel %vm1773, %v6910, 0
      %v7478 = vsel %vm1773, %v6913, 0
      %v7481 = vsel %vm1773, %v7026, 0
      %v7484 = vsel %vm1773, %v2830, 0
      %7486 = vmatpush.bf16.msra.mxu0 %v7427
      %7487 = vmatpush.bf16.msra.mxu0 %v7426
      %7488 = vmatpush.bf16.msra.mxu0 %v7425
      %7489 = vmatpush.bf16.msra.mxu0 %v7424
      %7490 = vmatpush.bf16.msra.mxu0 %v7423
      %7491 = vmatpush.bf16.msra.mxu0 %v7422
      %7492 = vmatpush.bf16.msra.mxu0 %v7421
      %7493 = vmatpush.bf16.msra.mxu0 %v7420
      %7494 = vmatmul.bf16.gmra.mxu0 %v7319
      %v7495 = vpop.f32.mrf.mxu0
      %v7496 = vadd.f32 0.0, %v7495
      %v7497 = vpop.f32.mrf.mxu0
      %v7498 = vadd.f32 0.0, %v7497
      %7499 = vmatmul.bf16.gmra.mxu0 %v7322
      %v7500 = vpop.f32.mrf.mxu0
      %v7501 = vadd.f32 0.0, %v7500
      %v7502 = vpop.f32.mrf.mxu0
      %v7503 = vadd.f32 0.0, %v7502
      %7504 = vmatmul.bf16.gmra.mxu0 %v7325
      %v7505 = vpop.f32.mrf.mxu0
      %v7506 = vadd.f32 0.0, %v7505
      %v7507 = vpop.f32.mrf.mxu0
      %v7508 = vadd.f32 0.0, %v7507
      %7509 = vmatmul.bf16.gmra.mxu0 %v7328
      %v7510 = vpop.f32.mrf.mxu0
      %v7511 = vadd.f32 0.0, %v7510
      %v7512 = vpop.f32.mrf.mxu0
      %v7513 = vadd.f32 0.0, %v7512
      %7514 = vmatmul.bf16.gmra.mxu0 %v7331
      %v7515 = vpop.f32.mrf.mxu0
      %v7516 = vadd.f32 0.0, %v7515
      %v7517 = vpop.f32.mrf.mxu0
      %v7518 = vadd.f32 0.0, %v7517
      %7519 = vmatmul.bf16.gmra.mxu0 %v7334
      %v7520 = vpop.f32.mrf.mxu0
      %v7521 = vadd.f32 0.0, %v7520
      %v7522 = vpop.f32.mrf.mxu0
      %v7523 = vadd.f32 0.0, %v7522
      %7524 = vmatmul.bf16.gmra.mxu0 %v7337
      %v7525 = vpop.f32.mrf.mxu0
      %v7526 = vadd.f32 0.0, %v7525
      %v7527 = vpop.f32.mrf.mxu0
      %v7528 = vadd.f32 0.0, %v7527
      %7529 = vmatmul.bf16.gmra.mxu0 %v7340
      %v7530 = vpop.f32.mrf.mxu0
      %v7531 = vadd.f32 0.0, %v7530
      %v7532 = vpop.f32.mrf.mxu0
      %v7533 = vadd.f32 0.0, %v7532
      %7534 = vmatmul.bf16.gmra.mxu0 %v7343
      %v7535 = vpop.f32.mrf.mxu0
      %v7536 = vadd.f32 0.0, %v7535
      %v7537 = vpop.f32.mrf.mxu0
      %v7538 = vadd.f32 0.0, %v7537
      %7539 = vmatmul.bf16.gmra.mxu0 %v7346
      %v7540 = vpop.f32.mrf.mxu0
      %v7541 = vadd.f32 0.0, %v7540
      %v7542 = vpop.f32.mrf.mxu0
      %v7543 = vadd.f32 0.0, %v7542
      %7544 = vmatmul.bf16.gmra.mxu0 %v7349
      %v7545 = vpop.f32.mrf.mxu0
      %v7546 = vadd.f32 0.0, %v7545
      %v7547 = vpop.f32.mrf.mxu0
      %v7548 = vadd.f32 0.0, %v7547
      %7549 = vmatmul.bf16.gmra.mxu0 %v7352
      %v7550 = vpop.f32.mrf.mxu0
      %v7551 = vadd.f32 0.0, %v7550
      %v7552 = vpop.f32.mrf.mxu0
      %v7553 = vadd.f32 0.0, %v7552
      %7554 = vmatmul.bf16.gmra.mxu0 %v7355
      %v7555 = vpop.f32.mrf.mxu0
      %v7556 = vadd.f32 0.0, %v7555
      %v7557 = vpop.f32.mrf.mxu0
      %v7558 = vadd.f32 0.0, %v7557
      %7559 = vmatmul.bf16.gmra.mxu0 %v7358
      %v7560 = vpop.f32.mrf.mxu0
      %v7561 = vadd.f32 0.0, %v7560
      %v7562 = vpop.f32.mrf.mxu0
      %v7563 = vadd.f32 0.0, %v7562
      %7564 = vmatmul.bf16.gmra.mxu0 %v7361
      %v7565 = vpop.f32.mrf.mxu0
      %v7566 = vadd.f32 0.0, %v7565
      %v7567 = vpop.f32.mrf.mxu0
      %v7568 = vadd.f32 0.0, %v7567
      %7569 = vmatmul.bf16.gmra.mxu0 %v7364
      %v7570 = vpop.f32.mrf.mxu0
      %v7571 = vadd.f32 0.0, %v7570
      %v7572 = vpop.f32.mrf.mxu0
      %v7573 = vadd.f32 0.0, %v7572
      %7574 = vdwg.mxu0
      %7575 = vmatpush.bf16.msra.mxu0 0
      %7576 = vmatpush.bf16.msra.mxu0 0
      %7577 = vmatpush.bf16.msra.mxu0 0
      %7578 = vmatpush.bf16.msra.mxu0 0
      %7579 = vmatpush.bf16.msra.mxu0 0
      %7580 = vmatpush.bf16.msra.mxu0 0
      %7581 = vmatpush.bf16.msra.mxu0 0
      %7582 = vmatpush.bf16.msra.mxu0 %v7428
      %7583 = vmatmul.bf16.gmra.mxu0 %v7439
      %v7584 = vpop.f32.mrf.mxu0
      %v7585 = vadd.f32 %v7496, %v7584
      %v7586 = vpop.f32.mrf.mxu0
      %v7587 = vadd.f32 %v7498, %v7586
      %7588 = vmatmul.bf16.gmra.mxu0 %v7442
      %v7589 = vpop.f32.mrf.mxu0
      %v7590 = vadd.f32 %v7501, %v7589
      %v7591 = vpop.f32.mrf.mxu0
      %v7592 = vadd.f32 %v7503, %v7591
      %7593 = vmatmul.bf16.gmra.mxu0 %v7445
      %v7594 = vpop.f32.mrf.mxu0
      %v7595 = vadd.f32 %v7506, %v7594
      %v7596 = vpop.f32.mrf.mxu0
      %v7597 = vadd.f32 %v7508, %v7596
      %7598 = vmatmul.bf16.gmra.mxu0 %v7448
      %v7599 = vpop.f32.mrf.mxu0
      %v7600 = vadd.f32 %v7511, %v7599
      %v7601 = vpop.f32.mrf.mxu0
      %v7602 = vadd.f32 %v7513, %v7601
      %7603 = vmatmul.bf16.gmra.mxu0 %v7451
      %v7604 = vpop.f32.mrf.mxu0
      %v7605 = vadd.f32 %v7516, %v7604
      %v7606 = vpop.f32.mrf.mxu0
      %v7607 = vadd.f32 %v7518, %v7606
      %7608 = vmatmul.bf16.gmra.mxu0 %v7454
      %v7609 = vpop.f32.mrf.mxu0
      %v7610 = vadd.f32 %v7521, %v7609
      %v7611 = vpop.f32.mrf.mxu0
      %v7612 = vadd.f32 %v7523, %v7611
      %7613 = vmatmul.bf16.gmra.mxu0 %v7457
      %v7614 = vpop.f32.mrf.mxu0
      %v7615 = vadd.f32 %v7526, %v7614
      %v7616 = vpop.f32.mrf.mxu0
      %v7617 = vadd.f32 %v7528, %v7616
      %7618 = vmatmul.bf16.gmra.mxu0 %v7460
      %v7619 = vpop.f32.mrf.mxu0
      %v7620 = vadd.f32 %v7531, %v7619
      %v7621 = vpop.f32.mrf.mxu0
      %v7622 = vadd.f32 %v7533, %v7621
      %7623 = vmatmul.bf16.gmra.mxu0 %v7463
      %v7624 = vpop.f32.mrf.mxu0
      %v7625 = vadd.f32 %v7536, %v7624
      %v7626 = vpop.f32.mrf.mxu0
      %v7627 = vadd.f32 %v7538, %v7626
      %7628 = vmatmul.bf16.gmra.mxu0 %v7466
      %v7629 = vpop.f32.mrf.mxu0
      %v7630 = vadd.f32 %v7541, %v7629
      %v7631 = vpop.f32.mrf.mxu0
      %v7632 = vadd.f32 %v7543, %v7631
      %7633 = vmatmul.bf16.gmra.mxu0 %v7469
      %v7634 = vpop.f32.mrf.mxu0
      %v7635 = vadd.f32 %v7546, %v7634
      %v7636 = vpop.f32.mrf.mxu0
      %v7637 = vadd.f32 %v7548, %v7636
      %7638 = vmatmul.bf16.gmra.mxu0 %v7472
      %v7639 = vpop.f32.mrf.mxu0
      %v7640 = vadd.f32 %v7551, %v7639
      %v7641 = vpop.f32.mrf.mxu0
      %v7642 = vadd.f32 %v7553, %v7641
      %7643 = vmatmul.bf16.gmra.mxu0 %v7475
      %v7644 = vpop.f32.mrf.mxu0
      %v7645 = vadd.f32 %v7556, %v7644
      %v7646 = vpop.f32.mrf.mxu0
      %v7647 = vadd.f32 %v7558, %v7646
      %7648 = vmatmul.bf16.gmra.mxu0 %v7478
      %v7649 = vpop.f32.mrf.mxu0
      %v7650 = vadd.f32 %v7561, %v7649
      %v7651 = vpop.f32.mrf.mxu0
      %v7652 = vadd.f32 %v7563, %v7651
      %7653 = vmatmul.bf16.gmra.mxu0 %v7481
      %v7654 = vpop.f32.mrf.mxu0
      %v7655 = vadd.f32 %v7566, %v7654
      %v7656 = vpop.f32.mrf.mxu0
      %v7657 = vadd.f32 %v7568, %v7656
      %7658 = vmatmul.bf16.gmra.mxu0 %v7484
      %v7659 = vpop.f32.mrf.mxu0
      %v7660 = vadd.f32 %v7571, %v7659
      %v7661 = vpop.f32.mrf.mxu0
      %v7662 = vadd.f32 %v7573, %v7661
      %7663 = vdwg.mxu0
      %v7664 = vld [vmem:[%s29] sm:$0x1]
      %v7666 = vperm.slane %v7664, 0
      %v7668 = vmul.f32 %v7585, %v7666
      %v7669 = vmul.f32 %v7587, %v7666
      %v7670 = vmul.f32 %v7590, %v7666
      %v7671 = vmul.f32 %v7592, %v7666
      %v7672 = vmul.f32 %v7595, %v7666
      %v7673 = vmul.f32 %v7597, %v7666
      %v7674 = vmul.f32 %v7600, %v7666
      %v7675 = vmul.f32 %v7602, %v7666
      %v7676 = vmul.f32 %v7605, %v7666
      %v7677 = vmul.f32 %v7607, %v7666
      %v7678 = vmul.f32 %v7610, %v7666
      %v7679 = vmul.f32 %v7612, %v7666
      %v7680 = vmul.f32 %v7615, %v7666
      %v7681 = vmul.f32 %v7617, %v7666
      %v7682 = vmul.f32 %v7620, %v7666
      %v7683 = vmul.f32 %v7622, %v7666
      %v7684 = vmul.f32 %v7625, %v7666
      %v7685 = vmul.f32 %v7627, %v7666
      %v7686 = vmul.f32 %v7630, %v7666
      %v7687 = vmul.f32 %v7632, %v7666
      %v7688 = vmul.f32 %v7635, %v7666
      %v7689 = vmul.f32 %v7637, %v7666
      %v7690 = vmul.f32 %v7640, %v7666
      %v7691 = vmul.f32 %v7642, %v7666
      %v7692 = vmul.f32 %v7645, %v7666
      %v7693 = vmul.f32 %v7647, %v7666
      %v7694 = vmul.f32 %v7650, %v7666
      %v7695 = vmul.f32 %v7652, %v7666
      %v7696 = vmul.f32 %v7655, %v7666
      %v7697 = vmul.f32 %v7657, %v7666
      %v7698 = vmul.f32 %v7660, %v7666
      %v7699 = vmul.f32 %v7662, %v7666
      %v7700 = vld [vmem:[%s31] sm:$0x1]
      %v7702 = vperm.slane %v7700, 0
      %v7704 = vadd.f32 %v7668, %v7702
      %v7705 = vadd.f32 %v7669, %v7702
      %v7706 = vadd.f32 %v7670, %v7702
      %v7707 = vadd.f32 %v7671, %v7702
      %v7708 = vadd.f32 %v7672, %v7702
      %v7709 = vadd.f32 %v7673, %v7702
      %v7710 = vadd.f32 %v7674, %v7702
      %v7711 = vadd.f32 %v7675, %v7702
      %v7712 = vadd.f32 %v7676, %v7702
      %v7713 = vadd.f32 %v7677, %v7702
      %v7714 = vadd.f32 %v7678, %v7702
      %v7715 = vadd.f32 %v7679, %v7702
      %v7716 = vadd.f32 %v7680, %v7702
      %v7717 = vadd.f32 %v7681, %v7702
      %v7718 = vadd.f32 %v7682, %v7702
      %v7719 = vadd.f32 %v7683, %v7702
      %v7720 = vadd.f32 %v7684, %v7702
      %v7721 = vadd.f32 %v7685, %v7702
      %v7722 = vadd.f32 %v7686, %v7702
      %v7723 = vadd.f32 %v7687, %v7702
      %v7724 = vadd.f32 %v7688, %v7702
      %v7725 = vadd.f32 %v7689, %v7702
      %v7726 = vadd.f32 %v7690, %v7702
      %v7727 = vadd.f32 %v7691, %v7702
      %v7728 = vadd.f32 %v7692, %v7702
      %v7729 = vadd.f32 %v7693, %v7702
      %v7730 = vadd.f32 %v7694, %v7702
      %v7731 = vadd.f32 %v7695, %v7702
      %v7732 = vadd.f32 %v7696, %v7702
      %v7733 = vadd.f32 %v7697, %v7702
      %v7734 = vadd.f32 %v7698, %v7702
      %v7735 = vadd.f32 %v7699, %v7702
      %v7736 = vld [vmem:[%s33] sm:$0xf]
      %v7737 = vsel %vm1740, %v5116, 0
      %v7739 = vsel %vm1740, %v5117, 0
      %v7741 = vsel %vm1740, %v5118, 0
      %v7743 = vsel %vm1740, %v5119, 0
      %v7745 = vsel %vm1740, %v5120, 0
      %v7747 = vsel %vm1740, %v5121, 0
      %v7749 = vsel %vm1740, %v5122, 0
      %v7751 = vsel %vm1740, %v5123, 0
      %v7753 = vsel %vm1740, %v5124, 0
      %v7755 = vsel %vm1740, %v5125, 0
      %v7757 = vsel %vm1740, %v5126, 0
      %v7759 = vsel %vm1740, %v5127, 0
      %v7761 = vsel %vm1740, %v5128, 0
      %v7763 = vsel %vm1740, %v5129, 0
      %v7765 = vsel %vm1740, %v5130, 0
      %v7767 = vsel %vm1740, %v5131, 0
      %v7770 = vsel %vm2073, %v7736, 0
      %7772 = vmatpush.bf16.msra.mxu0 0
      %7773 = vmatpush.bf16.msra.mxu0 0
      %7774 = vmatpush.bf16.msra.mxu0 0
      %7775 = vmatpush.bf16.msra.mxu0 0
      %7776 = vmatpush.bf16.msra.mxu0 0
      %7777 = vmatpush.bf16.msra.mxu0 0
      %7778 = vmatpush.bf16.msra.mxu0 0
      %7779 = vmatpush.bf16.msra.mxu0 %v7770
      %7780 = vmatmul.bf16.gmra.mxu0 %v7737
      %v7781 = vpop.f32.mrf.mxu0
      %v7782 = vadd.f32 0.0, %v7781
      %v7783 = vpop.f32.mrf.mxu0
      %v7784 = vadd.f32 0.0, %v7783
      %7785 = vmatmul.bf16.gmra.mxu0 %v7739
      %v7786 = vpop.f32.mrf.mxu0
      %v7787 = vadd.f32 0.0, %v7786
      %v7788 = vpop.f32.mrf.mxu0
      %v7789 = vadd.f32 0.0, %v7788
      %7790 = vmatmul.bf16.gmra.mxu0 %v7741
      %v7791 = vpop.f32.mrf.mxu0
      %v7792 = vadd.f32 0.0, %v7791
      %v7793 = vpop.f32.mrf.mxu0
      %v7794 = vadd.f32 0.0, %v7793
      %7795 = vmatmul.bf16.gmra.mxu0 %v7743
      %v7796 = vpop.f32.mrf.mxu0
      %v7797 = vadd.f32 0.0, %v7796
      %v7798 = vpop.f32.mrf.mxu0
      %v7799 = vadd.f32 0.0, %v7798
      %7800 = vmatmul.bf16.gmra.mxu0 %v7745
      %v7801 = vpop.f32.mrf.mxu0
      %v7802 = vadd.f32 0.0, %v7801
      %v7803 = vpop.f32.mrf.mxu0
      %v7804 = vadd.f32 0.0, %v7803
      %7805 = vmatmul.bf16.gmra.mxu0 %v7747
      %v7806 = vpop.f32.mrf.mxu0
      %v7807 = vadd.f32 0.0, %v7806
      %v7808 = vpop.f32.mrf.mxu0
      %v7809 = vadd.f32 0.0, %v7808
      %7810 = vmatmul.bf16.gmra.mxu0 %v7749
      %v7811 = vpop.f32.mrf.mxu0
      %v7812 = vadd.f32 0.0, %v7811
      %v7813 = vpop.f32.mrf.mxu0
      %v7814 = vadd.f32 0.0, %v7813
      %7815 = vmatmul.bf16.gmra.mxu0 %v7751
      %v7816 = vpop.f32.mrf.mxu0
      %v7817 = vadd.f32 0.0, %v7816
      %v7818 = vpop.f32.mrf.mxu0
      %v7819 = vadd.f32 0.0, %v7818
      %7820 = vmatmul.bf16.gmra.mxu0 %v7753
      %v7821 = vpop.f32.mrf.mxu0
      %v7822 = vadd.f32 0.0, %v7821
      %v7823 = vpop.f32.mrf.mxu0
      %v7824 = vadd.f32 0.0, %v7823
      %7825 = vmatmul.bf16.gmra.mxu0 %v7755
      %v7826 = vpop.f32.mrf.mxu0
      %v7827 = vadd.f32 0.0, %v7826
      %v7828 = vpop.f32.mrf.mxu0
      %v7829 = vadd.f32 0.0, %v7828
      %7830 = vmatmul.bf16.gmra.mxu0 %v7757
      %v7831 = vpop.f32.mrf.mxu0
      %v7832 = vadd.f32 0.0, %v7831
      %v7833 = vpop.f32.mrf.mxu0
      %v7834 = vadd.f32 0.0, %v7833
      %7835 = vmatmul.bf16.gmra.mxu0 %v7759
      %v7836 = vpop.f32.mrf.mxu0
      %v7837 = vadd.f32 0.0, %v7836
      %v7838 = vpop.f32.mrf.mxu0
      %v7839 = vadd.f32 0.0, %v7838
      %7840 = vmatmul.bf16.gmra.mxu0 %v7761
      %v7841 = vpop.f32.mrf.mxu0
      %v7842 = vadd.f32 0.0, %v7841
      %v7843 = vpop.f32.mrf.mxu0
      %v7844 = vadd.f32 0.0, %v7843
      %7845 = vmatmul.bf16.gmra.mxu0 %v7763
      %v7846 = vpop.f32.mrf.mxu0
      %v7847 = vadd.f32 0.0, %v7846
      %v7848 = vpop.f32.mrf.mxu0
      %v7849 = vadd.f32 0.0, %v7848
      %7850 = vmatmul.bf16.gmra.mxu0 %v7765
      %v7851 = vpop.f32.mrf.mxu0
      %v7852 = vadd.f32 0.0, %v7851
      %v7853 = vpop.f32.mrf.mxu0
      %v7854 = vadd.f32 0.0, %v7853
      %7855 = vmatmul.bf16.gmra.mxu0 %v7767
      %v7856 = vpop.f32.mrf.mxu0
      %v7857 = vadd.f32 0.0, %v7856
      %v7858 = vpop.f32.mrf.mxu0
      %v7859 = vadd.f32 0.0, %v7858
      %7860 = vdwg.mxu0
      %v7861 = vld [vmem:[%s35] sm:$0x1]
      %v7863 = vperm.slane %v7861, 0
      %v7865 = vmul.f32 %v7782, %v7863
      %v7866 = vmul.f32 %v7784, %v7863
      %v7867 = vmul.f32 %v7787, %v7863
      %v7868 = vmul.f32 %v7789, %v7863
      %v7869 = vmul.f32 %v7792, %v7863
      %v7870 = vmul.f32 %v7794, %v7863
      %v7871 = vmul.f32 %v7797, %v7863
      %v7872 = vmul.f32 %v7799, %v7863
      %v7873 = vmul.f32 %v7802, %v7863
      %v7874 = vmul.f32 %v7804, %v7863
      %v7875 = vmul.f32 %v7807, %v7863
      %v7876 = vmul.f32 %v7809, %v7863
      %v7877 = vmul.f32 %v7812, %v7863
      %v7878 = vmul.f32 %v7814, %v7863
      %v7879 = vmul.f32 %v7817, %v7863
      %v7880 = vmul.f32 %v7819, %v7863
      %v7881 = vmul.f32 %v7822, %v7863
      %v7882 = vmul.f32 %v7824, %v7863
      %v7883 = vmul.f32 %v7827, %v7863
      %v7884 = vmul.f32 %v7829, %v7863
      %v7885 = vmul.f32 %v7832, %v7863
      %v7886 = vmul.f32 %v7834, %v7863
      %v7887 = vmul.f32 %v7837, %v7863
      %v7888 = vmul.f32 %v7839, %v7863
      %v7889 = vmul.f32 %v7842, %v7863
      %v7890 = vmul.f32 %v7844, %v7863
      %v7891 = vmul.f32 %v7847, %v7863
      %v7892 = vmul.f32 %v7849, %v7863
      %v7893 = vmul.f32 %v7852, %v7863
      %v7894 = vmul.f32 %v7854, %v7863
      %v7895 = vmul.f32 %v7857, %v7863
      %v7896 = vmul.f32 %v7859, %v7863
      %v7897 = vld [vmem:[%s37] sm:$0x1]
      %v7899 = vperm.slane %v7897, 0
      %v7901 = vadd.f32 %v7865, %v7899
      %v7902 = vadd.f32 %v7866, %v7899
      %v7903 = vadd.f32 %v7867, %v7899
      %v7904 = vadd.f32 %v7868, %v7899
      %v7905 = vadd.f32 %v7869, %v7899
      %v7906 = vadd.f32 %v7870, %v7899
      %v7907 = vadd.f32 %v7871, %v7899
      %v7908 = vadd.f32 %v7872, %v7899
      %v7909 = vadd.f32 %v7873, %v7899
      %v7910 = vadd.f32 %v7874, %v7899
      %v7911 = vadd.f32 %v7875, %v7899
      %v7912 = vadd.f32 %v7876, %v7899
      %v7913 = vadd.f32 %v7877, %v7899
      %v7914 = vadd.f32 %v7878, %v7899
      %v7915 = vadd.f32 %v7879, %v7899
      %v7916 = vadd.f32 %v7880, %v7899
      %v7917 = vadd.f32 %v7881, %v7899
      %v7918 = vadd.f32 %v7882, %v7899
      %v7919 = vadd.f32 %v7883, %v7899
      %v7920 = vadd.f32 %v7884, %v7899
      %v7921 = vadd.f32 %v7885, %v7899
      %v7922 = vadd.f32 %v7886, %v7899
      %v7923 = vadd.f32 %v7887, %v7899
      %v7924 = vadd.f32 %v7888, %v7899
      %v7925 = vadd.f32 %v7889, %v7899
      %v7926 = vadd.f32 %v7890, %v7899
      %v7927 = vadd.f32 %v7891, %v7899
      %v7928 = vadd.f32 %v7892, %v7899
      %v7929 = vadd.f32 %v7893, %v7899
      %v7930 = vadd.f32 %v7894, %v7899
      %v7931 = vadd.f32 %v7895, %v7899
      %v7932 = vadd.f32 %v7896, %v7899
      %v7933 = vadd.f32 %v7704, %v7901
      %v7934 = vadd.f32 %v7705, %v7902
      %v7935 = vadd.f32 %v7706, %v7903
      %v7936 = vadd.f32 %v7707, %v7904
      %v7937 = vadd.f32 %v7708, %v7905
      %v7938 = vadd.f32 %v7709, %v7906
      %v7939 = vadd.f32 %v7710, %v7907
      %v7940 = vadd.f32 %v7711, %v7908
      %v7941 = vadd.f32 %v7712, %v7909
      %v7942 = vadd.f32 %v7713, %v7910
      %v7943 = vadd.f32 %v7714, %v7911
      %v7944 = vadd.f32 %v7715, %v7912
      %v7945 = vadd.f32 %v7716, %v7913
      %v7946 = vadd.f32 %v7717, %v7914
      %v7947 = vadd.f32 %v7718, %v7915
      %v7948 = vadd.f32 %v7719, %v7916
      %v7949 = vadd.f32 %v7720, %v7917
      %v7950 = vadd.f32 %v7721, %v7918
      %v7951 = vadd.f32 %v7722, %v7919
      %v7952 = vadd.f32 %v7723, %v7920
      %v7953 = vadd.f32 %v7724, %v7921
      %v7954 = vadd.f32 %v7725, %v7922
      %v7955 = vadd.f32 %v7726, %v7923
      %v7956 = vadd.f32 %v7727, %v7924
      %v7957 = vadd.f32 %v7728, %v7925
      %v7958 = vadd.f32 %v7729, %v7926
      %v7959 = vadd.f32 %v7730, %v7927
      %v7960 = vadd.f32 %v7731, %v7928
      %v7961 = vadd.f32 %v7732, %v7929
      %v7962 = vadd.f32 %v7733, %v7930
      %v7963 = vadd.f32 %v7734, %v7931
      %v7964 = vadd.f32 %v7735, %v7932
      %v7965 = vmax.f32 %v7933, 0.0
      %v7966 = vmax.f32 %v7934, 0.0
      %v7967 = vmax.f32 %v7935, 0.0
      %v7968 = vmax.f32 %v7936, 0.0
      %v7969 = vmax.f32 %v7937, 0.0
      %v7970 = vmax.f32 %v7938, 0.0
      %v7971 = vmax.f32 %v7939, 0.0
      %v7972 = vmax.f32 %v7940, 0.0
      %v7973 = vmax.f32 %v7941, 0.0
      %v7974 = vmax.f32 %v7942, 0.0
      %v7975 = vmax.f32 %v7943, 0.0
      %v7976 = vmax.f32 %v7944, 0.0
      %v7977 = vmax.f32 %v7945, 0.0
      %v7978 = vmax.f32 %v7946, 0.0
      %v7979 = vmax.f32 %v7947, 0.0
      %v7980 = vmax.f32 %v7948, 0.0
      %v7981 = vmax.f32 %v7949, 0.0
      %v7982 = vmax.f32 %v7950, 0.0
      %v7983 = vmax.f32 %v7951, 0.0
      %v7984 = vmax.f32 %v7952, 0.0
      %v7985 = vmax.f32 %v7953, 0.0
      %v7986 = vmax.f32 %v7954, 0.0
      %v7987 = vmax.f32 %v7955, 0.0
      %v7988 = vmax.f32 %v7956, 0.0
      %v7989 = vmax.f32 %v7957, 0.0
      %v7990 = vmax.f32 %v7958, 0.0
      %v7991 = vmax.f32 %v7959, 0.0
      %v7992 = vmax.f32 %v7960, 0.0
      %v7993 = vmax.f32 %v7961, 0.0
      %v7994 = vmax.f32 %v7962, 0.0
      %v7995 = vmax.f32 %v7963, 0.0
      %v7996 = vmax.f32 %v7964, 0.0
      %v7997 = vpack.c.bf16 %v7965, %v7965
      %v7998 = vpack.c.bf16 %v7966, %v7966
      %v7999 = vpack.c.bf16 %v7967, %v7967
      %v8000 = vpack.c.bf16 %v7968, %v7968
      %v8001 = vpack.c.bf16 %v7969, %v7969
      %v8002 = vpack.c.bf16 %v7970, %v7970
      %v8003 = vpack.c.bf16 %v7971, %v7971
      %v8004 = vpack.c.bf16 %v7972, %v7972
      %v8005 = vpack.c.bf16 %v7973, %v7973
      %v8006 = vpack.c.bf16 %v7974, %v7974
      %v8007 = vpack.c.bf16 %v7975, %v7975
      %v8008 = vpack.c.bf16 %v7976, %v7976
      %v8009 = vpack.c.bf16 %v7977, %v7977
      %v8010 = vpack.c.bf16 %v7978, %v7978
      %v8011 = vpack.c.bf16 %v7979, %v7979
      %v8012 = vpack.c.bf16 %v7980, %v7980
      %v8013 = vpack.c.bf16 %v7981, %v7981
      %v8014 = vpack.c.bf16 %v7982, %v7982
      %v8015 = vpack.c.bf16 %v7983, %v7983
      %v8016 = vpack.c.bf16 %v7984, %v7984
      %v8017 = vpack.c.bf16 %v7985, %v7985
      %v8018 = vpack.c.bf16 %v7986, %v7986
      %v8019 = vpack.c.bf16 %v7987, %v7987
      %v8020 = vpack.c.bf16 %v7988, %v7988
      %v8021 = vpack.c.bf16 %v7989, %v7989
      %v8022 = vpack.c.bf16 %v7990, %v7990
      %v8023 = vpack.c.bf16 %v7991, %v7991
      %v8024 = vpack.c.bf16 %v7992, %v7992
      %v8025 = vpack.c.bf16 %v7993, %v7993
      %v8026 = vpack.c.bf16 %v7994, %v7994
      %v8027 = vpack.c.bf16 %v7995, %v7995
      %v8028 = vpack.c.bf16 %v7996, %v7996
      %v8061 = vunpack.c.l.b16 %v7997
      %v8062 = vunpack.c.l.b16 %v7998
      %v8063 = vunpack.c.l.b16 %v7999
      %v8064 = vunpack.c.l.b16 %v8000
      %v8065 = vunpack.c.l.b16 %v8001
      %v8066 = vunpack.c.l.b16 %v8002
      %v8067 = vunpack.c.l.b16 %v8003
      %v8068 = vunpack.c.l.b16 %v8004
      %v8069 = vunpack.c.l.b16 %v8005
      %v8070 = vunpack.c.l.b16 %v8006
      %v8071 = vunpack.c.l.b16 %v8007
      %v8072 = vunpack.c.l.b16 %v8008
      %v8073 = vunpack.c.l.b16 %v8009
      %v8074 = vunpack.c.l.b16 %v8010
      %v8075 = vunpack.c.l.b16 %v8011
      %v8076 = vunpack.c.l.b16 %v8012
      %v8077 = vunpack.c.l.b16 %v8013
      %v8078 = vunpack.c.l.b16 %v8014
      %v8079 = vunpack.c.l.b16 %v8015
      %v8080 = vunpack.c.l.b16 %v8016
      %v8081 = vunpack.c.l.b16 %v8017
      %v8082 = vunpack.c.l.b16 %v8018
      %v8083 = vunpack.c.l.b16 %v8019
      %v8084 = vunpack.c.l.b16 %v8020
      %v8085 = vunpack.c.l.b16 %v8021
      %v8086 = vunpack.c.l.b16 %v8022
      %v8087 = vunpack.c.l.b16 %v8023
      %v8088 = vunpack.c.l.b16 %v8024
      %v8089 = vunpack.c.l.b16 %v8025
      %v8090 = vunpack.c.l.b16 %v8026
      %v8091 = vunpack.c.l.b16 %v8027
      %v8092 = vunpack.c.l.b16 %v8028
      %v8093 = vpack.c.b16 %v8062, %v8061
      %v8094 = vpack.c.b16 %v8064, %v8063
      %v8095 = vpack.c.b16 %v8066, %v8065
      %v8096 = vpack.c.b16 %v8068, %v8067
      %v8097 = vpack.c.b16 %v8070, %v8069
      %v8098 = vpack.c.b16 %v8072, %v8071
      %v8099 = vpack.c.b16 %v8074, %v8073
      %v8100 = vpack.c.b16 %v8076, %v8075
      %v8101 = vpack.c.b16 %v8078, %v8077
      %v8102 = vpack.c.b16 %v8080, %v8079
      %v8103 = vpack.c.b16 %v8082, %v8081
      %v8104 = vpack.c.b16 %v8084, %v8083
      %v8105 = vpack.c.b16 %v8086, %v8085
      %v8106 = vpack.c.b16 %v8088, %v8087
      %v8107 = vpack.c.b16 %v8090, %v8089
      %v8108 = vpack.c.b16 %v8092, %v8091
      %v8110 = vshrl.u32 %v8093, 16
      %v8112 = vrot.slane %v8110, 7
      %v8113 = vshll.u32 %v8093, 16
      %v8115 = vor.u32 %v8112, %v8113
      %v8117 = vshrl.u32 %v8094, 16
      %v8119 = vrot.slane %v8117, 7
      %v8120 = vshll.u32 %v8094, 16
      %v8122 = vor.u32 %v8119, %v8120
      %v8124 = vshrl.u32 %v8095, 16
      %v8126 = vrot.slane %v8124, 7
      %v8127 = vshll.u32 %v8095, 16
      %v8129 = vor.u32 %v8126, %v8127
      %v8131 = vshrl.u32 %v8096, 16
      %v8133 = vrot.slane %v8131, 7
      %v8134 = vshll.u32 %v8096, 16
      %v8136 = vor.u32 %v8133, %v8134
      %v8138 = vshrl.u32 %v8097, 16
      %v8140 = vrot.slane %v8138, 7
      %v8141 = vshll.u32 %v8097, 16
      %v8143 = vor.u32 %v8140, %v8141
      %v8145 = vshrl.u32 %v8098, 16
      %v8147 = vrot.slane %v8145, 7
      %v8148 = vshll.u32 %v8098, 16
      %v8150 = vor.u32 %v8147, %v8148
      %v8152 = vshrl.u32 %v8099, 16
      %v8154 = vrot.slane %v8152, 7
      %v8155 = vshll.u32 %v8099, 16
      %v8157 = vor.u32 %v8154, %v8155
      %v8159 = vshrl.u32 %v8100, 16
      %v8161 = vrot.slane %v8159, 7
      %v8162 = vshll.u32 %v8100, 16
      %v8164 = vor.u32 %v8161, %v8162
      %v8166 = vshrl.u32 %v8101, 16
      %v8168 = vrot.slane %v8166, 7
      %v8169 = vshll.u32 %v8101, 16
      %v8171 = vor.u32 %v8168, %v8169
      %v8173 = vshrl.u32 %v8102, 16
      %v8175 = vrot.slane %v8173, 7
      %v8176 = vshll.u32 %v8102, 16
      %v8178 = vor.u32 %v8175, %v8176
      %v8180 = vshrl.u32 %v8103, 16
      %v8182 = vrot.slane %v8180, 7
      %v8183 = vshll.u32 %v8103, 16
      %v8185 = vor.u32 %v8182, %v8183
      %v8187 = vshrl.u32 %v8104, 16
      %v8189 = vrot.slane %v8187, 7
      %v8190 = vshll.u32 %v8104, 16
      %v8192 = vor.u32 %v8189, %v8190
      %v8194 = vshrl.u32 %v8105, 16
      %v8196 = vrot.slane %v8194, 7
      %v8197 = vshll.u32 %v8105, 16
      %v8199 = vor.u32 %v8196, %v8197
      %v8201 = vshrl.u32 %v8106, 16
      %v8203 = vrot.slane %v8201, 7
      %v8204 = vshll.u32 %v8106, 16
      %v8206 = vor.u32 %v8203, %v8204
      %v8208 = vshrl.u32 %v8107, 16
      %v8210 = vrot.slane %v8208, 7
      %v8211 = vshll.u32 %v8107, 16
      %v8213 = vor.u32 %v8210, %v8211
      %v8215 = vshrl.u32 %v8108, 16
      %v8217 = vrot.slane %v8215, 7
      %v8218 = vshll.u32 %v8108, 16
      %v8220 = vor.u32 %v8217, %v8218
      %v8253 = vsel %vm2537, 0, %v8115
      %v8254 = vsel %vm2537, 0, %v8122
      %v8255 = vsel %vm2537, 0, %v8129
      %v8256 = vsel %vm2537, 0, %v8136
      %v8257 = vsel %vm2537, 0, %v8143
      %v8258 = vsel %vm2537, 0, %v8150
      %v8259 = vsel %vm2537, 0, %v8157
      %v8260 = vsel %vm2537, 0, %v8164
      %v8261 = vsel %vm2537, 0, %v8171
      %v8262 = vsel %vm2537, 0, %v8178
      %v8263 = vsel %vm2537, 0, %v8185
      %v8264 = vsel %vm2537, 0, %v8192
      %v8265 = vsel %vm2537, 0, %v8199
      %v8266 = vsel %vm2537, 0, %v8206
      %v8267 = vsel %vm2537, 0, %v8213
      %v8268 = vsel %vm2537, 0, %v8220
      %v8269 = vsel %vm2537, %v8112, 0
      %v8270 = vsel %vm2537, %v8119, 0
      %v8271 = vsel %vm2537, %v8126, 0
      %v8272 = vsel %vm2537, %v8133, 0
      %v8273 = vsel %vm2537, %v8140, 0
      %v8274 = vsel %vm2537, %v8147, 0
      %v8275 = vsel %vm2537, %v8154, 0
      %v8276 = vsel %vm2537, %v8161, 0
      %v8277 = vsel %vm2537, %v8168, 0
      %v8278 = vsel %vm2537, %v8175, 0
      %v8279 = vsel %vm2537, %v8182, 0
      %v8280 = vsel %vm2537, %v8189, 0
      %v8281 = vsel %vm2537, %v8196, 0
      %v8282 = vsel %vm2537, %v8203, 0
      %v8283 = vsel %vm2537, %v8210, 0
      %v8284 = vsel %vm2537, %v8217, 0
      %v8286 = vshrl.u32 %v8253, 16
      %v8288 = vshll.u32 %v8253, 16
      %v8290 = vrot.slane %v8288, 1
      %v8291 = vor.u32 %v8286, %v8290
      %v8293 = vshll.u32 %v8269, 16
      %v8295 = vrot.slane %v8293, 1
      %v8296 = vsel %vm1196, %v8291, %v8295
      %v8298 = vshrl.u32 %v8254, 16
      %v8300 = vshll.u32 %v8254, 16
      %v8302 = vrot.slane %v8300, 1
      %v8303 = vor.u32 %v8298, %v8302
      %v8305 = vshll.u32 %v8270, 16
      %v8307 = vrot.slane %v8305, 1
      %v8308 = vsel %vm1196, %v8303, %v8307
      %v8310 = vshrl.u32 %v8255, 16
      %v8312 = vshll.u32 %v8255, 16
      %v8314 = vrot.slane %v8312, 1
      %v8315 = vor.u32 %v8310, %v8314
      %v8317 = vshll.u32 %v8271, 16
      %v8319 = vrot.slane %v8317, 1
      %v8320 = vsel %vm1196, %v8315, %v8319
      %v8322 = vshrl.u32 %v8256, 16
      %v8324 = vshll.u32 %v8256, 16
      %v8326 = vrot.slane %v8324, 1
      %v8327 = vor.u32 %v8322, %v8326
      %v8329 = vshll.u32 %v8272, 16
      %v8331 = vrot.slane %v8329, 1
      %v8332 = vsel %vm1196, %v8327, %v8331
      %v8334 = vshrl.u32 %v8257, 16
      %v8336 = vshll.u32 %v8257, 16
      %v8338 = vrot.slane %v8336, 1
      %v8339 = vor.u32 %v8334, %v8338
      %v8341 = vshll.u32 %v8273, 16
      %v8343 = vrot.slane %v8341, 1
      %v8344 = vsel %vm1196, %v8339, %v8343
      %v8346 = vshrl.u32 %v8258, 16
      %v8348 = vshll.u32 %v8258, 16
      %v8350 = vrot.slane %v8348, 1
      %v8351 = vor.u32 %v8346, %v8350
      %v8353 = vshll.u32 %v8274, 16
      %v8355 = vrot.slane %v8353, 1
      %v8356 = vsel %vm1196, %v8351, %v8355
      %v8358 = vshrl.u32 %v8259, 16
      %v8360 = vshll.u32 %v8259, 16
      %v8362 = vrot.slane %v8360, 1
      %v8363 = vor.u32 %v8358, %v8362
      %v8365 = vshll.u32 %v8275, 16
      %v8367 = vrot.slane %v8365, 1
      %v8368 = vsel %vm1196, %v8363, %v8367
      %v8370 = vshrl.u32 %v8260, 16
      %v8372 = vshll.u32 %v8260, 16
      %v8374 = vrot.slane %v8372, 1
      %v8375 = vor.u32 %v8370, %v8374
      %v8377 = vshll.u32 %v8276, 16
      %v8379 = vrot.slane %v8377, 1
      %v8380 = vsel %vm1196, %v8375, %v8379
      %v8382 = vshrl.u32 %v8261, 16
      %v8384 = vshll.u32 %v8261, 16
      %v8386 = vrot.slane %v8384, 1
      %v8387 = vor.u32 %v8382, %v8386
      %v8389 = vshll.u32 %v8277, 16
      %v8391 = vrot.slane %v8389, 1
      %v8392 = vsel %vm1196, %v8387, %v8391
      %v8394 = vshrl.u32 %v8262, 16
      %v8396 = vshll.u32 %v8262, 16
      %v8398 = vrot.slane %v8396, 1
      %v8399 = vor.u32 %v8394, %v8398
      %v8401 = vshll.u32 %v8278, 16
      %v8403 = vrot.slane %v8401, 1
      %v8404 = vsel %vm1196, %v8399, %v8403
      %v8406 = vshrl.u32 %v8263, 16
      %v8408 = vshll.u32 %v8263, 16
      %v8410 = vrot.slane %v8408, 1
      %v8411 = vor.u32 %v8406, %v8410
      %v8413 = vshll.u32 %v8279, 16
      %v8415 = vrot.slane %v8413, 1
      %v8416 = vsel %vm1196, %v8411, %v8415
      %v8418 = vshrl.u32 %v8264, 16
      %v8420 = vshll.u32 %v8264, 16
      %v8422 = vrot.slane %v8420, 1
      %v8423 = vor.u32 %v8418, %v8422
      %v8425 = vshll.u32 %v8280, 16
      %v8427 = vrot.slane %v8425, 1
      %v8428 = vsel %vm1196, %v8423, %v8427
      %v8430 = vshrl.u32 %v8265, 16
      %v8432 = vshll.u32 %v8265, 16
      %v8434 = vrot.slane %v8432, 1
      %v8435 = vor.u32 %v8430, %v8434
      %v8437 = vshll.u32 %v8281, 16
      %v8439 = vrot.slane %v8437, 1
      %v8440 = vsel %vm1196, %v8435, %v8439
      %v8442 = vshrl.u32 %v8266, 16
      %v8444 = vshll.u32 %v8266, 16
      %v8446 = vrot.slane %v8444, 1
      %v8447 = vor.u32 %v8442, %v8446
      %v8449 = vshll.u32 %v8282, 16
      %v8451 = vrot.slane %v8449, 1
      %v8452 = vsel %vm1196, %v8447, %v8451
      %v8454 = vshrl.u32 %v8267, 16
      %v8456 = vshll.u32 %v8267, 16
      %v8458 = vrot.slane %v8456, 1
      %v8459 = vor.u32 %v8454, %v8458
      %v8461 = vshll.u32 %v8283, 16
      %v8463 = vrot.slane %v8461, 1
      %v8464 = vsel %vm1196, %v8459, %v8463
      %8465 = vrot.lane.b32.xlu0 %v8296, 16
      %v8466 = vpop.permute.xlu0 %8465
      %8467 = vrot.lane.b32.xlu0 %v8308, 16
      %v8468 = vpop.permute.xlu0 %8467
      %8469 = vrot.lane.b32.xlu0 %v8320, 16
      %v8470 = vpop.permute.xlu0 %8469
      %8471 = vrot.lane.b32.xlu0 %v8332, 16
      %v8472 = vpop.permute.xlu0 %8471
      %8473 = vrot.lane.b32.xlu0 %v8344, 16
      %v8474 = vpop.permute.xlu0 %8473
      %8475 = vrot.lane.b32.xlu0 %v8356, 16
      %v8476 = vpop.permute.xlu0 %8475
      %8477 = vrot.lane.b32.xlu0 %v8368, 16
      %v8478 = vpop.permute.xlu0 %8477
      %8479 = vrot.lane.b32.xlu0 %v8380, 16
      %v8480 = vpop.permute.xlu0 %8479
      %8481 = vrot.lane.b32.xlu0 %v8392, 16
      %v8482 = vpop.permute.xlu0 %8481
      %8483 = vrot.lane.b32.xlu0 %v8404, 16
      %v8484 = vpop.permute.xlu0 %8483
      %8485 = vrot.lane.b32.xlu0 %v8416, 16
      %v8486 = vpop.permute.xlu0 %8485
      %8487 = vrot.lane.b32.xlu0 %v8428, 16
      %v8488 = vpop.permute.xlu0 %8487
      %8489 = vrot.lane.b32.xlu0 %v8440, 16
      %v8490 = vpop.permute.xlu0 %8489
      %8491 = vrot.lane.b32.xlu0 %v8452, 16
      %v8492 = vpop.permute.xlu0 %8491
      %8493 = vrot.lane.b32.xlu0 %v8464, 16
      %v8494 = vpop.permute.xlu0 %8493
      %v8525 = vrot.slane %v8253, 1
      %v8526 = vrot.slane %v8269, 1
      %v8527 = vsel %vm1421, %v8525, %v8526
      %v8528 = vrot.slane %v8254, 1
      %v8529 = vrot.slane %v8270, 1
      %v8530 = vsel %vm1421, %v8528, %v8529
      %v8531 = vrot.slane %v8255, 1
      %v8532 = vrot.slane %v8271, 1
      %v8533 = vsel %vm1421, %v8531, %v8532
      %v8534 = vrot.slane %v8256, 1
      %v8535 = vrot.slane %v8272, 1
      %v8536 = vsel %vm1421, %v8534, %v8535
      %v8537 = vrot.slane %v8257, 1
      %v8538 = vrot.slane %v8273, 1
      %v8539 = vsel %vm1421, %v8537, %v8538
      %v8540 = vrot.slane %v8258, 1
      %v8541 = vrot.slane %v8274, 1
      %v8542 = vsel %vm1421, %v8540, %v8541
      %v8543 = vrot.slane %v8259, 1
      %v8544 = vrot.slane %v8275, 1
      %v8545 = vsel %vm1421, %v8543, %v8544
      %v8546 = vrot.slane %v8260, 1
      %v8547 = vrot.slane %v8276, 1
      %v8548 = vsel %vm1421, %v8546, %v8547
      %v8549 = vrot.slane %v8261, 1
      %v8550 = vrot.slane %v8277, 1
      %v8551 = vsel %vm1421, %v8549, %v8550
      %v8552 = vrot.slane %v8262, 1
      %v8553 = vrot.slane %v8278, 1
      %v8554 = vsel %vm1421, %v8552, %v8553
      %v8555 = vrot.slane %v8263, 1
      %v8556 = vrot.slane %v8279, 1
      %v8557 = vsel %vm1421, %v8555, %v8556
      %v8558 = vrot.slane %v8264, 1
      %v8559 = vrot.slane %v8280, 1
      %v8560 = vsel %vm1421, %v8558, %v8559
      %v8561 = vrot.slane %v8265, 1
      %v8562 = vrot.slane %v8281, 1
      %v8563 = vsel %vm1421, %v8561, %v8562
      %v8564 = vrot.slane %v8266, 1
      %v8565 = vrot.slane %v8282, 1
      %v8566 = vsel %vm1421, %v8564, %v8565
      %v8567 = vrot.slane %v8267, 1
      %v8568 = vrot.slane %v8283, 1
      %v8569 = vsel %vm1421, %v8567, %v8568
      %8570 = vrot.lane.b32.xlu0 %v8527, 32
      %v8571 = vpop.permute.xlu0 %8570
      %8572 = vrot.lane.b32.xlu0 %v8530, 32
      %v8573 = vpop.permute.xlu0 %8572
      %8574 = vrot.lane.b32.xlu0 %v8533, 32
      %v8575 = vpop.permute.xlu0 %8574
      %8576 = vrot.lane.b32.xlu0 %v8536, 32
      %v8577 = vpop.permute.xlu0 %8576
      %8578 = vrot.lane.b32.xlu0 %v8539, 32
      %v8579 = vpop.permute.xlu0 %8578
      %8580 = vrot.lane.b32.xlu0 %v8542, 32
      %v8581 = vpop.permute.xlu0 %8580
      %8582 = vrot.lane.b32.xlu0 %v8545, 32
      %v8583 = vpop.permute.xlu0 %8582
      %8584 = vrot.lane.b32.xlu0 %v8548, 32
      %v8585 = vpop.permute.xlu0 %8584
      %8586 = vrot.lane.b32.xlu0 %v8551, 32
      %v8587 = vpop.permute.xlu0 %8586
      %8588 = vrot.lane.b32.xlu0 %v8554, 32
      %v8589 = vpop.permute.xlu0 %8588
      %8590 = vrot.lane.b32.xlu0 %v8557, 32
      %v8591 = vpop.permute.xlu0 %8590
      %8592 = vrot.lane.b32.xlu0 %v8560, 32
      %v8593 = vpop.permute.xlu0 %8592
      %8594 = vrot.lane.b32.xlu0 %v8563, 32
      %v8595 = vpop.permute.xlu0 %8594
      %8596 = vrot.lane.b32.xlu0 %v8566, 32
      %v8597 = vpop.permute.xlu0 %8596
      %8598 = vrot.lane.b32.xlu0 %v8569, 32
      %v8599 = vpop.permute.xlu0 %8598
      %8601 = vrot.lane.b32.xlu0 %v8253, 48
      %v8602 = vpop.permute.xlu0 %8601
      %8603 = vrot.lane.b32.xlu0 %v8254, 48
      %v8604 = vpop.permute.xlu0 %8603
      %8605 = vrot.lane.b32.xlu0 %v8255, 48
      %v8606 = vpop.permute.xlu0 %8605
      %8607 = vrot.lane.b32.xlu0 %v8256, 48
      %v8608 = vpop.permute.xlu0 %8607
      %8609 = vrot.lane.b32.xlu0 %v8257, 48
      %v8610 = vpop.permute.xlu0 %8609
      %8611 = vrot.lane.b32.xlu0 %v8258, 48
      %v8612 = vpop.permute.xlu0 %8611
      %8613 = vrot.lane.b32.xlu0 %v8259, 48
      %v8614 = vpop.permute.xlu0 %8613
      %8615 = vrot.lane.b32.xlu0 %v8260, 48
      %v8616 = vpop.permute.xlu0 %8615
      %8617 = vrot.lane.b32.xlu0 %v8261, 48
      %v8618 = vpop.permute.xlu0 %8617
      %8619 = vrot.lane.b32.xlu0 %v8262, 48
      %v8620 = vpop.permute.xlu0 %8619
      %8621 = vrot.lane.b32.xlu0 %v8263, 48
      %v8622 = vpop.permute.xlu0 %8621
      %8623 = vrot.lane.b32.xlu0 %v8264, 48
      %v8624 = vpop.permute.xlu0 %8623
      %8625 = vrot.lane.b32.xlu0 %v8265, 48
      %v8626 = vpop.permute.xlu0 %8625
      %8627 = vrot.lane.b32.xlu0 %v8266, 48
      %v8628 = vpop.permute.xlu0 %8627
      %8629 = vrot.lane.b32.xlu0 %v8267, 48
      %v8630 = vpop.permute.xlu0 %8629
      %8631 = vrot.lane.b32.xlu0 %v8268, 48
      %v8632 = vpop.permute.xlu0 %8631
      %v8634 = vshrl.u32 %v8268, 16
      %v8636 = vshll.u32 %v8268, 16
      %v8638 = vrot.slane %v8636, 1
      %v8639 = vor.u32 %v8634, %v8638
      %v8641 = vshll.u32 %v8284, 16
      %v8643 = vrot.slane %v8641, 1
      %v8644 = vsel %vm1196, %v8639, %v8643
      %8645 = vrot.lane.b32.xlu0 %v8296, 64
      %v8646 = vpop.permute.xlu0 %8645
      %8647 = vrot.lane.b32.xlu0 %v8308, 64
      %v8648 = vpop.permute.xlu0 %8647
      %8649 = vrot.lane.b32.xlu0 %v8320, 64
      %v8650 = vpop.permute.xlu0 %8649
      %8651 = vrot.lane.b32.xlu0 %v8332, 64
      %v8652 = vpop.permute.xlu0 %8651
      %8653 = vrot.lane.b32.xlu0 %v8344, 64
      %v8654 = vpop.permute.xlu0 %8653
      %8655 = vrot.lane.b32.xlu0 %v8356, 64
      %v8656 = vpop.permute.xlu0 %8655
      %8657 = vrot.lane.b32.xlu0 %v8368, 64
      %v8658 = vpop.permute.xlu0 %8657
      %8659 = vrot.lane.b32.xlu0 %v8380, 64
      %v8660 = vpop.permute.xlu0 %8659
      %8661 = vrot.lane.b32.xlu0 %v8392, 64
      %v8662 = vpop.permute.xlu0 %8661
      %8663 = vrot.lane.b32.xlu0 %v8404, 64
      %v8664 = vpop.permute.xlu0 %8663
      %8665 = vrot.lane.b32.xlu0 %v8416, 64
      %v8666 = vpop.permute.xlu0 %8665
      %8667 = vrot.lane.b32.xlu0 %v8428, 64
      %v8668 = vpop.permute.xlu0 %8667
      %8669 = vrot.lane.b32.xlu0 %v8440, 64
      %v8670 = vpop.permute.xlu0 %8669
      %8671 = vrot.lane.b32.xlu0 %v8452, 64
      %v8672 = vpop.permute.xlu0 %8671
      %8673 = vrot.lane.b32.xlu0 %v8464, 64
      %v8674 = vpop.permute.xlu0 %8673
      %8675 = vrot.lane.b32.xlu0 %v8644, 64
      %v8676 = vpop.permute.xlu0 %8675
      %v8678 = vrot.slane %v8268, 1
      %v8679 = vrot.slane %v8284, 1
      %v8680 = vsel %vm1421, %v8678, %v8679
      %8681 = vrot.lane.b32.xlu0 %v8527, 80
      %v8682 = vpop.permute.xlu0 %8681
      %8683 = vrot.lane.b32.xlu0 %v8530, 80
      %v8684 = vpop.permute.xlu0 %8683
      %8685 = vrot.lane.b32.xlu0 %v8533, 80
      %v8686 = vpop.permute.xlu0 %8685
      %8687 = vrot.lane.b32.xlu0 %v8536, 80
      %v8688 = vpop.permute.xlu0 %8687
      %8689 = vrot.lane.b32.xlu0 %v8539, 80
      %v8690 = vpop.permute.xlu0 %8689
      %8691 = vrot.lane.b32.xlu0 %v8542, 80
      %v8692 = vpop.permute.xlu0 %8691
      %8693 = vrot.lane.b32.xlu0 %v8545, 80
      %v8694 = vpop.permute.xlu0 %8693
      %8695 = vrot.lane.b32.xlu0 %v8548, 80
      %v8696 = vpop.permute.xlu0 %8695
      %8697 = vrot.lane.b32.xlu0 %v8551, 80
      %v8698 = vpop.permute.xlu0 %8697
      %8699 = vrot.lane.b32.xlu0 %v8554, 80
      %v8700 = vpop.permute.xlu0 %8699
      %8701 = vrot.lane.b32.xlu0 %v8557, 80
      %v8702 = vpop.permute.xlu0 %8701
      %8703 = vrot.lane.b32.xlu0 %v8560, 80
      %v8704 = vpop.permute.xlu0 %8703
      %8705 = vrot.lane.b32.xlu0 %v8563, 80
      %v8706 = vpop.permute.xlu0 %8705
      %8707 = vrot.lane.b32.xlu0 %v8566, 80
      %v8708 = vpop.permute.xlu0 %8707
      %8709 = vrot.lane.b32.xlu0 %v8569, 80
      %v8710 = vpop.permute.xlu0 %8709
      %8711 = vrot.lane.b32.xlu0 %v8680, 80
      %v8712 = vpop.permute.xlu0 %8711
      %8713 = vrot.lane.b32.xlu0 %v8254, 96
      %v8714 = vpop.permute.xlu0 %8713
      %8715 = vrot.lane.b32.xlu0 %v8255, 96
      %v8716 = vpop.permute.xlu0 %8715
      %8717 = vrot.lane.b32.xlu0 %v8256, 96
      %v8718 = vpop.permute.xlu0 %8717
      %8719 = vrot.lane.b32.xlu0 %v8257, 96
      %v8720 = vpop.permute.xlu0 %8719
      %8721 = vrot.lane.b32.xlu0 %v8258, 96
      %v8722 = vpop.permute.xlu0 %8721
      %8723 = vrot.lane.b32.xlu0 %v8259, 96
      %v8724 = vpop.permute.xlu0 %8723
      %8725 = vrot.lane.b32.xlu0 %v8260, 96
      %v8726 = vpop.permute.xlu0 %8725
      %8727 = vrot.lane.b32.xlu0 %v8261, 96
      %v8728 = vpop.permute.xlu0 %8727
      %8729 = vrot.lane.b32.xlu0 %v8262, 96
      %v8730 = vpop.permute.xlu0 %8729
      %8731 = vrot.lane.b32.xlu0 %v8263, 96
      %v8732 = vpop.permute.xlu0 %8731
      %8733 = vrot.lane.b32.xlu0 %v8264, 96
      %v8734 = vpop.permute.xlu0 %8733
      %8735 = vrot.lane.b32.xlu0 %v8265, 96
      %v8736 = vpop.permute.xlu0 %8735
      %8737 = vrot.lane.b32.xlu0 %v8266, 96
      %v8738 = vpop.permute.xlu0 %8737
      %8739 = vrot.lane.b32.xlu0 %v8267, 96
      %v8740 = vpop.permute.xlu0 %8739
      %8741 = vrot.lane.b32.xlu0 %v8268, 96
      %v8742 = vpop.permute.xlu0 %8741
      %8743 = vrot.lane.b32.xlu0 %v8308, 112
      %v8744 = vpop.permute.xlu0 %8743
      %8745 = vrot.lane.b32.xlu0 %v8320, 112
      %v8746 = vpop.permute.xlu0 %8745
      %8747 = vrot.lane.b32.xlu0 %v8332, 112
      %v8748 = vpop.permute.xlu0 %8747
      %8749 = vrot.lane.b32.xlu0 %v8344, 112
      %v8750 = vpop.permute.xlu0 %8749
      %8751 = vrot.lane.b32.xlu0 %v8356, 112
      %v8752 = vpop.permute.xlu0 %8751
      %8753 = vrot.lane.b32.xlu0 %v8368, 112
      %v8754 = vpop.permute.xlu0 %8753
      %8755 = vrot.lane.b32.xlu0 %v8380, 112
      %v8756 = vpop.permute.xlu0 %8755
      %8757 = vrot.lane.b32.xlu0 %v8392, 112
      %v8758 = vpop.permute.xlu0 %8757
      %8759 = vrot.lane.b32.xlu0 %v8404, 112
      %v8760 = vpop.permute.xlu0 %8759
      %8761 = vrot.lane.b32.xlu0 %v8416, 112
      %v8762 = vpop.permute.xlu0 %8761
      %8763 = vrot.lane.b32.xlu0 %v8428, 112
      %v8764 = vpop.permute.xlu0 %8763
      %8765 = vrot.lane.b32.xlu0 %v8440, 112
      %v8766 = vpop.permute.xlu0 %8765
      %8767 = vrot.lane.b32.xlu0 %v8452, 112
      %v8768 = vpop.permute.xlu0 %8767
      %8769 = vrot.lane.b32.xlu0 %v8464, 112
      %v8770 = vpop.permute.xlu0 %8769
      %8771 = vrot.lane.b32.xlu0 %v8644, 112
      %v8772 = vpop.permute.xlu0 %8771
      %v8774 = vsel %vm1773, %v8253, %v8466
      %v8776 = vsel %vm1773, %v8254, %v8468
      %v8778 = vsel %vm1773, %v8255, %v8470
      %v8780 = vsel %vm1773, %v8256, %v8472
      %v8782 = vsel %vm1773, %v8257, %v8474
      %v8784 = vsel %vm1773, %v8258, %v8476
      %v8786 = vsel %vm1773, %v8259, %v8478
      %v8788 = vsel %vm1773, %v8260, %v8480
      %v8790 = vsel %vm1773, %v8261, %v8482
      %v8792 = vsel %vm1773, %v8262, %v8484
      %v8794 = vsel %vm1773, %v8263, %v8486
      %v8796 = vsel %vm1773, %v8264, %v8488
      %v8798 = vsel %vm1773, %v8265, %v8490
      %v8800 = vsel %vm1773, %v8266, %v8492
      %v8802 = vsel %vm1773, %v8267, %v8494
      %v8804 = vsel %vm1839, %v8774, %v8571
      %v8806 = vsel %vm1839, %v8776, %v8573
      %v8808 = vsel %vm1839, %v8778, %v8575
      %v8810 = vsel %vm1839, %v8780, %v8577
      %v8812 = vsel %vm1839, %v8782, %v8579
      %v8814 = vsel %vm1839, %v8784, %v8581
      %v8816 = vsel %vm1839, %v8786, %v8583
      %v8818 = vsel %vm1839, %v8788, %v8585
      %v8820 = vsel %vm1839, %v8790, %v8587
      %v8822 = vsel %vm1839, %v8792, %v8589
      %v8824 = vsel %vm1839, %v8794, %v8591
      %v8826 = vsel %vm1839, %v8796, %v8593
      %v8828 = vsel %vm1839, %v8798, %v8595
      %v8830 = vsel %vm1839, %v8800, %v8597
      %v8832 = vsel %vm1839, %v8802, %v8599
      %v8834 = vsel %vm1905, %v7156, %v8602
      %v8836 = vsel %vm1905, %v8804, %v8604
      %v8838 = vsel %vm1905, %v8806, %v8606
      %v8840 = vsel %vm1905, %v8808, %v8608
      %v8842 = vsel %vm1905, %v8810, %v8610
      %v8844 = vsel %vm1905, %v8812, %v8612
      %v8846 = vsel %vm1905, %v8814, %v8614
      %v8848 = vsel %vm1905, %v8816, %v8616
      %v8850 = vsel %vm1905, %v8818, %v8618
      %v8852 = vsel %vm1905, %v8820, %v8620
      %v8854 = vsel %vm1905, %v8822, %v8622
      %v8856 = vsel %vm1905, %v8824, %v8624
      %v8858 = vsel %vm1905, %v8826, %v8626
      %v8860 = vsel %vm1905, %v8828, %v8628
      %v8862 = vsel %vm1905, %v8830, %v8630
      %v8864 = vsel %vm1905, %v8832, %v8632
      %v8866 = vsel %vm1971, %v8834, %v8646
      %v8868 = vsel %vm1971, %v8836, %v8648
      %v8870 = vsel %vm1971, %v8838, %v8650
      %v8872 = vsel %vm1971, %v8840, %v8652
      %v8874 = vsel %vm1971, %v8842, %v8654
      %v8876 = vsel %vm1971, %v8844, %v8656
      %v8878 = vsel %vm1971, %v8846, %v8658
      %v8880 = vsel %vm1971, %v8848, %v8660
      %v8882 = vsel %vm1971, %v8850, %v8662
      %v8884 = vsel %vm1971, %v8852, %v8664
      %v8886 = vsel %vm1971, %v8854, %v8666
      %v8888 = vsel %vm1971, %v8856, %v8668
      %v8890 = vsel %vm1971, %v8858, %v8670
      %v8892 = vsel %vm1971, %v8860, %v8672
      %v8894 = vsel %vm1971, %v8862, %v8674
      %v8896 = vsel %vm1971, %v8864, %v8676
      %v8898 = vsel %vm7251, %v8866, %v8682
      %v8900 = vsel %vm7251, %v8868, %v8684
      %v8902 = vsel %vm7251, %v8870, %v8686
      %v8904 = vsel %vm7251, %v8872, %v8688
      %v8906 = vsel %vm7251, %v8874, %v8690
      %v8908 = vsel %vm7251, %v8876, %v8692
      %v8910 = vsel %vm7251, %v8878, %v8694
      %v8912 = vsel %vm7251, %v8880, %v8696
      %v8914 = vsel %vm7251, %v8882, %v8698
      %v8916 = vsel %vm7251, %v8884, %v8700
      %v8918 = vsel %vm7251, %v8886, %v8702
      %v8920 = vsel %vm7251, %v8888, %v8704
      %v8922 = vsel %vm7251, %v8890, %v8706
      %v8924 = vsel %vm7251, %v8892, %v8708
      %v8926 = vsel %vm7251, %v8894, %v8710
      %v8928 = vsel %vm7251, %v8896, %v8712
      %v8930 = vsel %vm7284, %v8898, %v8714
      %v8932 = vsel %vm7284, %v8900, %v8716
      %v8934 = vsel %vm7284, %v8902, %v8718
      %v8936 = vsel %vm7284, %v8904, %v8720
      %v8938 = vsel %vm7284, %v8906, %v8722
      %v8940 = vsel %vm7284, %v8908, %v8724
      %v8942 = vsel %vm7284, %v8910, %v8726
      %v8944 = vsel %vm7284, %v8912, %v8728
      %v8946 = vsel %vm7284, %v8914, %v8730
      %v8948 = vsel %vm7284, %v8916, %v8732
      %v8950 = vsel %vm7284, %v8918, %v8734
      %v8952 = vsel %vm7284, %v8920, %v8736
      %v8954 = vsel %vm7284, %v8922, %v8738
      %v8956 = vsel %vm7284, %v8924, %v8740
      %v8958 = vsel %vm7284, %v8926, %v8742
      %v8959 = vsel %vm7284, %v8928, %v7090
      %v8961 = vsel %vm7317, %v8930, %v8744
      %v8964 = vsel %vm7317, %v8932, %v8746
      %v8967 = vsel %vm7317, %v8934, %v8748
      %v8970 = vsel %vm7317, %v8936, %v8750
      %v8973 = vsel %vm7317, %v8938, %v8752
      %v8976 = vsel %vm7317, %v8940, %v8754
      %v8979 = vsel %vm7317, %v8942, %v8756
      %v8982 = vsel %vm7317, %v8944, %v8758
      %v8985 = vsel %vm7317, %v8946, %v8760
      %v8988 = vsel %vm7317, %v8948, %v8762
      %v8991 = vsel %vm7317, %v8950, %v8764
      %v8994 = vsel %vm7317, %v8952, %v8766
      %v8997 = vsel %vm7317, %v8954, %v8768
      %v9000 = vsel %vm7317, %v8956, %v8770
      %v9003 = vsel %vm7317, %v8958, %v8772
      %v9005 = vsel %vm7317, %v8959, %v7122
      %v9007 = vld [vmem:[%s39] sm:$0xf]
      %v9008 = vld [vmem:[%s39 + $0x4] sm:$0xf]
      %v9009 = vld [vmem:[%s39 + $0x8] sm:$0xf]
      %v9010 = vld [vmem:[%s39 + $0xc] sm:$0xf]
      %v9011 = vld [vmem:[%s39 + $0x10] sm:$0xf]
      %v9012 = vld [vmem:[%s39 + $0x14] sm:$0xf]
      %v9013 = vld [vmem:[%s39 + $0x18] sm:$0xf]
      %v9014 = vld [vmem:[%s39 + $0x1c] sm:$0xf]
      %v9015 = vld [vmem:[%s39 + $0x20] sm:$0xf]
      %v9016 = vld [vmem:[%s39 + $0x24] sm:$0xf]
      %v9017 = vld [vmem:[%s39 + $0x28] sm:$0xf]
      %v9018 = vld [vmem:[%s39 + $0x2c] sm:$0xf]
      %v9019 = vld [vmem:[%s39 + $0x30] sm:$0xf]
      %v9020 = vld [vmem:[%s39 + $0x34] sm:$0xf]
      %v9021 = vld [vmem:[%s39 + $0x38] sm:$0xf]
      %v9022 = vld [vmem:[%s39 + $0x3c] sm:$0xf]
      %v9023 = vld [vmem:[%s39 + $0x40] sm:$0xf]
      %v9024 = vld [vmem:[%s39 + $0x44] sm:$0xf]
      %v9043 = vunpack.c.l.b16 %v9007
      %v9044 = vunpack.c.l.b16 %v9008
      %v9045 = vunpack.c.l.b16 %v9009
      %v9046 = vunpack.c.l.b16 %v9010
      %v9047 = vunpack.c.l.b16 %v9011
      %v9048 = vunpack.c.l.b16 %v9012
      %v9049 = vunpack.c.l.b16 %v9013
      %v9050 = vunpack.c.l.b16 %v9014
      %v9051 = vunpack.c.l.b16 %v9015
      %v9052 = vunpack.c.l.b16 %v9016
      %v9053 = vunpack.c.l.b16 %v9017
      %v9054 = vunpack.c.l.b16 %v9018
      %v9055 = vunpack.c.l.b16 %v9019
      %v9056 = vunpack.c.l.b16 %v9020
      %v9057 = vunpack.c.l.b16 %v9021
      %v9058 = vunpack.c.l.b16 %v9022
      %v9059 = vunpack.c.l.b16 %v9023
      %v9060 = vunpack.c.l.b16 %v9024
      %v9061 = vpack.c.b16 %v9044, %v9043
      %v9062 = vpack.c.b16 %v9046, %v9045
      %v9063 = vpack.c.b16 %v9048, %v9047
      %v9064 = vpack.c.b16 %v9050, %v9049
      %v9065 = vpack.c.b16 %v9052, %v9051
      %v9066 = vpack.c.b16 %v9054, %v9053
      %v9067 = vpack.c.b16 %v9056, %v9055
      %v9068 = vpack.c.b16 %v9058, %v9057
      %v9069 = vpack.c.b16 %v9060, %v9059
      %v9080 = vsel %vm1773, %v8530, 0
      %v9083 = vsel %vm1773, %v8533, 0
      %v9086 = vsel %vm1773, %v8536, 0
      %v9089 = vsel %vm1773, %v8539, 0
      %v9092 = vsel %vm1773, %v8542, 0
      %v9095 = vsel %vm1773, %v8545, 0
      %v9098 = vsel %vm1773, %v8548, 0
      %v9101 = vsel %vm1773, %v8551, 0
      %v9104 = vsel %vm1773, %v8554, 0
      %v9107 = vsel %vm1773, %v8557, 0
      %v9110 = vsel %vm1773, %v8560, 0
      %v9113 = vsel %vm1773, %v8563, 0
      %v9116 = vsel %vm1773, %v8566, 0
      %v9119 = vsel %vm1773, %v8569, 0
      %v9122 = vsel %vm1773, %v8680, 0
      %9124 = vmatpush.bf16.msra.mxu0 %v9068
      %9125 = vmatpush.bf16.msra.mxu0 %v9067
      %9126 = vmatpush.bf16.msra.mxu0 %v9066
      %9127 = vmatpush.bf16.msra.mxu0 %v9065
      %9128 = vmatpush.bf16.msra.mxu0 %v9064
      %9129 = vmatpush.bf16.msra.mxu0 %v9063
      %9130 = vmatpush.bf16.msra.mxu0 %v9062
      %9131 = vmatpush.bf16.msra.mxu0 %v9061
      %9132 = vmatmul.bf16.gmra.mxu0 %v8961
      %v9133 = vpop.f32.mrf.mxu0
      %v9134 = vadd.f32 0.0, %v9133
      %v9135 = vpop.f32.mrf.mxu0
      %v9136 = vadd.f32 0.0, %v9135
      %9137 = vmatmul.bf16.gmra.mxu0 %v8964
      %v9138 = vpop.f32.mrf.mxu0
      %v9139 = vadd.f32 0.0, %v9138
      %v9140 = vpop.f32.mrf.mxu0
      %v9141 = vadd.f32 0.0, %v9140
      %9142 = vmatmul.bf16.gmra.mxu0 %v8967
      %v9143 = vpop.f32.mrf.mxu0
      %v9144 = vadd.f32 0.0, %v9143
      %v9145 = vpop.f32.mrf.mxu0
      %v9146 = vadd.f32 0.0, %v9145
      %9147 = vmatmul.bf16.gmra.mxu0 %v8970
      %v9148 = vpop.f32.mrf.mxu0
      %v9149 = vadd.f32 0.0, %v9148
      %v9150 = vpop.f32.mrf.mxu0
      %v9151 = vadd.f32 0.0, %v9150
      %9152 = vmatmul.bf16.gmra.mxu0 %v8973
      %v9153 = vpop.f32.mrf.mxu0
      %v9154 = vadd.f32 0.0, %v9153
      %v9155 = vpop.f32.mrf.mxu0
      %v9156 = vadd.f32 0.0, %v9155
      %9157 = vmatmul.bf16.gmra.mxu0 %v8976
      %v9158 = vpop.f32.mrf.mxu0
      %v9159 = vadd.f32 0.0, %v9158
      %v9160 = vpop.f32.mrf.mxu0
      %v9161 = vadd.f32 0.0, %v9160
      %9162 = vmatmul.bf16.gmra.mxu0 %v8979
      %v9163 = vpop.f32.mrf.mxu0
      %v9164 = vadd.f32 0.0, %v9163
      %v9165 = vpop.f32.mrf.mxu0
      %v9166 = vadd.f32 0.0, %v9165
      %9167 = vmatmul.bf16.gmra.mxu0 %v8982
      %v9168 = vpop.f32.mrf.mxu0
      %v9169 = vadd.f32 0.0, %v9168
      %v9170 = vpop.f32.mrf.mxu0
      %v9171 = vadd.f32 0.0, %v9170
      %9172 = vmatmul.bf16.gmra.mxu0 %v8985
      %v9173 = vpop.f32.mrf.mxu0
      %v9174 = vadd.f32 0.0, %v9173
      %v9175 = vpop.f32.mrf.mxu0
      %v9176 = vadd.f32 0.0, %v9175
      %9177 = vmatmul.bf16.gmra.mxu0 %v8988
      %v9178 = vpop.f32.mrf.mxu0
      %v9179 = vadd.f32 0.0, %v9178
      %v9180 = vpop.f32.mrf.mxu0
      %v9181 = vadd.f32 0.0, %v9180
      %9182 = vmatmul.bf16.gmra.mxu0 %v8991
      %v9183 = vpop.f32.mrf.mxu0
      %v9184 = vadd.f32 0.0, %v9183
      %v9185 = vpop.f32.mrf.mxu0
      %v9186 = vadd.f32 0.0, %v9185
      %9187 = vmatmul.bf16.gmra.mxu0 %v8994
      %v9188 = vpop.f32.mrf.mxu0
      %v9189 = vadd.f32 0.0, %v9188
      %v9190 = vpop.f32.mrf.mxu0
      %v9191 = vadd.f32 0.0, %v9190
      %9192 = vmatmul.bf16.gmra.mxu0 %v8997
      %v9193 = vpop.f32.mrf.mxu0
      %v9194 = vadd.f32 0.0, %v9193
      %v9195 = vpop.f32.mrf.mxu0
      %v9196 = vadd.f32 0.0, %v9195
      %9197 = vmatmul.bf16.gmra.mxu0 %v9000
      %v9198 = vpop.f32.mrf.mxu0
      %v9199 = vadd.f32 0.0, %v9198
      %v9200 = vpop.f32.mrf.mxu0
      %v9201 = vadd.f32 0.0, %v9200
      %9202 = vmatmul.bf16.gmra.mxu0 %v9003
      %v9203 = vpop.f32.mrf.mxu0
      %v9204 = vadd.f32 0.0, %v9203
      %v9205 = vpop.f32.mrf.mxu0
      %v9206 = vadd.f32 0.0, %v9205
      %9207 = vmatmul.bf16.gmra.mxu0 %v9005
      %v9208 = vpop.f32.mrf.mxu0
      %v9209 = vadd.f32 0.0, %v9208
      %v9210 = vpop.f32.mrf.mxu0
      %v9211 = vadd.f32 0.0, %v9210
      %9212 = vdwg.mxu0
      %9213 = vmatpush.bf16.msra.mxu0 0
      %9214 = vmatpush.bf16.msra.mxu0 0
      %9215 = vmatpush.bf16.msra.mxu0 0
      %9216 = vmatpush.bf16.msra.mxu0 0
      %9217 = vmatpush.bf16.msra.mxu0 0
      %9218 = vmatpush.bf16.msra.mxu0 0
      %9219 = vmatpush.bf16.msra.mxu0 0
      %9220 = vmatpush.bf16.msra.mxu0 %v9069
      %9221 = vmatmul.bf16.gmra.mxu0 %v9080
      %v9222 = vpop.f32.mrf.mxu0
      %v9223 = vadd.f32 %v9134, %v9222
      %v9224 = vpop.f32.mrf.mxu0
      %v9225 = vadd.f32 %v9136, %v9224
      %9226 = vmatmul.bf16.gmra.mxu0 %v9083
      %v9227 = vpop.f32.mrf.mxu0
      %v9228 = vadd.f32 %v9139, %v9227
      %v9229 = vpop.f32.mrf.mxu0
      %v9230 = vadd.f32 %v9141, %v9229
      %9231 = vmatmul.bf16.gmra.mxu0 %v9086
      %v9232 = vpop.f32.mrf.mxu0
      %v9233 = vadd.f32 %v9144, %v9232
      %v9234 = vpop.f32.mrf.mxu0
      %v9235 = vadd.f32 %v9146, %v9234
      %9236 = vmatmul.bf16.gmra.mxu0 %v9089
      %v9237 = vpop.f32.mrf.mxu0
      %v9238 = vadd.f32 %v9149, %v9237
      %v9239 = vpop.f32.mrf.mxu0
      %v9240 = vadd.f32 %v9151, %v9239
      %9241 = vmatmul.bf16.gmra.mxu0 %v9092
      %v9242 = vpop.f32.mrf.mxu0
      %v9243 = vadd.f32 %v9154, %v9242
      %v9244 = vpop.f32.mrf.mxu0
      %v9245 = vadd.f32 %v9156, %v9244
      %9246 = vmatmul.bf16.gmra.mxu0 %v9095
      %v9247 = vpop.f32.mrf.mxu0
      %v9248 = vadd.f32 %v9159, %v9247
      %v9249 = vpop.f32.mrf.mxu0
      %v9250 = vadd.f32 %v9161, %v9249
      %9251 = vmatmul.bf16.gmra.mxu0 %v9098
      %v9252 = vpop.f32.mrf.mxu0
      %v9253 = vadd.f32 %v9164, %v9252
      %v9254 = vpop.f32.mrf.mxu0
      %v9255 = vadd.f32 %v9166, %v9254
      %9256 = vmatmul.bf16.gmra.mxu0 %v9101
      %v9257 = vpop.f32.mrf.mxu0
      %v9258 = vadd.f32 %v9169, %v9257
      %v9259 = vpop.f32.mrf.mxu0
      %v9260 = vadd.f32 %v9171, %v9259
      %9261 = vmatmul.bf16.gmra.mxu0 %v9104
      %v9262 = vpop.f32.mrf.mxu0
      %v9263 = vadd.f32 %v9174, %v9262
      %v9264 = vpop.f32.mrf.mxu0
      %v9265 = vadd.f32 %v9176, %v9264
      %9266 = vmatmul.bf16.gmra.mxu0 %v9107
      %v9267 = vpop.f32.mrf.mxu0
      %v9268 = vadd.f32 %v9179, %v9267
      %v9269 = vpop.f32.mrf.mxu0
      %v9270 = vadd.f32 %v9181, %v9269
      %9271 = vmatmul.bf16.gmra.mxu0 %v9110
      %v9272 = vpop.f32.mrf.mxu0
      %v9273 = vadd.f32 %v9184, %v9272
      %v9274 = vpop.f32.mrf.mxu0
      %v9275 = vadd.f32 %v9186, %v9274
      %9276 = vmatmul.bf16.gmra.mxu0 %v9113
      %v9277 = vpop.f32.mrf.mxu0
      %v9278 = vadd.f32 %v9189, %v9277
      %v9279 = vpop.f32.mrf.mxu0
      %v9280 = vadd.f32 %v9191, %v9279
      %9281 = vmatmul.bf16.gmra.mxu0 %v9116
      %v9282 = vpop.f32.mrf.mxu0
      %v9283 = vadd.f32 %v9194, %v9282
      %v9284 = vpop.f32.mrf.mxu0
      %v9285 = vadd.f32 %v9196, %v9284
      %9286 = vmatmul.bf16.gmra.mxu0 %v9119
      %v9287 = vpop.f32.mrf.mxu0
      %v9288 = vadd.f32 %v9199, %v9287
      %v9289 = vpop.f32.mrf.mxu0
      %v9290 = vadd.f32 %v9201, %v9289
      %9291 = vmatmul.bf16.gmra.mxu0 %v9122
      %v9292 = vpop.f32.mrf.mxu0
      %v9293 = vadd.f32 %v9204, %v9292
      %v9294 = vpop.f32.mrf.mxu0
      %v9295 = vadd.f32 %v9206, %v9294
      %9296 = vmatmul.bf16.gmra.mxu0 %v7484
      %v9297 = vpop.f32.mrf.mxu0
      %v9298 = vadd.f32 %v9209, %v9297
      %v9299 = vpop.f32.mrf.mxu0
      %v9300 = vadd.f32 %v9211, %v9299
      %9301 = vdwg.mxu0
      %v9302 = vld [vmem:[%s41] sm:$0x1]
      %v9304 = vperm.slane %v9302, 0
      %v9306 = vmul.f32 %v9223, %v9304
      %v9307 = vmul.f32 %v9225, %v9304
      %v9308 = vmul.f32 %v9228, %v9304
      %v9309 = vmul.f32 %v9230, %v9304
      %v9310 = vmul.f32 %v9233, %v9304
      %v9311 = vmul.f32 %v9235, %v9304
      %v9312 = vmul.f32 %v9238, %v9304
      %v9313 = vmul.f32 %v9240, %v9304
      %v9314 = vmul.f32 %v9243, %v9304
      %v9315 = vmul.f32 %v9245, %v9304
      %v9316 = vmul.f32 %v9248, %v9304
      %v9317 = vmul.f32 %v9250, %v9304
      %v9318 = vmul.f32 %v9253, %v9304
      %v9319 = vmul.f32 %v9255, %v9304
      %v9320 = vmul.f32 %v9258, %v9304
      %v9321 = vmul.f32 %v9260, %v9304
      %v9322 = vmul.f32 %v9263, %v9304
      %v9323 = vmul.f32 %v9265, %v9304
      %v9324 = vmul.f32 %v9268, %v9304
      %v9325 = vmul.f32 %v9270, %v9304
      %v9326 = vmul.f32 %v9273, %v9304
      %v9327 = vmul.f32 %v9275, %v9304
      %v9328 = vmul.f32 %v9278, %v9304
      %v9329 = vmul.f32 %v9280, %v9304
      %v9330 = vmul.f32 %v9283, %v9304
      %v9331 = vmul.f32 %v9285, %v9304
      %v9332 = vmul.f32 %v9288, %v9304
      %v9333 = vmul.f32 %v9290, %v9304
      %v9334 = vmul.f32 %v9293, %v9304
      %v9335 = vmul.f32 %v9295, %v9304
      %v9336 = vmul.f32 %v9298, %v9304
      %v9337 = vmul.f32 %v9300, %v9304
      %v9338 = vld [vmem:[%s43] sm:$0x1]
      %v9340 = vperm.slane %v9338, 0
      %v9342 = vadd.f32 %v9306, %v9340
      %v9343 = vadd.f32 %v9307, %v9340
      %v9344 = vadd.f32 %v9308, %v9340
      %v9345 = vadd.f32 %v9309, %v9340
      %v9346 = vadd.f32 %v9310, %v9340
      %v9347 = vadd.f32 %v9311, %v9340
      %v9348 = vadd.f32 %v9312, %v9340
      %v9349 = vadd.f32 %v9313, %v9340
      %v9350 = vadd.f32 %v9314, %v9340
      %v9351 = vadd.f32 %v9315, %v9340
      %v9352 = vadd.f32 %v9316, %v9340
      %v9353 = vadd.f32 %v9317, %v9340
      %v9354 = vadd.f32 %v9318, %v9340
      %v9355 = vadd.f32 %v9319, %v9340
      %v9356 = vadd.f32 %v9320, %v9340
      %v9357 = vadd.f32 %v9321, %v9340
      %v9358 = vadd.f32 %v9322, %v9340
      %v9359 = vadd.f32 %v9323, %v9340
      %v9360 = vadd.f32 %v9324, %v9340
      %v9361 = vadd.f32 %v9325, %v9340
      %v9362 = vadd.f32 %v9326, %v9340
      %v9363 = vadd.f32 %v9327, %v9340
      %v9364 = vadd.f32 %v9328, %v9340
      %v9365 = vadd.f32 %v9329, %v9340
      %v9366 = vadd.f32 %v9330, %v9340
      %v9367 = vadd.f32 %v9331, %v9340
      %v9368 = vadd.f32 %v9332, %v9340
      %v9369 = vadd.f32 %v9333, %v9340
      %v9370 = vadd.f32 %v9334, %v9340
      %v9371 = vadd.f32 %v9335, %v9340
      %v9372 = vadd.f32 %v9336, %v9340
      %v9373 = vadd.f32 %v9337, %v9340
      %v9374 = vmax.f32 %v9342, 0.0
      %v9375 = vmax.f32 %v9343, 0.0
      %v9376 = vmax.f32 %v9344, 0.0
      %v9377 = vmax.f32 %v9345, 0.0
      %v9378 = vmax.f32 %v9346, 0.0
      %v9379 = vmax.f32 %v9347, 0.0
      %v9380 = vmax.f32 %v9348, 0.0
      %v9381 = vmax.f32 %v9349, 0.0
      %v9382 = vmax.f32 %v9350, 0.0
      %v9383 = vmax.f32 %v9351, 0.0
      %v9384 = vmax.f32 %v9352, 0.0
      %v9385 = vmax.f32 %v9353, 0.0
      %v9386 = vmax.f32 %v9354, 0.0
      %v9387 = vmax.f32 %v9355, 0.0
      %v9388 = vmax.f32 %v9356, 0.0
      %v9389 = vmax.f32 %v9357, 0.0
      %v9390 = vmax.f32 %v9358, 0.0
      %v9391 = vmax.f32 %v9359, 0.0
      %v9392 = vmax.f32 %v9360, 0.0
      %v9393 = vmax.f32 %v9361, 0.0
      %v9394 = vmax.f32 %v9362, 0.0
      %v9395 = vmax.f32 %v9363, 0.0
      %v9396 = vmax.f32 %v9364, 0.0
      %v9397 = vmax.f32 %v9365, 0.0
      %v9398 = vmax.f32 %v9366, 0.0
      %v9399 = vmax.f32 %v9367, 0.0
      %v9400 = vmax.f32 %v9368, 0.0
      %v9401 = vmax.f32 %v9369, 0.0
      %v9402 = vmax.f32 %v9370, 0.0
      %v9403 = vmax.f32 %v9371, 0.0
      %v9404 = vmax.f32 %v9372, 0.0
      %v9405 = vmax.f32 %v9373, 0.0
      %v9406 = vpack.c.bf16 %v9374, %v9374
      %v9407 = vpack.c.bf16 %v9375, %v9375
      %v9408 = vpack.c.bf16 %v9376, %v9376
      %v9409 = vpack.c.bf16 %v9377, %v9377
      %v9410 = vpack.c.bf16 %v9378, %v9378
      %v9411 = vpack.c.bf16 %v9379, %v9379
      %v9412 = vpack.c.bf16 %v9380, %v9380
      %v9413 = vpack.c.bf16 %v9381, %v9381
      %v9414 = vpack.c.bf16 %v9382, %v9382
      %v9415 = vpack.c.bf16 %v9383, %v9383
      %v9416 = vpack.c.bf16 %v9384, %v9384
      %v9417 = vpack.c.bf16 %v9385, %v9385
      %v9418 = vpack.c.bf16 %v9386, %v9386
      %v9419 = vpack.c.bf16 %v9387, %v9387
      %v9420 = vpack.c.bf16 %v9388, %v9388
      %v9421 = vpack.c.bf16 %v9389, %v9389
      %v9422 = vpack.c.bf16 %v9390, %v9390
      %v9423 = vpack.c.bf16 %v9391, %v9391
      %v9424 = vpack.c.bf16 %v9392, %v9392
      %v9425 = vpack.c.bf16 %v9393, %v9393
      %v9426 = vpack.c.bf16 %v9394, %v9394
      %v9427 = vpack.c.bf16 %v9395, %v9395
      %v9428 = vpack.c.bf16 %v9396, %v9396
      %v9429 = vpack.c.bf16 %v9397, %v9397
      %v9430 = vpack.c.bf16 %v9398, %v9398
      %v9431 = vpack.c.bf16 %v9399, %v9399
      %v9432 = vpack.c.bf16 %v9400, %v9400
      %v9433 = vpack.c.bf16 %v9401, %v9401
      %v9434 = vpack.c.bf16 %v9402, %v9402
      %v9435 = vpack.c.bf16 %v9403, %v9403
      %v9436 = vpack.c.bf16 %v9404, %v9404
      %v9437 = vpack.c.bf16 %v9405, %v9405
      %v9470 = vunpack.c.l.b16 %v9406
      %v9471 = vunpack.c.l.b16 %v9407
      %v9472 = vunpack.c.l.b16 %v9408
      %v9473 = vunpack.c.l.b16 %v9409
      %v9474 = vunpack.c.l.b16 %v9410
      %v9475 = vunpack.c.l.b16 %v9411
      %v9476 = vunpack.c.l.b16 %v9412
      %v9477 = vunpack.c.l.b16 %v9413
      %v9478 = vunpack.c.l.b16 %v9414
      %v9479 = vunpack.c.l.b16 %v9415
      %v9480 = vunpack.c.l.b16 %v9416
      %v9481 = vunpack.c.l.b16 %v9417
      %v9482 = vunpack.c.l.b16 %v9418
      %v9483 = vunpack.c.l.b16 %v9419
      %v9484 = vunpack.c.l.b16 %v9420
      %v9485 = vunpack.c.l.b16 %v9421
      %v9486 = vunpack.c.l.b16 %v9422
      %v9487 = vunpack.c.l.b16 %v9423
      %v9488 = vunpack.c.l.b16 %v9424
      %v9489 = vunpack.c.l.b16 %v9425
      %v9490 = vunpack.c.l.b16 %v9426
      %v9491 = vunpack.c.l.b16 %v9427
      %v9492 = vunpack.c.l.b16 %v9428
      %v9493 = vunpack.c.l.b16 %v9429
      %v9494 = vunpack.c.l.b16 %v9430
      %v9495 = vunpack.c.l.b16 %v9431
      %v9496 = vunpack.c.l.b16 %v9432
      %v9497 = vunpack.c.l.b16 %v9433
      %v9498 = vunpack.c.l.b16 %v9434
      %v9499 = vunpack.c.l.b16 %v9435
      %v9500 = vunpack.c.l.b16 %v9436
      %v9501 = vunpack.c.l.b16 %v9437
      %v9502 = vpack.c.b16 %v9471, %v9470
      %v9503 = vpack.c.b16 %v9473, %v9472
      %v9504 = vpack.c.b16 %v9475, %v9474
      %v9505 = vpack.c.b16 %v9477, %v9476
      %v9506 = vpack.c.b16 %v9479, %v9478
      %v9507 = vpack.c.b16 %v9481, %v9480
      %v9508 = vpack.c.b16 %v9483, %v9482
      %v9509 = vpack.c.b16 %v9485, %v9484
      %v9510 = vpack.c.b16 %v9487, %v9486
      %v9511 = vpack.c.b16 %v9489, %v9488
      %v9512 = vpack.c.b16 %v9491, %v9490
      %v9513 = vpack.c.b16 %v9493, %v9492
      %v9514 = vpack.c.b16 %v9495, %v9494
      %v9515 = vpack.c.b16 %v9497, %v9496
      %v9516 = vpack.c.b16 %v9499, %v9498
      %v9517 = vpack.c.b16 %v9501, %v9500
      %v9519 = vshrl.u32 %v9502, 16
      %v9521 = vrot.slane %v9519, 7
      %v9522 = vshll.u32 %v9502, 16
      %v9524 = vor.u32 %v9521, %v9522
      %v9526 = vshrl.u32 %v9503, 16
      %v9528 = vrot.slane %v9526, 7
      %v9529 = vshll.u32 %v9503, 16
      %v9531 = vor.u32 %v9528, %v9529
      %v9533 = vshrl.u32 %v9504, 16
      %v9535 = vrot.slane %v9533, 7
      %v9536 = vshll.u32 %v9504, 16
      %v9538 = vor.u32 %v9535, %v9536
      %v9540 = vshrl.u32 %v9505, 16
      %v9542 = vrot.slane %v9540, 7
      %v9543 = vshll.u32 %v9505, 16
      %v9545 = vor.u32 %v9542, %v9543
      %v9547 = vshrl.u32 %v9506, 16
      %v9549 = vrot.slane %v9547, 7
      %v9550 = vshll.u32 %v9506, 16
      %v9552 = vor.u32 %v9549, %v9550
      %v9554 = vshrl.u32 %v9507, 16
      %v9556 = vrot.slane %v9554, 7
      %v9557 = vshll.u32 %v9507, 16
      %v9559 = vor.u32 %v9556, %v9557
      %v9561 = vshrl.u32 %v9508, 16
      %v9563 = vrot.slane %v9561, 7
      %v9564 = vshll.u32 %v9508, 16
      %v9566 = vor.u32 %v9563, %v9564
      %v9568 = vshrl.u32 %v9509, 16
      %v9570 = vrot.slane %v9568, 7
      %v9571 = vshll.u32 %v9509, 16
      %v9573 = vor.u32 %v9570, %v9571
      %v9575 = vshrl.u32 %v9510, 16
      %v9577 = vrot.slane %v9575, 7
      %v9578 = vshll.u32 %v9510, 16
      %v9580 = vor.u32 %v9577, %v9578
      %v9582 = vshrl.u32 %v9511, 16
      %v9584 = vrot.slane %v9582, 7
      %v9585 = vshll.u32 %v9511, 16
      %v9587 = vor.u32 %v9584, %v9585
      %v9589 = vshrl.u32 %v9512, 16
      %v9591 = vrot.slane %v9589, 7
      %v9592 = vshll.u32 %v9512, 16
      %v9594 = vor.u32 %v9591, %v9592
      %v9596 = vshrl.u32 %v9513, 16
      %v9598 = vrot.slane %v9596, 7
      %v9599 = vshll.u32 %v9513, 16
      %v9601 = vor.u32 %v9598, %v9599
      %v9603 = vshrl.u32 %v9514, 16
      %v9605 = vrot.slane %v9603, 7
      %v9606 = vshll.u32 %v9514, 16
      %v9608 = vor.u32 %v9605, %v9606
      %v9610 = vshrl.u32 %v9515, 16
      %v9612 = vrot.slane %v9610, 7
      %v9613 = vshll.u32 %v9515, 16
      %v9615 = vor.u32 %v9612, %v9613
      %v9617 = vshrl.u32 %v9516, 16
      %v9619 = vrot.slane %v9617, 7
      %v9620 = vshll.u32 %v9516, 16
      %v9622 = vor.u32 %v9619, %v9620
      %v9624 = vshrl.u32 %v9517, 16
      %v9626 = vrot.slane %v9624, 7
      %v9627 = vshll.u32 %v9517, 16
      %v9629 = vor.u32 %v9626, %v9627
      %v9662 = vsel %vm2537, 0, %v9524
      %v9663 = vsel %vm2537, 0, %v9531
      %v9664 = vsel %vm2537, 0, %v9538
      %v9665 = vsel %vm2537, 0, %v9545
      %v9666 = vsel %vm2537, 0, %v9552
      %v9667 = vsel %vm2537, 0, %v9559
      %v9668 = vsel %vm2537, 0, %v9566
      %v9669 = vsel %vm2537, 0, %v9573
      %v9670 = vsel %vm2537, 0, %v9580
      %v9671 = vsel %vm2537, 0, %v9587
      %v9672 = vsel %vm2537, 0, %v9594
      %v9673 = vsel %vm2537, 0, %v9601
      %v9674 = vsel %vm2537, 0, %v9608
      %v9675 = vsel %vm2537, 0, %v9615
      %v9676 = vsel %vm2537, 0, %v9622
      %v9677 = vsel %vm2537, 0, %v9629
      %v9678 = vsel %vm2537, %v9521, 0
      %v9679 = vsel %vm2537, %v9528, 0
      %v9680 = vsel %vm2537, %v9535, 0
      %v9681 = vsel %vm2537, %v9542, 0
      %v9682 = vsel %vm2537, %v9549, 0
      %v9683 = vsel %vm2537, %v9556, 0
      %v9684 = vsel %vm2537, %v9563, 0
      %v9685 = vsel %vm2537, %v9570, 0
      %v9686 = vsel %vm2537, %v9577, 0
      %v9687 = vsel %vm2537, %v9584, 0
      %v9688 = vsel %vm2537, %v9591, 0
      %v9689 = vsel %vm2537, %v9598, 0
      %v9690 = vsel %vm2537, %v9605, 0
      %v9691 = vsel %vm2537, %v9612, 0
      %v9692 = vsel %vm2537, %v9619, 0
      %v9693 = vsel %vm2537, %v9626, 0
      %v9695 = vshrl.u32 %v9662, 16
      %v9697 = vshll.u32 %v9662, 16
      %v9699 = vrot.slane %v9697, 1
      %v9700 = vor.u32 %v9695, %v9699
      %v9702 = vshll.u32 %v9678, 16
      %v9704 = vrot.slane %v9702, 1
      %v9705 = vsel %vm1196, %v9700, %v9704
      %v9707 = vshrl.u32 %v9663, 16
      %v9709 = vshll.u32 %v9663, 16
      %v9711 = vrot.slane %v9709, 1
      %v9712 = vor.u32 %v9707, %v9711
      %v9714 = vshll.u32 %v9679, 16
      %v9716 = vrot.slane %v9714, 1
      %v9717 = vsel %vm1196, %v9712, %v9716
      %v9719 = vshrl.u32 %v9664, 16
      %v9721 = vshll.u32 %v9664, 16
      %v9723 = vrot.slane %v9721, 1
      %v9724 = vor.u32 %v9719, %v9723
      %v9726 = vshll.u32 %v9680, 16
      %v9728 = vrot.slane %v9726, 1
      %v9729 = vsel %vm1196, %v9724, %v9728
      %v9731 = vshrl.u32 %v9665, 16
      %v9733 = vshll.u32 %v9665, 16
      %v9735 = vrot.slane %v9733, 1
      %v9736 = vor.u32 %v9731, %v9735
      %v9738 = vshll.u32 %v9681, 16
      %v9740 = vrot.slane %v9738, 1
      %v9741 = vsel %vm1196, %v9736, %v9740
      %v9743 = vshrl.u32 %v9666, 16
      %v9745 = vshll.u32 %v9666, 16
      %v9747 = vrot.slane %v9745, 1
      %v9748 = vor.u32 %v9743, %v9747
      %v9750 = vshll.u32 %v9682, 16
      %v9752 = vrot.slane %v9750, 1
      %v9753 = vsel %vm1196, %v9748, %v9752
      %v9755 = vshrl.u32 %v9667, 16
      %v9757 = vshll.u32 %v9667, 16
      %v9759 = vrot.slane %v9757, 1
      %v9760 = vor.u32 %v9755, %v9759
      %v9762 = vshll.u32 %v9683, 16
      %v9764 = vrot.slane %v9762, 1
      %v9765 = vsel %vm1196, %v9760, %v9764
      %v9767 = vshrl.u32 %v9668, 16
      %v9769 = vshll.u32 %v9668, 16
      %v9771 = vrot.slane %v9769, 1
      %v9772 = vor.u32 %v9767, %v9771
      %v9774 = vshll.u32 %v9684, 16
      %v9776 = vrot.slane %v9774, 1
      %v9777 = vsel %vm1196, %v9772, %v9776
      %v9779 = vshrl.u32 %v9669, 16
      %v9781 = vshll.u32 %v9669, 16
      %v9783 = vrot.slane %v9781, 1
      %v9784 = vor.u32 %v9779, %v9783
      %v9786 = vshll.u32 %v9685, 16
      %v9788 = vrot.slane %v9786, 1
      %v9789 = vsel %vm1196, %v9784, %v9788
      %v9791 = vshrl.u32 %v9670, 16
      %v9793 = vshll.u32 %v9670, 16
      %v9795 = vrot.slane %v9793, 1
      %v9796 = vor.u32 %v9791, %v9795
      %v9798 = vshll.u32 %v9686, 16
      %v9800 = vrot.slane %v9798, 1
      %v9801 = vsel %vm1196, %v9796, %v9800
      %v9803 = vshrl.u32 %v9671, 16
      %v9805 = vshll.u32 %v9671, 16
      %v9807 = vrot.slane %v9805, 1
      %v9808 = vor.u32 %v9803, %v9807
      %v9810 = vshll.u32 %v9687, 16
      %v9812 = vrot.slane %v9810, 1
      %v9813 = vsel %vm1196, %v9808, %v9812
      %v9815 = vshrl.u32 %v9672, 16
      %v9817 = vshll.u32 %v9672, 16
      %v9819 = vrot.slane %v9817, 1
      %v9820 = vor.u32 %v9815, %v9819
      %v9822 = vshll.u32 %v9688, 16
      %v9824 = vrot.slane %v9822, 1
      %v9825 = vsel %vm1196, %v9820, %v9824
      %v9827 = vshrl.u32 %v9673, 16
      %v9829 = vshll.u32 %v9673, 16
      %v9831 = vrot.slane %v9829, 1
      %v9832 = vor.u32 %v9827, %v9831
      %v9834 = vshll.u32 %v9689, 16
      %v9836 = vrot.slane %v9834, 1
      %v9837 = vsel %vm1196, %v9832, %v9836
      %v9839 = vshrl.u32 %v9674, 16
      %v9841 = vshll.u32 %v9674, 16
      %v9843 = vrot.slane %v9841, 1
      %v9844 = vor.u32 %v9839, %v9843
      %v9846 = vshll.u32 %v9690, 16
      %v9848 = vrot.slane %v9846, 1
      %v9849 = vsel %vm1196, %v9844, %v9848
      %v9851 = vshrl.u32 %v9675, 16
      %v9853 = vshll.u32 %v9675, 16
      %v9855 = vrot.slane %v9853, 1
      %v9856 = vor.u32 %v9851, %v9855
      %v9858 = vshll.u32 %v9691, 16
      %v9860 = vrot.slane %v9858, 1
      %v9861 = vsel %vm1196, %v9856, %v9860
      %v9863 = vshrl.u32 %v9676, 16
      %v9865 = vshll.u32 %v9676, 16
      %v9867 = vrot.slane %v9865, 1
      %v9868 = vor.u32 %v9863, %v9867
      %v9870 = vshll.u32 %v9692, 16
      %v9872 = vrot.slane %v9870, 1
      %v9873 = vsel %vm1196, %v9868, %v9872
      %9874 = vrot.lane.b32.xlu0 %v9705, 16
      %v9875 = vpop.permute.xlu0 %9874
      %9876 = vrot.lane.b32.xlu0 %v9717, 16
      %v9877 = vpop.permute.xlu0 %9876
      %9878 = vrot.lane.b32.xlu0 %v9729, 16
      %v9879 = vpop.permute.xlu0 %9878
      %9880 = vrot.lane.b32.xlu0 %v9741, 16
      %v9881 = vpop.permute.xlu0 %9880
      %9882 = vrot.lane.b32.xlu0 %v9753, 16
      %v9883 = vpop.permute.xlu0 %9882
      %9884 = vrot.lane.b32.xlu0 %v9765, 16
      %v9885 = vpop.permute.xlu0 %9884
      %9886 = vrot.lane.b32.xlu0 %v9777, 16
      %v9887 = vpop.permute.xlu0 %9886
      %9888 = vrot.lane.b32.xlu0 %v9789, 16
      %v9889 = vpop.permute.xlu0 %9888
      %9890 = vrot.lane.b32.xlu0 %v9801, 16
      %v9891 = vpop.permute.xlu0 %9890
      %9892 = vrot.lane.b32.xlu0 %v9813, 16
      %v9893 = vpop.permute.xlu0 %9892
      %9894 = vrot.lane.b32.xlu0 %v9825, 16
      %v9895 = vpop.permute.xlu0 %9894
      %9896 = vrot.lane.b32.xlu0 %v9837, 16
      %v9897 = vpop.permute.xlu0 %9896
      %9898 = vrot.lane.b32.xlu0 %v9849, 16
      %v9899 = vpop.permute.xlu0 %9898
      %9900 = vrot.lane.b32.xlu0 %v9861, 16
      %v9901 = vpop.permute.xlu0 %9900
      %9902 = vrot.lane.b32.xlu0 %v9873, 16
      %v9903 = vpop.permute.xlu0 %9902
      %v9934 = vrot.slane %v9662, 1
      %v9935 = vrot.slane %v9678, 1
      %v9936 = vsel %vm1421, %v9934, %v9935
      %v9937 = vrot.slane %v9663, 1
      %v9938 = vrot.slane %v9679, 1
      %v9939 = vsel %vm1421, %v9937, %v9938
      %v9940 = vrot.slane %v9664, 1
      %v9941 = vrot.slane %v9680, 1
      %v9942 = vsel %vm1421, %v9940, %v9941
      %v9943 = vrot.slane %v9665, 1
      %v9944 = vrot.slane %v9681, 1
      %v9945 = vsel %vm1421, %v9943, %v9944
      %v9946 = vrot.slane %v9666, 1
      %v9947 = vrot.slane %v9682, 1
      %v9948 = vsel %vm1421, %v9946, %v9947
      %v9949 = vrot.slane %v9667, 1
      %v9950 = vrot.slane %v9683, 1
      %v9951 = vsel %vm1421, %v9949, %v9950
      %v9952 = vrot.slane %v9668, 1
      %v9953 = vrot.slane %v9684, 1
      %v9954 = vsel %vm1421, %v9952, %v9953
      %v9955 = vrot.slane %v9669, 1
      %v9956 = vrot.slane %v9685, 1
      %v9957 = vsel %vm1421, %v9955, %v9956
      %v9958 = vrot.slane %v9670, 1
      %v9959 = vrot.slane %v9686, 1
      %v9960 = vsel %vm1421, %v9958, %v9959
      %v9961 = vrot.slane %v9671, 1
      %v9962 = vrot.slane %v9687, 1
      %v9963 = vsel %vm1421, %v9961, %v9962
      %v9964 = vrot.slane %v9672, 1
      %v9965 = vrot.slane %v9688, 1
      %v9966 = vsel %vm1421, %v9964, %v9965
      %v9967 = vrot.slane %v9673, 1
      %v9968 = vrot.slane %v9689, 1
      %v9969 = vsel %vm1421, %v9967, %v9968
      %v9970 = vrot.slane %v9674, 1
      %v9971 = vrot.slane %v9690, 1
      %v9972 = vsel %vm1421, %v9970, %v9971
      %v9973 = vrot.slane %v9675, 1
      %v9974 = vrot.slane %v9691, 1
      %v9975 = vsel %vm1421, %v9973, %v9974
      %v9976 = vrot.slane %v9676, 1
      %v9977 = vrot.slane %v9692, 1
      %v9978 = vsel %vm1421, %v9976, %v9977
      %9979 = vrot.lane.b32.xlu0 %v9936, 32
      %v9980 = vpop.permute.xlu0 %9979
      %9981 = vrot.lane.b32.xlu0 %v9939, 32
      %v9982 = vpop.permute.xlu0 %9981
      %9983 = vrot.lane.b32.xlu0 %v9942, 32
      %v9984 = vpop.permute.xlu0 %9983
      %9985 = vrot.lane.b32.xlu0 %v9945, 32
      %v9986 = vpop.permute.xlu0 %9985
      %9987 = vrot.lane.b32.xlu0 %v9948, 32
      %v9988 = vpop.permute.xlu0 %9987
      %9989 = vrot.lane.b32.xlu0 %v9951, 32
      %v9990 = vpop.permute.xlu0 %9989
      %9991 = vrot.lane.b32.xlu0 %v9954, 32
      %v9992 = vpop.permute.xlu0 %9991
      %9993 = vrot.lane.b32.xlu0 %v9957, 32
      %v9994 = vpop.permute.xlu0 %9993
      %9995 = vrot.lane.b32.xlu0 %v9960, 32
      %v9996 = vpop.permute.xlu0 %9995
      %9997 = vrot.lane.b32.xlu0 %v9963, 32
      %v9998 = vpop.permute.xlu0 %9997
      %9999 = vrot.lane.b32.xlu0 %v9966, 32
      %v10000 = vpop.permute.xlu0 %9999
      %10001 = vrot.lane.b32.xlu0 %v9969, 32
      %v10002 = vpop.permute.xlu0 %10001
      %10003 = vrot.lane.b32.xlu0 %v9972, 32
      %v10004 = vpop.permute.xlu0 %10003
      %10005 = vrot.lane.b32.xlu0 %v9975, 32
      %v10006 = vpop.permute.xlu0 %10005
      %10007 = vrot.lane.b32.xlu0 %v9978, 32
      %v10008 = vpop.permute.xlu0 %10007
      %10010 = vrot.lane.b32.xlu0 %v9662, 48
      %v10011 = vpop.permute.xlu0 %10010
      %10012 = vrot.lane.b32.xlu0 %v9663, 48
      %v10013 = vpop.permute.xlu0 %10012
      %10014 = vrot.lane.b32.xlu0 %v9664, 48
      %v10015 = vpop.permute.xlu0 %10014
      %10016 = vrot.lane.b32.xlu0 %v9665, 48
      %v10017 = vpop.permute.xlu0 %10016
      %10018 = vrot.lane.b32.xlu0 %v9666, 48
      %v10019 = vpop.permute.xlu0 %10018
      %10020 = vrot.lane.b32.xlu0 %v9667, 48
      %v10021 = vpop.permute.xlu0 %10020
      %10022 = vrot.lane.b32.xlu0 %v9668, 48
      %v10023 = vpop.permute.xlu0 %10022
      %10024 = vrot.lane.b32.xlu0 %v9669, 48
      %v10025 = vpop.permute.xlu0 %10024
      %10026 = vrot.lane.b32.xlu0 %v9670, 48
      %v10027 = vpop.permute.xlu0 %10026
      %10028 = vrot.lane.b32.xlu0 %v9671, 48
      %v10029 = vpop.permute.xlu0 %10028
      %10030 = vrot.lane.b32.xlu0 %v9672, 48
      %v10031 = vpop.permute.xlu0 %10030
      %10032 = vrot.lane.b32.xlu0 %v9673, 48
      %v10033 = vpop.permute.xlu0 %10032
      %10034 = vrot.lane.b32.xlu0 %v9674, 48
      %v10035 = vpop.permute.xlu0 %10034
      %10036 = vrot.lane.b32.xlu0 %v9675, 48
      %v10037 = vpop.permute.xlu0 %10036
      %10038 = vrot.lane.b32.xlu0 %v9676, 48
      %v10039 = vpop.permute.xlu0 %10038
      %10040 = vrot.lane.b32.xlu0 %v9677, 48
      %v10041 = vpop.permute.xlu0 %10040
      %v10043 = vshrl.u32 %v9677, 16
      %v10045 = vshll.u32 %v9677, 16
      %v10047 = vrot.slane %v10045, 1
      %v10048 = vor.u32 %v10043, %v10047
      %v10050 = vshll.u32 %v9693, 16
      %v10052 = vrot.slane %v10050, 1
      %v10053 = vsel %vm1196, %v10048, %v10052
      %10054 = vrot.lane.b32.xlu0 %v9705, 64
      %v10055 = vpop.permute.xlu0 %10054
      %10056 = vrot.lane.b32.xlu0 %v9717, 64
      %v10057 = vpop.permute.xlu0 %10056
      %10058 = vrot.lane.b32.xlu0 %v9729, 64
      %v10059 = vpop.permute.xlu0 %10058
      %10060 = vrot.lane.b32.xlu0 %v9741, 64
      %v10061 = vpop.permute.xlu0 %10060
      %10062 = vrot.lane.b32.xlu0 %v9753, 64
      %v10063 = vpop.permute.xlu0 %10062
      %10064 = vrot.lane.b32.xlu0 %v9765, 64
      %v10065 = vpop.permute.xlu0 %10064
      %10066 = vrot.lane.b32.xlu0 %v9777, 64
      %v10067 = vpop.permute.xlu0 %10066
      %10068 = vrot.lane.b32.xlu0 %v9789, 64
      %v10069 = vpop.permute.xlu0 %10068
      %10070 = vrot.lane.b32.xlu0 %v9801, 64
      %v10071 = vpop.permute.xlu0 %10070
      %10072 = vrot.lane.b32.xlu0 %v9813, 64
      %v10073 = vpop.permute.xlu0 %10072
      %10074 = vrot.lane.b32.xlu0 %v9825, 64
      %v10075 = vpop.permute.xlu0 %10074
      %10076 = vrot.lane.b32.xlu0 %v9837, 64
      %v10077 = vpop.permute.xlu0 %10076
      %10078 = vrot.lane.b32.xlu0 %v9849, 64
      %v10079 = vpop.permute.xlu0 %10078
      %10080 = vrot.lane.b32.xlu0 %v9861, 64
      %v10081 = vpop.permute.xlu0 %10080
      %10082 = vrot.lane.b32.xlu0 %v9873, 64
      %v10083 = vpop.permute.xlu0 %10082
      %10084 = vrot.lane.b32.xlu0 %v10053, 64
      %v10085 = vpop.permute.xlu0 %10084
      %v10087 = vrot.slane %v9677, 1
      %v10088 = vrot.slane %v9693, 1
      %v10089 = vsel %vm1421, %v10087, %v10088
      %10090 = vrot.lane.b32.xlu0 %v9936, 80
      %v10091 = vpop.permute.xlu0 %10090
      %10092 = vrot.lane.b32.xlu0 %v9939, 80
      %v10093 = vpop.permute.xlu0 %10092
      %10094 = vrot.lane.b32.xlu0 %v9942, 80
      %v10095 = vpop.permute.xlu0 %10094
      %10096 = vrot.lane.b32.xlu0 %v9945, 80
      %v10097 = vpop.permute.xlu0 %10096
      %10098 = vrot.lane.b32.xlu0 %v9948, 80
      %v10099 = vpop.permute.xlu0 %10098
      %10100 = vrot.lane.b32.xlu0 %v9951, 80
      %v10101 = vpop.permute.xlu0 %10100
      %10102 = vrot.lane.b32.xlu0 %v9954, 80
      %v10103 = vpop.permute.xlu0 %10102
      %10104 = vrot.lane.b32.xlu0 %v9957, 80
      %v10105 = vpop.permute.xlu0 %10104
      %10106 = vrot.lane.b32.xlu0 %v9960, 80
      %v10107 = vpop.permute.xlu0 %10106
      %10108 = vrot.lane.b32.xlu0 %v9963, 80
      %v10109 = vpop.permute.xlu0 %10108
      %10110 = vrot.lane.b32.xlu0 %v9966, 80
      %v10111 = vpop.permute.xlu0 %10110
      %10112 = vrot.lane.b32.xlu0 %v9969, 80
      %v10113 = vpop.permute.xlu0 %10112
      %10114 = vrot.lane.b32.xlu0 %v9972, 80
      %v10115 = vpop.permute.xlu0 %10114
      %10116 = vrot.lane.b32.xlu0 %v9975, 80
      %v10117 = vpop.permute.xlu0 %10116
      %10118 = vrot.lane.b32.xlu0 %v9978, 80
      %v10119 = vpop.permute.xlu0 %10118
      %10120 = vrot.lane.b32.xlu0 %v10089, 80
      %v10121 = vpop.permute.xlu0 %10120
      %10122 = vrot.lane.b32.xlu0 %v9663, 96
      %v10123 = vpop.permute.xlu0 %10122
      %10124 = vrot.lane.b32.xlu0 %v9664, 96
      %v10125 = vpop.permute.xlu0 %10124
      %10126 = vrot.lane.b32.xlu0 %v9665, 96
      %v10127 = vpop.permute.xlu0 %10126
      %10128 = vrot.lane.b32.xlu0 %v9666, 96
      %v10129 = vpop.permute.xlu0 %10128
      %10130 = vrot.lane.b32.xlu0 %v9667, 96
      %v10131 = vpop.permute.xlu0 %10130
      %10132 = vrot.lane.b32.xlu0 %v9668, 96
      %v10133 = vpop.permute.xlu0 %10132
      %10134 = vrot.lane.b32.xlu0 %v9669, 96
      %v10135 = vpop.permute.xlu0 %10134
      %10136 = vrot.lane.b32.xlu0 %v9670, 96
      %v10137 = vpop.permute.xlu0 %10136
      %10138 = vrot.lane.b32.xlu0 %v9671, 96
      %v10139 = vpop.permute.xlu0 %10138
      %10140 = vrot.lane.b32.xlu0 %v9672, 96
      %v10141 = vpop.permute.xlu0 %10140
      %10142 = vrot.lane.b32.xlu0 %v9673, 96
      %v10143 = vpop.permute.xlu0 %10142
      %10144 = vrot.lane.b32.xlu0 %v9674, 96
      %v10145 = vpop.permute.xlu0 %10144
      %10146 = vrot.lane.b32.xlu0 %v9675, 96
      %v10147 = vpop.permute.xlu0 %10146
      %10148 = vrot.lane.b32.xlu0 %v9676, 96
      %v10149 = vpop.permute.xlu0 %10148
      %10150 = vrot.lane.b32.xlu0 %v9677, 96
      %v10151 = vpop.permute.xlu0 %10150
      %10152 = vrot.lane.b32.xlu0 %v9717, 112
      %v10153 = vpop.permute.xlu0 %10152
      %10154 = vrot.lane.b32.xlu0 %v9729, 112
      %v10155 = vpop.permute.xlu0 %10154
      %10156 = vrot.lane.b32.xlu0 %v9741, 112
      %v10157 = vpop.permute.xlu0 %10156
      %10158 = vrot.lane.b32.xlu0 %v9753, 112
      %v10159 = vpop.permute.xlu0 %10158
      %10160 = vrot.lane.b32.xlu0 %v9765, 112
      %v10161 = vpop.permute.xlu0 %10160
      %10162 = vrot.lane.b32.xlu0 %v9777, 112
      %v10163 = vpop.permute.xlu0 %10162
      %10164 = vrot.lane.b32.xlu0 %v9789, 112
      %v10165 = vpop.permute.xlu0 %10164
      %10166 = vrot.lane.b32.xlu0 %v9801, 112
      %v10167 = vpop.permute.xlu0 %10166
      %10168 = vrot.lane.b32.xlu0 %v9813, 112
      %v10169 = vpop.permute.xlu0 %10168
      %10170 = vrot.lane.b32.xlu0 %v9825, 112
      %v10171 = vpop.permute.xlu0 %10170
      %10172 = vrot.lane.b32.xlu0 %v9837, 112
      %v10173 = vpop.permute.xlu0 %10172
      %10174 = vrot.lane.b32.xlu0 %v9849, 112
      %v10175 = vpop.permute.xlu0 %10174
      %10176 = vrot.lane.b32.xlu0 %v9861, 112
      %v10177 = vpop.permute.xlu0 %10176
      %10178 = vrot.lane.b32.xlu0 %v9873, 112
      %v10179 = vpop.permute.xlu0 %10178
      %10180 = vrot.lane.b32.xlu0 %v10053, 112
      %v10181 = vpop.permute.xlu0 %10180
      %v10183 = vsel %vm1773, %v9662, %v9875
      %v10185 = vsel %vm1773, %v9663, %v9877
      %v10187 = vsel %vm1773, %v9664, %v9879
      %v10189 = vsel %vm1773, %v9665, %v9881
      %v10191 = vsel %vm1773, %v9666, %v9883
      %v10193 = vsel %vm1773, %v9667, %v9885
      %v10195 = vsel %vm1773, %v9668, %v9887
      %v10197 = vsel %vm1773, %v9669, %v9889
      %v10199 = vsel %vm1773, %v9670, %v9891
      %v10201 = vsel %vm1773, %v9671, %v9893
      %v10203 = vsel %vm1773, %v9672, %v9895
      %v10205 = vsel %vm1773, %v9673, %v9897
      %v10207 = vsel %vm1773, %v9674, %v9899
      %v10209 = vsel %vm1773, %v9675, %v9901
      %v10211 = vsel %vm1773, %v9676, %v9903
      %v10213 = vsel %vm1839, %v10183, %v9980
      %v10215 = vsel %vm1839, %v10185, %v9982
      %v10217 = vsel %vm1839, %v10187, %v9984
      %v10219 = vsel %vm1839, %v10189, %v9986
      %v10221 = vsel %vm1839, %v10191, %v9988
      %v10223 = vsel %vm1839, %v10193, %v9990
      %v10225 = vsel %vm1839, %v10195, %v9992
      %v10227 = vsel %vm1839, %v10197, %v9994
      %v10229 = vsel %vm1839, %v10199, %v9996
      %v10231 = vsel %vm1839, %v10201, %v9998
      %v10233 = vsel %vm1839, %v10203, %v10000
      %v10235 = vsel %vm1839, %v10205, %v10002
      %v10237 = vsel %vm1839, %v10207, %v10004
      %v10239 = vsel %vm1839, %v10209, %v10006
      %v10241 = vsel %vm1839, %v10211, %v10008
      %v10243 = vsel %vm1905, %v7156, %v10011
      %v10245 = vsel %vm1905, %v10213, %v10013
      %v10247 = vsel %vm1905, %v10215, %v10015
      %v10249 = vsel %vm1905, %v10217, %v10017
      %v10251 = vsel %vm1905, %v10219, %v10019
      %v10253 = vsel %vm1905, %v10221, %v10021
      %v10255 = vsel %vm1905, %v10223, %v10023
      %v10257 = vsel %vm1905, %v10225, %v10025
      %v10259 = vsel %vm1905, %v10227, %v10027
      %v10261 = vsel %vm1905, %v10229, %v10029
      %v10263 = vsel %vm1905, %v10231, %v10031
      %v10265 = vsel %vm1905, %v10233, %v10033
      %v10267 = vsel %vm1905, %v10235, %v10035
      %v10269 = vsel %vm1905, %v10237, %v10037
      %v10271 = vsel %vm1905, %v10239, %v10039
      %v10273 = vsel %vm1905, %v10241, %v10041
      %v10275 = vsel %vm1971, %v10243, %v10055
      %v10277 = vsel %vm1971, %v10245, %v10057
      %v10279 = vsel %vm1971, %v10247, %v10059
      %v10281 = vsel %vm1971, %v10249, %v10061
      %v10283 = vsel %vm1971, %v10251, %v10063
      %v10285 = vsel %vm1971, %v10253, %v10065
      %v10287 = vsel %vm1971, %v10255, %v10067
      %v10289 = vsel %vm1971, %v10257, %v10069
      %v10291 = vsel %vm1971, %v10259, %v10071
      %v10293 = vsel %vm1971, %v10261, %v10073
      %v10295 = vsel %vm1971, %v10263, %v10075
      %v10297 = vsel %vm1971, %v10265, %v10077
      %v10299 = vsel %vm1971, %v10267, %v10079
      %v10301 = vsel %vm1971, %v10269, %v10081
      %v10303 = vsel %vm1971, %v10271, %v10083
      %v10305 = vsel %vm1971, %v10273, %v10085
      %v10307 = vsel %vm7251, %v10275, %v10091
      %v10309 = vsel %vm7251, %v10277, %v10093
      %v10311 = vsel %vm7251, %v10279, %v10095
      %v10313 = vsel %vm7251, %v10281, %v10097
      %v10315 = vsel %vm7251, %v10283, %v10099
      %v10317 = vsel %vm7251, %v10285, %v10101
      %v10319 = vsel %vm7251, %v10287, %v10103
      %v10321 = vsel %vm7251, %v10289, %v10105
      %v10323 = vsel %vm7251, %v10291, %v10107
      %v10325 = vsel %vm7251, %v10293, %v10109
      %v10327 = vsel %vm7251, %v10295, %v10111
      %v10329 = vsel %vm7251, %v10297, %v10113
      %v10331 = vsel %vm7251, %v10299, %v10115
      %v10333 = vsel %vm7251, %v10301, %v10117
      %v10335 = vsel %vm7251, %v10303, %v10119
      %v10337 = vsel %vm7251, %v10305, %v10121
      %v10339 = vsel %vm7284, %v10307, %v10123
      %v10341 = vsel %vm7284, %v10309, %v10125
      %v10343 = vsel %vm7284, %v10311, %v10127
      %v10345 = vsel %vm7284, %v10313, %v10129
      %v10347 = vsel %vm7284, %v10315, %v10131
      %v10349 = vsel %vm7284, %v10317, %v10133
      %v10351 = vsel %vm7284, %v10319, %v10135
      %v10353 = vsel %vm7284, %v10321, %v10137
      %v10355 = vsel %vm7284, %v10323, %v10139
      %v10357 = vsel %vm7284, %v10325, %v10141
      %v10359 = vsel %vm7284, %v10327, %v10143
      %v10361 = vsel %vm7284, %v10329, %v10145
      %v10363 = vsel %vm7284, %v10331, %v10147
      %v10365 = vsel %vm7284, %v10333, %v10149
      %v10367 = vsel %vm7284, %v10335, %v10151
      %v10368 = vsel %vm7284, %v10337, %v7090
      %v10370 = vsel %vm7317, %v10339, %v10153
      %v10373 = vsel %vm7317, %v10341, %v10155
      %v10376 = vsel %vm7317, %v10343, %v10157
      %v10379 = vsel %vm7317, %v10345, %v10159
      %v10382 = vsel %vm7317, %v10347, %v10161
      %v10385 = vsel %vm7317, %v10349, %v10163
      %v10388 = vsel %vm7317, %v10351, %v10165
      %v10391 = vsel %vm7317, %v10353, %v10167
      %v10394 = vsel %vm7317, %v10355, %v10169
      %v10397 = vsel %vm7317, %v10357, %v10171
      %v10400 = vsel %vm7317, %v10359, %v10173
      %v10403 = vsel %vm7317, %v10361, %v10175
      %v10406 = vsel %vm7317, %v10363, %v10177
      %v10409 = vsel %vm7317, %v10365, %v10179
      %v10412 = vsel %vm7317, %v10367, %v10181
      %v10414 = vsel %vm7317, %v10368, %v7122
      %v10416 = vld [vmem:[%s45] sm:$0xf]
      %v10417 = vld [vmem:[%s45 + $0x4] sm:$0xf]
      %v10418 = vld [vmem:[%s45 + $0x8] sm:$0xf]
      %v10419 = vld [vmem:[%s45 + $0xc] sm:$0xf]
      %v10420 = vld [vmem:[%s45 + $0x10] sm:$0xf]
      %v10421 = vld [vmem:[%s45 + $0x14] sm:$0xf]
      %v10422 = vld [vmem:[%s45 + $0x18] sm:$0xf]
      %v10423 = vld [vmem:[%s45 + $0x1c] sm:$0xf]
      %v10424 = vld [vmem:[%s45 + $0x20] sm:$0xf]
      %v10425 = vld [vmem:[%s45 + $0x24] sm:$0xf]
      %v10426 = vld [vmem:[%s45 + $0x28] sm:$0xf]
      %v10427 = vld [vmem:[%s45 + $0x2c] sm:$0xf]
      %v10428 = vld [vmem:[%s45 + $0x30] sm:$0xf]
      %v10429 = vld [vmem:[%s45 + $0x34] sm:$0xf]
      %v10430 = vld [vmem:[%s45 + $0x38] sm:$0xf]
      %v10431 = vld [vmem:[%s45 + $0x3c] sm:$0xf]
      %v10432 = vld [vmem:[%s45 + $0x40] sm:$0xf]
      %v10433 = vld [vmem:[%s45 + $0x44] sm:$0xf]
      %v10452 = vunpack.c.l.b16 %v10416
      %v10453 = vunpack.c.l.b16 %v10417
      %v10454 = vunpack.c.l.b16 %v10418
      %v10455 = vunpack.c.l.b16 %v10419
      %v10456 = vunpack.c.l.b16 %v10420
      %v10457 = vunpack.c.l.b16 %v10421
      %v10458 = vunpack.c.l.b16 %v10422
      %v10459 = vunpack.c.l.b16 %v10423
      %v10460 = vunpack.c.l.b16 %v10424
      %v10461 = vunpack.c.l.b16 %v10425
      %v10462 = vunpack.c.l.b16 %v10426
      %v10463 = vunpack.c.l.b16 %v10427
      %v10464 = vunpack.c.l.b16 %v10428
      %v10465 = vunpack.c.l.b16 %v10429
      %v10466 = vunpack.c.l.b16 %v10430
      %v10467 = vunpack.c.l.b16 %v10431
      %v10468 = vunpack.c.l.b16 %v10432
      %v10469 = vunpack.c.l.b16 %v10433
      %v10470 = vpack.c.b16 %v10453, %v10452
      %v10471 = vpack.c.b16 %v10455, %v10454
      %v10472 = vpack.c.b16 %v10457, %v10456
      %v10473 = vpack.c.b16 %v10459, %v10458
      %v10474 = vpack.c.b16 %v10461, %v10460
      %v10475 = vpack.c.b16 %v10463, %v10462
      %v10476 = vpack.c.b16 %v10465, %v10464
      %v10477 = vpack.c.b16 %v10467, %v10466
      %v10478 = vpack.c.b16 %v10469, %v10468
      %v10489 = vsel %vm1773, %v9939, 0
      %v10492 = vsel %vm1773, %v9942, 0
      %v10495 = vsel %vm1773, %v9945, 0
      %v10498 = vsel %vm1773, %v9948, 0
      %v10501 = vsel %vm1773, %v9951, 0
      %v10504 = vsel %vm1773, %v9954, 0
      %v10507 = vsel %vm1773, %v9957, 0
      %v10510 = vsel %vm1773, %v9960, 0
      %v10513 = vsel %vm1773, %v9963, 0
      %v10516 = vsel %vm1773, %v9966, 0
      %v10519 = vsel %vm1773, %v9969, 0
      %v10522 = vsel %vm1773, %v9972, 0
      %v10525 = vsel %vm1773, %v9975, 0
      %v10528 = vsel %vm1773, %v9978, 0
      %v10531 = vsel %vm1773, %v10089, 0
      %10533 = vmatpush.bf16.msra.mxu0 %v10477
      %10534 = vmatpush.bf16.msra.mxu0 %v10476
      %10535 = vmatpush.bf16.msra.mxu0 %v10475
      %10536 = vmatpush.bf16.msra.mxu0 %v10474
      %10537 = vmatpush.bf16.msra.mxu0 %v10473
      %10538 = vmatpush.bf16.msra.mxu0 %v10472
      %10539 = vmatpush.bf16.msra.mxu0 %v10471
      %10540 = vmatpush.bf16.msra.mxu0 %v10470
      %10541 = vmatmul.bf16.gmra.mxu0 %v10370
      %v10542 = vpop.f32.mrf.mxu0
      %v10543 = vadd.f32 0.0, %v10542
      %v10544 = vpop.f32.mrf.mxu0
      %v10545 = vadd.f32 0.0, %v10544
      %10546 = vmatmul.bf16.gmra.mxu0 %v10373
      %v10547 = vpop.f32.mrf.mxu0
      %v10548 = vadd.f32 0.0, %v10547
      %v10549 = vpop.f32.mrf.mxu0
      %v10550 = vadd.f32 0.0, %v10549
      %10551 = vmatmul.bf16.gmra.mxu0 %v10376
      %v10552 = vpop.f32.mrf.mxu0
      %v10553 = vadd.f32 0.0, %v10552
      %v10554 = vpop.f32.mrf.mxu0
      %v10555 = vadd.f32 0.0, %v10554
      %10556 = vmatmul.bf16.gmra.mxu0 %v10379
      %v10557 = vpop.f32.mrf.mxu0
      %v10558 = vadd.f32 0.0, %v10557
      %v10559 = vpop.f32.mrf.mxu0
      %v10560 = vadd.f32 0.0, %v10559
      %10561 = vmatmul.bf16.gmra.mxu0 %v10382
      %v10562 = vpop.f32.mrf.mxu0
      %v10563 = vadd.f32 0.0, %v10562
      %v10564 = vpop.f32.mrf.mxu0
      %v10565 = vadd.f32 0.0, %v10564
      %10566 = vmatmul.bf16.gmra.mxu0 %v10385
      %v10567 = vpop.f32.mrf.mxu0
      %v10568 = vadd.f32 0.0, %v10567
      %v10569 = vpop.f32.mrf.mxu0
      %v10570 = vadd.f32 0.0, %v10569
      %10571 = vmatmul.bf16.gmra.mxu0 %v10388
      %v10572 = vpop.f32.mrf.mxu0
      %v10573 = vadd.f32 0.0, %v10572
      %v10574 = vpop.f32.mrf.mxu0
      %v10575 = vadd.f32 0.0, %v10574
      %10576 = vmatmul.bf16.gmra.mxu0 %v10391
      %v10577 = vpop.f32.mrf.mxu0
      %v10578 = vadd.f32 0.0, %v10577
      %v10579 = vpop.f32.mrf.mxu0
      %v10580 = vadd.f32 0.0, %v10579
      %10581 = vmatmul.bf16.gmra.mxu0 %v10394
      %v10582 = vpop.f32.mrf.mxu0
      %v10583 = vadd.f32 0.0, %v10582
      %v10584 = vpop.f32.mrf.mxu0
      %v10585 = vadd.f32 0.0, %v10584
      %10586 = vmatmul.bf16.gmra.mxu0 %v10397
      %v10587 = vpop.f32.mrf.mxu0
      %v10588 = vadd.f32 0.0, %v10587
      %v10589 = vpop.f32.mrf.mxu0
      %v10590 = vadd.f32 0.0, %v10589
      %10591 = vmatmul.bf16.gmra.mxu0 %v10400
      %v10592 = vpop.f32.mrf.mxu0
      %v10593 = vadd.f32 0.0, %v10592
      %v10594 = vpop.f32.mrf.mxu0
      %v10595 = vadd.f32 0.0, %v10594
      %10596 = vmatmul.bf16.gmra.mxu0 %v10403
      %v10597 = vpop.f32.mrf.mxu0
      %v10598 = vadd.f32 0.0, %v10597
      %v10599 = vpop.f32.mrf.mxu0
      %v10600 = vadd.f32 0.0, %v10599
      %10601 = vmatmul.bf16.gmra.mxu0 %v10406
      %v10602 = vpop.f32.mrf.mxu0
      %v10603 = vadd.f32 0.0, %v10602
      %v10604 = vpop.f32.mrf.mxu0
      %v10605 = vadd.f32 0.0, %v10604
      %10606 = vmatmul.bf16.gmra.mxu0 %v10409
      %v10607 = vpop.f32.mrf.mxu0
      %v10608 = vadd.f32 0.0, %v10607
      %v10609 = vpop.f32.mrf.mxu0
      %v10610 = vadd.f32 0.0, %v10609
      %10611 = vmatmul.bf16.gmra.mxu0 %v10412
      %v10612 = vpop.f32.mrf.mxu0
      %v10613 = vadd.f32 0.0, %v10612
      %v10614 = vpop.f32.mrf.mxu0
      %v10615 = vadd.f32 0.0, %v10614
      %10616 = vmatmul.bf16.gmra.mxu0 %v10414
      %v10617 = vpop.f32.mrf.mxu0
      %v10618 = vadd.f32 0.0, %v10617
      %v10619 = vpop.f32.mrf.mxu0
      %v10620 = vadd.f32 0.0, %v10619
      %10621 = vdwg.mxu0
      %10622 = vmatpush.bf16.msra.mxu0 0
      %10623 = vmatpush.bf16.msra.mxu0 0
      %10624 = vmatpush.bf16.msra.mxu0 0
      %10625 = vmatpush.bf16.msra.mxu0 0
      %10626 = vmatpush.bf16.msra.mxu0 0
      %10627 = vmatpush.bf16.msra.mxu0 0
      %10628 = vmatpush.bf16.msra.mxu0 0
      %10629 = vmatpush.bf16.msra.mxu0 %v10478
      %10630 = vmatmul.bf16.gmra.mxu0 %v10489
      %v10631 = vpop.f32.mrf.mxu0
      %v10632 = vadd.f32 %v10543, %v10631
      %v10633 = vpop.f32.mrf.mxu0
      %v10634 = vadd.f32 %v10545, %v10633
      %10635 = vmatmul.bf16.gmra.mxu0 %v10492
      %v10636 = vpop.f32.mrf.mxu0
      %v10637 = vadd.f32 %v10548, %v10636
      %v10638 = vpop.f32.mrf.mxu0
      %v10639 = vadd.f32 %v10550, %v10638
      %10640 = vmatmul.bf16.gmra.mxu0 %v10495
      %v10641 = vpop.f32.mrf.mxu0
      %v10642 = vadd.f32 %v10553, %v10641
      %v10643 = vpop.f32.mrf.mxu0
      %v10644 = vadd.f32 %v10555, %v10643
      %10645 = vmatmul.bf16.gmra.mxu0 %v10498
      %v10646 = vpop.f32.mrf.mxu0
      %v10647 = vadd.f32 %v10558, %v10646
      %v10648 = vpop.f32.mrf.mxu0
      %v10649 = vadd.f32 %v10560, %v10648
      %10650 = vmatmul.bf16.gmra.mxu0 %v10501
      %v10651 = vpop.f32.mrf.mxu0
      %v10652 = vadd.f32 %v10563, %v10651
      %v10653 = vpop.f32.mrf.mxu0
      %v10654 = vadd.f32 %v10565, %v10653
      %10655 = vmatmul.bf16.gmra.mxu0 %v10504
      %v10656 = vpop.f32.mrf.mxu0
      %v10657 = vadd.f32 %v10568, %v10656
      %v10658 = vpop.f32.mrf.mxu0
      %v10659 = vadd.f32 %v10570, %v10658
      %10660 = vmatmul.bf16.gmra.mxu0 %v10507
      %v10661 = vpop.f32.mrf.mxu0
      %v10662 = vadd.f32 %v10573, %v10661
      %v10663 = vpop.f32.mrf.mxu0
      %v10664 = vadd.f32 %v10575, %v10663
      %10665 = vmatmul.bf16.gmra.mxu0 %v10510
      %v10666 = vpop.f32.mrf.mxu0
      %v10667 = vadd.f32 %v10578, %v10666
      %v10668 = vpop.f32.mrf.mxu0
      %v10669 = vadd.f32 %v10580, %v10668
      %10670 = vmatmul.bf16.gmra.mxu0 %v10513
      %v10671 = vpop.f32.mrf.mxu0
      %v10672 = vadd.f32 %v10583, %v10671
      %v10673 = vpop.f32.mrf.mxu0
      %v10674 = vadd.f32 %v10585, %v10673
      %10675 = vmatmul.bf16.gmra.mxu0 %v10516
      %v10676 = vpop.f32.mrf.mxu0
      %v10677 = vadd.f32 %v10588, %v10676
      %v10678 = vpop.f32.mrf.mxu0
      %v10679 = vadd.f32 %v10590, %v10678
      %10680 = vmatmul.bf16.gmra.mxu0 %v10519
      %v10681 = vpop.f32.mrf.mxu0
      %v10682 = vadd.f32 %v10593, %v10681
      %v10683 = vpop.f32.mrf.mxu0
      %v10684 = vadd.f32 %v10595, %v10683
      %10685 = vmatmul.bf16.gmra.mxu0 %v10522
      %v10686 = vpop.f32.mrf.mxu0
      %v10687 = vadd.f32 %v10598, %v10686
      %v10688 = vpop.f32.mrf.mxu0
      %v10689 = vadd.f32 %v10600, %v10688
      %10690 = vmatmul.bf16.gmra.mxu0 %v10525
      %v10691 = vpop.f32.mrf.mxu0
      %v10692 = vadd.f32 %v10603, %v10691
      %v10693 = vpop.f32.mrf.mxu0
      %v10694 = vadd.f32 %v10605, %v10693
      %10695 = vmatmul.bf16.gmra.mxu0 %v10528
      %v10696 = vpop.f32.mrf.mxu0
      %v10697 = vadd.f32 %v10608, %v10696
      %v10698 = vpop.f32.mrf.mxu0
      %v10699 = vadd.f32 %v10610, %v10698
      %10700 = vmatmul.bf16.gmra.mxu0 %v10531
      %v10701 = vpop.f32.mrf.mxu0
      %v10702 = vadd.f32 %v10613, %v10701
      %v10703 = vpop.f32.mrf.mxu0
      %v10704 = vadd.f32 %v10615, %v10703
      %10705 = vmatmul.bf16.gmra.mxu0 %v7484
      %v10706 = vpop.f32.mrf.mxu0
      %v10707 = vadd.f32 %v10618, %v10706
      %v10708 = vpop.f32.mrf.mxu0
      %v10709 = vadd.f32 %v10620, %v10708
      %10710 = vdwg.mxu0
      %v10711 = vld [vmem:[%s47] sm:$0x1]
      %v10713 = vperm.slane %v10711, 0
      %v10715 = vmul.f32 %v10632, %v10713
      %v10716 = vmul.f32 %v10634, %v10713
      %v10717 = vmul.f32 %v10637, %v10713
      %v10718 = vmul.f32 %v10639, %v10713
      %v10719 = vmul.f32 %v10642, %v10713
      %v10720 = vmul.f32 %v10644, %v10713
      %v10721 = vmul.f32 %v10647, %v10713
      %v10722 = vmul.f32 %v10649, %v10713
      %v10723 = vmul.f32 %v10652, %v10713
      %v10724 = vmul.f32 %v10654, %v10713
      %v10725 = vmul.f32 %v10657, %v10713
      %v10726 = vmul.f32 %v10659, %v10713
      %v10727 = vmul.f32 %v10662, %v10713
      %v10728 = vmul.f32 %v10664, %v10713
      %v10729 = vmul.f32 %v10667, %v10713
      %v10730 = vmul.f32 %v10669, %v10713
      %v10731 = vmul.f32 %v10672, %v10713
      %v10732 = vmul.f32 %v10674, %v10713
      %v10733 = vmul.f32 %v10677, %v10713
      %v10734 = vmul.f32 %v10679, %v10713
      %v10735 = vmul.f32 %v10682, %v10713
      %v10736 = vmul.f32 %v10684, %v10713
      %v10737 = vmul.f32 %v10687, %v10713
      %v10738 = vmul.f32 %v10689, %v10713
      %v10739 = vmul.f32 %v10692, %v10713
      %v10740 = vmul.f32 %v10694, %v10713
      %v10741 = vmul.f32 %v10697, %v10713
      %v10742 = vmul.f32 %v10699, %v10713
      %v10743 = vmul.f32 %v10702, %v10713
      %v10744 = vmul.f32 %v10704, %v10713
      %v10745 = vmul.f32 %v10707, %v10713
      %v10746 = vmul.f32 %v10709, %v10713
      %v10747 = vld [vmem:[%s49] sm:$0x1]
      %v10749 = vperm.slane %v10747, 0
      %v10751 = vadd.f32 %v10715, %v10749
      %v10752 = vadd.f32 %v10716, %v10749
      %v10753 = vadd.f32 %v10717, %v10749
      %v10754 = vadd.f32 %v10718, %v10749
      %v10755 = vadd.f32 %v10719, %v10749
      %v10756 = vadd.f32 %v10720, %v10749
      %v10757 = vadd.f32 %v10721, %v10749
      %v10758 = vadd.f32 %v10722, %v10749
      %v10759 = vadd.f32 %v10723, %v10749
      %v10760 = vadd.f32 %v10724, %v10749
      %v10761 = vadd.f32 %v10725, %v10749
      %v10762 = vadd.f32 %v10726, %v10749
      %v10763 = vadd.f32 %v10727, %v10749
      %v10764 = vadd.f32 %v10728, %v10749
      %v10765 = vadd.f32 %v10729, %v10749
      %v10766 = vadd.f32 %v10730, %v10749
      %v10767 = vadd.f32 %v10731, %v10749
      %v10768 = vadd.f32 %v10732, %v10749
      %v10769 = vadd.f32 %v10733, %v10749
      %v10770 = vadd.f32 %v10734, %v10749
      %v10771 = vadd.f32 %v10735, %v10749
      %v10772 = vadd.f32 %v10736, %v10749
      %v10773 = vadd.f32 %v10737, %v10749
      %v10774 = vadd.f32 %v10738, %v10749
      %v10775 = vadd.f32 %v10739, %v10749
      %v10776 = vadd.f32 %v10740, %v10749
      %v10777 = vadd.f32 %v10741, %v10749
      %v10778 = vadd.f32 %v10742, %v10749
      %v10779 = vadd.f32 %v10743, %v10749
      %v10780 = vadd.f32 %v10744, %v10749
      %v10781 = vadd.f32 %v10745, %v10749
      %v10782 = vadd.f32 %v10746, %v10749
      %v10783 = vunpack.c.l.bf16 %v7997
      %v10784 = vunpack.c.l.bf16 %v7998
      %v10785 = vunpack.c.l.bf16 %v7999
      %v10786 = vunpack.c.l.bf16 %v8000
      %v10787 = vunpack.c.l.bf16 %v8001
      %v10788 = vunpack.c.l.bf16 %v8002
      %v10789 = vunpack.c.l.bf16 %v8003
      %v10790 = vunpack.c.l.bf16 %v8004
      %v10791 = vunpack.c.l.bf16 %v8005
      %v10792 = vunpack.c.l.bf16 %v8006
      %v10793 = vunpack.c.l.bf16 %v8007
      %v10794 = vunpack.c.l.bf16 %v8008
      %v10795 = vunpack.c.l.bf16 %v8009
      %v10796 = vunpack.c.l.bf16 %v8010
      %v10797 = vunpack.c.l.bf16 %v8011
      %v10798 = vunpack.c.l.bf16 %v8012
      %v10799 = vunpack.c.l.bf16 %v8013
      %v10800 = vunpack.c.l.bf16 %v8014
      %v10801 = vunpack.c.l.bf16 %v8015
      %v10802 = vunpack.c.l.bf16 %v8016
      %v10803 = vunpack.c.l.bf16 %v8017
      %v10804 = vunpack.c.l.bf16 %v8018
      %v10805 = vunpack.c.l.bf16 %v8019
      %v10806 = vunpack.c.l.bf16 %v8020
      %v10807 = vunpack.c.l.bf16 %v8021
      %v10808 = vunpack.c.l.bf16 %v8022
      %v10809 = vunpack.c.l.bf16 %v8023
      %v10810 = vunpack.c.l.bf16 %v8024
      %v10811 = vunpack.c.l.bf16 %v8025
      %v10812 = vunpack.c.l.bf16 %v8026
      %v10813 = vunpack.c.l.bf16 %v8027
      %v10814 = vunpack.c.l.bf16 %v8028
      %v10815 = vadd.f32 %v10751, %v10783
      %v10816 = vadd.f32 %v10752, %v10784
      %v10817 = vadd.f32 %v10753, %v10785
      %v10818 = vadd.f32 %v10754, %v10786
      %v10819 = vadd.f32 %v10755, %v10787
      %v10820 = vadd.f32 %v10756, %v10788
      %v10821 = vadd.f32 %v10757, %v10789
      %v10822 = vadd.f32 %v10758, %v10790
      %v10823 = vadd.f32 %v10759, %v10791
      %v10824 = vadd.f32 %v10760, %v10792
      %v10825 = vadd.f32 %v10761, %v10793
      %v10826 = vadd.f32 %v10762, %v10794
      %v10827 = vadd.f32 %v10763, %v10795
      %v10828 = vadd.f32 %v10764, %v10796
      %v10829 = vadd.f32 %v10765, %v10797
      %v10830 = vadd.f32 %v10766, %v10798
      %v10831 = vadd.f32 %v10767, %v10799
      %v10832 = vadd.f32 %v10768, %v10800
      %v10833 = vadd.f32 %v10769, %v10801
      %v10834 = vadd.f32 %v10770, %v10802
      %v10835 = vadd.f32 %v10771, %v10803
      %v10836 = vadd.f32 %v10772, %v10804
      %v10837 = vadd.f32 %v10773, %v10805
      %v10838 = vadd.f32 %v10774, %v10806
      %v10839 = vadd.f32 %v10775, %v10807
      %v10840 = vadd.f32 %v10776, %v10808
      %v10841 = vadd.f32 %v10777, %v10809
      %v10842 = vadd.f32 %v10778, %v10810
      %v10843 = vadd.f32 %v10779, %v10811
      %v10844 = vadd.f32 %v10780, %v10812
      %v10845 = vadd.f32 %v10781, %v10813
      %v10846 = vadd.f32 %v10782, %v10814
      %v10847 = vmax.f32 %v10815, 0.0
      %v10848 = vmax.f32 %v10816, 0.0
      %v10849 = vmax.f32 %v10817, 0.0
      %v10850 = vmax.f32 %v10818, 0.0
      %v10851 = vmax.f32 %v10819, 0.0
      %v10852 = vmax.f32 %v10820, 0.0
      %v10853 = vmax.f32 %v10821, 0.0
      %v10854 = vmax.f32 %v10822, 0.0
      %v10855 = vmax.f32 %v10823, 0.0
      %v10856 = vmax.f32 %v10824, 0.0
      %v10857 = vmax.f32 %v10825, 0.0
      %v10858 = vmax.f32 %v10826, 0.0
      %v10859 = vmax.f32 %v10827, 0.0
      %v10860 = vmax.f32 %v10828, 0.0
      %v10861 = vmax.f32 %v10829, 0.0
      %v10862 = vmax.f32 %v10830, 0.0
      %v10863 = vmax.f32 %v10831, 0.0
      %v10864 = vmax.f32 %v10832, 0.0
      %v10865 = vmax.f32 %v10833, 0.0
      %v10866 = vmax.f32 %v10834, 0.0
      %v10867 = vmax.f32 %v10835, 0.0
      %v10868 = vmax.f32 %v10836, 0.0
      %v10869 = vmax.f32 %v10837, 0.0
      %v10870 = vmax.f32 %v10838, 0.0
      %v10871 = vmax.f32 %v10839, 0.0
      %v10872 = vmax.f32 %v10840, 0.0
      %v10873 = vmax.f32 %v10841, 0.0
      %v10874 = vmax.f32 %v10842, 0.0
      %v10875 = vmax.f32 %v10843, 0.0
      %v10876 = vmax.f32 %v10844, 0.0
      %v10877 = vmax.f32 %v10845, 0.0
      %v10878 = vmax.f32 %v10846, 0.0
      %v10879 = vpack.c.bf16 %v10847, %v10847
      %v10880 = vpack.c.bf16 %v10848, %v10848
      %v10881 = vpack.c.bf16 %v10849, %v10849
      %v10882 = vpack.c.bf16 %v10850, %v10850
      %v10883 = vpack.c.bf16 %v10851, %v10851
      %v10884 = vpack.c.bf16 %v10852, %v10852
      %v10885 = vpack.c.bf16 %v10853, %v10853
      %v10886 = vpack.c.bf16 %v10854, %v10854
      %v10887 = vpack.c.bf16 %v10855, %v10855
      %v10888 = vpack.c.bf16 %v10856, %v10856
      %v10889 = vpack.c.bf16 %v10857, %v10857
      %v10890 = vpack.c.bf16 %v10858, %v10858
      %v10891 = vpack.c.bf16 %v10859, %v10859
      %v10892 = vpack.c.bf16 %v10860, %v10860
      %v10893 = vpack.c.bf16 %v10861, %v10861
      %v10894 = vpack.c.bf16 %v10862, %v10862
      %v10895 = vpack.c.bf16 %v10863, %v10863
      %v10896 = vpack.c.bf16 %v10864, %v10864
      %v10897 = vpack.c.bf16 %v10865, %v10865
      %v10898 = vpack.c.bf16 %v10866, %v10866
      %v10899 = vpack.c.bf16 %v10867, %v10867
      %v10900 = vpack.c.bf16 %v10868, %v10868
      %v10901 = vpack.c.bf16 %v10869, %v10869
      %v10902 = vpack.c.bf16 %v10870, %v10870
      %v10903 = vpack.c.bf16 %v10871, %v10871
      %v10904 = vpack.c.bf16 %v10872, %v10872
      %v10905 = vpack.c.bf16 %v10873, %v10873
      %v10906 = vpack.c.bf16 %v10874, %v10874
      %v10907 = vpack.c.bf16 %v10875, %v10875
      %v10908 = vpack.c.bf16 %v10876, %v10876
      %v10909 = vpack.c.bf16 %v10877, %v10877
      %v10910 = vpack.c.bf16 %v10878, %v10878
      %v10943 = vunpack.c.l.b16 %v10879
      %v10944 = vunpack.c.l.b16 %v10880
      %v10945 = vunpack.c.l.b16 %v10881
      %v10946 = vunpack.c.l.b16 %v10882
      %v10947 = vunpack.c.l.b16 %v10883
      %v10948 = vunpack.c.l.b16 %v10884
      %v10949 = vunpack.c.l.b16 %v10885
      %v10950 = vunpack.c.l.b16 %v10886
      %v10951 = vunpack.c.l.b16 %v10887
      %v10952 = vunpack.c.l.b16 %v10888
      %v10953 = vunpack.c.l.b16 %v10889
      %v10954 = vunpack.c.l.b16 %v10890
      %v10955 = vunpack.c.l.b16 %v10891
      %v10956 = vunpack.c.l.b16 %v10892
      %v10957 = vunpack.c.l.b16 %v10893
      %v10958 = vunpack.c.l.b16 %v10894
      %v10959 = vunpack.c.l.b16 %v10895
      %v10960 = vunpack.c.l.b16 %v10896
      %v10961 = vunpack.c.l.b16 %v10897
      %v10962 = vunpack.c.l.b16 %v10898
      %v10963 = vunpack.c.l.b16 %v10899
      %v10964 = vunpack.c.l.b16 %v10900
      %v10965 = vunpack.c.l.b16 %v10901
      %v10966 = vunpack.c.l.b16 %v10902
      %v10967 = vunpack.c.l.b16 %v10903
      %v10968 = vunpack.c.l.b16 %v10904
      %v10969 = vunpack.c.l.b16 %v10905
      %v10970 = vunpack.c.l.b16 %v10906
      %v10971 = vunpack.c.l.b16 %v10907
      %v10972 = vunpack.c.l.b16 %v10908
      %v10973 = vunpack.c.l.b16 %v10909
      %v10974 = vunpack.c.l.b16 %v10910
      %v10975 = vpack.c.b16 %v10944, %v10943
      %v10976 = vpack.c.b16 %v10946, %v10945
      %v10977 = vpack.c.b16 %v10948, %v10947
      %v10978 = vpack.c.b16 %v10950, %v10949
      %v10979 = vpack.c.b16 %v10952, %v10951
      %v10980 = vpack.c.b16 %v10954, %v10953
      %v10981 = vpack.c.b16 %v10956, %v10955
      %v10982 = vpack.c.b16 %v10958, %v10957
      %v10983 = vpack.c.b16 %v10960, %v10959
      %v10984 = vpack.c.b16 %v10962, %v10961
      %v10985 = vpack.c.b16 %v10964, %v10963
      %v10986 = vpack.c.b16 %v10966, %v10965
      %v10987 = vpack.c.b16 %v10968, %v10967
      %v10988 = vpack.c.b16 %v10970, %v10969
      %v10989 = vpack.c.b16 %v10972, %v10971
      %v10990 = vpack.c.b16 %v10974, %v10973
      %v10992 = vshrl.u32 %v10975, 16
      %v10994 = vrot.slane %v10992, 7
      %v10995 = vshll.u32 %v10975, 16
      %v10997 = vor.u32 %v10994, %v10995
      %v10999 = vshrl.u32 %v10976, 16
      %v11001 = vrot.slane %v10999, 7
      %v11002 = vshll.u32 %v10976, 16
      %v11004 = vor.u32 %v11001, %v11002
      %v11006 = vshrl.u32 %v10977, 16
      %v11008 = vrot.slane %v11006, 7
      %v11009 = vshll.u32 %v10977, 16
      %v11011 = vor.u32 %v11008, %v11009
      %v11013 = vshrl.u32 %v10978, 16
      %v11015 = vrot.slane %v11013, 7
      %v11016 = vshll.u32 %v10978, 16
      %v11018 = vor.u32 %v11015, %v11016
      %v11020 = vshrl.u32 %v10979, 16
      %v11022 = vrot.slane %v11020, 7
      %v11023 = vshll.u32 %v10979, 16
      %v11025 = vor.u32 %v11022, %v11023
      %v11027 = vshrl.u32 %v10980, 16
      %v11029 = vrot.slane %v11027, 7
      %v11030 = vshll.u32 %v10980, 16
      %v11032 = vor.u32 %v11029, %v11030
      %v11034 = vshrl.u32 %v10981, 16
      %v11036 = vrot.slane %v11034, 7
      %v11037 = vshll.u32 %v10981, 16
      %v11039 = vor.u32 %v11036, %v11037
      %v11041 = vshrl.u32 %v10982, 16
      %v11043 = vrot.slane %v11041, 7
      %v11044 = vshll.u32 %v10982, 16
      %v11046 = vor.u32 %v11043, %v11044
      %v11048 = vshrl.u32 %v10983, 16
      %v11050 = vrot.slane %v11048, 7
      %v11051 = vshll.u32 %v10983, 16
      %v11053 = vor.u32 %v11050, %v11051
      %v11055 = vshrl.u32 %v10984, 16
      %v11057 = vrot.slane %v11055, 7
      %v11058 = vshll.u32 %v10984, 16
      %v11060 = vor.u32 %v11057, %v11058
      %v11062 = vshrl.u32 %v10985, 16
      %v11064 = vrot.slane %v11062, 7
      %v11065 = vshll.u32 %v10985, 16
      %v11067 = vor.u32 %v11064, %v11065
      %v11069 = vshrl.u32 %v10986, 16
      %v11071 = vrot.slane %v11069, 7
      %v11072 = vshll.u32 %v10986, 16
      %v11074 = vor.u32 %v11071, %v11072
      %v11076 = vshrl.u32 %v10987, 16
      %v11078 = vrot.slane %v11076, 7
      %v11079 = vshll.u32 %v10987, 16
      %v11081 = vor.u32 %v11078, %v11079
      %v11083 = vshrl.u32 %v10988, 16
      %v11085 = vrot.slane %v11083, 7
      %v11086 = vshll.u32 %v10988, 16
      %v11088 = vor.u32 %v11085, %v11086
      %v11090 = vshrl.u32 %v10989, 16
      %v11092 = vrot.slane %v11090, 7
      %v11093 = vshll.u32 %v10989, 16
      %v11095 = vor.u32 %v11092, %v11093
      %v11097 = vshrl.u32 %v10990, 16
      %v11099 = vrot.slane %v11097, 7
      %v11100 = vshll.u32 %v10990, 16
      %v11102 = vor.u32 %v11099, %v11100
      %v11135 = vsel %vm2537, 0, %v10997
      %v11136 = vsel %vm2537, 0, %v11004
      %v11137 = vsel %vm2537, 0, %v11011
      %v11138 = vsel %vm2537, 0, %v11018
      %v11139 = vsel %vm2537, 0, %v11025
      %v11140 = vsel %vm2537, 0, %v11032
      %v11141 = vsel %vm2537, 0, %v11039
      %v11142 = vsel %vm2537, 0, %v11046
      %v11143 = vsel %vm2537, 0, %v11053
      %v11144 = vsel %vm2537, 0, %v11060
      %v11145 = vsel %vm2537, 0, %v11067
      %v11146 = vsel %vm2537, 0, %v11074
      %v11147 = vsel %vm2537, 0, %v11081
      %v11148 = vsel %vm2537, 0, %v11088
      %v11149 = vsel %vm2537, 0, %v11095
      %v11150 = vsel %vm2537, 0, %v11102
      %v11151 = vsel %vm2537, %v10994, 0
      %v11152 = vsel %vm2537, %v11001, 0
      %v11153 = vsel %vm2537, %v11008, 0
      %v11154 = vsel %vm2537, %v11015, 0
      %v11155 = vsel %vm2537, %v11022, 0
      %v11156 = vsel %vm2537, %v11029, 0
      %v11157 = vsel %vm2537, %v11036, 0
      %v11158 = vsel %vm2537, %v11043, 0
      %v11159 = vsel %vm2537, %v11050, 0
      %v11160 = vsel %vm2537, %v11057, 0
      %v11161 = vsel %vm2537, %v11064, 0
      %v11162 = vsel %vm2537, %v11071, 0
      %v11163 = vsel %vm2537, %v11078, 0
      %v11164 = vsel %vm2537, %v11085, 0
      %v11165 = vsel %vm2537, %v11092, 0
      %v11166 = vsel %vm2537, %v11099, 0
      %v11168 = vshrl.u32 %v11135, 16
      %v11170 = vshll.u32 %v11135, 16
      %v11172 = vrot.slane %v11170, 1
      %v11173 = vor.u32 %v11168, %v11172
      %v11175 = vshll.u32 %v11151, 16
      %v11177 = vrot.slane %v11175, 1
      %v11178 = vsel %vm1196, %v11173, %v11177
      %v11180 = vshrl.u32 %v11136, 16
      %v11182 = vshll.u32 %v11136, 16
      %v11184 = vrot.slane %v11182, 1
      %v11185 = vor.u32 %v11180, %v11184
      %v11187 = vshll.u32 %v11152, 16
      %v11189 = vrot.slane %v11187, 1
      %v11190 = vsel %vm1196, %v11185, %v11189
      %v11192 = vshrl.u32 %v11137, 16
      %v11194 = vshll.u32 %v11137, 16
      %v11196 = vrot.slane %v11194, 1
      %v11197 = vor.u32 %v11192, %v11196
      %v11199 = vshll.u32 %v11153, 16
      %v11201 = vrot.slane %v11199, 1
      %v11202 = vsel %vm1196, %v11197, %v11201
      %v11204 = vshrl.u32 %v11138, 16
      %v11206 = vshll.u32 %v11138, 16
      %v11208 = vrot.slane %v11206, 1
      %v11209 = vor.u32 %v11204, %v11208
      %v11211 = vshll.u32 %v11154, 16
      %v11213 = vrot.slane %v11211, 1
      %v11214 = vsel %vm1196, %v11209, %v11213
      %v11216 = vshrl.u32 %v11139, 16
      %v11218 = vshll.u32 %v11139, 16
      %v11220 = vrot.slane %v11218, 1
      %v11221 = vor.u32 %v11216, %v11220
      %v11223 = vshll.u32 %v11155, 16
      %v11225 = vrot.slane %v11223, 1
      %v11226 = vsel %vm1196, %v11221, %v11225
      %v11228 = vshrl.u32 %v11140, 16
      %v11230 = vshll.u32 %v11140, 16
      %v11232 = vrot.slane %v11230, 1
      %v11233 = vor.u32 %v11228, %v11232
      %v11235 = vshll.u32 %v11156, 16
      %v11237 = vrot.slane %v11235, 1
      %v11238 = vsel %vm1196, %v11233, %v11237
      %v11240 = vshrl.u32 %v11141, 16
      %v11242 = vshll.u32 %v11141, 16
      %v11244 = vrot.slane %v11242, 1
      %v11245 = vor.u32 %v11240, %v11244
      %v11247 = vshll.u32 %v11157, 16
      %v11249 = vrot.slane %v11247, 1
      %v11250 = vsel %vm1196, %v11245, %v11249
      %v11252 = vshrl.u32 %v11142, 16
      %v11254 = vshll.u32 %v11142, 16
      %v11256 = vrot.slane %v11254, 1
      %v11257 = vor.u32 %v11252, %v11256
      %v11259 = vshll.u32 %v11158, 16
      %v11261 = vrot.slane %v11259, 1
      %v11262 = vsel %vm1196, %v11257, %v11261
      %v11264 = vshrl.u32 %v11143, 16
      %v11266 = vshll.u32 %v11143, 16
      %v11268 = vrot.slane %v11266, 1
      %v11269 = vor.u32 %v11264, %v11268
      %v11271 = vshll.u32 %v11159, 16
      %v11273 = vrot.slane %v11271, 1
      %v11274 = vsel %vm1196, %v11269, %v11273
      %v11276 = vshrl.u32 %v11144, 16
      %v11278 = vshll.u32 %v11144, 16
      %v11280 = vrot.slane %v11278, 1
      %v11281 = vor.u32 %v11276, %v11280
      %v11283 = vshll.u32 %v11160, 16
      %v11285 = vrot.slane %v11283, 1
      %v11286 = vsel %vm1196, %v11281, %v11285
      %v11288 = vshrl.u32 %v11145, 16
      %v11290 = vshll.u32 %v11145, 16
      %v11292 = vrot.slane %v11290, 1
      %v11293 = vor.u32 %v11288, %v11292
      %v11295 = vshll.u32 %v11161, 16
      %v11297 = vrot.slane %v11295, 1
      %v11298 = vsel %vm1196, %v11293, %v11297
      %v11300 = vshrl.u32 %v11146, 16
      %v11302 = vshll.u32 %v11146, 16
      %v11304 = vrot.slane %v11302, 1
      %v11305 = vor.u32 %v11300, %v11304
      %v11307 = vshll.u32 %v11162, 16
      %v11309 = vrot.slane %v11307, 1
      %v11310 = vsel %vm1196, %v11305, %v11309
      %v11312 = vshrl.u32 %v11147, 16
      %v11314 = vshll.u32 %v11147, 16
      %v11316 = vrot.slane %v11314, 1
      %v11317 = vor.u32 %v11312, %v11316
      %v11319 = vshll.u32 %v11163, 16
      %v11321 = vrot.slane %v11319, 1
      %v11322 = vsel %vm1196, %v11317, %v11321
      %v11324 = vshrl.u32 %v11148, 16
      %v11326 = vshll.u32 %v11148, 16
      %v11328 = vrot.slane %v11326, 1
      %v11329 = vor.u32 %v11324, %v11328
      %v11331 = vshll.u32 %v11164, 16
      %v11333 = vrot.slane %v11331, 1
      %v11334 = vsel %vm1196, %v11329, %v11333
      %v11336 = vshrl.u32 %v11149, 16
      %v11338 = vshll.u32 %v11149, 16
      %v11340 = vrot.slane %v11338, 1
      %v11341 = vor.u32 %v11336, %v11340
      %v11343 = vshll.u32 %v11165, 16
      %v11345 = vrot.slane %v11343, 1
      %v11346 = vsel %vm1196, %v11341, %v11345
      %11347 = vrot.lane.b32.xlu0 %v11178, 16
      %v11348 = vpop.permute.xlu0 %11347
      %11349 = vrot.lane.b32.xlu0 %v11190, 16
      %v11350 = vpop.permute.xlu0 %11349
      %11351 = vrot.lane.b32.xlu0 %v11202, 16
      %v11352 = vpop.permute.xlu0 %11351
      %11353 = vrot.lane.b32.xlu0 %v11214, 16
      %v11354 = vpop.permute.xlu0 %11353
      %11355 = vrot.lane.b32.xlu0 %v11226, 16
      %v11356 = vpop.permute.xlu0 %11355
      %11357 = vrot.lane.b32.xlu0 %v11238, 16
      %v11358 = vpop.permute.xlu0 %11357
      %11359 = vrot.lane.b32.xlu0 %v11250, 16
      %v11360 = vpop.permute.xlu0 %11359
      %11361 = vrot.lane.b32.xlu0 %v11262, 16
      %v11362 = vpop.permute.xlu0 %11361
      %11363 = vrot.lane.b32.xlu0 %v11274, 16
      %v11364 = vpop.permute.xlu0 %11363
      %11365 = vrot.lane.b32.xlu0 %v11286, 16
      %v11366 = vpop.permute.xlu0 %11365
      %11367 = vrot.lane.b32.xlu0 %v11298, 16
      %v11368 = vpop.permute.xlu0 %11367
      %11369 = vrot.lane.b32.xlu0 %v11310, 16
      %v11370 = vpop.permute.xlu0 %11369
      %11371 = vrot.lane.b32.xlu0 %v11322, 16
      %v11372 = vpop.permute.xlu0 %11371
      %11373 = vrot.lane.b32.xlu0 %v11334, 16
      %v11374 = vpop.permute.xlu0 %11373
      %11375 = vrot.lane.b32.xlu0 %v11346, 16
      %v11376 = vpop.permute.xlu0 %11375
      %v11407 = vrot.slane %v11135, 1
      %v11408 = vrot.slane %v11151, 1
      %v11409 = vsel %vm1421, %v11407, %v11408
      %v11410 = vrot.slane %v11136, 1
      %v11411 = vrot.slane %v11152, 1
      %v11412 = vsel %vm1421, %v11410, %v11411
      %v11413 = vrot.slane %v11137, 1
      %v11414 = vrot.slane %v11153, 1
      %v11415 = vsel %vm1421, %v11413, %v11414
      %v11416 = vrot.slane %v11138, 1
      %v11417 = vrot.slane %v11154, 1
      %v11418 = vsel %vm1421, %v11416, %v11417
      %v11419 = vrot.slane %v11139, 1
      %v11420 = vrot.slane %v11155, 1
      %v11421 = vsel %vm1421, %v11419, %v11420
      %v11422 = vrot.slane %v11140, 1
      %v11423 = vrot.slane %v11156, 1
      %v11424 = vsel %vm1421, %v11422, %v11423
      %v11425 = vrot.slane %v11141, 1
      %v11426 = vrot.slane %v11157, 1
      %v11427 = vsel %vm1421, %v11425, %v11426
      %v11428 = vrot.slane %v11142, 1
      %v11429 = vrot.slane %v11158, 1
      %v11430 = vsel %vm1421, %v11428, %v11429
      %v11431 = vrot.slane %v11143, 1
      %v11432 = vrot.slane %v11159, 1
      %v11433 = vsel %vm1421, %v11431, %v11432
      %v11434 = vrot.slane %v11144, 1
      %v11435 = vrot.slane %v11160, 1
      %v11436 = vsel %vm1421, %v11434, %v11435
      %v11437 = vrot.slane %v11145, 1
      %v11438 = vrot.slane %v11161, 1
      %v11439 = vsel %vm1421, %v11437, %v11438
      %v11440 = vrot.slane %v11146, 1
      %v11441 = vrot.slane %v11162, 1
      %v11442 = vsel %vm1421, %v11440, %v11441
      %v11443 = vrot.slane %v11147, 1
      %v11444 = vrot.slane %v11163, 1
      %v11445 = vsel %vm1421, %v11443, %v11444
      %v11446 = vrot.slane %v11148, 1
      %v11447 = vrot.slane %v11164, 1
      %v11448 = vsel %vm1421, %v11446, %v11447
      %v11449 = vrot.slane %v11149, 1
      %v11450 = vrot.slane %v11165, 1
      %v11451 = vsel %vm1421, %v11449, %v11450
      %11452 = vrot.lane.b32.xlu0 %v11409, 32
      %v11453 = vpop.permute.xlu0 %11452
      %11454 = vrot.lane.b32.xlu0 %v11412, 32
      %v11455 = vpop.permute.xlu0 %11454
      %11456 = vrot.lane.b32.xlu0 %v11415, 32
      %v11457 = vpop.permute.xlu0 %11456
      %11458 = vrot.lane.b32.xlu0 %v11418, 32
      %v11459 = vpop.permute.xlu0 %11458
      %11460 = vrot.lane.b32.xlu0 %v11421, 32
      %v11461 = vpop.permute.xlu0 %11460
      %11462 = vrot.lane.b32.xlu0 %v11424, 32
      %v11463 = vpop.permute.xlu0 %11462
      %11464 = vrot.lane.b32.xlu0 %v11427, 32
      %v11465 = vpop.permute.xlu0 %11464
      %11466 = vrot.lane.b32.xlu0 %v11430, 32
      %v11467 = vpop.permute.xlu0 %11466
      %11468 = vrot.lane.b32.xlu0 %v11433, 32
      %v11469 = vpop.permute.xlu0 %11468
      %11470 = vrot.lane.b32.xlu0 %v11436, 32
      %v11471 = vpop.permute.xlu0 %11470
      %11472 = vrot.lane.b32.xlu0 %v11439, 32
      %v11473 = vpop.permute.xlu0 %11472
      %11474 = vrot.lane.b32.xlu0 %v11442, 32
      %v11475 = vpop.permute.xlu0 %11474
      %11476 = vrot.lane.b32.xlu0 %v11445, 32
      %v11477 = vpop.permute.xlu0 %11476
      %11478 = vrot.lane.b32.xlu0 %v11448, 32
      %v11479 = vpop.permute.xlu0 %11478
      %11480 = vrot.lane.b32.xlu0 %v11451, 32
      %v11481 = vpop.permute.xlu0 %11480
      %11483 = vrot.lane.b32.xlu0 %v11135, 48
      %v11484 = vpop.permute.xlu0 %11483
      %11485 = vrot.lane.b32.xlu0 %v11136, 48
      %v11486 = vpop.permute.xlu0 %11485
      %11487 = vrot.lane.b32.xlu0 %v11137, 48
      %v11488 = vpop.permute.xlu0 %11487
      %11489 = vrot.lane.b32.xlu0 %v11138, 48
      %v11490 = vpop.permute.xlu0 %11489
      %11491 = vrot.lane.b32.xlu0 %v11139, 48
      %v11492 = vpop.permute.xlu0 %11491
      %11493 = vrot.lane.b32.xlu0 %v11140, 48
      %v11494 = vpop.permute.xlu0 %11493
      %11495 = vrot.lane.b32.xlu0 %v11141, 48
      %v11496 = vpop.permute.xlu0 %11495
      %11497 = vrot.lane.b32.xlu0 %v11142, 48
      %v11498 = vpop.permute.xlu0 %11497
      %11499 = vrot.lane.b32.xlu0 %v11143, 48
      %v11500 = vpop.permute.xlu0 %11499
      %11501 = vrot.lane.b32.xlu0 %v11144, 48
      %v11502 = vpop.permute.xlu0 %11501
      %11503 = vrot.lane.b32.xlu0 %v11145, 48
      %v11504 = vpop.permute.xlu0 %11503
      %11505 = vrot.lane.b32.xlu0 %v11146, 48
      %v11506 = vpop.permute.xlu0 %11505
      %11507 = vrot.lane.b32.xlu0 %v11147, 48
      %v11508 = vpop.permute.xlu0 %11507
      %11509 = vrot.lane.b32.xlu0 %v11148, 48
      %v11510 = vpop.permute.xlu0 %11509
      %11511 = vrot.lane.b32.xlu0 %v11149, 48
      %v11512 = vpop.permute.xlu0 %11511
      %11513 = vrot.lane.b32.xlu0 %v11150, 48
      %v11514 = vpop.permute.xlu0 %11513
      %v11516 = vshrl.u32 %v11150, 16
      %v11518 = vshll.u32 %v11150, 16
      %v11520 = vrot.slane %v11518, 1
      %v11521 = vor.u32 %v11516, %v11520
      %v11523 = vshll.u32 %v11166, 16
      %v11525 = vrot.slane %v11523, 1
      %v11526 = vsel %vm1196, %v11521, %v11525
      %11527 = vrot.lane.b32.xlu0 %v11178, 64
      %v11528 = vpop.permute.xlu0 %11527
      %11529 = vrot.lane.b32.xlu0 %v11190, 64
      %v11530 = vpop.permute.xlu0 %11529
      %11531 = vrot.lane.b32.xlu0 %v11202, 64
      %v11532 = vpop.permute.xlu0 %11531
      %11533 = vrot.lane.b32.xlu0 %v11214, 64
      %v11534 = vpop.permute.xlu0 %11533
      %11535 = vrot.lane.b32.xlu0 %v11226, 64
      %v11536 = vpop.permute.xlu0 %11535
      %11537 = vrot.lane.b32.xlu0 %v11238, 64
      %v11538 = vpop.permute.xlu0 %11537
      %11539 = vrot.lane.b32.xlu0 %v11250, 64
      %v11540 = vpop.permute.xlu0 %11539
      %11541 = vrot.lane.b32.xlu0 %v11262, 64
      %v11542 = vpop.permute.xlu0 %11541
      %11543 = vrot.lane.b32.xlu0 %v11274, 64
      %v11544 = vpop.permute.xlu0 %11543
      %11545 = vrot.lane.b32.xlu0 %v11286, 64
      %v11546 = vpop.permute.xlu0 %11545
      %11547 = vrot.lane.b32.xlu0 %v11298, 64
      %v11548 = vpop.permute.xlu0 %11547
      %11549 = vrot.lane.b32.xlu0 %v11310, 64
      %v11550 = vpop.permute.xlu0 %11549
      %11551 = vrot.lane.b32.xlu0 %v11322, 64
      %v11552 = vpop.permute.xlu0 %11551
      %11553 = vrot.lane.b32.xlu0 %v11334, 64
      %v11554 = vpop.permute.xlu0 %11553
      %11555 = vrot.lane.b32.xlu0 %v11346, 64
      %v11556 = vpop.permute.xlu0 %11555
      %11557 = vrot.lane.b32.xlu0 %v11526, 64
      %v11558 = vpop.permute.xlu0 %11557
      %v11560 = vrot.slane %v11150, 1
      %v11561 = vrot.slane %v11166, 1
      %v11562 = vsel %vm1421, %v11560, %v11561
      %11563 = vrot.lane.b32.xlu0 %v11409, 80
      %v11564 = vpop.permute.xlu0 %11563
      %11565 = vrot.lane.b32.xlu0 %v11412, 80
      %v11566 = vpop.permute.xlu0 %11565
      %11567 = vrot.lane.b32.xlu0 %v11415, 80
      %v11568 = vpop.permute.xlu0 %11567
      %11569 = vrot.lane.b32.xlu0 %v11418, 80
      %v11570 = vpop.permute.xlu0 %11569
      %11571 = vrot.lane.b32.xlu0 %v11421, 80
      %v11572 = vpop.permute.xlu0 %11571
      %11573 = vrot.lane.b32.xlu0 %v11424, 80
      %v11574 = vpop.permute.xlu0 %11573
      %11575 = vrot.lane.b32.xlu0 %v11427, 80
      %v11576 = vpop.permute.xlu0 %11575
      %11577 = vrot.lane.b32.xlu0 %v11430, 80
      %v11578 = vpop.permute.xlu0 %11577
      %11579 = vrot.lane.b32.xlu0 %v11433, 80
      %v11580 = vpop.permute.xlu0 %11579
      %11581 = vrot.lane.b32.xlu0 %v11436, 80
      %v11582 = vpop.permute.xlu0 %11581
      %11583 = vrot.lane.b32.xlu0 %v11439, 80
      %v11584 = vpop.permute.xlu0 %11583
      %11585 = vrot.lane.b32.xlu0 %v11442, 80
      %v11586 = vpop.permute.xlu0 %11585
      %11587 = vrot.lane.b32.xlu0 %v11445, 80
      %v11588 = vpop.permute.xlu0 %11587
      %11589 = vrot.lane.b32.xlu0 %v11448, 80
      %v11590 = vpop.permute.xlu0 %11589
      %11591 = vrot.lane.b32.xlu0 %v11451, 80
      %v11592 = vpop.permute.xlu0 %11591
      %11593 = vrot.lane.b32.xlu0 %v11562, 80
      %v11594 = vpop.permute.xlu0 %11593
      %11595 = vrot.lane.b32.xlu0 %v11136, 96
      %v11596 = vpop.permute.xlu0 %11595
      %11597 = vrot.lane.b32.xlu0 %v11137, 96
      %v11598 = vpop.permute.xlu0 %11597
      %11599 = vrot.lane.b32.xlu0 %v11138, 96
      %v11600 = vpop.permute.xlu0 %11599
      %11601 = vrot.lane.b32.xlu0 %v11139, 96
      %v11602 = vpop.permute.xlu0 %11601
      %11603 = vrot.lane.b32.xlu0 %v11140, 96
      %v11604 = vpop.permute.xlu0 %11603
      %11605 = vrot.lane.b32.xlu0 %v11141, 96
      %v11606 = vpop.permute.xlu0 %11605
      %11607 = vrot.lane.b32.xlu0 %v11142, 96
      %v11608 = vpop.permute.xlu0 %11607
      %11609 = vrot.lane.b32.xlu0 %v11143, 96
      %v11610 = vpop.permute.xlu0 %11609
      %11611 = vrot.lane.b32.xlu0 %v11144, 96
      %v11612 = vpop.permute.xlu0 %11611
      %11613 = vrot.lane.b32.xlu0 %v11145, 96
      %v11614 = vpop.permute.xlu0 %11613
      %11615 = vrot.lane.b32.xlu0 %v11146, 96
      %v11616 = vpop.permute.xlu0 %11615
      %11617 = vrot.lane.b32.xlu0 %v11147, 96
      %v11618 = vpop.permute.xlu0 %11617
      %11619 = vrot.lane.b32.xlu0 %v11148, 96
      %v11620 = vpop.permute.xlu0 %11619
      %11621 = vrot.lane.b32.xlu0 %v11149, 96
      %v11622 = vpop.permute.xlu0 %11621
      %11623 = vrot.lane.b32.xlu0 %v11150, 96
      %v11624 = vpop.permute.xlu0 %11623
      %11625 = vrot.lane.b32.xlu0 %v11190, 112
      %v11626 = vpop.permute.xlu0 %11625
      %11627 = vrot.lane.b32.xlu0 %v11202, 112
      %v11628 = vpop.permute.xlu0 %11627
      %11629 = vrot.lane.b32.xlu0 %v11214, 112
      %v11630 = vpop.permute.xlu0 %11629
      %11631 = vrot.lane.b32.xlu0 %v11226, 112
      %v11632 = vpop.permute.xlu0 %11631
      %11633 = vrot.lane.b32.xlu0 %v11238, 112
      %v11634 = vpop.permute.xlu0 %11633
      %11635 = vrot.lane.b32.xlu0 %v11250, 112
      %v11636 = vpop.permute.xlu0 %11635
      %11637 = vrot.lane.b32.xlu0 %v11262, 112
      %v11638 = vpop.permute.xlu0 %11637
      %11639 = vrot.lane.b32.xlu0 %v11274, 112
      %v11640 = vpop.permute.xlu0 %11639
      %11641 = vrot.lane.b32.xlu0 %v11286, 112
      %v11642 = vpop.permute.xlu0 %11641
      %11643 = vrot.lane.b32.xlu0 %v11298, 112
      %v11644 = vpop.permute.xlu0 %11643
      %11645 = vrot.lane.b32.xlu0 %v11310, 112
      %v11646 = vpop.permute.xlu0 %11645
      %11647 = vrot.lane.b32.xlu0 %v11322, 112
      %v11648 = vpop.permute.xlu0 %11647
      %11649 = vrot.lane.b32.xlu0 %v11334, 112
      %v11650 = vpop.permute.xlu0 %11649
      %11651 = vrot.lane.b32.xlu0 %v11346, 112
      %v11652 = vpop.permute.xlu0 %11651
      %11653 = vrot.lane.b32.xlu0 %v11526, 112
      %v11654 = vpop.permute.xlu0 %11653
      %v11656 = vsel %vm1773, %v11135, %v11348
      %v11658 = vsel %vm1773, %v11136, %v11350
      %v11660 = vsel %vm1773, %v11137, %v11352
      %v11662 = vsel %vm1773, %v11138, %v11354
      %v11664 = vsel %vm1773, %v11139, %v11356
      %v11666 = vsel %vm1773, %v11140, %v11358
      %v11668 = vsel %vm1773, %v11141, %v11360
      %v11670 = vsel %vm1773, %v11142, %v11362
      %v11672 = vsel %vm1773, %v11143, %v11364
      %v11674 = vsel %vm1773, %v11144, %v11366
      %v11676 = vsel %vm1773, %v11145, %v11368
      %v11678 = vsel %vm1773, %v11146, %v11370
      %v11680 = vsel %vm1773, %v11147, %v11372
      %v11682 = vsel %vm1773, %v11148, %v11374
      %v11684 = vsel %vm1773, %v11149, %v11376
      %v11686 = vsel %vm1839, %v11656, %v11453
      %v11688 = vsel %vm1839, %v11658, %v11455
      %v11690 = vsel %vm1839, %v11660, %v11457
      %v11692 = vsel %vm1839, %v11662, %v11459
      %v11694 = vsel %vm1839, %v11664, %v11461
      %v11696 = vsel %vm1839, %v11666, %v11463
      %v11698 = vsel %vm1839, %v11668, %v11465
      %v11700 = vsel %vm1839, %v11670, %v11467
      %v11702 = vsel %vm1839, %v11672, %v11469
      %v11704 = vsel %vm1839, %v11674, %v11471
      %v11706 = vsel %vm1839, %v11676, %v11473
      %v11708 = vsel %vm1839, %v11678, %v11475
      %v11710 = vsel %vm1839, %v11680, %v11477
      %v11712 = vsel %vm1839, %v11682, %v11479
      %v11714 = vsel %vm1839, %v11684, %v11481
      %v11716 = vsel %vm1905, %v7156, %v11484
      %v11718 = vsel %vm1905, %v11686, %v11486
      %v11720 = vsel %vm1905, %v11688, %v11488
      %v11722 = vsel %vm1905, %v11690, %v11490
      %v11724 = vsel %vm1905, %v11692, %v11492
      %v11726 = vsel %vm1905, %v11694, %v11494
      %v11728 = vsel %vm1905, %v11696, %v11496
      %v11730 = vsel %vm1905, %v11698, %v11498
      %v11732 = vsel %vm1905, %v11700, %v11500
      %v11734 = vsel %vm1905, %v11702, %v11502
      %v11736 = vsel %vm1905, %v11704, %v11504
      %v11738 = vsel %vm1905, %v11706, %v11506
      %v11740 = vsel %vm1905, %v11708, %v11508
      %v11742 = vsel %vm1905, %v11710, %v11510
      %v11744 = vsel %vm1905, %v11712, %v11512
      %v11746 = vsel %vm1905, %v11714, %v11514
      %v11748 = vsel %vm1971, %v11716, %v11528
      %v11750 = vsel %vm1971, %v11718, %v11530
      %v11752 = vsel %vm1971, %v11720, %v11532
      %v11754 = vsel %vm1971, %v11722, %v11534
      %v11756 = vsel %vm1971, %v11724, %v11536
      %v11758 = vsel %vm1971, %v11726, %v11538
      %v11760 = vsel %vm1971, %v11728, %v11540
      %v11762 = vsel %vm1971, %v11730, %v11542
      %v11764 = vsel %vm1971, %v11732, %v11544
      %v11766 = vsel %vm1971, %v11734, %v11546
      %v11768 = vsel %vm1971, %v11736, %v11548
      %v11770 = vsel %vm1971, %v11738, %v11550
      %v11772 = vsel %vm1971, %v11740, %v11552
      %v11774 = vsel %vm1971, %v11742, %v11554
      %v11776 = vsel %vm1971, %v11744, %v11556
      %v11778 = vsel %vm1971, %v11746, %v11558
      %v11780 = vsel %vm7251, %v11748, %v11564
      %v11782 = vsel %vm7251, %v11750, %v11566
      %v11784 = vsel %vm7251, %v11752, %v11568
      %v11786 = vsel %vm7251, %v11754, %v11570
      %v11788 = vsel %vm7251, %v11756, %v11572
      %v11790 = vsel %vm7251, %v11758, %v11574
      %v11792 = vsel %vm7251, %v11760, %v11576
      %v11794 = vsel %vm7251, %v11762, %v11578
      %v11796 = vsel %vm7251, %v11764, %v11580
      %v11798 = vsel %vm7251, %v11766, %v11582
      %v11800 = vsel %vm7251, %v11768, %v11584
      %v11802 = vsel %vm7251, %v11770, %v11586
      %v11804 = vsel %vm7251, %v11772, %v11588
      %v11806 = vsel %vm7251, %v11774, %v11590
      %v11808 = vsel %vm7251, %v11776, %v11592
      %v11810 = vsel %vm7251, %v11778, %v11594
      %v11812 = vsel %vm7284, %v11780, %v11596
      %v11814 = vsel %vm7284, %v11782, %v11598
      %v11816 = vsel %vm7284, %v11784, %v11600
      %v11818 = vsel %vm7284, %v11786, %v11602
      %v11820 = vsel %vm7284, %v11788, %v11604
      %v11822 = vsel %vm7284, %v11790, %v11606
      %v11824 = vsel %vm7284, %v11792, %v11608
      %v11826 = vsel %vm7284, %v11794, %v11610
      %v11828 = vsel %vm7284, %v11796, %v11612
      %v11830 = vsel %vm7284, %v11798, %v11614
      %v11832 = vsel %vm7284, %v11800, %v11616
      %v11834 = vsel %vm7284, %v11802, %v11618
      %v11836 = vsel %vm7284, %v11804, %v11620
      %v11838 = vsel %vm7284, %v11806, %v11622
      %v11840 = vsel %vm7284, %v11808, %v11624
      %v11841 = vsel %vm7284, %v11810, %v7090
      %v11843 = vsel %vm7317, %v11812, %v11626
      %v11846 = vsel %vm7317, %v11814, %v11628
      %v11849 = vsel %vm7317, %v11816, %v11630
      %v11852 = vsel %vm7317, %v11818, %v11632
      %v11855 = vsel %vm7317, %v11820, %v11634
      %v11858 = vsel %vm7317, %v11822, %v11636
      %v11861 = vsel %vm7317, %v11824, %v11638
      %v11864 = vsel %vm7317, %v11826, %v11640
      %v11867 = vsel %vm7317, %v11828, %v11642
      %v11870 = vsel %vm7317, %v11830, %v11644
      %v11873 = vsel %vm7317, %v11832, %v11646
      %v11876 = vsel %vm7317, %v11834, %v11648
      %v11879 = vsel %vm7317, %v11836, %v11650
      %v11882 = vsel %vm7317, %v11838, %v11652
      %v11885 = vsel %vm7317, %v11840, %v11654
      %v11887 = vsel %vm7317, %v11841, %v7122
      %v11889 = vld [vmem:[%s51] sm:$0xf]
      %v11890 = vld [vmem:[%s51 + $0x4] sm:$0xf]
      %v11891 = vld [vmem:[%s51 + $0x8] sm:$0xf]
      %v11892 = vld [vmem:[%s51 + $0xc] sm:$0xf]
      %v11893 = vld [vmem:[%s51 + $0x10] sm:$0xf]
      %v11894 = vld [vmem:[%s51 + $0x14] sm:$0xf]
      %v11895 = vld [vmem:[%s51 + $0x18] sm:$0xf]
      %v11896 = vld [vmem:[%s51 + $0x1c] sm:$0xf]
      %v11897 = vld [vmem:[%s51 + $0x20] sm:$0xf]
      %v11898 = vld [vmem:[%s51 + $0x24] sm:$0xf]
      %v11899 = vld [vmem:[%s51 + $0x28] sm:$0xf]
      %v11900 = vld [vmem:[%s51 + $0x2c] sm:$0xf]
      %v11901 = vld [vmem:[%s51 + $0x30] sm:$0xf]
      %v11902 = vld [vmem:[%s51 + $0x34] sm:$0xf]
      %v11903 = vld [vmem:[%s51 + $0x38] sm:$0xf]
      %v11904 = vld [vmem:[%s51 + $0x3c] sm:$0xf]
      %v11905 = vld [vmem:[%s51 + $0x40] sm:$0xf]
      %v11906 = vld [vmem:[%s51 + $0x44] sm:$0xf]
      %v11925 = vunpack.c.l.b16 %v11889
      %v11926 = vunpack.c.l.b16 %v11890
      %v11927 = vunpack.c.l.b16 %v11891
      %v11928 = vunpack.c.l.b16 %v11892
      %v11929 = vunpack.c.l.b16 %v11893
      %v11930 = vunpack.c.l.b16 %v11894
      %v11931 = vunpack.c.l.b16 %v11895
      %v11932 = vunpack.c.l.b16 %v11896
      %v11933 = vunpack.c.l.b16 %v11897
      %v11934 = vunpack.c.l.b16 %v11898
      %v11935 = vunpack.c.l.b16 %v11899
      %v11936 = vunpack.c.l.b16 %v11900
      %v11937 = vunpack.c.l.b16 %v11901
      %v11938 = vunpack.c.l.b16 %v11902
      %v11939 = vunpack.c.l.b16 %v11903
      %v11940 = vunpack.c.l.b16 %v11904
      %v11941 = vunpack.c.l.b16 %v11905
      %v11942 = vunpack.c.l.b16 %v11906
      %v11943 = vpack.c.b16 %v11926, %v11925
      %v11944 = vpack.c.b16 %v11928, %v11927
      %v11945 = vpack.c.b16 %v11930, %v11929
      %v11946 = vpack.c.b16 %v11932, %v11931
      %v11947 = vpack.c.b16 %v11934, %v11933
      %v11948 = vpack.c.b16 %v11936, %v11935
      %v11949 = vpack.c.b16 %v11938, %v11937
      %v11950 = vpack.c.b16 %v11940, %v11939
      %v11951 = vpack.c.b16 %v11942, %v11941
      %v11962 = vsel %vm1773, %v11412, 0
      %v11965 = vsel %vm1773, %v11415, 0
      %v11968 = vsel %vm1773, %v11418, 0
      %v11971 = vsel %vm1773, %v11421, 0
      %v11974 = vsel %vm1773, %v11424, 0
      %v11977 = vsel %vm1773, %v11427, 0
      %v11980 = vsel %vm1773, %v11430, 0
      %v11983 = vsel %vm1773, %v11433, 0
      %v11986 = vsel %vm1773, %v11436, 0
      %v11989 = vsel %vm1773, %v11439, 0
      %v11992 = vsel %vm1773, %v11442, 0
      %v11995 = vsel %vm1773, %v11445, 0
      %v11998 = vsel %vm1773, %v11448, 0
      %v12001 = vsel %vm1773, %v11451, 0
      %v12004 = vsel %vm1773, %v11562, 0
      %12006 = vmatpush.bf16.msra.mxu0 %v11950
      %12007 = vmatpush.bf16.msra.mxu0 %v11949
      %12008 = vmatpush.bf16.msra.mxu0 %v11948
      %12009 = vmatpush.bf16.msra.mxu0 %v11947
      %12010 = vmatpush.bf16.msra.mxu0 %v11946
      %12011 = vmatpush.bf16.msra.mxu0 %v11945
      %12012 = vmatpush.bf16.msra.mxu0 %v11944
      %12013 = vmatpush.bf16.msra.mxu0 %v11943
      %12014 = vmatmul.bf16.gmra.mxu0 %v11843
      %v12015 = vpop.f32.mrf.mxu0
      %v12016 = vadd.f32 0.0, %v12015
      %v12017 = vpop.f32.mrf.mxu0
      %v12018 = vadd.f32 0.0, %v12017
      %12019 = vmatmul.bf16.gmra.mxu0 %v11846
      %v12020 = vpop.f32.mrf.mxu0
      %v12021 = vadd.f32 0.0, %v12020
      %v12022 = vpop.f32.mrf.mxu0
      %v12023 = vadd.f32 0.0, %v12022
      %12024 = vmatmul.bf16.gmra.mxu0 %v11849
      %v12025 = vpop.f32.mrf.mxu0
      %v12026 = vadd.f32 0.0, %v12025
      %v12027 = vpop.f32.mrf.mxu0
      %v12028 = vadd.f32 0.0, %v12027
      %12029 = vmatmul.bf16.gmra.mxu0 %v11852
      %v12030 = vpop.f32.mrf.mxu0
      %v12031 = vadd.f32 0.0, %v12030
      %v12032 = vpop.f32.mrf.mxu0
      %v12033 = vadd.f32 0.0, %v12032
      %12034 = vmatmul.bf16.gmra.mxu0 %v11855
      %v12035 = vpop.f32.mrf.mxu0
      %v12036 = vadd.f32 0.0, %v12035
      %v12037 = vpop.f32.mrf.mxu0
      %v12038 = vadd.f32 0.0, %v12037
      %12039 = vmatmul.bf16.gmra.mxu0 %v11858
      %v12040 = vpop.f32.mrf.mxu0
      %v12041 = vadd.f32 0.0, %v12040
      %v12042 = vpop.f32.mrf.mxu0
      %v12043 = vadd.f32 0.0, %v12042
      %12044 = vmatmul.bf16.gmra.mxu0 %v11861
      %v12045 = vpop.f32.mrf.mxu0
      %v12046 = vadd.f32 0.0, %v12045
      %v12047 = vpop.f32.mrf.mxu0
      %v12048 = vadd.f32 0.0, %v12047
      %12049 = vmatmul.bf16.gmra.mxu0 %v11864
      %v12050 = vpop.f32.mrf.mxu0
      %v12051 = vadd.f32 0.0, %v12050
      %v12052 = vpop.f32.mrf.mxu0
      %v12053 = vadd.f32 0.0, %v12052
      %12054 = vmatmul.bf16.gmra.mxu0 %v11867
      %v12055 = vpop.f32.mrf.mxu0
      %v12056 = vadd.f32 0.0, %v12055
      %v12057 = vpop.f32.mrf.mxu0
      %v12058 = vadd.f32 0.0, %v12057
      %12059 = vmatmul.bf16.gmra.mxu0 %v11870
      %v12060 = vpop.f32.mrf.mxu0
      %v12061 = vadd.f32 0.0, %v12060
      %v12062 = vpop.f32.mrf.mxu0
      %v12063 = vadd.f32 0.0, %v12062
      %12064 = vmatmul.bf16.gmra.mxu0 %v11873
      %v12065 = vpop.f32.mrf.mxu0
      %v12066 = vadd.f32 0.0, %v12065
      %v12067 = vpop.f32.mrf.mxu0
      %v12068 = vadd.f32 0.0, %v12067
      %12069 = vmatmul.bf16.gmra.mxu0 %v11876
      %v12070 = vpop.f32.mrf.mxu0
      %v12071 = vadd.f32 0.0, %v12070
      %v12072 = vpop.f32.mrf.mxu0
      %v12073 = vadd.f32 0.0, %v12072
      %12074 = vmatmul.bf16.gmra.mxu0 %v11879
      %v12075 = vpop.f32.mrf.mxu0
      %v12076 = vadd.f32 0.0, %v12075
      %v12077 = vpop.f32.mrf.mxu0
      %v12078 = vadd.f32 0.0, %v12077
      %12079 = vmatmul.bf16.gmra.mxu0 %v11882
      %v12080 = vpop.f32.mrf.mxu0
      %v12081 = vadd.f32 0.0, %v12080
      %v12082 = vpop.f32.mrf.mxu0
      %v12083 = vadd.f32 0.0, %v12082
      %12084 = vmatmul.bf16.gmra.mxu0 %v11885
      %v12085 = vpop.f32.mrf.mxu0
      %v12086 = vadd.f32 0.0, %v12085
      %v12087 = vpop.f32.mrf.mxu0
      %v12088 = vadd.f32 0.0, %v12087
      %12089 = vmatmul.bf16.gmra.mxu0 %v11887
      %v12090 = vpop.f32.mrf.mxu0
      %v12091 = vadd.f32 0.0, %v12090
      %v12092 = vpop.f32.mrf.mxu0
      %v12093 = vadd.f32 0.0, %v12092
      %12094 = vdwg.mxu0
      %12095 = vmatpush.bf16.msra.mxu0 0
      %12096 = vmatpush.bf16.msra.mxu0 0
      %12097 = vmatpush.bf16.msra.mxu0 0
      %12098 = vmatpush.bf16.msra.mxu0 0
      %12099 = vmatpush.bf16.msra.mxu0 0
      %12100 = vmatpush.bf16.msra.mxu0 0
      %12101 = vmatpush.bf16.msra.mxu0 0
      %12102 = vmatpush.bf16.msra.mxu0 %v11951
      %12103 = vmatmul.bf16.gmra.mxu0 %v11962
      %v12104 = vpop.f32.mrf.mxu0
      %v12105 = vadd.f32 %v12016, %v12104
      %v12106 = vpop.f32.mrf.mxu0
      %v12107 = vadd.f32 %v12018, %v12106
      %12108 = vmatmul.bf16.gmra.mxu0 %v11965
      %v12109 = vpop.f32.mrf.mxu0
      %v12110 = vadd.f32 %v12021, %v12109
      %v12111 = vpop.f32.mrf.mxu0
      %v12112 = vadd.f32 %v12023, %v12111
      %12113 = vmatmul.bf16.gmra.mxu0 %v11968
      %v12114 = vpop.f32.mrf.mxu0
      %v12115 = vadd.f32 %v12026, %v12114
      %v12116 = vpop.f32.mrf.mxu0
      %v12117 = vadd.f32 %v12028, %v12116
      %12118 = vmatmul.bf16.gmra.mxu0 %v11971
      %v12119 = vpop.f32.mrf.mxu0
      %v12120 = vadd.f32 %v12031, %v12119
      %v12121 = vpop.f32.mrf.mxu0
      %v12122 = vadd.f32 %v12033, %v12121
      %12123 = vmatmul.bf16.gmra.mxu0 %v11974
      %v12124 = vpop.f32.mrf.mxu0
      %v12125 = vadd.f32 %v12036, %v12124
      %v12126 = vpop.f32.mrf.mxu0
      %v12127 = vadd.f32 %v12038, %v12126
      %12128 = vmatmul.bf16.gmra.mxu0 %v11977
      %v12129 = vpop.f32.mrf.mxu0
      %v12130 = vadd.f32 %v12041, %v12129
      %v12131 = vpop.f32.mrf.mxu0
      %v12132 = vadd.f32 %v12043, %v12131
      %12133 = vmatmul.bf16.gmra.mxu0 %v11980
      %v12134 = vpop.f32.mrf.mxu0
      %v12135 = vadd.f32 %v12046, %v12134
      %v12136 = vpop.f32.mrf.mxu0
      %v12137 = vadd.f32 %v12048, %v12136
      %12138 = vmatmul.bf16.gmra.mxu0 %v11983
      %v12139 = vpop.f32.mrf.mxu0
      %v12140 = vadd.f32 %v12051, %v12139
      %v12141 = vpop.f32.mrf.mxu0
      %v12142 = vadd.f32 %v12053, %v12141
      %12143 = vmatmul.bf16.gmra.mxu0 %v11986
      %v12144 = vpop.f32.mrf.mxu0
      %v12145 = vadd.f32 %v12056, %v12144
      %v12146 = vpop.f32.mrf.mxu0
      %v12147 = vadd.f32 %v12058, %v12146
      %12148 = vmatmul.bf16.gmra.mxu0 %v11989
      %v12149 = vpop.f32.mrf.mxu0
      %v12150 = vadd.f32 %v12061, %v12149
      %v12151 = vpop.f32.mrf.mxu0
      %v12152 = vadd.f32 %v12063, %v12151
      %12153 = vmatmul.bf16.gmra.mxu0 %v11992
      %v12154 = vpop.f32.mrf.mxu0
      %v12155 = vadd.f32 %v12066, %v12154
      %v12156 = vpop.f32.mrf.mxu0
      %v12157 = vadd.f32 %v12068, %v12156
      %12158 = vmatmul.bf16.gmra.mxu0 %v11995
      %v12159 = vpop.f32.mrf.mxu0
      %v12160 = vadd.f32 %v12071, %v12159
      %v12161 = vpop.f32.mrf.mxu0
      %v12162 = vadd.f32 %v12073, %v12161
      %12163 = vmatmul.bf16.gmra.mxu0 %v11998
      %v12164 = vpop.f32.mrf.mxu0
      %v12165 = vadd.f32 %v12076, %v12164
      %v12166 = vpop.f32.mrf.mxu0
      %v12167 = vadd.f32 %v12078, %v12166
      %12168 = vmatmul.bf16.gmra.mxu0 %v12001
      %v12169 = vpop.f32.mrf.mxu0
      %v12170 = vadd.f32 %v12081, %v12169
      %v12171 = vpop.f32.mrf.mxu0
      %v12172 = vadd.f32 %v12083, %v12171
      %12173 = vmatmul.bf16.gmra.mxu0 %v12004
      %v12174 = vpop.f32.mrf.mxu0
      %v12175 = vadd.f32 %v12086, %v12174
      %v12176 = vpop.f32.mrf.mxu0
      %v12177 = vadd.f32 %v12088, %v12176
      %12178 = vmatmul.bf16.gmra.mxu0 %v7484
      %v12179 = vpop.f32.mrf.mxu0
      %v12180 = vadd.f32 %v12091, %v12179
      %v12181 = vpop.f32.mrf.mxu0
      %v12182 = vadd.f32 %v12093, %v12181
      %12183 = vdwg.mxu0
      %v12184 = vld [vmem:[%s53] sm:$0x1]
      %v12186 = vperm.slane %v12184, 0
      %v12188 = vmul.f32 %v12105, %v12186
      %v12189 = vmul.f32 %v12107, %v12186
      %v12190 = vmul.f32 %v12110, %v12186
      %v12191 = vmul.f32 %v12112, %v12186
      %v12192 = vmul.f32 %v12115, %v12186
      %v12193 = vmul.f32 %v12117, %v12186
      %v12194 = vmul.f32 %v12120, %v12186
      %v12195 = vmul.f32 %v12122, %v12186
      %v12196 = vmul.f32 %v12125, %v12186
      %v12197 = vmul.f32 %v12127, %v12186
      %v12198 = vmul.f32 %v12130, %v12186
      %v12199 = vmul.f32 %v12132, %v12186
      %v12200 = vmul.f32 %v12135, %v12186
      %v12201 = vmul.f32 %v12137, %v12186
      %v12202 = vmul.f32 %v12140, %v12186
      %v12203 = vmul.f32 %v12142, %v12186
      %v12204 = vmul.f32 %v12145, %v12186
      %v12205 = vmul.f32 %v12147, %v12186
      %v12206 = vmul.f32 %v12150, %v12186
      %v12207 = vmul.f32 %v12152, %v12186
      %v12208 = vmul.f32 %v12155, %v12186
      %v12209 = vmul.f32 %v12157, %v12186
      %v12210 = vmul.f32 %v12160, %v12186
      %v12211 = vmul.f32 %v12162, %v12186
      %v12212 = vmul.f32 %v12165, %v12186
      %v12213 = vmul.f32 %v12167, %v12186
      %v12214 = vmul.f32 %v12170, %v12186
      %v12215 = vmul.f32 %v12172, %v12186
      %v12216 = vmul.f32 %v12175, %v12186
      %v12217 = vmul.f32 %v12177, %v12186
      %v12218 = vmul.f32 %v12180, %v12186
      %v12219 = vmul.f32 %v12182, %v12186
      %v12220 = vld [vmem:[%s55] sm:$0x1]
      %v12222 = vperm.slane %v12220, 0
      %v12224 = vadd.f32 %v12188, %v12222
      %v12225 = vadd.f32 %v12189, %v12222
      %v12226 = vadd.f32 %v12190, %v12222
      %v12227 = vadd.f32 %v12191, %v12222
      %v12228 = vadd.f32 %v12192, %v12222
      %v12229 = vadd.f32 %v12193, %v12222
      %v12230 = vadd.f32 %v12194, %v12222
      %v12231 = vadd.f32 %v12195, %v12222
      %v12232 = vadd.f32 %v12196, %v12222
      %v12233 = vadd.f32 %v12197, %v12222
      %v12234 = vadd.f32 %v12198, %v12222
      %v12235 = vadd.f32 %v12199, %v12222
      %v12236 = vadd.f32 %v12200, %v12222
      %v12237 = vadd.f32 %v12201, %v12222
      %v12238 = vadd.f32 %v12202, %v12222
      %v12239 = vadd.f32 %v12203, %v12222
      %v12240 = vadd.f32 %v12204, %v12222
      %v12241 = vadd.f32 %v12205, %v12222
      %v12242 = vadd.f32 %v12206, %v12222
      %v12243 = vadd.f32 %v12207, %v12222
      %v12244 = vadd.f32 %v12208, %v12222
      %v12245 = vadd.f32 %v12209, %v12222
      %v12246 = vadd.f32 %v12210, %v12222
      %v12247 = vadd.f32 %v12211, %v12222
      %v12248 = vadd.f32 %v12212, %v12222
      %v12249 = vadd.f32 %v12213, %v12222
      %v12250 = vadd.f32 %v12214, %v12222
      %v12251 = vadd.f32 %v12215, %v12222
      %v12252 = vadd.f32 %v12216, %v12222
      %v12253 = vadd.f32 %v12217, %v12222
      %v12254 = vadd.f32 %v12218, %v12222
      %v12255 = vadd.f32 %v12219, %v12222
      %v12256 = vmax.f32 %v12224, 0.0
      %v12257 = vmax.f32 %v12225, 0.0
      %v12258 = vmax.f32 %v12226, 0.0
      %v12259 = vmax.f32 %v12227, 0.0
      %v12260 = vmax.f32 %v12228, 0.0
      %v12261 = vmax.f32 %v12229, 0.0
      %v12262 = vmax.f32 %v12230, 0.0
      %v12263 = vmax.f32 %v12231, 0.0
      %v12264 = vmax.f32 %v12232, 0.0
      %v12265 = vmax.f32 %v12233, 0.0
      %v12266 = vmax.f32 %v12234, 0.0
      %v12267 = vmax.f32 %v12235, 0.0
      %v12268 = vmax.f32 %v12236, 0.0
      %v12269 = vmax.f32 %v12237, 0.0
      %v12270 = vmax.f32 %v12238, 0.0
      %v12271 = vmax.f32 %v12239, 0.0
      %v12272 = vmax.f32 %v12240, 0.0
      %v12273 = vmax.f32 %v12241, 0.0
      %v12274 = vmax.f32 %v12242, 0.0
      %v12275 = vmax.f32 %v12243, 0.0
      %v12276 = vmax.f32 %v12244, 0.0
      %v12277 = vmax.f32 %v12245, 0.0
      %v12278 = vmax.f32 %v12246, 0.0
      %v12279 = vmax.f32 %v12247, 0.0
      %v12280 = vmax.f32 %v12248, 0.0
      %v12281 = vmax.f32 %v12249, 0.0
      %v12282 = vmax.f32 %v12250, 0.0
      %v12283 = vmax.f32 %v12251, 0.0
      %v12284 = vmax.f32 %v12252, 0.0
      %v12285 = vmax.f32 %v12253, 0.0
      %v12286 = vmax.f32 %v12254, 0.0
      %v12287 = vmax.f32 %v12255, 0.0
      %v12288 = vpack.c.bf16 %v12256, %v12256
      %v12289 = vpack.c.bf16 %v12257, %v12257
      %v12290 = vpack.c.bf16 %v12258, %v12258
      %v12291 = vpack.c.bf16 %v12259, %v12259
      %v12292 = vpack.c.bf16 %v12260, %v12260
      %v12293 = vpack.c.bf16 %v12261, %v12261
      %v12294 = vpack.c.bf16 %v12262, %v12262
      %v12295 = vpack.c.bf16 %v12263, %v12263
      %v12296 = vpack.c.bf16 %v12264, %v12264
      %v12297 = vpack.c.bf16 %v12265, %v12265
      %v12298 = vpack.c.bf16 %v12266, %v12266
      %v12299 = vpack.c.bf16 %v12267, %v12267
      %v12300 = vpack.c.bf16 %v12268, %v12268
      %v12301 = vpack.c.bf16 %v12269, %v12269
      %v12302 = vpack.c.bf16 %v12270, %v12270
      %v12303 = vpack.c.bf16 %v12271, %v12271
      %v12304 = vpack.c.bf16 %v12272, %v12272
      %v12305 = vpack.c.bf16 %v12273, %v12273
      %v12306 = vpack.c.bf16 %v12274, %v12274
      %v12307 = vpack.c.bf16 %v12275, %v12275
      %v12308 = vpack.c.bf16 %v12276, %v12276
      %v12309 = vpack.c.bf16 %v12277, %v12277
      %v12310 = vpack.c.bf16 %v12278, %v12278
      %v12311 = vpack.c.bf16 %v12279, %v12279
      %v12312 = vpack.c.bf16 %v12280, %v12280
      %v12313 = vpack.c.bf16 %v12281, %v12281
      %v12314 = vpack.c.bf16 %v12282, %v12282
      %v12315 = vpack.c.bf16 %v12283, %v12283
      %v12316 = vpack.c.bf16 %v12284, %v12284
      %v12317 = vpack.c.bf16 %v12285, %v12285
      %v12318 = vpack.c.bf16 %v12286, %v12286
      %v12319 = vpack.c.bf16 %v12287, %v12287
      %v12352 = vunpack.c.l.b16 %v12288
      %v12353 = vunpack.c.l.b16 %v12289
      %v12354 = vunpack.c.l.b16 %v12290
      %v12355 = vunpack.c.l.b16 %v12291
      %v12356 = vunpack.c.l.b16 %v12292
      %v12357 = vunpack.c.l.b16 %v12293
      %v12358 = vunpack.c.l.b16 %v12294
      %v12359 = vunpack.c.l.b16 %v12295
      %v12360 = vunpack.c.l.b16 %v12296
      %v12361 = vunpack.c.l.b16 %v12297
      %v12362 = vunpack.c.l.b16 %v12298
      %v12363 = vunpack.c.l.b16 %v12299
      %v12364 = vunpack.c.l.b16 %v12300
      %v12365 = vunpack.c.l.b16 %v12301
      %v12366 = vunpack.c.l.b16 %v12302
      %v12367 = vunpack.c.l.b16 %v12303
      %v12368 = vunpack.c.l.b16 %v12304
      %v12369 = vunpack.c.l.b16 %v12305
      %v12370 = vunpack.c.l.b16 %v12306
      %v12371 = vunpack.c.l.b16 %v12307
      %v12372 = vunpack.c.l.b16 %v12308
      %v12373 = vunpack.c.l.b16 %v12309
      %v12374 = vunpack.c.l.b16 %v12310
      %v12375 = vunpack.c.l.b16 %v12311
      %v12376 = vunpack.c.l.b16 %v12312
      %v12377 = vunpack.c.l.b16 %v12313
      %v12378 = vunpack.c.l.b16 %v12314
      %v12379 = vunpack.c.l.b16 %v12315
      %v12380 = vunpack.c.l.b16 %v12316
      %v12381 = vunpack.c.l.b16 %v12317
      %v12382 = vunpack.c.l.b16 %v12318
      %v12383 = vunpack.c.l.b16 %v12319
      %v12384 = vpack.c.b16 %v12353, %v12352
      %v12385 = vpack.c.b16 %v12355, %v12354
      %v12386 = vpack.c.b16 %v12357, %v12356
      %v12387 = vpack.c.b16 %v12359, %v12358
      %v12388 = vpack.c.b16 %v12361, %v12360
      %v12389 = vpack.c.b16 %v12363, %v12362
      %v12390 = vpack.c.b16 %v12365, %v12364
      %v12391 = vpack.c.b16 %v12367, %v12366
      %v12392 = vpack.c.b16 %v12369, %v12368
      %v12393 = vpack.c.b16 %v12371, %v12370
      %v12394 = vpack.c.b16 %v12373, %v12372
      %v12395 = vpack.c.b16 %v12375, %v12374
      %v12396 = vpack.c.b16 %v12377, %v12376
      %v12397 = vpack.c.b16 %v12379, %v12378
      %v12398 = vpack.c.b16 %v12381, %v12380
      %v12399 = vpack.c.b16 %v12383, %v12382
      %v12401 = vshrl.u32 %v12384, 16
      %v12403 = vrot.slane %v12401, 7
      %v12404 = vshll.u32 %v12384, 16
      %v12406 = vor.u32 %v12403, %v12404
      %v12408 = vshrl.u32 %v12385, 16
      %v12410 = vrot.slane %v12408, 7
      %v12411 = vshll.u32 %v12385, 16
      %v12413 = vor.u32 %v12410, %v12411
      %v12415 = vshrl.u32 %v12386, 16
      %v12417 = vrot.slane %v12415, 7
      %v12418 = vshll.u32 %v12386, 16
      %v12420 = vor.u32 %v12417, %v12418
      %v12422 = vshrl.u32 %v12387, 16
      %v12424 = vrot.slane %v12422, 7
      %v12425 = vshll.u32 %v12387, 16
      %v12427 = vor.u32 %v12424, %v12425
      %v12429 = vshrl.u32 %v12388, 16
      %v12431 = vrot.slane %v12429, 7
      %v12432 = vshll.u32 %v12388, 16
      %v12434 = vor.u32 %v12431, %v12432
      %v12436 = vshrl.u32 %v12389, 16
      %v12438 = vrot.slane %v12436, 7
      %v12439 = vshll.u32 %v12389, 16
      %v12441 = vor.u32 %v12438, %v12439
      %v12443 = vshrl.u32 %v12390, 16
      %v12445 = vrot.slane %v12443, 7
      %v12446 = vshll.u32 %v12390, 16
      %v12448 = vor.u32 %v12445, %v12446
      %v12450 = vshrl.u32 %v12391, 16
      %v12452 = vrot.slane %v12450, 7
      %v12453 = vshll.u32 %v12391, 16
      %v12455 = vor.u32 %v12452, %v12453
      %v12457 = vshrl.u32 %v12392, 16
      %v12459 = vrot.slane %v12457, 7
      %v12460 = vshll.u32 %v12392, 16
      %v12462 = vor.u32 %v12459, %v12460
      %v12464 = vshrl.u32 %v12393, 16
      %v12466 = vrot.slane %v12464, 7
      %v12467 = vshll.u32 %v12393, 16
      %v12469 = vor.u32 %v12466, %v12467
      %v12471 = vshrl.u32 %v12394, 16
      %v12473 = vrot.slane %v12471, 7
      %v12474 = vshll.u32 %v12394, 16
      %v12476 = vor.u32 %v12473, %v12474
      %v12478 = vshrl.u32 %v12395, 16
      %v12480 = vrot.slane %v12478, 7
      %v12481 = vshll.u32 %v12395, 16
      %v12483 = vor.u32 %v12480, %v12481
      %v12485 = vshrl.u32 %v12396, 16
      %v12487 = vrot.slane %v12485, 7
      %v12488 = vshll.u32 %v12396, 16
      %v12490 = vor.u32 %v12487, %v12488
      %v12492 = vshrl.u32 %v12397, 16
      %v12494 = vrot.slane %v12492, 7
      %v12495 = vshll.u32 %v12397, 16
      %v12497 = vor.u32 %v12494, %v12495
      %v12499 = vshrl.u32 %v12398, 16
      %v12501 = vrot.slane %v12499, 7
      %v12502 = vshll.u32 %v12398, 16
      %v12504 = vor.u32 %v12501, %v12502
      %v12506 = vshrl.u32 %v12399, 16
      %v12508 = vrot.slane %v12506, 7
      %v12509 = vshll.u32 %v12399, 16
      %v12511 = vor.u32 %v12508, %v12509
      %v12544 = vsel %vm2537, 0, %v12406
      %v12545 = vsel %vm2537, 0, %v12413
      %v12546 = vsel %vm2537, 0, %v12420
      %v12547 = vsel %vm2537, 0, %v12427
      %v12548 = vsel %vm2537, 0, %v12434
      %v12549 = vsel %vm2537, 0, %v12441
      %v12550 = vsel %vm2537, 0, %v12448
      %v12551 = vsel %vm2537, 0, %v12455
      %v12552 = vsel %vm2537, 0, %v12462
      %v12553 = vsel %vm2537, 0, %v12469
      %v12554 = vsel %vm2537, 0, %v12476
      %v12555 = vsel %vm2537, 0, %v12483
      %v12556 = vsel %vm2537, 0, %v12490
      %v12557 = vsel %vm2537, 0, %v12497
      %v12558 = vsel %vm2537, 0, %v12504
      %v12559 = vsel %vm2537, 0, %v12511
      %v12560 = vsel %vm2537, %v12403, 0
      %v12561 = vsel %vm2537, %v12410, 0
      %v12562 = vsel %vm2537, %v12417, 0
      %v12563 = vsel %vm2537, %v12424, 0
      %v12564 = vsel %vm2537, %v12431, 0
      %v12565 = vsel %vm2537, %v12438, 0
      %v12566 = vsel %vm2537, %v12445, 0
      %v12567 = vsel %vm2537, %v12452, 0
      %v12568 = vsel %vm2537, %v12459, 0
      %v12569 = vsel %vm2537, %v12466, 0
      %v12570 = vsel %vm2537, %v12473, 0
      %v12571 = vsel %vm2537, %v12480, 0
      %v12572 = vsel %vm2537, %v12487, 0
      %v12573 = vsel %vm2537, %v12494, 0
      %v12574 = vsel %vm2537, %v12501, 0
      %v12575 = vsel %vm2537, %v12508, 0
      %v12577 = vshrl.u32 %v12544, 16
      %v12579 = vshll.u32 %v12544, 16
      %v12581 = vrot.slane %v12579, 1
      %v12582 = vor.u32 %v12577, %v12581
      %v12584 = vshll.u32 %v12560, 16
      %v12586 = vrot.slane %v12584, 1
      %v12587 = vsel %vm1196, %v12582, %v12586
      %v12589 = vshrl.u32 %v12545, 16
      %v12591 = vshll.u32 %v12545, 16
      %v12593 = vrot.slane %v12591, 1
      %v12594 = vor.u32 %v12589, %v12593
      %v12596 = vshll.u32 %v12561, 16
      %v12598 = vrot.slane %v12596, 1
      %v12599 = vsel %vm1196, %v12594, %v12598
      %v12601 = vshrl.u32 %v12546, 16
      %v12603 = vshll.u32 %v12546, 16
      %v12605 = vrot.slane %v12603, 1
      %v12606 = vor.u32 %v12601, %v12605
      %v12608 = vshll.u32 %v12562, 16
      %v12610 = vrot.slane %v12608, 1
      %v12611 = vsel %vm1196, %v12606, %v12610
      %v12613 = vshrl.u32 %v12547, 16
      %v12615 = vshll.u32 %v12547, 16
      %v12617 = vrot.slane %v12615, 1
      %v12618 = vor.u32 %v12613, %v12617
      %v12620 = vshll.u32 %v12563, 16
      %v12622 = vrot.slane %v12620, 1
      %v12623 = vsel %vm1196, %v12618, %v12622
      %v12625 = vshrl.u32 %v12548, 16
      %v12627 = vshll.u32 %v12548, 16
      %v12629 = vrot.slane %v12627, 1
      %v12630 = vor.u32 %v12625, %v12629
      %v12632 = vshll.u32 %v12564, 16
      %v12634 = vrot.slane %v12632, 1
      %v12635 = vsel %vm1196, %v12630, %v12634
      %v12637 = vshrl.u32 %v12549, 16
      %v12639 = vshll.u32 %v12549, 16
      %v12641 = vrot.slane %v12639, 1
      %v12642 = vor.u32 %v12637, %v12641
      %v12644 = vshll.u32 %v12565, 16
      %v12646 = vrot.slane %v12644, 1
      %v12647 = vsel %vm1196, %v12642, %v12646
      %v12649 = vshrl.u32 %v12550, 16
      %v12651 = vshll.u32 %v12550, 16
      %v12653 = vrot.slane %v12651, 1
      %v12654 = vor.u32 %v12649, %v12653
      %v12656 = vshll.u32 %v12566, 16
      %v12658 = vrot.slane %v12656, 1
      %v12659 = vsel %vm1196, %v12654, %v12658
      %v12661 = vshrl.u32 %v12551, 16
      %v12663 = vshll.u32 %v12551, 16
      %v12665 = vrot.slane %v12663, 1
      %v12666 = vor.u32 %v12661, %v12665
      %v12668 = vshll.u32 %v12567, 16
      %v12670 = vrot.slane %v12668, 1
      %v12671 = vsel %vm1196, %v12666, %v12670
      %v12673 = vshrl.u32 %v12552, 16
      %v12675 = vshll.u32 %v12552, 16
      %v12677 = vrot.slane %v12675, 1
      %v12678 = vor.u32 %v12673, %v12677
      %v12680 = vshll.u32 %v12568, 16
      %v12682 = vrot.slane %v12680, 1
      %v12683 = vsel %vm1196, %v12678, %v12682
      %v12685 = vshrl.u32 %v12553, 16
      %v12687 = vshll.u32 %v12553, 16
      %v12689 = vrot.slane %v12687, 1
      %v12690 = vor.u32 %v12685, %v12689
      %v12692 = vshll.u32 %v12569, 16
      %v12694 = vrot.slane %v12692, 1
      %v12695 = vsel %vm1196, %v12690, %v12694
      %v12697 = vshrl.u32 %v12554, 16
      %v12699 = vshll.u32 %v12554, 16
      %v12701 = vrot.slane %v12699, 1
      %v12702 = vor.u32 %v12697, %v12701
      %v12704 = vshll.u32 %v12570, 16
      %v12706 = vrot.slane %v12704, 1
      %v12707 = vsel %vm1196, %v12702, %v12706
      %v12709 = vshrl.u32 %v12555, 16
      %v12711 = vshll.u32 %v12555, 16
      %v12713 = vrot.slane %v12711, 1
      %v12714 = vor.u32 %v12709, %v12713
      %v12716 = vshll.u32 %v12571, 16
      %v12718 = vrot.slane %v12716, 1
      %v12719 = vsel %vm1196, %v12714, %v12718
      %v12721 = vshrl.u32 %v12556, 16
      %v12723 = vshll.u32 %v12556, 16
      %v12725 = vrot.slane %v12723, 1
      %v12726 = vor.u32 %v12721, %v12725
      %v12728 = vshll.u32 %v12572, 16
      %v12730 = vrot.slane %v12728, 1
      %v12731 = vsel %vm1196, %v12726, %v12730
      %v12733 = vshrl.u32 %v12557, 16
      %v12735 = vshll.u32 %v12557, 16
      %v12737 = vrot.slane %v12735, 1
      %v12738 = vor.u32 %v12733, %v12737
      %v12740 = vshll.u32 %v12573, 16
      %v12742 = vrot.slane %v12740, 1
      %v12743 = vsel %vm1196, %v12738, %v12742
      %v12745 = vshrl.u32 %v12558, 16
      %v12747 = vshll.u32 %v12558, 16
      %v12749 = vrot.slane %v12747, 1
      %v12750 = vor.u32 %v12745, %v12749
      %v12752 = vshll.u32 %v12574, 16
      %v12754 = vrot.slane %v12752, 1
      %v12755 = vsel %vm1196, %v12750, %v12754
      %12756 = vrot.lane.b32.xlu0 %v12587, 16
      %v12757 = vpop.permute.xlu0 %12756
      %12758 = vrot.lane.b32.xlu0 %v12599, 16
      %v12759 = vpop.permute.xlu0 %12758
      %12760 = vrot.lane.b32.xlu0 %v12611, 16
      %v12761 = vpop.permute.xlu0 %12760
      %12762 = vrot.lane.b32.xlu0 %v12623, 16
      %v12763 = vpop.permute.xlu0 %12762
      %12764 = vrot.lane.b32.xlu0 %v12635, 16
      %v12765 = vpop.permute.xlu0 %12764
      %12766 = vrot.lane.b32.xlu0 %v12647, 16
      %v12767 = vpop.permute.xlu0 %12766
      %12768 = vrot.lane.b32.xlu0 %v12659, 16
      %v12769 = vpop.permute.xlu0 %12768
      %12770 = vrot.lane.b32.xlu0 %v12671, 16
      %v12771 = vpop.permute.xlu0 %12770
      %12772 = vrot.lane.b32.xlu0 %v12683, 16
      %v12773 = vpop.permute.xlu0 %12772
      %12774 = vrot.lane.b32.xlu0 %v12695, 16
      %v12775 = vpop.permute.xlu0 %12774
      %12776 = vrot.lane.b32.xlu0 %v12707, 16
      %v12777 = vpop.permute.xlu0 %12776
      %12778 = vrot.lane.b32.xlu0 %v12719, 16
      %v12779 = vpop.permute.xlu0 %12778
      %12780 = vrot.lane.b32.xlu0 %v12731, 16
      %v12781 = vpop.permute.xlu0 %12780
      %12782 = vrot.lane.b32.xlu0 %v12743, 16
      %v12783 = vpop.permute.xlu0 %12782
      %12784 = vrot.lane.b32.xlu0 %v12755, 16
      %v12785 = vpop.permute.xlu0 %12784
      %v12816 = vrot.slane %v12544, 1
      %v12817 = vrot.slane %v12560, 1
      %v12818 = vsel %vm1421, %v12816, %v12817
      %v12819 = vrot.slane %v12545, 1
      %v12820 = vrot.slane %v12561, 1
      %v12821 = vsel %vm1421, %v12819, %v12820
      %v12822 = vrot.slane %v12546, 1
      %v12823 = vrot.slane %v12562, 1
      %v12824 = vsel %vm1421, %v12822, %v12823
      %v12825 = vrot.slane %v12547, 1
      %v12826 = vrot.slane %v12563, 1
      %v12827 = vsel %vm1421, %v12825, %v12826
      %v12828 = vrot.slane %v12548, 1
      %v12829 = vrot.slane %v12564, 1
      %v12830 = vsel %vm1421, %v12828, %v12829
      %v12831 = vrot.slane %v12549, 1
      %v12832 = vrot.slane %v12565, 1
      %v12833 = vsel %vm1421, %v12831, %v12832
      %v12834 = vrot.slane %v12550, 1
      %v12835 = vrot.slane %v12566, 1
      %v12836 = vsel %vm1421, %v12834, %v12835
      %v12837 = vrot.slane %v12551, 1
      %v12838 = vrot.slane %v12567, 1
      %v12839 = vsel %vm1421, %v12837, %v12838
      %v12840 = vrot.slane %v12552, 1
      %v12841 = vrot.slane %v12568, 1
      %v12842 = vsel %vm1421, %v12840, %v12841
      %v12843 = vrot.slane %v12553, 1
      %v12844 = vrot.slane %v12569, 1
      %v12845 = vsel %vm1421, %v12843, %v12844
      %v12846 = vrot.slane %v12554, 1
      %v12847 = vrot.slane %v12570, 1
      %v12848 = vsel %vm1421, %v12846, %v12847
      %v12849 = vrot.slane %v12555, 1
      %v12850 = vrot.slane %v12571, 1
      %v12851 = vsel %vm1421, %v12849, %v12850
      %v12852 = vrot.slane %v12556, 1
      %v12853 = vrot.slane %v12572, 1
      %v12854 = vsel %vm1421, %v12852, %v12853
      %v12855 = vrot.slane %v12557, 1
      %v12856 = vrot.slane %v12573, 1
      %v12857 = vsel %vm1421, %v12855, %v12856
      %v12858 = vrot.slane %v12558, 1
      %v12859 = vrot.slane %v12574, 1
      %v12860 = vsel %vm1421, %v12858, %v12859
      %12861 = vrot.lane.b32.xlu0 %v12818, 32
      %v12862 = vpop.permute.xlu0 %12861
      %12863 = vrot.lane.b32.xlu0 %v12821, 32
      %v12864 = vpop.permute.xlu0 %12863
      %12865 = vrot.lane.b32.xlu0 %v12824, 32
      %v12866 = vpop.permute.xlu0 %12865
      %12867 = vrot.lane.b32.xlu0 %v12827, 32
      %v12868 = vpop.permute.xlu0 %12867
      %12869 = vrot.lane.b32.xlu0 %v12830, 32
      %v12870 = vpop.permute.xlu0 %12869
      %12871 = vrot.lane.b32.xlu0 %v12833, 32
      %v12872 = vpop.permute.xlu0 %12871
      %12873 = vrot.lane.b32.xlu0 %v12836, 32
      %v12874 = vpop.permute.xlu0 %12873
      %12875 = vrot.lane.b32.xlu0 %v12839, 32
      %v12876 = vpop.permute.xlu0 %12875
      %12877 = vrot.lane.b32.xlu0 %v12842, 32
      %v12878 = vpop.permute.xlu0 %12877
      %12879 = vrot.lane.b32.xlu0 %v12845, 32
      %v12880 = vpop.permute.xlu0 %12879
      %12881 = vrot.lane.b32.xlu0 %v12848, 32
      %v12882 = vpop.permute.xlu0 %12881
      %12883 = vrot.lane.b32.xlu0 %v12851, 32
      %v12884 = vpop.permute.xlu0 %12883
      %12885 = vrot.lane.b32.xlu0 %v12854, 32
      %v12886 = vpop.permute.xlu0 %12885
      %12887 = vrot.lane.b32.xlu0 %v12857, 32
      %v12888 = vpop.permute.xlu0 %12887
      %12889 = vrot.lane.b32.xlu0 %v12860, 32
      %v12890 = vpop.permute.xlu0 %12889
      %12892 = vrot.lane.b32.xlu0 %v12544, 48
      %v12893 = vpop.permute.xlu0 %12892
      %12894 = vrot.lane.b32.xlu0 %v12545, 48
      %v12895 = vpop.permute.xlu0 %12894
      %12896 = vrot.lane.b32.xlu0 %v12546, 48
      %v12897 = vpop.permute.xlu0 %12896
      %12898 = vrot.lane.b32.xlu0 %v12547, 48
      %v12899 = vpop.permute.xlu0 %12898
      %12900 = vrot.lane.b32.xlu0 %v12548, 48
      %v12901 = vpop.permute.xlu0 %12900
      %12902 = vrot.lane.b32.xlu0 %v12549, 48
      %v12903 = vpop.permute.xlu0 %12902
      %12904 = vrot.lane.b32.xlu0 %v12550, 48
      %v12905 = vpop.permute.xlu0 %12904
      %12906 = vrot.lane.b32.xlu0 %v12551, 48
      %v12907 = vpop.permute.xlu0 %12906
      %12908 = vrot.lane.b32.xlu0 %v12552, 48
      %v12909 = vpop.permute.xlu0 %12908
      %12910 = vrot.lane.b32.xlu0 %v12553, 48
      %v12911 = vpop.permute.xlu0 %12910
      %12912 = vrot.lane.b32.xlu0 %v12554, 48
      %v12913 = vpop.permute.xlu0 %12912
      %12914 = vrot.lane.b32.xlu0 %v12555, 48
      %v12915 = vpop.permute.xlu0 %12914
      %12916 = vrot.lane.b32.xlu0 %v12556, 48
      %v12917 = vpop.permute.xlu0 %12916
      %12918 = vrot.lane.b32.xlu0 %v12557, 48
      %v12919 = vpop.permute.xlu0 %12918
      %12920 = vrot.lane.b32.xlu0 %v12558, 48
      %v12921 = vpop.permute.xlu0 %12920
      %12922 = vrot.lane.b32.xlu0 %v12559, 48
      %v12923 = vpop.permute.xlu0 %12922
      %v12925 = vshrl.u32 %v12559, 16
      %v12927 = vshll.u32 %v12559, 16
      %v12929 = vrot.slane %v12927, 1
      %v12930 = vor.u32 %v12925, %v12929
      %v12932 = vshll.u32 %v12575, 16
      %v12934 = vrot.slane %v12932, 1
      %v12935 = vsel %vm1196, %v12930, %v12934
      %12936 = vrot.lane.b32.xlu0 %v12587, 64
      %v12937 = vpop.permute.xlu0 %12936
      %12938 = vrot.lane.b32.xlu0 %v12599, 64
      %v12939 = vpop.permute.xlu0 %12938
      %12940 = vrot.lane.b32.xlu0 %v12611, 64
      %v12941 = vpop.permute.xlu0 %12940
      %12942 = vrot.lane.b32.xlu0 %v12623, 64
      %v12943 = vpop.permute.xlu0 %12942
      %12944 = vrot.lane.b32.xlu0 %v12635, 64
      %v12945 = vpop.permute.xlu0 %12944
      %12946 = vrot.lane.b32.xlu0 %v12647, 64
      %v12947 = vpop.permute.xlu0 %12946
      %12948 = vrot.lane.b32.xlu0 %v12659, 64
      %v12949 = vpop.permute.xlu0 %12948
      %12950 = vrot.lane.b32.xlu0 %v12671, 64
      %v12951 = vpop.permute.xlu0 %12950
      %12952 = vrot.lane.b32.xlu0 %v12683, 64
      %v12953 = vpop.permute.xlu0 %12952
      %12954 = vrot.lane.b32.xlu0 %v12695, 64
      %v12955 = vpop.permute.xlu0 %12954
      %12956 = vrot.lane.b32.xlu0 %v12707, 64
      %v12957 = vpop.permute.xlu0 %12956
      %12958 = vrot.lane.b32.xlu0 %v12719, 64
      %v12959 = vpop.permute.xlu0 %12958
      %12960 = vrot.lane.b32.xlu0 %v12731, 64
      %v12961 = vpop.permute.xlu0 %12960
      %12962 = vrot.lane.b32.xlu0 %v12743, 64
      %v12963 = vpop.permute.xlu0 %12962
      %12964 = vrot.lane.b32.xlu0 %v12755, 64
      %v12965 = vpop.permute.xlu0 %12964
      %12966 = vrot.lane.b32.xlu0 %v12935, 64
      %v12967 = vpop.permute.xlu0 %12966
      %v12969 = vrot.slane %v12559, 1
      %v12970 = vrot.slane %v12575, 1
      %v12971 = vsel %vm1421, %v12969, %v12970
      %12972 = vrot.lane.b32.xlu0 %v12818, 80
      %v12973 = vpop.permute.xlu0 %12972
      %12974 = vrot.lane.b32.xlu0 %v12821, 80
      %v12975 = vpop.permute.xlu0 %12974
      %12976 = vrot.lane.b32.xlu0 %v12824, 80
      %v12977 = vpop.permute.xlu0 %12976
      %12978 = vrot.lane.b32.xlu0 %v12827, 80
      %v12979 = vpop.permute.xlu0 %12978
      %12980 = vrot.lane.b32.xlu0 %v12830, 80
      %v12981 = vpop.permute.xlu0 %12980
      %12982 = vrot.lane.b32.xlu0 %v12833, 80
      %v12983 = vpop.permute.xlu0 %12982
      %12984 = vrot.lane.b32.xlu0 %v12836, 80
      %v12985 = vpop.permute.xlu0 %12984
      %12986 = vrot.lane.b32.xlu0 %v12839, 80
      %v12987 = vpop.permute.xlu0 %12986
      %12988 = vrot.lane.b32.xlu0 %v12842, 80
      %v12989 = vpop.permute.xlu0 %12988
      %12990 = vrot.lane.b32.xlu0 %v12845, 80
      %v12991 = vpop.permute.xlu0 %12990
      %12992 = vrot.lane.b32.xlu0 %v12848, 80
      %v12993 = vpop.permute.xlu0 %12992
      %12994 = vrot.lane.b32.xlu0 %v12851, 80
      %v12995 = vpop.permute.xlu0 %12994
      %12996 = vrot.lane.b32.xlu0 %v12854, 80
      %v12997 = vpop.permute.xlu0 %12996
      %12998 = vrot.lane.b32.xlu0 %v12857, 80
      %v12999 = vpop.permute.xlu0 %12998
      %13000 = vrot.lane.b32.xlu0 %v12860, 80
      %v13001 = vpop.permute.xlu0 %13000
      %13002 = vrot.lane.b32.xlu0 %v12971, 80
      %v13003 = vpop.permute.xlu0 %13002
      %13004 = vrot.lane.b32.xlu0 %v12545, 96
      %v13005 = vpop.permute.xlu0 %13004
      %13006 = vrot.lane.b32.xlu0 %v12546, 96
      %v13007 = vpop.permute.xlu0 %13006
      %13008 = vrot.lane.b32.xlu0 %v12547, 96
      %v13009 = vpop.permute.xlu0 %13008
      %13010 = vrot.lane.b32.xlu0 %v12548, 96
      %v13011 = vpop.permute.xlu0 %13010
      %13012 = vrot.lane.b32.xlu0 %v12549, 96
      %v13013 = vpop.permute.xlu0 %13012
      %13014 = vrot.lane.b32.xlu0 %v12550, 96
      %v13015 = vpop.permute.xlu0 %13014
      %13016 = vrot.lane.b32.xlu0 %v12551, 96
      %v13017 = vpop.permute.xlu0 %13016
      %13018 = vrot.lane.b32.xlu0 %v12552, 96
      %v13019 = vpop.permute.xlu0 %13018
      %13020 = vrot.lane.b32.xlu0 %v12553, 96
      %v13021 = vpop.permute.xlu0 %13020
      %13022 = vrot.lane.b32.xlu0 %v12554, 96
      %v13023 = vpop.permute.xlu0 %13022
      %13024 = vrot.lane.b32.xlu0 %v12555, 96
      %v13025 = vpop.permute.xlu0 %13024
      %13026 = vrot.lane.b32.xlu0 %v12556, 96
      %v13027 = vpop.permute.xlu0 %13026
      %13028 = vrot.lane.b32.xlu0 %v12557, 96
      %v13029 = vpop.permute.xlu0 %13028
      %13030 = vrot.lane.b32.xlu0 %v12558, 96
      %v13031 = vpop.permute.xlu0 %13030
      %13032 = vrot.lane.b32.xlu0 %v12559, 96
      %v13033 = vpop.permute.xlu0 %13032
      %13034 = vrot.lane.b32.xlu0 %v12599, 112
      %v13035 = vpop.permute.xlu0 %13034
      %13036 = vrot.lane.b32.xlu0 %v12611, 112
      %v13037 = vpop.permute.xlu0 %13036
      %13038 = vrot.lane.b32.xlu0 %v12623, 112
      %v13039 = vpop.permute.xlu0 %13038
      %13040 = vrot.lane.b32.xlu0 %v12635, 112
      %v13041 = vpop.permute.xlu0 %13040
      %13042 = vrot.lane.b32.xlu0 %v12647, 112
      %v13043 = vpop.permute.xlu0 %13042
      %13044 = vrot.lane.b32.xlu0 %v12659, 112
      %v13045 = vpop.permute.xlu0 %13044
      %13046 = vrot.lane.b32.xlu0 %v12671, 112
      %v13047 = vpop.permute.xlu0 %13046
      %13048 = vrot.lane.b32.xlu0 %v12683, 112
      %v13049 = vpop.permute.xlu0 %13048
      %13050 = vrot.lane.b32.xlu0 %v12695, 112
      %v13051 = vpop.permute.xlu0 %13050
      %13052 = vrot.lane.b32.xlu0 %v12707, 112
      %v13053 = vpop.permute.xlu0 %13052
      %13054 = vrot.lane.b32.xlu0 %v12719, 112
      %v13055 = vpop.permute.xlu0 %13054
      %13056 = vrot.lane.b32.xlu0 %v12731, 112
      %v13057 = vpop.permute.xlu0 %13056
      %13058 = vrot.lane.b32.xlu0 %v12743, 112
      %v13059 = vpop.permute.xlu0 %13058
      %13060 = vrot.lane.b32.xlu0 %v12755, 112
      %v13061 = vpop.permute.xlu0 %13060
      %13062 = vrot.lane.b32.xlu0 %v12935, 112
      %v13063 = vpop.permute.xlu0 %13062
      %v13065 = vsel %vm1773, %v12544, %v12757
      %v13067 = vsel %vm1773, %v12545, %v12759
      %v13069 = vsel %vm1773, %v12546, %v12761
      %v13071 = vsel %vm1773, %v12547, %v12763
      %v13073 = vsel %vm1773, %v12548, %v12765
      %v13075 = vsel %vm1773, %v12549, %v12767
      %v13077 = vsel %vm1773, %v12550, %v12769
      %v13079 = vsel %vm1773, %v12551, %v12771
      %v13081 = vsel %vm1773, %v12552, %v12773
      %v13083 = vsel %vm1773, %v12553, %v12775
      %v13085 = vsel %vm1773, %v12554, %v12777
      %v13087 = vsel %vm1773, %v12555, %v12779
      %v13089 = vsel %vm1773, %v12556, %v12781
      %v13091 = vsel %vm1773, %v12557, %v12783
      %v13093 = vsel %vm1773, %v12558, %v12785
      %v13095 = vsel %vm1839, %v13065, %v12862
      %v13097 = vsel %vm1839, %v13067, %v12864
      %v13099 = vsel %vm1839, %v13069, %v12866
      %v13101 = vsel %vm1839, %v13071, %v12868
      %v13103 = vsel %vm1839, %v13073, %v12870
      %v13105 = vsel %vm1839, %v13075, %v12872
      %v13107 = vsel %vm1839, %v13077, %v12874
      %v13109 = vsel %vm1839, %v13079, %v12876
      %v13111 = vsel %vm1839, %v13081, %v12878
      %v13113 = vsel %vm1839, %v13083, %v12880
      %v13115 = vsel %vm1839, %v13085, %v12882
      %v13117 = vsel %vm1839, %v13087, %v12884
      %v13119 = vsel %vm1839, %v13089, %v12886
      %v13121 = vsel %vm1839, %v13091, %v12888
      %v13123 = vsel %vm1839, %v13093, %v12890
      %v13125 = vsel %vm1905, %v7156, %v12893
      %v13127 = vsel %vm1905, %v13095, %v12895
      %v13129 = vsel %vm1905, %v13097, %v12897
      %v13131 = vsel %vm1905, %v13099, %v12899
      %v13133 = vsel %vm1905, %v13101, %v12901
      %v13135 = vsel %vm1905, %v13103, %v12903
      %v13137 = vsel %vm1905, %v13105, %v12905
      %v13139 = vsel %vm1905, %v13107, %v12907
      %v13141 = vsel %vm1905, %v13109, %v12909
      %v13143 = vsel %vm1905, %v13111, %v12911
      %v13145 = vsel %vm1905, %v13113, %v12913
      %v13147 = vsel %vm1905, %v13115, %v12915
      %v13149 = vsel %vm1905, %v13117, %v12917
      %v13151 = vsel %vm1905, %v13119, %v12919
      %v13153 = vsel %vm1905, %v13121, %v12921
      %v13155 = vsel %vm1905, %v13123, %v12923
      %v13157 = vsel %vm1971, %v13125, %v12937
      %v13159 = vsel %vm1971, %v13127, %v12939
      %v13161 = vsel %vm1971, %v13129, %v12941
      %v13163 = vsel %vm1971, %v13131, %v12943
      %v13165 = vsel %vm1971, %v13133, %v12945
      %v13167 = vsel %vm1971, %v13135, %v12947
      %v13169 = vsel %vm1971, %v13137, %v12949
      %v13171 = vsel %vm1971, %v13139, %v12951
      %v13173 = vsel %vm1971, %v13141, %v12953
      %v13175 = vsel %vm1971, %v13143, %v12955
      %v13177 = vsel %vm1971, %v13145, %v12957
      %v13179 = vsel %vm1971, %v13147, %v12959
      %v13181 = vsel %vm1971, %v13149, %v12961
      %v13183 = vsel %vm1971, %v13151, %v12963
      %v13185 = vsel %vm1971, %v13153, %v12965
      %v13187 = vsel %vm1971, %v13155, %v12967
      %v13189 = vsel %vm7251, %v13157, %v12973
      %v13191 = vsel %vm7251, %v13159, %v12975
      %v13193 = vsel %vm7251, %v13161, %v12977
      %v13195 = vsel %vm7251, %v13163, %v12979
      %v13197 = vsel %vm7251, %v13165, %v12981
      %v13199 = vsel %vm7251, %v13167, %v12983
      %v13201 = vsel %vm7251, %v13169, %v12985
      %v13203 = vsel %vm7251, %v13171, %v12987
      %v13205 = vsel %vm7251, %v13173, %v12989
      %v13207 = vsel %vm7251, %v13175, %v12991
      %v13209 = vsel %vm7251, %v13177, %v12993
      %v13211 = vsel %vm7251, %v13179, %v12995
      %v13213 = vsel %vm7251, %v13181, %v12997
      %v13215 = vsel %vm7251, %v13183, %v12999
      %v13217 = vsel %vm7251, %v13185, %v13001
      %v13219 = vsel %vm7251, %v13187, %v13003
      %v13221 = vsel %vm7284, %v13189, %v13005
      %v13223 = vsel %vm7284, %v13191, %v13007
      %v13225 = vsel %vm7284, %v13193, %v13009
      %v13227 = vsel %vm7284, %v13195, %v13011
      %v13229 = vsel %vm7284, %v13197, %v13013
      %v13231 = vsel %vm7284, %v13199, %v13015
      %v13233 = vsel %vm7284, %v13201, %v13017
      %v13235 = vsel %vm7284, %v13203, %v13019
      %v13237 = vsel %vm7284, %v13205, %v13021
      %v13239 = vsel %vm7284, %v13207, %v13023
      %v13241 = vsel %vm7284, %v13209, %v13025
      %v13243 = vsel %vm7284, %v13211, %v13027
      %v13245 = vsel %vm7284, %v13213, %v13029
      %v13247 = vsel %vm7284, %v13215, %v13031
      %v13249 = vsel %vm7284, %v13217, %v13033
      %v13250 = vsel %vm7284, %v13219, %v7090
      %v13252 = vsel %vm7317, %v13221, %v13035
      %v13255 = vsel %vm7317, %v13223, %v13037
      %v13258 = vsel %vm7317, %v13225, %v13039
      %v13261 = vsel %vm7317, %v13227, %v13041
      %v13264 = vsel %vm7317, %v13229, %v13043
      %v13267 = vsel %vm7317, %v13231, %v13045
      %v13270 = vsel %vm7317, %v13233, %v13047
      %v13273 = vsel %vm7317, %v13235, %v13049
      %v13276 = vsel %vm7317, %v13237, %v13051
      %v13279 = vsel %vm7317, %v13239, %v13053
      %v13282 = vsel %vm7317, %v13241, %v13055
      %v13285 = vsel %vm7317, %v13243, %v13057
      %v13288 = vsel %vm7317, %v13245, %v13059
      %v13291 = vsel %vm7317, %v13247, %v13061
      %v13294 = vsel %vm7317, %v13249, %v13063
      %v13296 = vsel %vm7317, %v13250, %v7122
      %v13298 = vld [vmem:[%s57] sm:$0xf]
      %v13299 = vld [vmem:[%s57 + $0x4] sm:$0xf]
      %v13300 = vld [vmem:[%s57 + $0x8] sm:$0xf]
      %v13301 = vld [vmem:[%s57 + $0xc] sm:$0xf]
      %v13302 = vld [vmem:[%s57 + $0x10] sm:$0xf]
      %v13303 = vld [vmem:[%s57 + $0x14] sm:$0xf]
      %v13304 = vld [vmem:[%s57 + $0x18] sm:$0xf]
      %v13305 = vld [vmem:[%s57 + $0x1c] sm:$0xf]
      %v13306 = vld [vmem:[%s57 + $0x20] sm:$0xf]
      %v13307 = vld [vmem:[%s57 + $0x24] sm:$0xf]
      %v13308 = vld [vmem:[%s57 + $0x28] sm:$0xf]
      %v13309 = vld [vmem:[%s57 + $0x2c] sm:$0xf]
      %v13310 = vld [vmem:[%s57 + $0x30] sm:$0xf]
      %v13311 = vld [vmem:[%s57 + $0x34] sm:$0xf]
      %v13312 = vld [vmem:[%s57 + $0x38] sm:$0xf]
      %v13313 = vld [vmem:[%s57 + $0x3c] sm:$0xf]
      %v13314 = vld [vmem:[%s57 + $0x40] sm:$0xf]
      %v13315 = vld [vmem:[%s57 + $0x44] sm:$0xf]
      %v13334 = vunpack.c.l.b16 %v13298
      %v13335 = vunpack.c.l.b16 %v13299
      %v13336 = vunpack.c.l.b16 %v13300
      %v13337 = vunpack.c.l.b16 %v13301
      %v13338 = vunpack.c.l.b16 %v13302
      %v13339 = vunpack.c.l.b16 %v13303
      %v13340 = vunpack.c.l.b16 %v13304
      %v13341 = vunpack.c.l.b16 %v13305
      %v13342 = vunpack.c.l.b16 %v13306
      %v13343 = vunpack.c.l.b16 %v13307
      %v13344 = vunpack.c.l.b16 %v13308
      %v13345 = vunpack.c.l.b16 %v13309
      %v13346 = vunpack.c.l.b16 %v13310
      %v13347 = vunpack.c.l.b16 %v13311
      %v13348 = vunpack.c.l.b16 %v13312
      %v13349 = vunpack.c.l.b16 %v13313
      %v13350 = vunpack.c.l.b16 %v13314
      %v13351 = vunpack.c.l.b16 %v13315
      %v13352 = vpack.c.b16 %v13335, %v13334
      %v13353 = vpack.c.b16 %v13337, %v13336
      %v13354 = vpack.c.b16 %v13339, %v13338
      %v13355 = vpack.c.b16 %v13341, %v13340
      %v13356 = vpack.c.b16 %v13343, %v13342
      %v13357 = vpack.c.b16 %v13345, %v13344
      %v13358 = vpack.c.b16 %v13347, %v13346
      %v13359 = vpack.c.b16 %v13349, %v13348
      %v13360 = vpack.c.b16 %v13351, %v13350
      %v13371 = vsel %vm1773, %v12821, 0
      %v13374 = vsel %vm1773, %v12824, 0
      %v13377 = vsel %vm1773, %v12827, 0
      %v13380 = vsel %vm1773, %v12830, 0
      %v13383 = vsel %vm1773, %v12833, 0
      %v13386 = vsel %vm1773, %v12836, 0
      %v13389 = vsel %vm1773, %v12839, 0
      %v13392 = vsel %vm1773, %v12842, 0
      %v13395 = vsel %vm1773, %v12845, 0
      %v13398 = vsel %vm1773, %v12848, 0
      %v13401 = vsel %vm1773, %v12851, 0
      %v13404 = vsel %vm1773, %v12854, 0
      %v13407 = vsel %vm1773, %v12857, 0
      %v13410 = vsel %vm1773, %v12860, 0
      %v13413 = vsel %vm1773, %v12971, 0
      %13415 = vmatpush.bf16.msra.mxu0 %v13359
      %13416 = vmatpush.bf16.msra.mxu0 %v13358
      %13417 = vmatpush.bf16.msra.mxu0 %v13357
      %13418 = vmatpush.bf16.msra.mxu0 %v13356
      %13419 = vmatpush.bf16.msra.mxu0 %v13355
      %13420 = vmatpush.bf16.msra.mxu0 %v13354
      %13421 = vmatpush.bf16.msra.mxu0 %v13353
      %13422 = vmatpush.bf16.msra.mxu0 %v13352
      %13423 = vmatmul.bf16.gmra.mxu0 %v13252
      %v13424 = vpop.f32.mrf.mxu0
      %v13425 = vadd.f32 0.0, %v13424
      %v13426 = vpop.f32.mrf.mxu0
      %v13427 = vadd.f32 0.0, %v13426
      %13428 = vmatmul.bf16.gmra.mxu0 %v13255
      %v13429 = vpop.f32.mrf.mxu0
      %v13430 = vadd.f32 0.0, %v13429
      %v13431 = vpop.f32.mrf.mxu0
      %v13432 = vadd.f32 0.0, %v13431
      %13433 = vmatmul.bf16.gmra.mxu0 %v13258
      %v13434 = vpop.f32.mrf.mxu0
      %v13435 = vadd.f32 0.0, %v13434
      %v13436 = vpop.f32.mrf.mxu0
      %v13437 = vadd.f32 0.0, %v13436
      %13438 = vmatmul.bf16.gmra.mxu0 %v13261
      %v13439 = vpop.f32.mrf.mxu0
      %v13440 = vadd.f32 0.0, %v13439
      %v13441 = vpop.f32.mrf.mxu0
      %v13442 = vadd.f32 0.0, %v13441
      %13443 = vmatmul.bf16.gmra.mxu0 %v13264
      %v13444 = vpop.f32.mrf.mxu0
      %v13445 = vadd.f32 0.0, %v13444
      %v13446 = vpop.f32.mrf.mxu0
      %v13447 = vadd.f32 0.0, %v13446
      %13448 = vmatmul.bf16.gmra.mxu0 %v13267
      %v13449 = vpop.f32.mrf.mxu0
      %v13450 = vadd.f32 0.0, %v13449
      %v13451 = vpop.f32.mrf.mxu0
      %v13452 = vadd.f32 0.0, %v13451
      %13453 = vmatmul.bf16.gmra.mxu0 %v13270
      %v13454 = vpop.f32.mrf.mxu0
      %v13455 = vadd.f32 0.0, %v13454
      %v13456 = vpop.f32.mrf.mxu0
      %v13457 = vadd.f32 0.0, %v13456
      %13458 = vmatmul.bf16.gmra.mxu0 %v13273
      %v13459 = vpop.f32.mrf.mxu0
      %v13460 = vadd.f32 0.0, %v13459
      %v13461 = vpop.f32.mrf.mxu0
      %v13462 = vadd.f32 0.0, %v13461
      %13463 = vmatmul.bf16.gmra.mxu0 %v13276
      %v13464 = vpop.f32.mrf.mxu0
      %v13465 = vadd.f32 0.0, %v13464
      %v13466 = vpop.f32.mrf.mxu0
      %v13467 = vadd.f32 0.0, %v13466
      %13468 = vmatmul.bf16.gmra.mxu0 %v13279
      %v13469 = vpop.f32.mrf.mxu0
      %v13470 = vadd.f32 0.0, %v13469
      %v13471 = vpop.f32.mrf.mxu0
      %v13472 = vadd.f32 0.0, %v13471
      %13473 = vmatmul.bf16.gmra.mxu0 %v13282
      %v13474 = vpop.f32.mrf.mxu0
      %v13475 = vadd.f32 0.0, %v13474
      %v13476 = vpop.f32.mrf.mxu0
      %v13477 = vadd.f32 0.0, %v13476
      %13478 = vmatmul.bf16.gmra.mxu0 %v13285
      %v13479 = vpop.f32.mrf.mxu0
      %v13480 = vadd.f32 0.0, %v13479
      %v13481 = vpop.f32.mrf.mxu0
      %v13482 = vadd.f32 0.0, %v13481
      %13483 = vmatmul.bf16.gmra.mxu0 %v13288
      %v13484 = vpop.f32.mrf.mxu0
      %v13485 = vadd.f32 0.0, %v13484
      %v13486 = vpop.f32.mrf.mxu0
      %v13487 = vadd.f32 0.0, %v13486
      %13488 = vmatmul.bf16.gmra.mxu0 %v13291
      %v13489 = vpop.f32.mrf.mxu0
      %v13490 = vadd.f32 0.0, %v13489
      %v13491 = vpop.f32.mrf.mxu0
      %v13492 = vadd.f32 0.0, %v13491
      %13493 = vmatmul.bf16.gmra.mxu0 %v13294
      %v13494 = vpop.f32.mrf.mxu0
      %v13495 = vadd.f32 0.0, %v13494
      %v13496 = vpop.f32.mrf.mxu0
      %v13497 = vadd.f32 0.0, %v13496
      %13498 = vmatmul.bf16.gmra.mxu0 %v13296
      %v13499 = vpop.f32.mrf.mxu0
      %v13500 = vadd.f32 0.0, %v13499
      %v13501 = vpop.f32.mrf.mxu0
      %v13502 = vadd.f32 0.0, %v13501
      %13503 = vdwg.mxu0
      %13504 = vmatpush.bf16.msra.mxu0 0
      %13505 = vmatpush.bf16.msra.mxu0 0
      %13506 = vmatpush.bf16.msra.mxu0 0
      %13507 = vmatpush.bf16.msra.mxu0 0
      %13508 = vmatpush.bf16.msra.mxu0 0
      %13509 = vmatpush.bf16.msra.mxu0 0
      %13510 = vmatpush.bf16.msra.mxu0 0
      %13511 = vmatpush.bf16.msra.mxu0 %v13360
      %13512 = vmatmul.bf16.gmra.mxu0 %v13371
      %v13513 = vpop.f32.mrf.mxu0
      %v13514 = vadd.f32 %v13425, %v13513
      %v13515 = vpop.f32.mrf.mxu0
      %v13516 = vadd.f32 %v13427, %v13515
      %13517 = vmatmul.bf16.gmra.mxu0 %v13374
      %v13518 = vpop.f32.mrf.mxu0
      %v13519 = vadd.f32 %v13430, %v13518
      %v13520 = vpop.f32.mrf.mxu0
      %v13521 = vadd.f32 %v13432, %v13520
      %13522 = vmatmul.bf16.gmra.mxu0 %v13377
      %v13523 = vpop.f32.mrf.mxu0
      %v13524 = vadd.f32 %v13435, %v13523
      %v13525 = vpop.f32.mrf.mxu0
      %v13526 = vadd.f32 %v13437, %v13525
      %13527 = vmatmul.bf16.gmra.mxu0 %v13380
      %v13528 = vpop.f32.mrf.mxu0
      %v13529 = vadd.f32 %v13440, %v13528
      %v13530 = vpop.f32.mrf.mxu0
      %v13531 = vadd.f32 %v13442, %v13530
      %13532 = vmatmul.bf16.gmra.mxu0 %v13383
      %v13533 = vpop.f32.mrf.mxu0
      %v13534 = vadd.f32 %v13445, %v13533
      %v13535 = vpop.f32.mrf.mxu0
      %v13536 = vadd.f32 %v13447, %v13535
      %13537 = vmatmul.bf16.gmra.mxu0 %v13386
      %v13538 = vpop.f32.mrf.mxu0
      %v13539 = vadd.f32 %v13450, %v13538
      %v13540 = vpop.f32.mrf.mxu0
      %v13541 = vadd.f32 %v13452, %v13540
      %13542 = vmatmul.bf16.gmra.mxu0 %v13389
      %v13543 = vpop.f32.mrf.mxu0
      %v13544 = vadd.f32 %v13455, %v13543
      %v13545 = vpop.f32.mrf.mxu0
      %v13546 = vadd.f32 %v13457, %v13545
      %13547 = vmatmul.bf16.gmra.mxu0 %v13392
      %v13548 = vpop.f32.mrf.mxu0
      %v13549 = vadd.f32 %v13460, %v13548
      %v13550 = vpop.f32.mrf.mxu0
      %v13551 = vadd.f32 %v13462, %v13550
      %13552 = vmatmul.bf16.gmra.mxu0 %v13395
      %v13553 = vpop.f32.mrf.mxu0
      %v13554 = vadd.f32 %v13465, %v13553
      %v13555 = vpop.f32.mrf.mxu0
      %v13556 = vadd.f32 %v13467, %v13555
      %13557 = vmatmul.bf16.gmra.mxu0 %v13398
      %v13558 = vpop.f32.mrf.mxu0
      %v13559 = vadd.f32 %v13470, %v13558
      %v13560 = vpop.f32.mrf.mxu0
      %v13561 = vadd.f32 %v13472, %v13560
      %13562 = vmatmul.bf16.gmra.mxu0 %v13401
      %v13563 = vpop.f32.mrf.mxu0
      %v13564 = vadd.f32 %v13475, %v13563
      %v13565 = vpop.f32.mrf.mxu0
      %v13566 = vadd.f32 %v13477, %v13565
      %13567 = vmatmul.bf16.gmra.mxu0 %v13404
      %v13568 = vpop.f32.mrf.mxu0
      %v13569 = vadd.f32 %v13480, %v13568
      %v13570 = vpop.f32.mrf.mxu0
      %v13571 = vadd.f32 %v13482, %v13570
      %13572 = vmatmul.bf16.gmra.mxu0 %v13407
      %v13573 = vpop.f32.mrf.mxu0
      %v13574 = vadd.f32 %v13485, %v13573
      %v13575 = vpop.f32.mrf.mxu0
      %v13576 = vadd.f32 %v13487, %v13575
      %13577 = vmatmul.bf16.gmra.mxu0 %v13410
      %v13578 = vpop.f32.mrf.mxu0
      %v13579 = vadd.f32 %v13490, %v13578
      %v13580 = vpop.f32.mrf.mxu0
      %v13581 = vadd.f32 %v13492, %v13580
      %13582 = vmatmul.bf16.gmra.mxu0 %v13413
      %v13583 = vpop.f32.mrf.mxu0
      %v13584 = vadd.f32 %v13495, %v13583
      %v13585 = vpop.f32.mrf.mxu0
      %v13586 = vadd.f32 %v13497, %v13585
      %13587 = vmatmul.bf16.gmra.mxu0 %v7484
      %v13588 = vpop.f32.mrf.mxu0
      %v13589 = vadd.f32 %v13500, %v13588
      %v13590 = vpop.f32.mrf.mxu0
      %v13591 = vadd.f32 %v13502, %v13590
      %13592 = vdwg.mxu0
      %v13593 = vld [vmem:[%s59] sm:$0x1]
      %v13595 = vperm.slane %v13593, 0
      %v13597 = vmul.f32 %v13514, %v13595
      %v13598 = vmul.f32 %v13516, %v13595
      %v13599 = vmul.f32 %v13519, %v13595
      %v13600 = vmul.f32 %v13521, %v13595
      %v13601 = vmul.f32 %v13524, %v13595
      %v13602 = vmul.f32 %v13526, %v13595
      %v13603 = vmul.f32 %v13529, %v13595
      %v13604 = vmul.f32 %v13531, %v13595
      %v13605 = vmul.f32 %v13534, %v13595
      %v13606 = vmul.f32 %v13536, %v13595
      %v13607 = vmul.f32 %v13539, %v13595
      %v13608 = vmul.f32 %v13541, %v13595
      %v13609 = vmul.f32 %v13544, %v13595
      %v13610 = vmul.f32 %v13546, %v13595
      %v13611 = vmul.f32 %v13549, %v13595
      %v13612 = vmul.f32 %v13551, %v13595
      %v13613 = vmul.f32 %v13554, %v13595
      %v13614 = vmul.f32 %v13556, %v13595
      %v13615 = vmul.f32 %v13559, %v13595
      %v13616 = vmul.f32 %v13561, %v13595
      %v13617 = vmul.f32 %v13564, %v13595
      %v13618 = vmul.f32 %v13566, %v13595
      %v13619 = vmul.f32 %v13569, %v13595
      %v13620 = vmul.f32 %v13571, %v13595
      %v13621 = vmul.f32 %v13574, %v13595
      %v13622 = vmul.f32 %v13576, %v13595
      %v13623 = vmul.f32 %v13579, %v13595
      %v13624 = vmul.f32 %v13581, %v13595
      %v13625 = vmul.f32 %v13584, %v13595
      %v13626 = vmul.f32 %v13586, %v13595
      %v13627 = vmul.f32 %v13589, %v13595
      %v13628 = vmul.f32 %v13591, %v13595
      %v13629 = vld [vmem:[%s61] sm:$0x1]
      %v13631 = vperm.slane %v13629, 0
      %v13633 = vadd.f32 %v13597, %v13631
      %v13634 = vadd.f32 %v13598, %v13631
      %v13635 = vadd.f32 %v13599, %v13631
      %v13636 = vadd.f32 %v13600, %v13631
      %v13637 = vadd.f32 %v13601, %v13631
      %v13638 = vadd.f32 %v13602, %v13631
      %v13639 = vadd.f32 %v13603, %v13631
      %v13640 = vadd.f32 %v13604, %v13631
      %v13641 = vadd.f32 %v13605, %v13631
      %v13642 = vadd.f32 %v13606, %v13631
      %v13643 = vadd.f32 %v13607, %v13631
      %v13644 = vadd.f32 %v13608, %v13631
      %v13645 = vadd.f32 %v13609, %v13631
      %v13646 = vadd.f32 %v13610, %v13631
      %v13647 = vadd.f32 %v13611, %v13631
      %v13648 = vadd.f32 %v13612, %v13631
      %v13649 = vadd.f32 %v13613, %v13631
      %v13650 = vadd.f32 %v13614, %v13631
      %v13651 = vadd.f32 %v13615, %v13631
      %v13652 = vadd.f32 %v13616, %v13631
      %v13653 = vadd.f32 %v13617, %v13631
      %v13654 = vadd.f32 %v13618, %v13631
      %v13655 = vadd.f32 %v13619, %v13631
      %v13656 = vadd.f32 %v13620, %v13631
      %v13657 = vadd.f32 %v13621, %v13631
      %v13658 = vadd.f32 %v13622, %v13631
      %v13659 = vadd.f32 %v13623, %v13631
      %v13660 = vadd.f32 %v13624, %v13631
      %v13661 = vadd.f32 %v13625, %v13631
      %v13662 = vadd.f32 %v13626, %v13631
      %v13663 = vadd.f32 %v13627, %v13631
      %v13664 = vadd.f32 %v13628, %v13631
      %v13665 = vunpack.c.l.bf16 %v10879
      %v13666 = vunpack.c.l.bf16 %v10880
      %v13667 = vunpack.c.l.bf16 %v10881
      %v13668 = vunpack.c.l.bf16 %v10882
      %v13669 = vunpack.c.l.bf16 %v10883
      %v13670 = vunpack.c.l.bf16 %v10884
      %v13671 = vunpack.c.l.bf16 %v10885
      %v13672 = vunpack.c.l.bf16 %v10886
      %v13673 = vunpack.c.l.bf16 %v10887
      %v13674 = vunpack.c.l.bf16 %v10888
      %v13675 = vunpack.c.l.bf16 %v10889
      %v13676 = vunpack.c.l.bf16 %v10890
      %v13677 = vunpack.c.l.bf16 %v10891
      %v13678 = vunpack.c.l.bf16 %v10892
      %v13679 = vunpack.c.l.bf16 %v10893
      %v13680 = vunpack.c.l.bf16 %v10894
      %v13681 = vunpack.c.l.bf16 %v10895
      %v13682 = vunpack.c.l.bf16 %v10896
      %v13683 = vunpack.c.l.bf16 %v10897
      %v13684 = vunpack.c.l.bf16 %v10898
      %v13685 = vunpack.c.l.bf16 %v10899
      %v13686 = vunpack.c.l.bf16 %v10900
      %v13687 = vunpack.c.l.bf16 %v10901
      %v13688 = vunpack.c.l.bf16 %v10902
      %v13689 = vunpack.c.l.bf16 %v10903
      %v13690 = vunpack.c.l.bf16 %v10904
      %v13691 = vunpack.c.l.bf16 %v10905
      %v13692 = vunpack.c.l.bf16 %v10906
      %v13693 = vunpack.c.l.bf16 %v10907
      %v13694 = vunpack.c.l.bf16 %v10908
      %v13695 = vunpack.c.l.bf16 %v10909
      %v13696 = vunpack.c.l.bf16 %v10910
      %v13697 = vadd.f32 %v13633, %v13665
      %v13698 = vadd.f32 %v13634, %v13666
      %v13699 = vadd.f32 %v13635, %v13667
      %v13700 = vadd.f32 %v13636, %v13668
      %v13701 = vadd.f32 %v13637, %v13669
      %v13702 = vadd.f32 %v13638, %v13670
      %v13703 = vadd.f32 %v13639, %v13671
      %v13704 = vadd.f32 %v13640, %v13672
      %v13705 = vadd.f32 %v13641, %v13673
      %v13706 = vadd.f32 %v13642, %v13674
      %v13707 = vadd.f32 %v13643, %v13675
      %v13708 = vadd.f32 %v13644, %v13676
      %v13709 = vadd.f32 %v13645, %v13677
      %v13710 = vadd.f32 %v13646, %v13678
      %v13711 = vadd.f32 %v13647, %v13679
      %v13712 = vadd.f32 %v13648, %v13680
      %v13713 = vadd.f32 %v13649, %v13681
      %v13714 = vadd.f32 %v13650, %v13682
      %v13715 = vadd.f32 %v13651, %v13683
      %v13716 = vadd.f32 %v13652, %v13684
      %v13717 = vadd.f32 %v13653, %v13685
      %v13718 = vadd.f32 %v13654, %v13686
      %v13719 = vadd.f32 %v13655, %v13687
      %v13720 = vadd.f32 %v13656, %v13688
      %v13721 = vadd.f32 %v13657, %v13689
      %v13722 = vadd.f32 %v13658, %v13690
      %v13723 = vadd.f32 %v13659, %v13691
      %v13724 = vadd.f32 %v13660, %v13692
      %v13725 = vadd.f32 %v13661, %v13693
      %v13726 = vadd.f32 %v13662, %v13694
      %v13727 = vadd.f32 %v13663, %v13695
      %v13728 = vadd.f32 %v13664, %v13696
      %v13729 = vmax.f32 %v13697, 0.0
      %v13730 = vmax.f32 %v13698, 0.0
      %v13731 = vmax.f32 %v13699, 0.0
      %v13732 = vmax.f32 %v13700, 0.0
      %v13733 = vmax.f32 %v13701, 0.0
      %v13734 = vmax.f32 %v13702, 0.0
      %v13735 = vmax.f32 %v13703, 0.0
      %v13736 = vmax.f32 %v13704, 0.0
      %v13737 = vmax.f32 %v13705, 0.0
      %v13738 = vmax.f32 %v13706, 0.0
      %v13739 = vmax.f32 %v13707, 0.0
      %v13740 = vmax.f32 %v13708, 0.0
      %v13741 = vmax.f32 %v13709, 0.0
      %v13742 = vmax.f32 %v13710, 0.0
      %v13743 = vmax.f32 %v13711, 0.0
      %v13744 = vmax.f32 %v13712, 0.0
      %v13745 = vmax.f32 %v13713, 0.0
      %v13746 = vmax.f32 %v13714, 0.0
      %v13747 = vmax.f32 %v13715, 0.0
      %v13748 = vmax.f32 %v13716, 0.0
      %v13749 = vmax.f32 %v13717, 0.0
      %v13750 = vmax.f32 %v13718, 0.0
      %v13751 = vmax.f32 %v13719, 0.0
      %v13752 = vmax.f32 %v13720, 0.0
      %v13753 = vmax.f32 %v13721, 0.0
      %v13754 = vmax.f32 %v13722, 0.0
      %v13755 = vmax.f32 %v13723, 0.0
      %v13756 = vmax.f32 %v13724, 0.0
      %v13757 = vmax.f32 %v13725, 0.0
      %v13758 = vmax.f32 %v13726, 0.0
      %v13759 = vmax.f32 %v13727, 0.0
      %v13760 = vmax.f32 %v13728, 0.0
      %v13761 = vpack.c.bf16 %v13730, %v13729
      %v13762 = vpack.c.bf16 %v13732, %v13731
      %v13763 = vpack.c.bf16 %v13734, %v13733
      %v13764 = vpack.c.bf16 %v13736, %v13735
      %v13765 = vpack.c.bf16 %v13738, %v13737
      %v13766 = vpack.c.bf16 %v13740, %v13739
      %v13767 = vpack.c.bf16 %v13742, %v13741
      %v13768 = vpack.c.bf16 %v13744, %v13743
      %v13769 = vpack.c.bf16 %v13746, %v13745
      %v13770 = vpack.c.bf16 %v13748, %v13747
      %v13771 = vpack.c.bf16 %v13750, %v13749
      %v13772 = vpack.c.bf16 %v13752, %v13751
      %v13773 = vpack.c.bf16 %v13754, %v13753
      %v13774 = vpack.c.bf16 %v13756, %v13755
      %v13775 = vpack.c.bf16 %v13758, %v13757
      %v13776 = vpack.c.bf16 %v13760, %v13759
      %v13777 = vunpack.c.l.bf16 %v13761
      %v13778 = vunpack.c.h.bf16 %v13761
      %v13779 = vunpack.c.l.bf16 %v13762
      %v13780 = vunpack.c.h.bf16 %v13762
      %v13781 = vunpack.c.l.bf16 %v13763
      %v13782 = vunpack.c.h.bf16 %v13763
      %v13783 = vunpack.c.l.bf16 %v13764
      %v13784 = vunpack.c.h.bf16 %v13764
      %v13785 = vunpack.c.l.bf16 %v13765
      %v13786 = vunpack.c.h.bf16 %v13765
      %v13787 = vunpack.c.l.bf16 %v13766
      %v13788 = vunpack.c.h.bf16 %v13766
      %v13789 = vunpack.c.l.bf16 %v13767
      %v13790 = vunpack.c.h.bf16 %v13767
      %v13791 = vunpack.c.l.bf16 %v13768
      %v13792 = vunpack.c.h.bf16 %v13768
      %v13793 = vunpack.c.l.bf16 %v13769
      %v13794 = vunpack.c.h.bf16 %v13769
      %v13795 = vunpack.c.l.bf16 %v13770
      %v13796 = vunpack.c.h.bf16 %v13770
      %v13797 = vunpack.c.l.bf16 %v13771
      %v13798 = vunpack.c.h.bf16 %v13771
      %v13799 = vunpack.c.l.bf16 %v13772
      %v13800 = vunpack.c.h.bf16 %v13772
      %v13801 = vunpack.c.l.bf16 %v13773
      %v13802 = vunpack.c.h.bf16 %v13773
      %v13803 = vunpack.c.l.bf16 %v13774
      %v13804 = vunpack.c.h.bf16 %v13774
      %v13805 = vunpack.c.l.bf16 %v13775
      %v13806 = vunpack.c.h.bf16 %v13775
      %v13807 = vunpack.c.l.bf16 %v13776
      %v13808 = vunpack.c.h.bf16 %v13776
      %v13809 = vsel %vm1773, %v13777, 0.0
      %v13810 = vsel %vm1773, %v13778, 0.0
      %v13811 = vadd.f32 %v13809, %v13810
      %v13812 = vsel %vm1773, %v13779, 0.0
      %v13813 = vadd.f32 %v13811, %v13812
      %v13814 = vsel %vm1773, %v13780, 0.0
      %v13815 = vadd.f32 %v13813, %v13814
      %v13816 = vsel %vm1773, %v13781, 0.0
      %v13817 = vadd.f32 %v13815, %v13816
      %v13818 = vsel %vm1773, %v13782, 0.0
      %v13819 = vadd.f32 %v13817, %v13818
      %v13820 = vsel %vm1773, %v13783, 0.0
      %v13821 = vadd.f32 %v13819, %v13820
      %v13822 = vsel %vm1773, %v13784, 0.0
      %v13823 = vadd.f32 %v13821, %v13822
      %v13824 = vsel %vm1773, %v13785, 0.0
      %v13825 = vadd.f32 %v13823, %v13824
      %v13826 = vsel %vm1773, %v13786, 0.0
      %v13827 = vadd.f32 %v13825, %v13826
      %v13828 = vsel %vm1773, %v13787, 0.0
      %v13829 = vadd.f32 %v13827, %v13828
      %v13830 = vsel %vm1773, %v13788, 0.0
      %v13831 = vadd.f32 %v13829, %v13830
      %v13832 = vsel %vm1773, %v13789, 0.0
      %v13833 = vadd.f32 %v13831, %v13832
      %v13834 = vsel %vm1773, %v13790, 0.0
      %v13835 = vadd.f32 %v13833, %v13834
      %v13836 = vsel %vm1773, %v13791, 0.0
      %v13837 = vadd.f32 %v13835, %v13836
      %v13838 = vsel %vm1773, %v13792, 0.0
      %v13839 = vadd.f32 %v13837, %v13838
      %v13840 = vsel %vm1773, %v13793, 0.0
      %v13841 = vadd.f32 %v13839, %v13840
      %v13842 = vsel %vm1773, %v13794, 0.0
      %v13843 = vadd.f32 %v13841, %v13842
      %v13844 = vsel %vm1773, %v13795, 0.0
      %v13845 = vadd.f32 %v13843, %v13844
      %v13846 = vsel %vm1773, %v13796, 0.0
      %v13847 = vadd.f32 %v13845, %v13846
      %v13848 = vsel %vm1773, %v13797, 0.0
      %v13849 = vadd.f32 %v13847, %v13848
      %v13850 = vsel %vm1773, %v13798, 0.0
      %v13851 = vadd.f32 %v13849, %v13850
      %v13852 = vsel %vm1773, %v13799, 0.0
      %v13853 = vadd.f32 %v13851, %v13852
      %v13854 = vsel %vm1773, %v13800, 0.0
      %v13855 = vadd.f32 %v13853, %v13854
      %v13856 = vsel %vm1773, %v13801, 0.0
      %v13857 = vadd.f32 %v13855, %v13856
      %v13858 = vsel %vm1773, %v13802, 0.0
      %v13859 = vadd.f32 %v13857, %v13858
      %v13860 = vsel %vm1773, %v13803, 0.0
      %v13861 = vadd.f32 %v13859, %v13860
      %v13862 = vsel %vm1773, %v13804, 0.0
      %v13863 = vadd.f32 %v13861, %v13862
      %v13864 = vsel %vm1773, %v13805, 0.0
      %v13865 = vadd.f32 %v13863, %v13864
      %v13866 = vsel %vm1773, %v13806, 0.0
      %v13867 = vadd.f32 %v13865, %v13866
      %v13868 = vsel %vm1773, %v13807, 0.0
      %v13869 = vadd.f32 %v13867, %v13868
      %v13870 = vsel %vm1773, %v13808, 0.0
      %v13871 = vadd.f32 %v13869, %v13870
      %v13872 = vrot.slane %v13871, 4
      %v13873 = vadd.f32 %v13871, %v13872
      %v13874 = vrot.slane %v13873, 2
      %v13875 = vadd.f32 %v13873, %v13874
      %v13876 = vrot.slane %v13875, 1
      %v13877 = vadd.f32 %v13875, %v13876
      %v13878 = vrcp.pop 256.0
      %v13879 = vmul.f32 256.0, %v13878
      %v13880 = vsub.f32 1.0, %v13879
      %v13881 = vmul.f32 %v13878, %v13880
      %v13882 = vadd.f32 %v13878, %v13881
      %vm13883 = vweird.f32 %v13878
      %v13884 = vsel %vm13883, %v13878, %v13882
      %v13885 = vmul.f32 %v13877, %v13884
      %v13886 = vld [vmem:[%s63] sm:$0xff]
      %v13887 = vld [vmem:[%s63 + $0x8] sm:$0xff]
      %v13888 = vld [vmem:[%s65] sm:$0x1]
      %v13890 = vsel %vm1773, %v13885, 0
      %13892 = vmatpush.msra.mxu0 0.0
      %13893 = vmatpush.msra.mxu0 0.0
      %13894 = vmatpush.msra.mxu0 0.0
      %13895 = vmatpush.msra.mxu0 0.0
      %13896 = vmatpush.msra.mxu0 0.0
      %13897 = vmatpush.msra.mxu0 0.0
      %13898 = vmatpush.msra.mxu0 0.0
      %13899 = vmatpush.msra.mxu0 0.0
      %13900 = vmatpush.msra.mxu0 0.0
      %13901 = vmatpush.msra.mxu0 0.0
      %13902 = vmatpush.msra.mxu0 0.0
      %13903 = vmatpush.msra.mxu0 0.0
      %13904 = vmatpush.msra.mxu0 0.0
      %13905 = vmatpush.msra.mxu0 0.0
      %13906 = vmatpush.msra.mxu0 %v13887
      %13907 = vmatpush.msra.mxu0 %v13886
      %13908 = vmatmul.f32.gmra.mxu0 %v13890
      %v13909 = vpop.f32.mrf.mxu0
      %v13910 = vadd.f32 %v13888, %v13909
      %13911 = vdwg.mxu0
      %v13912 = vperm.slane %v13910, 0
      %13913 = vst [vmem:[%s1012] sm:$0xff] %v13912
      %p13914 = scmp.lt.s32.totalorder %s78, 1
      %s13915 = scalar_select %p13914, %s78, 1
      %s13916 = smul.addr %s13915, 8
      %s13917 = scalar_lea.vmem %s67, %s13916
      // Predicated region
      $region153: #{_lambda_.1} parent=151 // pred_check
        %p13918 = pneg %p794
      $region154: #{_lambda_.1} parent=151 // pred_check_branch
        %13920 = sbr.rel (%p13918) target = $region156
      $region155: #{_lambda_.1} parent=151 // pred_region
        _
      $region156: #{_lambda_.1} parent=151 // pred_fallthru
        _
    $region152: #{_lambda_.1} parent=5 // pred_fallthru
      _
    %p13921 = scmp.le.s32.totalorder 2, %s73
    // Predicated region
    $region157: #{_lambda_.1} parent=5 // pred_check
      %p13922 = pneg %p13921
    $region158: #{_lambda_.1} parent=5 // pred_check_branch
      %13924 = sbr.rel (%p13922) target = $region160
    $region159: #{_lambda_.1} parent=5 // pred_region
      %s13925 = ssub.s32 %s73, 2
      // Predicated region
      $region161: #{_lambda_.1} parent=159 // pred_check
        %p13926 = pneg %p800
      $region162: #{_lambda_.1} parent=159 // pred_check_branch
        %13928 = sbr.rel (%p13926) target = $region164
      $region163: #{_lambda_.1} parent=159 // pred_region
        %p13929 = scmp.lt.s32.totalorder %s79, 1
        %s13930 = scalar_select %p13929, %s79, 1
        %s13931 = smul.addr %s13930, 8
        %s13932 = scalar_lea.vmem %s67, %s13931
      $region164: #{_lambda_.1} parent=159 // pred_fallthru
        _
    $region160: #{_lambda_.1} parent=5 // pred_fallthru
      _
  $region6: #{_lambda_.1} parent=0 // loop_footer
    %s77 = sadd.s32 1, %s73
  $region7: #{_lambda_.1} parent=0 // loop_footer_branch
    %72 = sbr.rel target = $region3
  $region8: #{_lambda_.1} parent=0 // loop_exit
    _

</llo_original>
